<compile_context>
chip_gen: v7x
topology: tpu7x:2x2x1
jax: 0.10.0
libtpu: 0.0.40
codegen_flags: <defaults>
</compile_context>

<pallas_src>
import jax
import jax.numpy as jnp
from jax import lax
from jax.experimental import pallas as pl
from jax.experimental.pallas import tpu as pltpu


# -----------------------------------------------------------------------------
# Pallas kernel: whole 2-layer LSTM recurrence + final Linear in one invocation.
# -----------------------------------------------------------------------------
def lstm_shakespeare_kernel(
    x_ref,       # (T*Bp, E)   bf16  embedded inputs, time-major, flattened
    wih1_ref,    # (E, 4H)     bf16  layer-1 input weights (transposed)
    whh1_ref,    # (H, 4H)     bf16  layer-1 hidden weights (transposed)
    b1_ref,      # (1, 4H)     f32   layer-1 combined bias (b_ih + b_hh)
    wih2_ref,    # (H, 4H)     bf16  layer-2 input weights (transposed)
    whh2_ref,    # (H, 4H)     bf16  layer-2 hidden weights (transposed)
    b2_ref,      # (1, 4H)     f32   layer-2 combined bias
    wfc_ref,     # (H, Vp)     bf16  fc weights (transposed, vocab-padded)
    bfc_ref,     # (1, Vp)     f32   fc bias (vocab-padded)
    out_ref,     # (Bp, Vp)    f32   logits
):
    Bp = out_ref.shape[0]
    H = whh1_ref.shape[0]
    T = x_ref.shape[0] // Bp

    # Load weights once from VMEM refs.
    whh1 = whh1_ref[...]
    wih2 = wih2_ref[...]
    whh2 = whh2_ref[...]
    b2 = b2_ref[...]

    # Hoisted layer-1 input projection: no recurrent dependency, one matmul.
    gates_in1 = (
        jnp.dot(x_ref[...], wih1_ref[...], preferred_element_type=jnp.float32)
        + b1_ref[...]
    )  # (T*Bp, 4H) f32

    def gate_split(g):
        i = jax.nn.sigmoid(g[:, 0 * H:1 * H])
        f = jax.nn.sigmoid(g[:, 1 * H:2 * H])
        gg = jnp.tanh(g[:, 2 * H:3 * H])
        o = jax.nn.sigmoid(g[:, 3 * H:4 * H])
        return i, f, gg, o

    # Recurrent state: h kept in bf16 (matmul LHS), c kept in f32.
    h1 = jnp.zeros((Bp, H), jnp.bfloat16)
    h2 = jnp.zeros((Bp, H), jnp.bfloat16)
    c1 = jnp.zeros((Bp, H), jnp.float32)
    c2 = jnp.zeros((Bp, H), jnp.float32)

    # Fully unrolled recurrence (T is a small static constant).
    for t in range(T):
        # Layer-2 recurrent contribution first: depends only on previous h2,
        # so it can be pipelined under the layer-1 work for this step.
        g2_hh = jnp.dot(h2, whh2, preferred_element_type=jnp.float32) + b2

        # ---- layer 1 ----
        g1 = (
            gates_in1[t * Bp:(t + 1) * Bp]
            + jnp.dot(h1, whh1, preferred_element_type=jnp.float32)
        )
        i1, f1, gg1, o1 = gate_split(g1)
        c1 = f1 * c1 + i1 * gg1
        h1 = (o1 * jnp.tanh(c1)).astype(jnp.bfloat16)

        # ---- layer 2 (consumes layer-1 output at the same timestep) ----
        g2 = g2_hh + jnp.dot(h1, wih2, preferred_element_type=jnp.float32)
        i2, f2, gg2, o2 = gate_split(g2)
        c2 = f2 * c2 + i2 * gg2
        h2 = (o2 * jnp.tanh(c2)).astype(jnp.bfloat16)

    # Final linear layer on the last hidden state (vocab padded to lane width).
    out_ref[...] = (
        jnp.dot(h2, wfc_ref[...], preferred_element_type=jnp.float32)
        + bfc_ref[...]
    )


# -----------------------------------------------------------------------------
# Wrapper
# -----------------------------------------------------------------------------
def lstm_shakespeare_forward(tokens, params):
    """tokens: (B, T) int32 token ids.  Returns logits (B, vocab) in f32."""
    emb = params["embedding"]                      # (vocab, E) f32
    B, T = tokens.shape
    E = emb.shape[1]
    H = params["whh1_T"].shape[0]
    V = params["wfc_T"].shape[1]

    Bp = ((B + 7) // 8) * 8                        # pad batch to sublane height
    Vp = ((V + 127) // 128) * 128                  # pad vocab to lane width

    # Embedding gather (glue, plain JAX); time-major, batch-padded, flattened.
    x = jnp.take(emb, tokens, axis=0)              # (B, T, E)
    x = jnp.transpose(x, (1, 0, 2))                # (T, B, E)
    x = jnp.pad(x, ((0, 0), (0, Bp - B), (0, 0)))  # (T, Bp, E)
    x = x.reshape(T * Bp, E).astype(jnp.bfloat16)  # (T*Bp, E) bf16

    # bf16 weights (MXU datapath), f32 biases.
    wih1 = params["wih1_T"].astype(jnp.bfloat16)
    whh1 = params["whh1_T"].astype(jnp.bfloat16)
    wih2 = params["wih2_T"].astype(jnp.bfloat16)
    whh2 = params["whh2_T"].astype(jnp.bfloat16)
    wfc = jnp.pad(params["wfc_T"], ((0, 0), (0, Vp - V))).astype(jnp.bfloat16)
    bfc = jnp.pad(params["bfc"], ((0, 0), (0, Vp - V)))          # f32

    full = lambda shape: pl.BlockSpec(shape, lambda i, s=shape: (0,) * len(s))

    out = pl.pallas_call(
        lstm_shakespeare_kernel,
        out_shape=jax.ShapeDtypeStruct((Bp, Vp), jnp.float32),
        grid_spec=pltpu.PrefetchScalarGridSpec(
            num_scalar_prefetch=0,
            grid=(1,),                              # single invocation
            in_specs=[
                full((T * Bp, E)),                  # x
                full((E, 4 * H)),                   # wih1_T
                full((H, 4 * H)),                   # whh1_T
                full((1, 4 * H)),                   # b1
                full((H, 4 * H)),                   # wih2_T
                full((H, 4 * H)),                   # whh2_T
                full((1, 4 * H)),                   # b2
                full((H, Vp)),                      # wfc_T (padded)
                full((1, Vp)),                      # bfc   (padded)
            ],
            out_specs=full((Bp, Vp)),
        ),
        compiler_params=pltpu.CompilerParams(
            dimension_semantics=("arbitrary",),     # sequential recurrence
        ),
    )(
        x,
        wih1, whh1, params["b1"],
        wih2, whh2, params["b2"],
        wfc, bfc,
    )
    return out[:B, :V]


# -----------------------------------------------------------------------------
# Pure-JAX f32 reference (for correctness check)
# -----------------------------------------------------------------------------
def lstm_shakespeare_reference(tokens, params):
    emb = params["embedding"]
    x = jnp.take(emb, tokens, axis=0)              # (B, T, E)
    B, T, E = x.shape
    H = params["whh1_T"].shape[0]

    def cell(x_t, h, c, wih_T, whh_T, b):
        gates = x_t @ wih_T + h @ whh_T + b
        i = jax.nn.sigmoid(gates[:, 0 * H:1 * H])
        f = jax.nn.sigmoid(gates[:, 1 * H:2 * H])
        g = jnp.tanh(gates[:, 2 * H:3 * H])
        o = jax.nn.sigmoid(gates[:, 3 * H:4 * H])
        c_new = f * c + i * g
        h_new = o * jnp.tanh(c_new)
        return h_new, c_new

    def step(carry, x_t):
        h1, c1, h2, c2 = carry
        h1, c1 = cell(x_t, h1, c1, params["wih1_T"], params["whh1_T"], params["b1"])
        h2, c2 = cell(h1, h2, c2, params["wih2_T"], params["whh2_T"], params["b2"])
        return (h1, c1, h2, c2), None

    z = jnp.zeros((B, H), jnp.float32)
    (h1, c1, h2, c2), _ = lax.scan(step, (z, z, z, z),
                                   jnp.transpose(x, (1, 0, 2)))
    return h2 @ params["wfc_T"] + params["bfc"]


# -----------------------------------------------------------------------------
# Deterministic parameter construction (matches nn.Module shapes)
# -----------------------------------------------------------------------------
def make_params(key, vocab_size=90, embedding_dim=8, hidden_size=256):
    E, H, V = embedding_dim, hidden_size, vocab_size
    k = 1.0 / jnp.sqrt(jnp.float32(H))
    keys = jax.random.split(key, 12)
    u = lambda kk, shape, scale: jax.random.uniform(
        kk, shape, jnp.float32, -scale, scale)

    emb = jax.random.normal(keys[0], (V, E), jnp.float32)
    emb = emb.at[0].set(0.0)                       # padding_idx=0 -> zero row

    # PyTorch LSTM params: W_ih (4H, in), W_hh (4H, H), b_ih (4H,), b_hh (4H,)
    wih1 = u(keys[1], (4 * H, E), k)
    whh1 = u(keys[2], (4 * H, H), k)
    b1 = u(keys[3], (4 * H,), k) + u(keys[4], (4 * H,), k)
    wih2 = u(keys[5], (4 * H, H), k)
    whh2 = u(keys[6], (4 * H, H), k)
    b2 = u(keys[7], (4 * H,), k) + u(keys[8], (4 * H,), k)
    # fc: Linear(H, V): W (V, H), b (V,)
    kf = 1.0 / jnp.sqrt(jnp.float32(H))
    wfc = u(keys[9], (V, H), kf)
    bfc = u(keys[10], (V,), kf)

    return {
        "embedding": emb,
        "wih1_T": wih1.T, "whh1_T": whh1.T, "b1": b1[None, :],
        "wih2_T": wih2.T, "whh2_T": whh2.T, "b2": b2[None, :],
        "wfc_T": wfc.T, "bfc": bfc[None, :],
    }


if __name__ == "__main__":
    key = jax.random.PRNGKey(0)
    pkey, tkey = jax.random.split(key)

    VOCAB, E, H = 90, 8, 256
    B, T = 2, 8

    params = make_params(pkey, vocab_size=VOCAB, embedding_dim=E, hidden_size=H)
    tokens = jax.random.randint(tkey, (B, T), 0, VOCAB, dtype=jnp.int32)

    logits = jax.jit(lstm_shakespeare_forward)(tokens, params)
    logits = jax.block_until_ready(logits)

    ref = lstm_shakespeare_reference(tokens, params)
    assert logits.shape == (B, VOCAB)
    # bf16 weights / matmul LHS in the kernel vs f32 reference -> loose tol.
    assert jnp.allclose(logits, ref, atol=3e-2, rtol=3e-2), (
        f"max abs err = {jnp.max(jnp.abs(logits - ref))}")

    print("KERNEL_OK")
</pallas_src>

<mosaic_0001>
module attributes {stable_mosaic.version = 11 : i64} {
  func.func @lstm_shakespeare_kernel(%arg0: i32, %arg1: memref<64x8xbf16, #tpu.memory_space<vmem>>, %arg2: memref<8x1024xbf16, #tpu.memory_space<vmem>>, %arg3: memref<256x1024xbf16, #tpu.memory_space<vmem>>, %arg4: memref<1x1024xf32, #tpu.memory_space<vmem>>, %arg5: memref<256x1024xbf16, #tpu.memory_space<vmem>>, %arg6: memref<256x1024xbf16, #tpu.memory_space<vmem>>, %arg7: memref<1x1024xf32, #tpu.memory_space<vmem>>, %arg8: memref<256x128xbf16, #tpu.memory_space<vmem>>, %arg9: memref<1x128xf32, #tpu.memory_space<vmem>>, %arg10: memref<8x128xf32, #tpu.memory_space<vmem>>) attributes {dimension_semantics = [#tpu.dimension_semantics<arbitrary>], iteration_bounds = array<i64: 1>, scalar_prefetch = 0 : i64, scratch_operands = 0 : i64, tpu.core_type = #tpu.core_type<tc>, window_params = [{pipeline_mode = #tpu.pipeline_mode<synchronous>, transform_indices = @transform_0, window_bounds = array<i64: 64, 8>}, {pipeline_mode = #tpu.pipeline_mode<synchronous>, transform_indices = @transform_1, window_bounds = array<i64: 8, 1024>}, {pipeline_mode = #tpu.pipeline_mode<synchronous>, transform_indices = @transform_2, window_bounds = array<i64: 256, 1024>}, {pipeline_mode = #tpu.pipeline_mode<synchronous>, transform_indices = @transform_3, window_bounds = array<i64: 1, 1024>}, {pipeline_mode = #tpu.pipeline_mode<synchronous>, transform_indices = @transform_4, window_bounds = array<i64: 256, 1024>}, {pipeline_mode = #tpu.pipeline_mode<synchronous>, transform_indices = @transform_5, window_bounds = array<i64: 256, 1024>}, {pipeline_mode = #tpu.pipeline_mode<synchronous>, transform_indices = @transform_6, window_bounds = array<i64: 1, 1024>}, {pipeline_mode = #tpu.pipeline_mode<synchronous>, transform_indices = @transform_7, window_bounds = array<i64: 256, 128>}, {pipeline_mode = #tpu.pipeline_mode<synchronous>, transform_indices = @transform_8, window_bounds = array<i64: 1, 128>}, {pipeline_mode = #tpu.pipeline_mode<synchronous>, transform_indices = @transform_9, window_bounds = array<i64: 8, 128>}]} {
    %c0 = arith.constant 0 : index
    %c0_0 = arith.constant 0 : index
    %0 = vector.load %arg3[%c0, %c0_0] : memref<256x1024xbf16, #tpu.memory_space<vmem>>, vector<256x1024xbf16>
    %c0_1 = arith.constant 0 : index
    %c0_2 = arith.constant 0 : index
    %1 = vector.load %arg5[%c0_1, %c0_2] : memref<256x1024xbf16, #tpu.memory_space<vmem>>, vector<256x1024xbf16>
    %c0_3 = arith.constant 0 : index
    %c0_4 = arith.constant 0 : index
    %2 = vector.load %arg6[%c0_3, %c0_4] : memref<256x1024xbf16, #tpu.memory_space<vmem>>, vector<256x1024xbf16>
    %c0_5 = arith.constant 0 : index
    %c0_6 = arith.constant 0 : index
    %3 = vector.load %arg7[%c0_5, %c0_6] : memref<1x1024xf32, #tpu.memory_space<vmem>>, vector<1x1024xf32>
    %c0_7 = arith.constant 0 : index
    %c0_8 = arith.constant 0 : index
    %4 = vector.load %arg1[%c0_7, %c0_8] : memref<64x8xbf16, #tpu.memory_space<vmem>>, vector<64x8xbf16>
    %c0_9 = arith.constant 0 : index
    %c0_10 = arith.constant 0 : index
    %5 = vector.load %arg2[%c0_9, %c0_10] : memref<8x1024xbf16, #tpu.memory_space<vmem>>, vector<8x1024xbf16>
    %cst = arith.constant dense<0.000000e+00> : vector<64x1024xf32>
    %6 = tpu.matmul %4, %5, %cst {dimension_numbers = #tpu.dot_dimension_numbers<[1], [0], [0], [1], [0, 0, 1, 1], [], []>} : vector<64x8xbf16>, vector<8x1024xbf16>, vector<64x1024xf32> -> vector<64x1024xf32>
    %c0_11 = arith.constant 0 : index
    %c0_12 = arith.constant 0 : index
    %7 = vector.load %arg4[%c0_11, %c0_12] : memref<1x1024xf32, #tpu.memory_space<vmem>>, vector<1x1024xf32>
    %8 = vector.broadcast %7 : vector<1x1024xf32> to vector<64x1024xf32>
    %9 = arith.addf %6, %8 : vector<64x1024xf32>
    %cst_13 = arith.constant 0.000000e+00 : bf16
    %10 = vector.broadcast %cst_13 : bf16 to vector<8x256xbf16>
    %cst_14 = arith.constant 0.000000e+00 : bf16
    %11 = vector.broadcast %cst_14 : bf16 to vector<8x256xbf16>
    %cst_15 = arith.constant 0.000000e+00 : f32
    %12 = vector.broadcast %cst_15 : f32 to vector<8x256xf32>
    %cst_16 = arith.constant 0.000000e+00 : f32
    %13 = vector.broadcast %cst_16 : f32 to vector<8x256xf32>
    %cst_17 = arith.constant dense<0.000000e+00> : vector<8x1024xf32>
    %14 = tpu.matmul %11, %2, %cst_17 {dimension_numbers = #tpu.dot_dimension_numbers<[1], [0], [0], [1], [0, 0, 1, 1], [], []>} : vector<8x256xbf16>, vector<256x1024xbf16>, vector<8x1024xf32> -> vector<8x1024xf32>
    %15 = vector.broadcast %3 : vector<1x1024xf32> to vector<8x1024xf32>
    %16 = arith.addf %14, %15 : vector<8x1024xf32>
    %17 = vector.extract_strided_slice %9 {offsets = [0, 0], sizes = [8, 1024], strides = [1, 1]} : vector<64x1024xf32> to vector<8x1024xf32>
    %cst_18 = arith.constant dense<0.000000e+00> : vector<8x1024xf32>
    %18 = tpu.matmul %10, %0, %cst_18 {dimension_numbers = #tpu.dot_dimension_numbers<[1], [0], [0], [1], [0, 0, 1, 1], [], []>} : vector<8x256xbf16>, vector<256x1024xbf16>, vector<8x1024xf32> -> vector<8x1024xf32>
    %19 = arith.addf %17, %18 : vector<8x1024xf32>
    %20 = vector.extract_strided_slice %19 {offsets = [0, 0], sizes = [8, 256], strides = [1, 1]} : vector<8x1024xf32> to vector<8x256xf32>
    %21 = arith.negf %20 : vector<8x256xf32>
    %22 = math.exp %21 : vector<8x256xf32>
    %cst_19 = arith.constant 1.000000e+00 : f32
    %23 = vector.broadcast %cst_19 : f32 to vector<8x256xf32>
    %24 = arith.addf %23, %22 : vector<8x256xf32>
    %25 = arith.divf %23, %24 : vector<8x256xf32>
    %26 = vector.extract_strided_slice %19 {offsets = [0, 256], sizes = [8, 256], strides = [1, 1]} : vector<8x1024xf32> to vector<8x256xf32>
    %27 = arith.negf %26 : vector<8x256xf32>
    %28 = math.exp %27 : vector<8x256xf32>
    %cst_20 = arith.constant 1.000000e+00 : f32
    %29 = vector.broadcast %cst_20 : f32 to vector<8x256xf32>
    %30 = arith.addf %29, %28 : vector<8x256xf32>
    %31 = arith.divf %29, %30 : vector<8x256xf32>
    %32 = vector.extract_strided_slice %19 {offsets = [0, 512], sizes = [8, 256], strides = [1, 1]} : vector<8x1024xf32> to vector<8x256xf32>
    %33 = math.tanh %32 : vector<8x256xf32>
    %34 = vector.extract_strided_slice %19 {offsets = [0, 768], sizes = [8, 256], strides = [1, 1]} : vector<8x1024xf32> to vector<8x256xf32>
    %35 = arith.negf %34 : vector<8x256xf32>
    %36 = math.exp %35 : vector<8x256xf32>
    %cst_21 = arith.constant 1.000000e+00 : f32
    %37 = vector.broadcast %cst_21 : f32 to vector<8x256xf32>
    %38 = arith.addf %37, %36 : vector<8x256xf32>
    %39 = arith.divf %37, %38 : vector<8x256xf32>
    %40 = arith.mulf %31, %12 : vector<8x256xf32>
    %41 = arith.mulf %25, %33 : vector<8x256xf32>
    %42 = arith.addf %40, %41 : vector<8x256xf32>
    %43 = math.tanh %42 : vector<8x256xf32>
    %44 = arith.mulf %39, %43 : vector<8x256xf32>
    %45 = arith.truncf %44 : vector<8x256xf32> to vector<8x256xbf16>
    %cst_22 = arith.constant dense<0.000000e+00> : vector<8x1024xf32>
    %46 = tpu.matmul %45, %1, %cst_22 {dimension_numbers = #tpu.dot_dimension_numbers<[1], [0], [0], [1], [0, 0, 1, 1], [], []>} : vector<8x256xbf16>, vector<256x1024xbf16>, vector<8x1024xf32> -> vector<8x1024xf32>
    %47 = arith.addf %16, %46 : vector<8x1024xf32>
    %48 = vector.extract_strided_slice %47 {offsets = [0, 0], sizes = [8, 256], strides = [1, 1]} : vector<8x1024xf32> to vector<8x256xf32>
    %49 = arith.negf %48 : vector<8x256xf32>
    %50 = math.exp %49 : vector<8x256xf32>
    %cst_23 = arith.constant 1.000000e+00 : f32
    %51 = vector.broadcast %cst_23 : f32 to vector<8x256xf32>
    %52 = arith.addf %51, %50 : vector<8x256xf32>
    %53 = arith.divf %51, %52 : vector<8x256xf32>
    %54 = vector.extract_strided_slice %47 {offsets = [0, 256], sizes = [8, 256], strides = [1, 1]} : vector<8x1024xf32> to vector<8x256xf32>
    %55 = arith.negf %54 : vector<8x256xf32>
    %56 = math.exp %55 : vector<8x256xf32>
    %cst_24 = arith.constant 1.000000e+00 : f32
    %57 = vector.broadcast %cst_24 : f32 to vector<8x256xf32>
    %58 = arith.addf %57, %56 : vector<8x256xf32>
    %59 = arith.divf %57, %58 : vector<8x256xf32>
    %60 = vector.extract_strided_slice %47 {offsets = [0, 512], sizes = [8, 256], strides = [1, 1]} : vector<8x1024xf32> to vector<8x256xf32>
    %61 = math.tanh %60 : vector<8x256xf32>
    %62 = vector.extract_strided_slice %47 {offsets = [0, 768], sizes = [8, 256], strides = [1, 1]} : vector<8x1024xf32> to vector<8x256xf32>
    %63 = arith.negf %62 : vector<8x256xf32>
    %64 = math.exp %63 : vector<8x256xf32>
    %cst_25 = arith.constant 1.000000e+00 : f32
    %65 = vector.broadcast %cst_25 : f32 to vector<8x256xf32>
    %66 = arith.addf %65, %64 : vector<8x256xf32>
    %67 = arith.divf %65, %66 : vector<8x256xf32>
    %68 = arith.mulf %59, %13 : vector<8x256xf32>
    %69 = arith.mulf %53, %61 : vector<8x256xf32>
    %70 = arith.addf %68, %69 : vector<8x256xf32>
    %71 = math.tanh %70 : vector<8x256xf32>
    %72 = arith.mulf %67, %71 : vector<8x256xf32>
    %73 = arith.truncf %72 : vector<8x256xf32> to vector<8x256xbf16>
    %cst_26 = arith.constant dense<0.000000e+00> : vector<8x1024xf32>
    %74 = tpu.matmul %73, %2, %cst_26 {dimension_numbers = #tpu.dot_dimension_numbers<[1], [0], [0], [1], [0, 0, 1, 1], [], []>} : vector<8x256xbf16>, vector<256x1024xbf16>, vector<8x1024xf32> -> vector<8x1024xf32>
    %75 = vector.broadcast %3 : vector<1x1024xf32> to vector<8x1024xf32>
    %76 = arith.addf %74, %75 : vector<8x1024xf32>
    %77 = vector.extract_strided_slice %9 {offsets = [8, 0], sizes = [8, 1024], strides = [1, 1]} : vector<64x1024xf32> to vector<8x1024xf32>
    %cst_27 = arith.constant dense<0.000000e+00> : vector<8x1024xf32>
    %78 = tpu.matmul %45, %0, %cst_27 {dimension_numbers = #tpu.dot_dimension_numbers<[1], [0], [0], [1], [0, 0, 1, 1], [], []>} : vector<8x256xbf16>, vector<256x1024xbf16>, vector<8x1024xf32> -> vector<8x1024xf32>
    %79 = arith.addf %77, %78 : vector<8x1024xf32>
    %80 = vector.extract_strided_slice %79 {offsets = [0, 0], sizes = [8, 256], strides = [1, 1]} : vector<8x1024xf32> to vector<8x256xf32>
    %81 = arith.negf %80 : vector<8x256xf32>
    %82 = math.exp %81 : vector<8x256xf32>
    %cst_28 = arith.constant 1.000000e+00 : f32
    %83 = vector.broadcast %cst_28 : f32 to vector<8x256xf32>
    %84 = arith.addf %83, %82 : vector<8x256xf32>
    %85 = arith.divf %83, %84 : vector<8x256xf32>
    %86 = vector.extract_strided_slice %79 {offsets = [0, 256], sizes = [8, 256], strides = [1, 1]} : vector<8x1024xf32> to vector<8x256xf32>
    %87 = arith.negf %86 : vector<8x256xf32>
    %88 = math.exp %87 : vector<8x256xf32>
    %cst_29 = arith.constant 1.000000e+00 : f32
    %89 = vector.broadcast %cst_29 : f32 to vector<8x256xf32>
    %90 = arith.addf %89, %88 : vector<8x256xf32>
    %91 = arith.divf %89, %90 : vector<8x256xf32>
    %92 = vector.extract_strided_slice %79 {offsets = [0, 512], sizes = [8, 256], strides = [1, 1]} : vector<8x1024xf32> to vector<8x256xf32>
    %93 = math.tanh %92 : vector<8x256xf32>
    %94 = vector.extract_strided_slice %79 {offsets = [0, 768], sizes = [8, 256], strides = [1, 1]} : vector<8x1024xf32> to vector<8x256xf32>
    %95 = arith.negf %94 : vector<8x256xf32>
    %96 = math.exp %95 : vector<8x256xf32>
    %cst_30 = arith.constant 1.000000e+00 : f32
    %97 = vector.broadcast %cst_30 : f32 to vector<8x256xf32>
    %98 = arith.addf %97, %96 : vector<8x256xf32>
    %99 = arith.divf %97, %98 : vector<8x256xf32>
    %100 = arith.mulf %91, %42 : vector<8x256xf32>
    %101 = arith.mulf %85, %93 : vector<8x256xf32>
    %102 = arith.addf %100, %101 : vector<8x256xf32>
    %103 = math.tanh %102 : vector<8x256xf32>
    %104 = arith.mulf %99, %103 : vector<8x256xf32>
    %105 = arith.truncf %104 : vector<8x256xf32> to vector<8x256xbf16>
    %cst_31 = arith.constant dense<0.000000e+00> : vector<8x1024xf32>
    %106 = tpu.matmul %105, %1, %cst_31 {dimension_numbers = #tpu.dot_dimension_numbers<[1], [0], [0], [1], [0, 0, 1, 1], [], []>} : vector<8x256xbf16>, vector<256x1024xbf16>, vector<8x1024xf32> -> vector<8x1024xf32>
    %107 = arith.addf %76, %106 : vector<8x1024xf32>
    %108 = vector.extract_strided_slice %107 {offsets = [0, 0], sizes = [8, 256], strides = [1, 1]} : vector<8x1024xf32> to vector<8x256xf32>
    %109 = arith.negf %108 : vector<8x256xf32>
    %110 = math.exp %109 : vector<8x256xf32>
    %cst_32 = arith.constant 1.000000e+00 : f32
    %111 = vector.broadcast %cst_32 : f32 to vector<8x256xf32>
    %112 = arith.addf %111, %110 : vector<8x256xf32>
    %113 = arith.divf %111, %112 : vector<8x256xf32>
    %114 = vector.extract_strided_slice %107 {offsets = [0, 256], sizes = [8, 256], strides = [1, 1]} : vector<8x1024xf32> to vector<8x256xf32>
    %115 = arith.negf %114 : vector<8x256xf32>
    %116 = math.exp %115 : vector<8x256xf32>
    %cst_33 = arith.constant 1.000000e+00 : f32
    %117 = vector.broadcast %cst_33 : f32 to vector<8x256xf32>
    %118 = arith.addf %117, %116 : vector<8x256xf32>
    %119 = arith.divf %117, %118 : vector<8x256xf32>
    %120 = vector.extract_strided_slice %107 {offsets = [0, 512], sizes = [8, 256], strides = [1, 1]} : vector<8x1024xf32> to vector<8x256xf32>
    %121 = math.tanh %120 : vector<8x256xf32>
    %122 = vector.extract_strided_slice %107 {offsets = [0, 768], sizes = [8, 256], strides = [1, 1]} : vector<8x1024xf32> to vector<8x256xf32>
    %123 = arith.negf %122 : vector<8x256xf32>
    %124 = math.exp %123 : vector<8x256xf32>
    %cst_34 = arith.constant 1.000000e+00 : f32
    %125 = vector.broadcast %cst_34 : f32 to vector<8x256xf32>
    %126 = arith.addf %125, %124 : vector<8x256xf32>
    %127 = arith.divf %125, %126 : vector<8x256xf32>
    %128 = arith.mulf %119, %70 : vector<8x256xf32>
    %129 = arith.mulf %113, %121 : vector<8x256xf32>
    %130 = arith.addf %128, %129 : vector<8x256xf32>
    %131 = math.tanh %130 : vector<8x256xf32>
    %132 = arith.mulf %127, %131 : vector<8x256xf32>
    %133 = arith.truncf %132 : vector<8x256xf32> to vector<8x256xbf16>
    %cst_35 = arith.constant dense<0.000000e+00> : vector<8x1024xf32>
    %134 = tpu.matmul %133, %2, %cst_35 {dimension_numbers = #tpu.dot_dimension_numbers<[1], [0], [0], [1], [0, 0, 1, 1], [], []>} : vector<8x256xbf16>, vector<256x1024xbf16>, vector<8x1024xf32> -> vector<8x1024xf32>
    %135 = vector.broadcast %3 : vector<1x1024xf32> to vector<8x1024xf32>
    %136 = arith.addf %134, %135 : vector<8x1024xf32>
    %137 = vector.extract_strided_slice %9 {offsets = [16, 0], sizes = [8, 1024], strides = [1, 1]} : vector<64x1024xf32> to vector<8x1024xf32>
    %cst_36 = arith.constant dense<0.000000e+00> : vector<8x1024xf32>
    %138 = tpu.matmul %105, %0, %cst_36 {dimension_numbers = #tpu.dot_dimension_numbers<[1], [0], [0], [1], [0, 0, 1, 1], [], []>} : vector<8x256xbf16>, vector<256x1024xbf16>, vector<8x1024xf32> -> vector<8x1024xf32>
    %139 = arith.addf %137, %138 : vector<8x1024xf32>
    %140 = vector.extract_strided_slice %139 {offsets = [0, 0], sizes = [8, 256], strides = [1, 1]} : vector<8x1024xf32> to vector<8x256xf32>
    %141 = arith.negf %140 : vector<8x256xf32>
    %142 = math.exp %141 : vector<8x256xf32>
    %cst_37 = arith.constant 1.000000e+00 : f32
    %143 = vector.broadcast %cst_37 : f32 to vector<8x256xf32>
    %144 = arith.addf %143, %142 : vector<8x256xf32>
    %145 = arith.divf %143, %144 : vector<8x256xf32>
    %146 = vector.extract_strided_slice %139 {offsets = [0, 256], sizes = [8, 256], strides = [1, 1]} : vector<8x1024xf32> to vector<8x256xf32>
    %147 = arith.negf %146 : vector<8x256xf32>
    %148 = math.exp %147 : vector<8x256xf32>
    %cst_38 = arith.constant 1.000000e+00 : f32
    %149 = vector.broadcast %cst_38 : f32 to vector<8x256xf32>
    %150 = arith.addf %149, %148 : vector<8x256xf32>
    %151 = arith.divf %149, %150 : vector<8x256xf32>
    %152 = vector.extract_strided_slice %139 {offsets = [0, 512], sizes = [8, 256], strides = [1, 1]} : vector<8x1024xf32> to vector<8x256xf32>
    %153 = math.tanh %152 : vector<8x256xf32>
    %154 = vector.extract_strided_slice %139 {offsets = [0, 768], sizes = [8, 256], strides = [1, 1]} : vector<8x1024xf32> to vector<8x256xf32>
    %155 = arith.negf %154 : vector<8x256xf32>
    %156 = math.exp %155 : vector<8x256xf32>
    %cst_39 = arith.constant 1.000000e+00 : f32
    %157 = vector.broadcast %cst_39 : f32 to vector<8x256xf32>
    %158 = arith.addf %157, %156 : vector<8x256xf32>
    %159 = arith.divf %157, %158 : vector<8x256xf32>
    %160 = arith.mulf %151, %102 : vector<8x256xf32>
    %161 = arith.mulf %145, %153 : vector<8x256xf32>
    %162 = arith.addf %160, %161 : vector<8x256xf32>
    %163 = math.tanh %162 : vector<8x256xf32>
    %164 = arith.mulf %159, %163 : vector<8x256xf32>
    %165 = arith.truncf %164 : vector<8x256xf32> to vector<8x256xbf16>
    %cst_40 = arith.constant dense<0.000000e+00> : vector<8x1024xf32>
    %166 = tpu.matmul %165, %1, %cst_40 {dimension_numbers = #tpu.dot_dimension_numbers<[1], [0], [0], [1], [0, 0, 1, 1], [], []>} : vector<8x256xbf16>, vector<256x1024xbf16>, vector<8x1024xf32> -> vector<8x1024xf32>
    %167 = arith.addf %136, %166 : vector<8x1024xf32>
    %168 = vector.extract_strided_slice %167 {offsets = [0, 0], sizes = [8, 256], strides = [1, 1]} : vector<8x1024xf32> to vector<8x256xf32>
    %169 = arith.negf %168 : vector<8x256xf32>
    %170 = math.exp %169 : vector<8x256xf32>
    %cst_41 = arith.constant 1.000000e+00 : f32
    %171 = vector.broadcast %cst_41 : f32 to vector<8x256xf32>
    %172 = arith.addf %171, %170 : vector<8x256xf32>
    %173 = arith.divf %171, %172 : vector<8x256xf32>
    %174 = vector.extract_strided_slice %167 {offsets = [0, 256], sizes = [8, 256], strides = [1, 1]} : vector<8x1024xf32> to vector<8x256xf32>
    %175 = arith.negf %174 : vector<8x256xf32>
    %176 = math.exp %175 : vector<8x256xf32>
    %cst_42 = arith.constant 1.000000e+00 : f32
    %177 = vector.broadcast %cst_42 : f32 to vector<8x256xf32>
    %178 = arith.addf %177, %176 : vector<8x256xf32>
    %179 = arith.divf %177, %178 : vector<8x256xf32>
    %180 = vector.extract_strided_slice %167 {offsets = [0, 512], sizes = [8, 256], strides = [1, 1]} : vector<8x1024xf32> to vector<8x256xf32>
    %181 = math.tanh %180 : vector<8x256xf32>
    %182 = vector.extract_strided_slice %167 {offsets = [0, 768], sizes = [8, 256], strides = [1, 1]} : vector<8x1024xf32> to vector<8x256xf32>
    %183 = arith.negf %182 : vector<8x256xf32>
    %184 = math.exp %183 : vector<8x256xf32>
    %cst_43 = arith.constant 1.000000e+00 : f32
    %185 = vector.broadcast %cst_43 : f32 to vector<8x256xf32>
    %186 = arith.addf %185, %184 : vector<8x256xf32>
    %187 = arith.divf %185, %186 : vector<8x256xf32>
    %188 = arith.mulf %179, %130 : vector<8x256xf32>
    %189 = arith.mulf %173, %181 : vector<8x256xf32>
    %190 = arith.addf %188, %189 : vector<8x256xf32>
    %191 = math.tanh %190 : vector<8x256xf32>
    %192 = arith.mulf %187, %191 : vector<8x256xf32>
    %193 = arith.truncf %192 : vector<8x256xf32> to vector<8x256xbf16>
    %cst_44 = arith.constant dense<0.000000e+00> : vector<8x1024xf32>
    %194 = tpu.matmul %193, %2, %cst_44 {dimension_numbers = #tpu.dot_dimension_numbers<[1], [0], [0], [1], [0, 0, 1, 1], [], []>} : vector<8x256xbf16>, vector<256x1024xbf16>, vector<8x1024xf32> -> vector<8x1024xf32>
    %195 = vector.broadcast %3 : vector<1x1024xf32> to vector<8x1024xf32>
    %196 = arith.addf %194, %195 : vector<8x1024xf32>
    %197 = vector.extract_strided_slice %9 {offsets = [24, 0], sizes = [8, 1024], strides = [1, 1]} : vector<64x1024xf32> to vector<8x1024xf32>
    %cst_45 = arith.constant dense<0.000000e+00> : vector<8x1024xf32>
    %198 = tpu.matmul %165, %0, %cst_45 {dimension_numbers = #tpu.dot_dimension_numbers<[1], [0], [0], [1], [0, 0, 1, 1], [], []>} : vector<8x256xbf16>, vector<256x1024xbf16>, vector<8x1024xf32> -> vector<8x1024xf32>
    %199 = arith.addf %197, %198 : vector<8x1024xf32>
    %200 = vector.extract_strided_slice %199 {offsets = [0, 0], sizes = [8, 256], strides = [1, 1]} : vector<8x1024xf32> to vector<8x256xf32>
    %201 = arith.negf %200 : vector<8x256xf32>
    %202 = math.exp %201 : vector<8x256xf32>
    %cst_46 = arith.constant 1.000000e+00 : f32
    %203 = vector.broadcast %cst_46 : f32 to vector<8x256xf32>
    %204 = arith.addf %203, %202 : vector<8x256xf32>
    %205 = arith.divf %203, %204 : vector<8x256xf32>
    %206 = vector.extract_strided_slice %199 {offsets = [0, 256], sizes = [8, 256], strides = [1, 1]} : vector<8x1024xf32> to vector<8x256xf32>
    %207 = arith.negf %206 : vector<8x256xf32>
    %208 = math.exp %207 : vector<8x256xf32>
    %cst_47 = arith.constant 1.000000e+00 : f32
    %209 = vector.broadcast %cst_47 : f32 to vector<8x256xf32>
    %210 = arith.addf %209, %208 : vector<8x256xf32>
    %211 = arith.divf %209, %210 : vector<8x256xf32>
    %212 = vector.extract_strided_slice %199 {offsets = [0, 512], sizes = [8, 256], strides = [1, 1]} : vector<8x1024xf32> to vector<8x256xf32>
    %213 = math.tanh %212 : vector<8x256xf32>
    %214 = vector.extract_strided_slice %199 {offsets = [0, 768], sizes = [8, 256], strides = [1, 1]} : vector<8x1024xf32> to vector<8x256xf32>
    %215 = arith.negf %214 : vector<8x256xf32>
    %216 = math.exp %215 : vector<8x256xf32>
    %cst_48 = arith.constant 1.000000e+00 : f32
    %217 = vector.broadcast %cst_48 : f32 to vector<8x256xf32>
    %218 = arith.addf %217, %216 : vector<8x256xf32>
    %219 = arith.divf %217, %218 : vector<8x256xf32>
    %220 = arith.mulf %211, %162 : vector<8x256xf32>
    %221 = arith.mulf %205, %213 : vector<8x256xf32>
    %222 = arith.addf %220, %221 : vector<8x256xf32>
    %223 = math.tanh %222 : vector<8x256xf32>
    %224 = arith.mulf %219, %223 : vector<8x256xf32>
    %225 = arith.truncf %224 : vector<8x256xf32> to vector<8x256xbf16>
    %cst_49 = arith.constant dense<0.000000e+00> : vector<8x1024xf32>
    %226 = tpu.matmul %225, %1, %cst_49 {dimension_numbers = #tpu.dot_dimension_numbers<[1], [0], [0], [1], [0, 0, 1, 1], [], []>} : vector<8x256xbf16>, vector<256x1024xbf16>, vector<8x1024xf32> -> vector<8x1024xf32>
    %227 = arith.addf %196, %226 : vector<8x1024xf32>
    %228 = vector.extract_strided_slice %227 {offsets = [0, 0], sizes = [8, 256], strides = [1, 1]} : vector<8x1024xf32> to vector<8x256xf32>
    %229 = arith.negf %228 : vector<8x256xf32>
    %230 = math.exp %229 : vector<8x256xf32>
    %cst_50 = arith.constant 1.000000e+00 : f32
    %231 = vector.broadcast %cst_50 : f32 to vector<8x256xf32>
    %232 = arith.addf %231, %230 : vector<8x256xf32>
    %233 = arith.divf %231, %232 : vector<8x256xf32>
    %234 = vector.extract_strided_slice %227 {offsets = [0, 256], sizes = [8, 256], strides = [1, 1]} : vector<8x1024xf32> to vector<8x256xf32>
    %235 = arith.negf %234 : vector<8x256xf32>
    %236 = math.exp %235 : vector<8x256xf32>
    %cst_51 = arith.constant 1.000000e+00 : f32
    %237 = vector.broadcast %cst_51 : f32 to vector<8x256xf32>
    %238 = arith.addf %237, %236 : vector<8x256xf32>
    %239 = arith.divf %237, %238 : vector<8x256xf32>
    %240 = vector.extract_strided_slice %227 {offsets = [0, 512], sizes = [8, 256], strides = [1, 1]} : vector<8x1024xf32> to vector<8x256xf32>
    %241 = math.tanh %240 : vector<8x256xf32>
    %242 = vector.extract_strided_slice %227 {offsets = [0, 768], sizes = [8, 256], strides = [1, 1]} : vector<8x1024xf32> to vector<8x256xf32>
    %243 = arith.negf %242 : vector<8x256xf32>
    %244 = math.exp %243 : vector<8x256xf32>
    %cst_52 = arith.constant 1.000000e+00 : f32
    %245 = vector.broadcast %cst_52 : f32 to vector<8x256xf32>
    %246 = arith.addf %245, %244 : vector<8x256xf32>
    %247 = arith.divf %245, %246 : vector<8x256xf32>
    %248 = arith.mulf %239, %190 : vector<8x256xf32>
    %249 = arith.mulf %233, %241 : vector<8x256xf32>
    %250 = arith.addf %248, %249 : vector<8x256xf32>
    %251 = math.tanh %250 : vector<8x256xf32>
    %252 = arith.mulf %247, %251 : vector<8x256xf32>
    %253 = arith.truncf %252 : vector<8x256xf32> to vector<8x256xbf16>
    %cst_53 = arith.constant dense<0.000000e+00> : vector<8x1024xf32>
    %254 = tpu.matmul %253, %2, %cst_53 {dimension_numbers = #tpu.dot_dimension_numbers<[1], [0], [0], [1], [0, 0, 1, 1], [], []>} : vector<8x256xbf16>, vector<256x1024xbf16>, vector<8x1024xf32> -> vector<8x1024xf32>
    %255 = vector.broadcast %3 : vector<1x1024xf32> to vector<8x1024xf32>
    %256 = arith.addf %254, %255 : vector<8x1024xf32>
    %257 = vector.extract_strided_slice %9 {offsets = [32, 0], sizes = [8, 1024], strides = [1, 1]} : vector<64x1024xf32> to vector<8x1024xf32>
    %cst_54 = arith.constant dense<0.000000e+00> : vector<8x1024xf32>
    %258 = tpu.matmul %225, %0, %cst_54 {dimension_numbers = #tpu.dot_dimension_numbers<[1], [0], [0], [1], [0, 0, 1, 1], [], []>} : vector<8x256xbf16>, vector<256x1024xbf16>, vector<8x1024xf32> -> vector<8x1024xf32>
    %259 = arith.addf %257, %258 : vector<8x1024xf32>
    %260 = vector.extract_strided_slice %259 {offsets = [0, 0], sizes = [8, 256], strides = [1, 1]} : vector<8x1024xf32> to vector<8x256xf32>
    %261 = arith.negf %260 : vector<8x256xf32>
    %262 = math.exp %261 : vector<8x256xf32>
    %cst_55 = arith.constant 1.000000e+00 : f32
    %263 = vector.broadcast %cst_55 : f32 to vector<8x256xf32>
    %264 = arith.addf %263, %262 : vector<8x256xf32>
    %265 = arith.divf %263, %264 : vector<8x256xf32>
    %266 = vector.extract_strided_slice %259 {offsets = [0, 256], sizes = [8, 256], strides = [1, 1]} : vector<8x1024xf32> to vector<8x256xf32>
    %267 = arith.negf %266 : vector<8x256xf32>
    %268 = math.exp %267 : vector<8x256xf32>
    %cst_56 = arith.constant 1.000000e+00 : f32
    %269 = vector.broadcast %cst_56 : f32 to vector<8x256xf32>
    %270 = arith.addf %269, %268 : vector<8x256xf32>
    %271 = arith.divf %269, %270 : vector<8x256xf32>
    %272 = vector.extract_strided_slice %259 {offsets = [0, 512], sizes = [8, 256], strides = [1, 1]} : vector<8x1024xf32> to vector<8x256xf32>
    %273 = math.tanh %272 : vector<8x256xf32>
    %274 = vector.extract_strided_slice %259 {offsets = [0, 768], sizes = [8, 256], strides = [1, 1]} : vector<8x1024xf32> to vector<8x256xf32>
    %275 = arith.negf %274 : vector<8x256xf32>
    %276 = math.exp %275 : vector<8x256xf32>
    %cst_57 = arith.constant 1.000000e+00 : f32
    %277 = vector.broadcast %cst_57 : f32 to vector<8x256xf32>
    %278 = arith.addf %277, %276 : vector<8x256xf32>
    %279 = arith.divf %277, %278 : vector<8x256xf32>
    %280 = arith.mulf %271, %222 : vector<8x256xf32>
    %281 = arith.mulf %265, %273 : vector<8x256xf32>
    %282 = arith.addf %280, %281 : vector<8x256xf32>
    %283 = math.tanh %282 : vector<8x256xf32>
    %284 = arith.mulf %279, %283 : vector<8x256xf32>
    %285 = arith.truncf %284 : vector<8x256xf32> to vector<8x256xbf16>
    %cst_58 = arith.constant dense<0.000000e+00> : vector<8x1024xf32>
    %286 = tpu.matmul %285, %1, %cst_58 {dimension_numbers = #tpu.dot_dimension_numbers<[1], [0], [0], [1], [0, 0, 1, 1], [], []>} : vector<8x256xbf16>, vector<256x1024xbf16>, vector<8x1024xf32> -> vector<8x1024xf32>
    %287 = arith.addf %256, %286 : vector<8x1024xf32>
    %288 = vector.extract_strided_slice %287 {offsets = [0, 0], sizes = [8, 256], strides = [1, 1]} : vector<8x1024xf32> to vector<8x256xf32>
    %289 = arith.negf %288 : vector<8x256xf32>
    %290 = math.exp %289 : vector<8x256xf32>
    %cst_59 = arith.constant 1.000000e+00 : f32
    %291 = vector.broadcast %cst_59 : f32 to vector<8x256xf32>
    %292 = arith.addf %291, %290 : vector<8x256xf32>
    %293 = arith.divf %291, %292 : vector<8x256xf32>
    %294 = vector.extract_strided_slice %287 {offsets = [0, 256], sizes = [8, 256], strides = [1, 1]} : vector<8x1024xf32> to vector<8x256xf32>
    %295 = arith.negf %294 : vector<8x256xf32>
    %296 = math.exp %295 : vector<8x256xf32>
    %cst_60 = arith.constant 1.000000e+00 : f32
    %297 = vector.broadcast %cst_60 : f32 to vector<8x256xf32>
    %298 = arith.addf %297, %296 : vector<8x256xf32>
    %299 = arith.divf %297, %298 : vector<8x256xf32>
    %300 = vector.extract_strided_slice %287 {offsets = [0, 512], sizes = [8, 256], strides = [1, 1]} : vector<8x1024xf32> to vector<8x256xf32>
    %301 = math.tanh %300 : vector<8x256xf32>
    %302 = vector.extract_strided_slice %287 {offsets = [0, 768], sizes = [8, 256], strides = [1, 1]} : vector<8x1024xf32> to vector<8x256xf32>
    %303 = arith.negf %302 : vector<8x256xf32>
    %304 = math.exp %303 : vector<8x256xf32>
    %cst_61 = arith.constant 1.000000e+00 : f32
    %305 = vector.broadcast %cst_61 : f32 to vector<8x256xf32>
    %306 = arith.addf %305, %304 : vector<8x256xf32>
    %307 = arith.divf %305, %306 : vector<8x256xf32>
    %308 = arith.mulf %299, %250 : vector<8x256xf32>
    %309 = arith.mulf %293, %301 : vector<8x256xf32>
    %310 = arith.addf %308, %309 : vector<8x256xf32>
    %311 = math.tanh %310 : vector<8x256xf32>
    %312 = arith.mulf %307, %311 : vector<8x256xf32>
    %313 = arith.truncf %312 : vector<8x256xf32> to vector<8x256xbf16>
    %cst_62 = arith.constant dense<0.000000e+00> : vector<8x1024xf32>
    %314 = tpu.matmul %313, %2, %cst_62 {dimension_numbers = #tpu.dot_dimension_numbers<[1], [0], [0], [1], [0, 0, 1, 1], [], []>} : vector<8x256xbf16>, vector<256x1024xbf16>, vector<8x1024xf32> -> vector<8x1024xf32>
    %315 = vector.broadcast %3 : vector<1x1024xf32> to vector<8x1024xf32>
    %316 = arith.addf %314, %315 : vector<8x1024xf32>
    %317 = vector.extract_strided_slice %9 {offsets = [40, 0], sizes = [8, 1024], strides = [1, 1]} : vector<64x1024xf32> to vector<8x1024xf32>
    %cst_63 = arith.constant dense<0.000000e+00> : vector<8x1024xf32>
    %318 = tpu.matmul %285, %0, %cst_63 {dimension_numbers = #tpu.dot_dimension_numbers<[1], [0], [0], [1], [0, 0, 1, 1], [], []>} : vector<8x256xbf16>, vector<256x1024xbf16>, vector<8x1024xf32> -> vector<8x1024xf32>
    %319 = arith.addf %317, %318 : vector<8x1024xf32>
    %320 = vector.extract_strided_slice %319 {offsets = [0, 0], sizes = [8, 256], strides = [1, 1]} : vector<8x1024xf32> to vector<8x256xf32>
    %321 = arith.negf %320 : vector<8x256xf32>
    %322 = math.exp %321 : vector<8x256xf32>
    %cst_64 = arith.constant 1.000000e+00 : f32
    %323 = vector.broadcast %cst_64 : f32 to vector<8x256xf32>
    %324 = arith.addf %323, %322 : vector<8x256xf32>
    %325 = arith.divf %323, %324 : vector<8x256xf32>
    %326 = vector.extract_strided_slice %319 {offsets = [0, 256], sizes = [8, 256], strides = [1, 1]} : vector<8x1024xf32> to vector<8x256xf32>
    %327 = arith.negf %326 : vector<8x256xf32>
    %328 = math.exp %327 : vector<8x256xf32>
    %cst_65 = arith.constant 1.000000e+00 : f32
    %329 = vector.broadcast %cst_65 : f32 to vector<8x256xf32>
    %330 = arith.addf %329, %328 : vector<8x256xf32>
    %331 = arith.divf %329, %330 : vector<8x256xf32>
    %332 = vector.extract_strided_slice %319 {offsets = [0, 512], sizes = [8, 256], strides = [1, 1]} : vector<8x1024xf32> to vector<8x256xf32>
    %333 = math.tanh %332 : vector<8x256xf32>
    %334 = vector.extract_strided_slice %319 {offsets = [0, 768], sizes = [8, 256], strides = [1, 1]} : vector<8x1024xf32> to vector<8x256xf32>
    %335 = arith.negf %334 : vector<8x256xf32>
    %336 = math.exp %335 : vector<8x256xf32>
    %cst_66 = arith.constant 1.000000e+00 : f32
    %337 = vector.broadcast %cst_66 : f32 to vector<8x256xf32>
    %338 = arith.addf %337, %336 : vector<8x256xf32>
    %339 = arith.divf %337, %338 : vector<8x256xf32>
    %340 = arith.mulf %331, %282 : vector<8x256xf32>
    %341 = arith.mulf %325, %333 : vector<8x256xf32>
    %342 = arith.addf %340, %341 : vector<8x256xf32>
    %343 = math.tanh %342 : vector<8x256xf32>
    %344 = arith.mulf %339, %343 : vector<8x256xf32>
    %345 = arith.truncf %344 : vector<8x256xf32> to vector<8x256xbf16>
    %cst_67 = arith.constant dense<0.000000e+00> : vector<8x1024xf32>
    %346 = tpu.matmul %345, %1, %cst_67 {dimension_numbers = #tpu.dot_dimension_numbers<[1], [0], [0], [1], [0, 0, 1, 1], [], []>} : vector<8x256xbf16>, vector<256x1024xbf16>, vector<8x1024xf32> -> vector<8x1024xf32>
    %347 = arith.addf %316, %346 : vector<8x1024xf32>
    %348 = vector.extract_strided_slice %347 {offsets = [0, 0], sizes = [8, 256], strides = [1, 1]} : vector<8x1024xf32> to vector<8x256xf32>
    %349 = arith.negf %348 : vector<8x256xf32>
    %350 = math.exp %349 : vector<8x256xf32>
    %cst_68 = arith.constant 1.000000e+00 : f32
    %351 = vector.broadcast %cst_68 : f32 to vector<8x256xf32>
    %352 = arith.addf %351, %350 : vector<8x256xf32>
    %353 = arith.divf %351, %352 : vector<8x256xf32>
    %354 = vector.extract_strided_slice %347 {offsets = [0, 256], sizes = [8, 256], strides = [1, 1]} : vector<8x1024xf32> to vector<8x256xf32>
    %355 = arith.negf %354 : vector<8x256xf32>
    %356 = math.exp %355 : vector<8x256xf32>
    %cst_69 = arith.constant 1.000000e+00 : f32
    %357 = vector.broadcast %cst_69 : f32 to vector<8x256xf32>
    %358 = arith.addf %357, %356 : vector<8x256xf32>
    %359 = arith.divf %357, %358 : vector<8x256xf32>
    %360 = vector.extract_strided_slice %347 {offsets = [0, 512], sizes = [8, 256], strides = [1, 1]} : vector<8x1024xf32> to vector<8x256xf32>
    %361 = math.tanh %360 : vector<8x256xf32>
    %362 = vector.extract_strided_slice %347 {offsets = [0, 768], sizes = [8, 256], strides = [1, 1]} : vector<8x1024xf32> to vector<8x256xf32>
    %363 = arith.negf %362 : vector<8x256xf32>
    %364 = math.exp %363 : vector<8x256xf32>
    %cst_70 = arith.constant 1.000000e+00 : f32
    %365 = vector.broadcast %cst_70 : f32 to vector<8x256xf32>
    %366 = arith.addf %365, %364 : vector<8x256xf32>
    %367 = arith.divf %365, %366 : vector<8x256xf32>
    %368 = arith.mulf %359, %310 : vector<8x256xf32>
    %369 = arith.mulf %353, %361 : vector<8x256xf32>
    %370 = arith.addf %368, %369 : vector<8x256xf32>
    %371 = math.tanh %370 : vector<8x256xf32>
    %372 = arith.mulf %367, %371 : vector<8x256xf32>
    %373 = arith.truncf %372 : vector<8x256xf32> to vector<8x256xbf16>
    %cst_71 = arith.constant dense<0.000000e+00> : vector<8x1024xf32>
    %374 = tpu.matmul %373, %2, %cst_71 {dimension_numbers = #tpu.dot_dimension_numbers<[1], [0], [0], [1], [0, 0, 1, 1], [], []>} : vector<8x256xbf16>, vector<256x1024xbf16>, vector<8x1024xf32> -> vector<8x1024xf32>
    %375 = vector.broadcast %3 : vector<1x1024xf32> to vector<8x1024xf32>
    %376 = arith.addf %374, %375 : vector<8x1024xf32>
    %377 = vector.extract_strided_slice %9 {offsets = [48, 0], sizes = [8, 1024], strides = [1, 1]} : vector<64x1024xf32> to vector<8x1024xf32>
    %cst_72 = arith.constant dense<0.000000e+00> : vector<8x1024xf32>
    %378 = tpu.matmul %345, %0, %cst_72 {dimension_numbers = #tpu.dot_dimension_numbers<[1], [0], [0], [1], [0, 0, 1, 1], [], []>} : vector<8x256xbf16>, vector<256x1024xbf16>, vector<8x1024xf32> -> vector<8x1024xf32>
    %379 = arith.addf %377, %378 : vector<8x1024xf32>
    %380 = vector.extract_strided_slice %379 {offsets = [0, 0], sizes = [8, 256], strides = [1, 1]} : vector<8x1024xf32> to vector<8x256xf32>
    %381 = arith.negf %380 : vector<8x256xf32>
    %382 = math.exp %381 : vector<8x256xf32>
    %cst_73 = arith.constant 1.000000e+00 : f32
    %383 = vector.broadcast %cst_73 : f32 to vector<8x256xf32>
    %384 = arith.addf %383, %382 : vector<8x256xf32>
    %385 = arith.divf %383, %384 : vector<8x256xf32>
    %386 = vector.extract_strided_slice %379 {offsets = [0, 256], sizes = [8, 256], strides = [1, 1]} : vector<8x1024xf32> to vector<8x256xf32>
    %387 = arith.negf %386 : vector<8x256xf32>
    %388 = math.exp %387 : vector<8x256xf32>
    %cst_74 = arith.constant 1.000000e+00 : f32
    %389 = vector.broadcast %cst_74 : f32 to vector<8x256xf32>
    %390 = arith.addf %389, %388 : vector<8x256xf32>
    %391 = arith.divf %389, %390 : vector<8x256xf32>
    %392 = vector.extract_strided_slice %379 {offsets = [0, 512], sizes = [8, 256], strides = [1, 1]} : vector<8x1024xf32> to vector<8x256xf32>
    %393 = math.tanh %392 : vector<8x256xf32>
    %394 = vector.extract_strided_slice %379 {offsets = [0, 768], sizes = [8, 256], strides = [1, 1]} : vector<8x1024xf32> to vector<8x256xf32>
    %395 = arith.negf %394 : vector<8x256xf32>
    %396 = math.exp %395 : vector<8x256xf32>
    %cst_75 = arith.constant 1.000000e+00 : f32
    %397 = vector.broadcast %cst_75 : f32 to vector<8x256xf32>
    %398 = arith.addf %397, %396 : vector<8x256xf32>
    %399 = arith.divf %397, %398 : vector<8x256xf32>
    %400 = arith.mulf %391, %342 : vector<8x256xf32>
    %401 = arith.mulf %385, %393 : vector<8x256xf32>
    %402 = arith.addf %400, %401 : vector<8x256xf32>
    %403 = math.tanh %402 : vector<8x256xf32>
    %404 = arith.mulf %399, %403 : vector<8x256xf32>
    %405 = arith.truncf %404 : vector<8x256xf32> to vector<8x256xbf16>
    %cst_76 = arith.constant dense<0.000000e+00> : vector<8x1024xf32>
    %406 = tpu.matmul %405, %1, %cst_76 {dimension_numbers = #tpu.dot_dimension_numbers<[1], [0], [0], [1], [0, 0, 1, 1], [], []>} : vector<8x256xbf16>, vector<256x1024xbf16>, vector<8x1024xf32> -> vector<8x1024xf32>
    %407 = arith.addf %376, %406 : vector<8x1024xf32>
    %408 = vector.extract_strided_slice %407 {offsets = [0, 0], sizes = [8, 256], strides = [1, 1]} : vector<8x1024xf32> to vector<8x256xf32>
    %409 = arith.negf %408 : vector<8x256xf32>
    %410 = math.exp %409 : vector<8x256xf32>
    %cst_77 = arith.constant 1.000000e+00 : f32
    %411 = vector.broadcast %cst_77 : f32 to vector<8x256xf32>
    %412 = arith.addf %411, %410 : vector<8x256xf32>
    %413 = arith.divf %411, %412 : vector<8x256xf32>
    %414 = vector.extract_strided_slice %407 {offsets = [0, 256], sizes = [8, 256], strides = [1, 1]} : vector<8x1024xf32> to vector<8x256xf32>
    %415 = arith.negf %414 : vector<8x256xf32>
    %416 = math.exp %415 : vector<8x256xf32>
    %cst_78 = arith.constant 1.000000e+00 : f32
    %417 = vector.broadcast %cst_78 : f32 to vector<8x256xf32>
    %418 = arith.addf %417, %416 : vector<8x256xf32>
    %419 = arith.divf %417, %418 : vector<8x256xf32>
    %420 = vector.extract_strided_slice %407 {offsets = [0, 512], sizes = [8, 256], strides = [1, 1]} : vector<8x1024xf32> to vector<8x256xf32>
    %421 = math.tanh %420 : vector<8x256xf32>
    %422 = vector.extract_strided_slice %407 {offsets = [0, 768], sizes = [8, 256], strides = [1, 1]} : vector<8x1024xf32> to vector<8x256xf32>
    %423 = arith.negf %422 : vector<8x256xf32>
    %424 = math.exp %423 : vector<8x256xf32>
    %cst_79 = arith.constant 1.000000e+00 : f32
    %425 = vector.broadcast %cst_79 : f32 to vector<8x256xf32>
    %426 = arith.addf %425, %424 : vector<8x256xf32>
    %427 = arith.divf %425, %426 : vector<8x256xf32>
    %428 = arith.mulf %419, %370 : vector<8x256xf32>
    %429 = arith.mulf %413, %421 : vector<8x256xf32>
    %430 = arith.addf %428, %429 : vector<8x256xf32>
    %431 = math.tanh %430 : vector<8x256xf32>
    %432 = arith.mulf %427, %431 : vector<8x256xf32>
    %433 = arith.truncf %432 : vector<8x256xf32> to vector<8x256xbf16>
    %cst_80 = arith.constant dense<0.000000e+00> : vector<8x1024xf32>
    %434 = tpu.matmul %433, %2, %cst_80 {dimension_numbers = #tpu.dot_dimension_numbers<[1], [0], [0], [1], [0, 0, 1, 1], [], []>} : vector<8x256xbf16>, vector<256x1024xbf16>, vector<8x1024xf32> -> vector<8x1024xf32>
    %435 = vector.broadcast %3 : vector<1x1024xf32> to vector<8x1024xf32>
    %436 = arith.addf %434, %435 : vector<8x1024xf32>
    %437 = vector.extract_strided_slice %9 {offsets = [56, 0], sizes = [8, 1024], strides = [1, 1]} : vector<64x1024xf32> to vector<8x1024xf32>
    %cst_81 = arith.constant dense<0.000000e+00> : vector<8x1024xf32>
    %438 = tpu.matmul %405, %0, %cst_81 {dimension_numbers = #tpu.dot_dimension_numbers<[1], [0], [0], [1], [0, 0, 1, 1], [], []>} : vector<8x256xbf16>, vector<256x1024xbf16>, vector<8x1024xf32> -> vector<8x1024xf32>
    %439 = arith.addf %437, %438 : vector<8x1024xf32>
    %440 = vector.extract_strided_slice %439 {offsets = [0, 0], sizes = [8, 256], strides = [1, 1]} : vector<8x1024xf32> to vector<8x256xf32>
    %441 = arith.negf %440 : vector<8x256xf32>
    %442 = math.exp %441 : vector<8x256xf32>
    %cst_82 = arith.constant 1.000000e+00 : f32
    %443 = vector.broadcast %cst_82 : f32 to vector<8x256xf32>
    %444 = arith.addf %443, %442 : vector<8x256xf32>
    %445 = arith.divf %443, %444 : vector<8x256xf32>
    %446 = vector.extract_strided_slice %439 {offsets = [0, 256], sizes = [8, 256], strides = [1, 1]} : vector<8x1024xf32> to vector<8x256xf32>
    %447 = arith.negf %446 : vector<8x256xf32>
    %448 = math.exp %447 : vector<8x256xf32>
    %cst_83 = arith.constant 1.000000e+00 : f32
    %449 = vector.broadcast %cst_83 : f32 to vector<8x256xf32>
    %450 = arith.addf %449, %448 : vector<8x256xf32>
    %451 = arith.divf %449, %450 : vector<8x256xf32>
    %452 = vector.extract_strided_slice %439 {offsets = [0, 512], sizes = [8, 256], strides = [1, 1]} : vector<8x1024xf32> to vector<8x256xf32>
    %453 = math.tanh %452 : vector<8x256xf32>
    %454 = vector.extract_strided_slice %439 {offsets = [0, 768], sizes = [8, 256], strides = [1, 1]} : vector<8x1024xf32> to vector<8x256xf32>
    %455 = arith.negf %454 : vector<8x256xf32>
    %456 = math.exp %455 : vector<8x256xf32>
    %cst_84 = arith.constant 1.000000e+00 : f32
    %457 = vector.broadcast %cst_84 : f32 to vector<8x256xf32>
    %458 = arith.addf %457, %456 : vector<8x256xf32>
    %459 = arith.divf %457, %458 : vector<8x256xf32>
    %460 = arith.mulf %451, %402 : vector<8x256xf32>
    %461 = arith.mulf %445, %453 : vector<8x256xf32>
    %462 = arith.addf %460, %461 : vector<8x256xf32>
    %463 = math.tanh %462 : vector<8x256xf32>
    %464 = arith.mulf %459, %463 : vector<8x256xf32>
    %465 = arith.truncf %464 : vector<8x256xf32> to vector<8x256xbf16>
    %cst_85 = arith.constant dense<0.000000e+00> : vector<8x1024xf32>
    %466 = tpu.matmul %465, %1, %cst_85 {dimension_numbers = #tpu.dot_dimension_numbers<[1], [0], [0], [1], [0, 0, 1, 1], [], []>} : vector<8x256xbf16>, vector<256x1024xbf16>, vector<8x1024xf32> -> vector<8x1024xf32>
    %467 = arith.addf %436, %466 : vector<8x1024xf32>
    %468 = vector.extract_strided_slice %467 {offsets = [0, 0], sizes = [8, 256], strides = [1, 1]} : vector<8x1024xf32> to vector<8x256xf32>
    %469 = arith.negf %468 : vector<8x256xf32>
    %470 = math.exp %469 : vector<8x256xf32>
    %cst_86 = arith.constant 1.000000e+00 : f32
    %471 = vector.broadcast %cst_86 : f32 to vector<8x256xf32>
    %472 = arith.addf %471, %470 : vector<8x256xf32>
    %473 = arith.divf %471, %472 : vector<8x256xf32>
    %474 = vector.extract_strided_slice %467 {offsets = [0, 256], sizes = [8, 256], strides = [1, 1]} : vector<8x1024xf32> to vector<8x256xf32>
    %475 = arith.negf %474 : vector<8x256xf32>
    %476 = math.exp %475 : vector<8x256xf32>
    %cst_87 = arith.constant 1.000000e+00 : f32
    %477 = vector.broadcast %cst_87 : f32 to vector<8x256xf32>
    %478 = arith.addf %477, %476 : vector<8x256xf32>
    %479 = arith.divf %477, %478 : vector<8x256xf32>
    %480 = vector.extract_strided_slice %467 {offsets = [0, 512], sizes = [8, 256], strides = [1, 1]} : vector<8x1024xf32> to vector<8x256xf32>
    %481 = math.tanh %480 : vector<8x256xf32>
    %482 = vector.extract_strided_slice %467 {offsets = [0, 768], sizes = [8, 256], strides = [1, 1]} : vector<8x1024xf32> to vector<8x256xf32>
    %483 = arith.negf %482 : vector<8x256xf32>
    %484 = math.exp %483 : vector<8x256xf32>
    %cst_88 = arith.constant 1.000000e+00 : f32
    %485 = vector.broadcast %cst_88 : f32 to vector<8x256xf32>
    %486 = arith.addf %485, %484 : vector<8x256xf32>
    %487 = arith.divf %485, %486 : vector<8x256xf32>
    %488 = arith.mulf %479, %430 : vector<8x256xf32>
    %489 = arith.mulf %473, %481 : vector<8x256xf32>
    %490 = arith.addf %488, %489 : vector<8x256xf32>
    %491 = math.tanh %490 : vector<8x256xf32>
    %492 = arith.mulf %487, %491 : vector<8x256xf32>
    %493 = arith.truncf %492 : vector<8x256xf32> to vector<8x256xbf16>
    %c0_89 = arith.constant 0 : index
    %c0_90 = arith.constant 0 : index
    %494 = vector.load %arg8[%c0_89, %c0_90] : memref<256x128xbf16, #tpu.memory_space<vmem>>, vector<256x128xbf16>
    %cst_91 = arith.constant dense<0.000000e+00> : vector<8x128xf32>
    %495 = tpu.matmul %493, %494, %cst_91 {dimension_numbers = #tpu.dot_dimension_numbers<[1], [0], [0], [1], [0, 0, 1, 1], [], []>} : vector<8x256xbf16>, vector<256x128xbf16>, vector<8x128xf32> -> vector<8x128xf32>
    %c0_92 = arith.constant 0 : index
    %c0_93 = arith.constant 0 : index
    %496 = vector.load %arg9[%c0_92, %c0_93] : memref<1x128xf32, #tpu.memory_space<vmem>>, vector<1x128xf32>
    %497 = vector.broadcast %496 : vector<1x128xf32> to vector<8x128xf32>
    %498 = arith.addf %495, %497 : vector<8x128xf32>
    %c0_94 = arith.constant 0 : index
    %c0_95 = arith.constant 0 : index
    %499 = vector.load %arg10[%c0_94, %c0_95] : memref<8x128xf32, #tpu.memory_space<vmem>>, vector<8x128xf32>
    tpu.vector_store %arg10[%c0_94, %c0_95], %498 {strides = array<i32>} : memref<8x128xf32, #tpu.memory_space<vmem>>, vector<8x128xf32>,
    return
  }
  func.func @transform_0(%arg0: i32) -> (i32, i32) {
    %c0_i32 = arith.constant 0 : i32
    %c0_i32_0 = arith.constant 0 : i32
    %c0_i32_1 = arith.constant 0 : i32
    return %c0_i32, %c0_i32_0 : i32, i32
  }
  func.func @transform_1(%arg0: i32) -> (i32, i32) {
    %c0_i32 = arith.constant 0 : i32
    %c0_i32_0 = arith.constant 0 : i32
    %c0_i32_1 = arith.constant 0 : i32
    return %c0_i32, %c0_i32_0 : i32, i32
  }
  func.func @transform_2(%arg0: i32) -> (i32, i32) {
    %c0_i32 = arith.constant 0 : i32
    %c0_i32_0 = arith.constant 0 : i32
    %c0_i32_1 = arith.constant 0 : i32
    return %c0_i32, %c0_i32_0 : i32, i32
  }
  func.func @transform_3(%arg0: i32) -> (i32, i32) {
    %c0_i32 = arith.constant 0 : i32
    %c0_i32_0 = arith.constant 0 : i32
    %c0_i32_1 = arith.constant 0 : i32
    return %c0_i32, %c0_i32_0 : i32, i32
  }
  func.func @transform_4(%arg0: i32) -> (i32, i32) {
    %c0_i32 = arith.constant 0 : i32
    %c0_i32_0 = arith.constant 0 : i32
    %c0_i32_1 = arith.constant 0 : i32
    return %c0_i32, %c0_i32_0 : i32, i32
  }
  func.func @transform_5(%arg0: i32) -> (i32, i32) {
    %c0_i32 = arith.constant 0 : i32
    %c0_i32_0 = arith.constant 0 : i32
    %c0_i32_1 = arith.constant 0 : i32
    return %c0_i32, %c0_i32_0 : i32, i32
  }
  func.func @transform_6(%arg0: i32) -> (i32, i32) {
    %c0_i32 = arith.constant 0 : i32
    %c0_i32_0 = arith.constant 0 : i32
    %c0_i32_1 = arith.constant 0 : i32
    return %c0_i32, %c0_i32_0 : i32, i32
  }
  func.func @transform_7(%arg0: i32) -> (i32, i32) {
    %c0_i32 = arith.constant 0 : i32
    %c0_i32_0 = arith.constant 0 : i32
    %c0_i32_1 = arith.constant 0 : i32
    return %c0_i32, %c0_i32_0 : i32, i32
  }
  func.func @transform_8(%arg0: i32) -> (i32, i32) {
    %c0_i32 = arith.constant 0 : i32
    %c0_i32_0 = arith.constant 0 : i32
    %c0_i32_1 = arith.constant 0 : i32
    return %c0_i32, %c0_i32_0 : i32, i32
  }
  func.func @transform_9(%arg0: i32) -> (i32, i32) {
    %c0_i32 = arith.constant 0 : i32
    %c0_i32_0 = arith.constant 0 : i32
    %c0_i32_1 = arith.constant 0 : i32
    return %c0_i32, %c0_i32_0 : i32, i32
  }
}

</mosaic_0001>

<llo_original>
// kernel: lstm_shakespeare_forward.1
$region0: #{lstm_shakespeare_forward.1}
  #allocation0 [shape = 'u32[]', space=smem, size = 0x4, offset = 0x4, fixed_abs, tag = 'smem constant byte address 0x4 - core index']
  #allocation1 [shape = 'u32[144,128]{1,0:T(1,128)}', space=vmem, size = 0x12000, scoped, tag = 'internal scratch']
  %s0 = inlined_call_operand.vmem [shape: bf16[64,8], index: 0, kind: input, shape index: {}]
  %s1 = inlined_call_operand.vmem [shape: bf16[8,1024], index: 1, kind: input, shape index: {}]
  %s2 = inlined_call_operand.vmem [shape: bf16[256,1024], index: 2, kind: input, shape index: {}]
  %s3 = inlined_call_operand.vmem [shape: f32[1,1024], index: 3, kind: input, shape index: {}]
  %s4 = inlined_call_operand.vmem [shape: bf16[256,1024], index: 4, kind: input, shape index: {}]
  %s5 = inlined_call_operand.vmem [shape: bf16[256,1024], index: 5, kind: input, shape index: {}]
  %s6 = inlined_call_operand.vmem [shape: f32[1,1024], index: 6, kind: input, shape index: {}]
  %s7 = inlined_call_operand.vmem [shape: bf16[256,128], index: 7, kind: input, shape index: {}]
  %s8 = inlined_call_operand.vmem [shape: f32[1,128], index: 8, kind: input, shape index: {}]
  %s9 = inlined_call_operand.vmem [shape: f32[8,128], index: 9, kind: output, shape index: {}]
  %s10 = sld [smem:[#allocation0]]
  $region46: #{lstm_shakespeare_forward.1} parent=0
    _
  %s12 = ssub.s32 1, %s10
  %s13 = scalar_select 0, %s12, %s10
  // Predicated region
  $region2: #{lstm_shakespeare_forward.1} parent=0 // pred_check
    _
  $region3: #{lstm_shakespeare_forward.1} parent=0 // pred_check_branch
    %15 = sbr.rel (0) target = $region5
  $region4: #{lstm_shakespeare_forward.1} parent=0 // pred_region
    _
  $region5: #{lstm_shakespeare_forward.1} parent=0 // pred_fallthru
    _
  // Predicated region
  $region6: #{lstm_shakespeare_forward.1} parent=0 // pred_check
    _
  $region7: #{lstm_shakespeare_forward.1} parent=0 // pred_check_branch
    %17 = sbr.rel (0) target = $region9
  $region8: #{lstm_shakespeare_forward.1} parent=0 // pred_region
    _
  $region9: #{lstm_shakespeare_forward.1} parent=0 // pred_fallthru
    _
  // Predicated region
  $region10: #{lstm_shakespeare_forward.1} parent=0 // pred_check
    _
  $region11: #{lstm_shakespeare_forward.1} parent=0 // pred_check_branch
    %19 = sbr.rel (0) target = $region13
  $region12: #{lstm_shakespeare_forward.1} parent=0 // pred_region
    _
  $region13: #{lstm_shakespeare_forward.1} parent=0 // pred_fallthru
    _
  // Predicated region
  $region14: #{lstm_shakespeare_forward.1} parent=0 // pred_check
    _
  $region15: #{lstm_shakespeare_forward.1} parent=0 // pred_check_branch
    %21 = sbr.rel (0) target = $region17
  $region16: #{lstm_shakespeare_forward.1} parent=0 // pred_region
    _
  $region17: #{lstm_shakespeare_forward.1} parent=0 // pred_fallthru
    _
  // Predicated region
  $region18: #{lstm_shakespeare_forward.1} parent=0 // pred_check
    _
  $region19: #{lstm_shakespeare_forward.1} parent=0 // pred_check_branch
    %23 = sbr.rel (0) target = $region21
  $region20: #{lstm_shakespeare_forward.1} parent=0 // pred_region
    _
  $region21: #{lstm_shakespeare_forward.1} parent=0 // pred_fallthru
    _
  // Predicated region
  $region22: #{lstm_shakespeare_forward.1} parent=0 // pred_check
    _
  $region23: #{lstm_shakespeare_forward.1} parent=0 // pred_check_branch
    %25 = sbr.rel (0) target = $region25
  $region24: #{lstm_shakespeare_forward.1} parent=0 // pred_region
    _
  $region25: #{lstm_shakespeare_forward.1} parent=0 // pred_fallthru
    _
  // Predicated region
  $region26: #{lstm_shakespeare_forward.1} parent=0 // pred_check
    _
  $region27: #{lstm_shakespeare_forward.1} parent=0 // pred_check_branch
    %27 = sbr.rel (0) target = $region29
  $region28: #{lstm_shakespeare_forward.1} parent=0 // pred_region
    _
  $region29: #{lstm_shakespeare_forward.1} parent=0 // pred_fallthru
    _
  // Predicated region
  $region30: #{lstm_shakespeare_forward.1} parent=0 // pred_check
    _
  $region31: #{lstm_shakespeare_forward.1} parent=0 // pred_check_branch
    %29 = sbr.rel (0) target = $region33
  $region32: #{lstm_shakespeare_forward.1} parent=0 // pred_region
    _
  $region33: #{lstm_shakespeare_forward.1} parent=0 // pred_fallthru
    _
  // Predicated region
  $region34: #{lstm_shakespeare_forward.1} parent=0 // pred_check
    _
  $region35: #{lstm_shakespeare_forward.1} parent=0 // pred_check_branch
    %31 = sbr.rel (0) target = $region37
  $region36: #{lstm_shakespeare_forward.1} parent=0 // pred_region
    _
  $region37: #{lstm_shakespeare_forward.1} parent=0 // pred_fallthru
    _
  %v33 = vld [vmem:[%s2] sm:$0xff]
  %v34 = vld [vmem:[%s2 + $0x8] sm:$0xff]
  %v35 = vld [vmem:[%s2 + $0x10] sm:$0xff]
  %v36 = vld [vmem:[%s2 + $0x18] sm:$0xff]
  %v37 = vld [vmem:[%s2 + $0x20] sm:$0xff]
  %v38 = vld [vmem:[%s2 + $0x28] sm:$0xff]
  %v39 = vld [vmem:[%s2 + $0x30] sm:$0xff]
  %v40 = vld [vmem:[%s2 + $0x38] sm:$0xff]
  %v41 = vld [vmem:[%s2 + $0x40] sm:$0xff]
  %v42 = vld [vmem:[%s2 + $0x48] sm:$0xff]
  %v43 = vld [vmem:[%s2 + $0x50] sm:$0xff]
  %v44 = vld [vmem:[%s2 + $0x58] sm:$0xff]
  %v45 = vld [vmem:[%s2 + $0x60] sm:$0xff]
  %v46 = vld [vmem:[%s2 + $0x68] sm:$0xff]
  %v47 = vld [vmem:[%s2 + $0x70] sm:$0xff]
  %v48 = vld [vmem:[%s2 + $0x78] sm:$0xff]
  %v49 = vld [vmem:[%s2 + $0x80] sm:$0xff]
  %v50 = vld [vmem:[%s2 + $0x88] sm:$0xff]
  %v51 = vld [vmem:[%s2 + $0x90] sm:$0xff]
  %v52 = vld [vmem:[%s2 + $0x98] sm:$0xff]
  %v53 = vld [vmem:[%s2 + $0xa0] sm:$0xff]
  %v54 = vld [vmem:[%s2 + $0xa8] sm:$0xff]
  %v55 = vld [vmem:[%s2 + $0xb0] sm:$0xff]
  %v56 = vld [vmem:[%s2 + $0xb8] sm:$0xff]
  %v57 = vld [vmem:[%s2 + $0xc0] sm:$0xff]
  %v58 = vld [vmem:[%s2 + $0xc8] sm:$0xff]
  %v59 = vld [vmem:[%s2 + $0xd0] sm:$0xff]
  %v60 = vld [vmem:[%s2 + $0xd8] sm:$0xff]
  %v61 = vld [vmem:[%s2 + $0xe0] sm:$0xff]
  %v62 = vld [vmem:[%s2 + $0xe8] sm:$0xff]
  %v63 = vld [vmem:[%s2 + $0xf0] sm:$0xff]
  %v64 = vld [vmem:[%s2 + $0xf8] sm:$0xff]
  %v65 = vld [vmem:[%s2 + $0x100] sm:$0xff]
  %v66 = vld [vmem:[%s2 + $0x108] sm:$0xff]
  %v67 = vld [vmem:[%s2 + $0x110] sm:$0xff]
  %v68 = vld [vmem:[%s2 + $0x118] sm:$0xff]
  %v69 = vld [vmem:[%s2 + $0x120] sm:$0xff]
  %v70 = vld [vmem:[%s2 + $0x128] sm:$0xff]
  %v71 = vld [vmem:[%s2 + $0x130] sm:$0xff]
  %v72 = vld [vmem:[%s2 + $0x138] sm:$0xff]
  %v73 = vld [vmem:[%s2 + $0x140] sm:$0xff]
  %v74 = vld [vmem:[%s2 + $0x148] sm:$0xff]
  %v75 = vld [vmem:[%s2 + $0x150] sm:$0xff]
  %v76 = vld [vmem:[%s2 + $0x158] sm:$0xff]
  %v77 = vld [vmem:[%s2 + $0x160] sm:$0xff]
  %v78 = vld [vmem:[%s2 + $0x168] sm:$0xff]
  %v79 = vld [vmem:[%s2 + $0x170] sm:$0xff]
  %v80 = vld [vmem:[%s2 + $0x178] sm:$0xff]
  %v81 = vld [vmem:[%s2 + $0x180] sm:$0xff]
  %v82 = vld [vmem:[%s2 + $0x188] sm:$0xff]
  %v83 = vld [vmem:[%s2 + $0x190] sm:$0xff]
  %v84 = vld [vmem:[%s2 + $0x198] sm:$0xff]
  %v85 = vld [vmem:[%s2 + $0x1a0] sm:$0xff]
  %v86 = vld [vmem:[%s2 + $0x1a8] sm:$0xff]
  %v87 = vld [vmem:[%s2 + $0x1b0] sm:$0xff]
  %v88 = vld [vmem:[%s2 + $0x1b8] sm:$0xff]
  %v89 = vld [vmem:[%s2 + $0x1c0] sm:$0xff]
  %v90 = vld [vmem:[%s2 + $0x1c8] sm:$0xff]
  %v91 = vld [vmem:[%s2 + $0x1d0] sm:$0xff]
  %v92 = vld [vmem:[%s2 + $0x1d8] sm:$0xff]
  %v93 = vld [vmem:[%s2 + $0x1e0] sm:$0xff]
  %v94 = vld [vmem:[%s2 + $0x1e8] sm:$0xff]
  %v95 = vld [vmem:[%s2 + $0x1f0] sm:$0xff]
  %v96 = vld [vmem:[%s2 + $0x1f8] sm:$0xff]
  %v97 = vld [vmem:[%s2 + $0x200] sm:$0xff]
  %v98 = vld [vmem:[%s2 + $0x208] sm:$0xff]
  %v99 = vld [vmem:[%s2 + $0x210] sm:$0xff]
  %v100 = vld [vmem:[%s2 + $0x218] sm:$0xff]
  %v101 = vld [vmem:[%s2 + $0x220] sm:$0xff]
  %v102 = vld [vmem:[%s2 + $0x228] sm:$0xff]
  %v103 = vld [vmem:[%s2 + $0x230] sm:$0xff]
  %v104 = vld [vmem:[%s2 + $0x238] sm:$0xff]
  %v105 = vld [vmem:[%s2 + $0x240] sm:$0xff]
  %v106 = vld [vmem:[%s2 + $0x248] sm:$0xff]
  %v107 = vld [vmem:[%s2 + $0x250] sm:$0xff]
  %v108 = vld [vmem:[%s2 + $0x258] sm:$0xff]
  %v109 = vld [vmem:[%s2 + $0x260] sm:$0xff]
  %v110 = vld [vmem:[%s2 + $0x268] sm:$0xff]
  %v111 = vld [vmem:[%s2 + $0x270] sm:$0xff]
  %v112 = vld [vmem:[%s2 + $0x278] sm:$0xff]
  %v113 = vld [vmem:[%s2 + $0x280] sm:$0xff]
  %v114 = vld [vmem:[%s2 + $0x288] sm:$0xff]
  %v115 = vld [vmem:[%s2 + $0x290] sm:$0xff]
  %v116 = vld [vmem:[%s2 + $0x298] sm:$0xff]
  %v117 = vld [vmem:[%s2 + $0x2a0] sm:$0xff]
  %v118 = vld [vmem:[%s2 + $0x2a8] sm:$0xff]
  %v119 = vld [vmem:[%s2 + $0x2b0] sm:$0xff]
  %v120 = vld [vmem:[%s2 + $0x2b8] sm:$0xff]
  %v121 = vld [vmem:[%s2 + $0x2c0] sm:$0xff]
  %v122 = vld [vmem:[%s2 + $0x2c8] sm:$0xff]
  %v123 = vld [vmem:[%s2 + $0x2d0] sm:$0xff]
  %v124 = vld [vmem:[%s2 + $0x2d8] sm:$0xff]
  %v125 = vld [vmem:[%s2 + $0x2e0] sm:$0xff]
  %v126 = vld [vmem:[%s2 + $0x2e8] sm:$0xff]
  %v127 = vld [vmem:[%s2 + $0x2f0] sm:$0xff]
  %v128 = vld [vmem:[%s2 + $0x2f8] sm:$0xff]
  %v129 = vld [vmem:[%s2 + $0x300] sm:$0xff]
  %v130 = vld [vmem:[%s2 + $0x308] sm:$0xff]
  %v131 = vld [vmem:[%s2 + $0x310] sm:$0xff]
  %v132 = vld [vmem:[%s2 + $0x318] sm:$0xff]
  %v133 = vld [vmem:[%s2 + $0x320] sm:$0xff]
  %v134 = vld [vmem:[%s2 + $0x328] sm:$0xff]
  %v135 = vld [vmem:[%s2 + $0x330] sm:$0xff]
  %v136 = vld [vmem:[%s2 + $0x338] sm:$0xff]
  %v137 = vld [vmem:[%s2 + $0x340] sm:$0xff]
  %v138 = vld [vmem:[%s2 + $0x348] sm:$0xff]
  %v139 = vld [vmem:[%s2 + $0x350] sm:$0xff]
  %v140 = vld [vmem:[%s2 + $0x358] sm:$0xff]
  %v141 = vld [vmem:[%s2 + $0x360] sm:$0xff]
  %v142 = vld [vmem:[%s2 + $0x368] sm:$0xff]
  %v143 = vld [vmem:[%s2 + $0x370] sm:$0xff]
  %v144 = vld [vmem:[%s2 + $0x378] sm:$0xff]
  %v145 = vld [vmem:[%s2 + $0x380] sm:$0xff]
  %v146 = vld [vmem:[%s2 + $0x388] sm:$0xff]
  %v147 = vld [vmem:[%s2 + $0x390] sm:$0xff]
  %v148 = vld [vmem:[%s2 + $0x398] sm:$0xff]
  %v149 = vld [vmem:[%s2 + $0x3a0] sm:$0xff]
  %v150 = vld [vmem:[%s2 + $0x3a8] sm:$0xff]
  %v151 = vld [vmem:[%s2 + $0x3b0] sm:$0xff]
  %v152 = vld [vmem:[%s2 + $0x3b8] sm:$0xff]
  %v153 = vld [vmem:[%s2 + $0x3c0] sm:$0xff]
  %v154 = vld [vmem:[%s2 + $0x3c8] sm:$0xff]
  %v155 = vld [vmem:[%s2 + $0x3d0] sm:$0xff]
  %v156 = vld [vmem:[%s2 + $0x3d8] sm:$0xff]
  %v157 = vld [vmem:[%s2 + $0x3e0] sm:$0xff]
  %v158 = vld [vmem:[%s2 + $0x3e8] sm:$0xff]
  %v159 = vld [vmem:[%s2 + $0x3f0] sm:$0xff]
  %v160 = vld [vmem:[%s2 + $0x3f8] sm:$0xff]
  %v161 = vld [vmem:[%s4] sm:$0xff]
  %v162 = vld [vmem:[%s4 + $0x8] sm:$0xff]
  %v163 = vld [vmem:[%s4 + $0x10] sm:$0xff]
  %v164 = vld [vmem:[%s4 + $0x18] sm:$0xff]
  %v165 = vld [vmem:[%s4 + $0x20] sm:$0xff]
  %v166 = vld [vmem:[%s4 + $0x28] sm:$0xff]
  %v167 = vld [vmem:[%s4 + $0x30] sm:$0xff]
  %v168 = vld [vmem:[%s4 + $0x38] sm:$0xff]
  %v169 = vld [vmem:[%s4 + $0x40] sm:$0xff]
  %v170 = vld [vmem:[%s4 + $0x48] sm:$0xff]
  %v171 = vld [vmem:[%s4 + $0x50] sm:$0xff]
  %v172 = vld [vmem:[%s4 + $0x58] sm:$0xff]
  %v173 = vld [vmem:[%s4 + $0x60] sm:$0xff]
  %v174 = vld [vmem:[%s4 + $0x68] sm:$0xff]
  %v175 = vld [vmem:[%s4 + $0x70] sm:$0xff]
  %v176 = vld [vmem:[%s4 + $0x78] sm:$0xff]
  %v177 = vld [vmem:[%s4 + $0x80] sm:$0xff]
  %v178 = vld [vmem:[%s4 + $0x88] sm:$0xff]
  %v179 = vld [vmem:[%s4 + $0x90] sm:$0xff]
  %v180 = vld [vmem:[%s4 + $0x98] sm:$0xff]
  %v181 = vld [vmem:[%s4 + $0xa0] sm:$0xff]
  %v182 = vld [vmem:[%s4 + $0xa8] sm:$0xff]
  %v183 = vld [vmem:[%s4 + $0xb0] sm:$0xff]
  %v184 = vld [vmem:[%s4 + $0xb8] sm:$0xff]
  %v185 = vld [vmem:[%s4 + $0xc0] sm:$0xff]
  %v186 = vld [vmem:[%s4 + $0xc8] sm:$0xff]
  %v187 = vld [vmem:[%s4 + $0xd0] sm:$0xff]
  %v188 = vld [vmem:[%s4 + $0xd8] sm:$0xff]
  %v189 = vld [vmem:[%s4 + $0xe0] sm:$0xff]
  %v190 = vld [vmem:[%s4 + $0xe8] sm:$0xff]
  %v191 = vld [vmem:[%s4 + $0xf0] sm:$0xff]
  %v192 = vld [vmem:[%s4 + $0xf8] sm:$0xff]
  %v193 = vld [vmem:[%s4 + $0x100] sm:$0xff]
  %v194 = vld [vmem:[%s4 + $0x108] sm:$0xff]
  %v195 = vld [vmem:[%s4 + $0x110] sm:$0xff]
  %v196 = vld [vmem:[%s4 + $0x118] sm:$0xff]
  %v197 = vld [vmem:[%s4 + $0x120] sm:$0xff]
  %v198 = vld [vmem:[%s4 + $0x128] sm:$0xff]
  %v199 = vld [vmem:[%s4 + $0x130] sm:$0xff]
  %v200 = vld [vmem:[%s4 + $0x138] sm:$0xff]
  %v201 = vld [vmem:[%s4 + $0x140] sm:$0xff]
  %v202 = vld [vmem:[%s4 + $0x148] sm:$0xff]
  %v203 = vld [vmem:[%s4 + $0x150] sm:$0xff]
  %v204 = vld [vmem:[%s4 + $0x158] sm:$0xff]
  %v205 = vld [vmem:[%s4 + $0x160] sm:$0xff]
  %v206 = vld [vmem:[%s4 + $0x168] sm:$0xff]
  %v207 = vld [vmem:[%s4 + $0x170] sm:$0xff]
  %v208 = vld [vmem:[%s4 + $0x178] sm:$0xff]
  %v209 = vld [vmem:[%s4 + $0x180] sm:$0xff]
  %v210 = vld [vmem:[%s4 + $0x188] sm:$0xff]
  %v211 = vld [vmem:[%s4 + $0x190] sm:$0xff]
  %v212 = vld [vmem:[%s4 + $0x198] sm:$0xff]
  %v213 = vld [vmem:[%s4 + $0x1a0] sm:$0xff]
  %v214 = vld [vmem:[%s4 + $0x1a8] sm:$0xff]
  %v215 = vld [vmem:[%s4 + $0x1b0] sm:$0xff]
  %v216 = vld [vmem:[%s4 + $0x1b8] sm:$0xff]
  %v217 = vld [vmem:[%s4 + $0x1c0] sm:$0xff]
  %v218 = vld [vmem:[%s4 + $0x1c8] sm:$0xff]
  %v219 = vld [vmem:[%s4 + $0x1d0] sm:$0xff]
  %v220 = vld [vmem:[%s4 + $0x1d8] sm:$0xff]
  %v221 = vld [vmem:[%s4 + $0x1e0] sm:$0xff]
  %v222 = vld [vmem:[%s4 + $0x1e8] sm:$0xff]
  %v223 = vld [vmem:[%s4 + $0x1f0] sm:$0xff]
  %v224 = vld [vmem:[%s4 + $0x1f8] sm:$0xff]
  %v225 = vld [vmem:[%s4 + $0x200] sm:$0xff]
  %v226 = vld [vmem:[%s4 + $0x208] sm:$0xff]
  %v227 = vld [vmem:[%s4 + $0x210] sm:$0xff]
  %v228 = vld [vmem:[%s4 + $0x218] sm:$0xff]
  %v229 = vld [vmem:[%s4 + $0x220] sm:$0xff]
  %v230 = vld [vmem:[%s4 + $0x228] sm:$0xff]
  %v231 = vld [vmem:[%s4 + $0x230] sm:$0xff]
  %v232 = vld [vmem:[%s4 + $0x238] sm:$0xff]
  %v233 = vld [vmem:[%s4 + $0x240] sm:$0xff]
  %v234 = vld [vmem:[%s4 + $0x248] sm:$0xff]
  %v235 = vld [vmem:[%s4 + $0x250] sm:$0xff]
  %v236 = vld [vmem:[%s4 + $0x258] sm:$0xff]
  %v237 = vld [vmem:[%s4 + $0x260] sm:$0xff]
  %v238 = vld [vmem:[%s4 + $0x268] sm:$0xff]
  %v239 = vld [vmem:[%s4 + $0x270] sm:$0xff]
  %v240 = vld [vmem:[%s4 + $0x278] sm:$0xff]
  %v241 = vld [vmem:[%s4 + $0x280] sm:$0xff]
  %v242 = vld [vmem:[%s4 + $0x288] sm:$0xff]
  %v243 = vld [vmem:[%s4 + $0x290] sm:$0xff]
  %v244 = vld [vmem:[%s4 + $0x298] sm:$0xff]
  %v245 = vld [vmem:[%s4 + $0x2a0] sm:$0xff]
  %v246 = vld [vmem:[%s4 + $0x2a8] sm:$0xff]
  %v247 = vld [vmem:[%s4 + $0x2b0] sm:$0xff]
  %v248 = vld [vmem:[%s4 + $0x2b8] sm:$0xff]
  %v249 = vld [vmem:[%s4 + $0x2c0] sm:$0xff]
  %v250 = vld [vmem:[%s4 + $0x2c8] sm:$0xff]
  %v251 = vld [vmem:[%s4 + $0x2d0] sm:$0xff]
  %v252 = vld [vmem:[%s4 + $0x2d8] sm:$0xff]
  %v253 = vld [vmem:[%s4 + $0x2e0] sm:$0xff]
  %v254 = vld [vmem:[%s4 + $0x2e8] sm:$0xff]
  %v255 = vld [vmem:[%s4 + $0x2f0] sm:$0xff]
  %v256 = vld [vmem:[%s4 + $0x2f8] sm:$0xff]
  %v257 = vld [vmem:[%s4 + $0x300] sm:$0xff]
  %v258 = vld [vmem:[%s4 + $0x308] sm:$0xff]
  %v259 = vld [vmem:[%s4 + $0x310] sm:$0xff]
  %v260 = vld [vmem:[%s4 + $0x318] sm:$0xff]
  %v261 = vld [vmem:[%s4 + $0x320] sm:$0xff]
  %v262 = vld [vmem:[%s4 + $0x328] sm:$0xff]
  %v263 = vld [vmem:[%s4 + $0x330] sm:$0xff]
  %v264 = vld [vmem:[%s4 + $0x338] sm:$0xff]
  %v265 = vld [vmem:[%s4 + $0x340] sm:$0xff]
  %v266 = vld [vmem:[%s4 + $0x348] sm:$0xff]
  %v267 = vld [vmem:[%s4 + $0x350] sm:$0xff]
  %v268 = vld [vmem:[%s4 + $0x358] sm:$0xff]
  %v269 = vld [vmem:[%s4 + $0x360] sm:$0xff]
  %v270 = vld [vmem:[%s4 + $0x368] sm:$0xff]
  %v271 = vld [vmem:[%s4 + $0x370] sm:$0xff]
  %v272 = vld [vmem:[%s4 + $0x378] sm:$0xff]
  %v273 = vld [vmem:[%s4 + $0x380] sm:$0xff]
  %v274 = vld [vmem:[%s4 + $0x388] sm:$0xff]
  %v275 = vld [vmem:[%s4 + $0x390] sm:$0xff]
  %v276 = vld [vmem:[%s4 + $0x398] sm:$0xff]
  %v277 = vld [vmem:[%s4 + $0x3a0] sm:$0xff]
  %v278 = vld [vmem:[%s4 + $0x3a8] sm:$0xff]
  %v279 = vld [vmem:[%s4 + $0x3b0] sm:$0xff]
  %v280 = vld [vmem:[%s4 + $0x3b8] sm:$0xff]
  %v281 = vld [vmem:[%s4 + $0x3c0] sm:$0xff]
  %v282 = vld [vmem:[%s4 + $0x3c8] sm:$0xff]
  %v283 = vld [vmem:[%s4 + $0x3d0] sm:$0xff]
  %v284 = vld [vmem:[%s4 + $0x3d8] sm:$0xff]
  %v285 = vld [vmem:[%s4 + $0x3e0] sm:$0xff]
  %v286 = vld [vmem:[%s4 + $0x3e8] sm:$0xff]
  %v287 = vld [vmem:[%s4 + $0x3f0] sm:$0xff]
  %v288 = vld [vmem:[%s4 + $0x3f8] sm:$0xff]
  %v289 = vld [vmem:[%s5] sm:$0xff]
  %v290 = vld [vmem:[%s5 + $0x8] sm:$0xff]
  %v291 = vld [vmem:[%s5 + $0x10] sm:$0xff]
  %v292 = vld [vmem:[%s5 + $0x18] sm:$0xff]
  %v293 = vld [vmem:[%s5 + $0x20] sm:$0xff]
  %v294 = vld [vmem:[%s5 + $0x28] sm:$0xff]
  %v295 = vld [vmem:[%s5 + $0x30] sm:$0xff]
  %v296 = vld [vmem:[%s5 + $0x38] sm:$0xff]
  %v297 = vld [vmem:[%s5 + $0x40] sm:$0xff]
  %v298 = vld [vmem:[%s5 + $0x48] sm:$0xff]
  %v299 = vld [vmem:[%s5 + $0x50] sm:$0xff]
  %v300 = vld [vmem:[%s5 + $0x58] sm:$0xff]
  %v301 = vld [vmem:[%s5 + $0x60] sm:$0xff]
  %v302 = vld [vmem:[%s5 + $0x68] sm:$0xff]
  %v303 = vld [vmem:[%s5 + $0x70] sm:$0xff]
  %v304 = vld [vmem:[%s5 + $0x78] sm:$0xff]
  %v305 = vld [vmem:[%s5 + $0x80] sm:$0xff]
  %v306 = vld [vmem:[%s5 + $0x88] sm:$0xff]
  %v307 = vld [vmem:[%s5 + $0x90] sm:$0xff]
  %v308 = vld [vmem:[%s5 + $0x98] sm:$0xff]
  %v309 = vld [vmem:[%s5 + $0xa0] sm:$0xff]
  %v310 = vld [vmem:[%s5 + $0xa8] sm:$0xff]
  %v311 = vld [vmem:[%s5 + $0xb0] sm:$0xff]
  %v312 = vld [vmem:[%s5 + $0xb8] sm:$0xff]
  %v313 = vld [vmem:[%s5 + $0xc0] sm:$0xff]
  %v314 = vld [vmem:[%s5 + $0xc8] sm:$0xff]
  %v315 = vld [vmem:[%s5 + $0xd0] sm:$0xff]
  %v316 = vld [vmem:[%s5 + $0xd8] sm:$0xff]
  %v317 = vld [vmem:[%s5 + $0xe0] sm:$0xff]
  %v318 = vld [vmem:[%s5 + $0xe8] sm:$0xff]
  %v319 = vld [vmem:[%s5 + $0xf0] sm:$0xff]
  %v320 = vld [vmem:[%s5 + $0xf8] sm:$0xff]
  %v321 = vld [vmem:[%s5 + $0x100] sm:$0xff]
  %v322 = vld [vmem:[%s5 + $0x108] sm:$0xff]
  %v323 = vld [vmem:[%s5 + $0x110] sm:$0xff]
  %v324 = vld [vmem:[%s5 + $0x118] sm:$0xff]
  %v325 = vld [vmem:[%s5 + $0x120] sm:$0xff]
  %v326 = vld [vmem:[%s5 + $0x128] sm:$0xff]
  %v327 = vld [vmem:[%s5 + $0x130] sm:$0xff]
  %v328 = vld [vmem:[%s5 + $0x138] sm:$0xff]
  %v329 = vld [vmem:[%s5 + $0x140] sm:$0xff]
  %v330 = vld [vmem:[%s5 + $0x148] sm:$0xff]
  %v331 = vld [vmem:[%s5 + $0x150] sm:$0xff]
  %v332 = vld [vmem:[%s5 + $0x158] sm:$0xff]
  %v333 = vld [vmem:[%s5 + $0x160] sm:$0xff]
  %v334 = vld [vmem:[%s5 + $0x168] sm:$0xff]
  %v335 = vld [vmem:[%s5 + $0x170] sm:$0xff]
  %v336 = vld [vmem:[%s5 + $0x178] sm:$0xff]
  %v337 = vld [vmem:[%s5 + $0x180] sm:$0xff]
  %v338 = vld [vmem:[%s5 + $0x188] sm:$0xff]
  %v339 = vld [vmem:[%s5 + $0x190] sm:$0xff]
  %v340 = vld [vmem:[%s5 + $0x198] sm:$0xff]
  %v341 = vld [vmem:[%s5 + $0x1a0] sm:$0xff]
  %v342 = vld [vmem:[%s5 + $0x1a8] sm:$0xff]
  %v343 = vld [vmem:[%s5 + $0x1b0] sm:$0xff]
  %v344 = vld [vmem:[%s5 + $0x1b8] sm:$0xff]
  %v345 = vld [vmem:[%s5 + $0x1c0] sm:$0xff]
  %v346 = vld [vmem:[%s5 + $0x1c8] sm:$0xff]
  %v347 = vld [vmem:[%s5 + $0x1d0] sm:$0xff]
  %v348 = vld [vmem:[%s5 + $0x1d8] sm:$0xff]
  %v349 = vld [vmem:[%s5 + $0x1e0] sm:$0xff]
  %v350 = vld [vmem:[%s5 + $0x1e8] sm:$0xff]
  %v351 = vld [vmem:[%s5 + $0x1f0] sm:$0xff]
  %v352 = vld [vmem:[%s5 + $0x1f8] sm:$0xff]
  %v353 = vld [vmem:[%s5 + $0x200] sm:$0xff]
  %v354 = vld [vmem:[%s5 + $0x208] sm:$0xff]
  %v355 = vld [vmem:[%s5 + $0x210] sm:$0xff]
  %v356 = vld [vmem:[%s5 + $0x218] sm:$0xff]
  %v357 = vld [vmem:[%s5 + $0x220] sm:$0xff]
  %v358 = vld [vmem:[%s5 + $0x228] sm:$0xff]
  %v359 = vld [vmem:[%s5 + $0x230] sm:$0xff]
  %v360 = vld [vmem:[%s5 + $0x238] sm:$0xff]
  %v361 = vld [vmem:[%s5 + $0x240] sm:$0xff]
  %v362 = vld [vmem:[%s5 + $0x248] sm:$0xff]
  %v363 = vld [vmem:[%s5 + $0x250] sm:$0xff]
  %v364 = vld [vmem:[%s5 + $0x258] sm:$0xff]
  %v365 = vld [vmem:[%s5 + $0x260] sm:$0xff]
  %v366 = vld [vmem:[%s5 + $0x268] sm:$0xff]
  %v367 = vld [vmem:[%s5 + $0x270] sm:$0xff]
  %v368 = vld [vmem:[%s5 + $0x278] sm:$0xff]
  %v369 = vld [vmem:[%s5 + $0x280] sm:$0xff]
  %v370 = vld [vmem:[%s5 + $0x288] sm:$0xff]
  %v371 = vld [vmem:[%s5 + $0x290] sm:$0xff]
  %v372 = vld [vmem:[%s5 + $0x298] sm:$0xff]
  %v373 = vld [vmem:[%s5 + $0x2a0] sm:$0xff]
  %v374 = vld [vmem:[%s5 + $0x2a8] sm:$0xff]
  %v375 = vld [vmem:[%s5 + $0x2b0] sm:$0xff]
  %v376 = vld [vmem:[%s5 + $0x2b8] sm:$0xff]
  %v377 = vld [vmem:[%s5 + $0x2c0] sm:$0xff]
  %v378 = vld [vmem:[%s5 + $0x2c8] sm:$0xff]
  %v379 = vld [vmem:[%s5 + $0x2d0] sm:$0xff]
  %v380 = vld [vmem:[%s5 + $0x2d8] sm:$0xff]
  %v381 = vld [vmem:[%s5 + $0x2e0] sm:$0xff]
  %v382 = vld [vmem:[%s5 + $0x2e8] sm:$0xff]
  %v383 = vld [vmem:[%s5 + $0x2f0] sm:$0xff]
  %v384 = vld [vmem:[%s5 + $0x2f8] sm:$0xff]
  %v385 = vld [vmem:[%s5 + $0x300] sm:$0xff]
  %v386 = vld [vmem:[%s5 + $0x308] sm:$0xff]
  %v387 = vld [vmem:[%s5 + $0x310] sm:$0xff]
  %v388 = vld [vmem:[%s5 + $0x318] sm:$0xff]
  %v389 = vld [vmem:[%s5 + $0x320] sm:$0xff]
  %v390 = vld [vmem:[%s5 + $0x328] sm:$0xff]
  %v391 = vld [vmem:[%s5 + $0x330] sm:$0xff]
  %v392 = vld [vmem:[%s5 + $0x338] sm:$0xff]
  %v393 = vld [vmem:[%s5 + $0x340] sm:$0xff]
  %v394 = vld [vmem:[%s5 + $0x348] sm:$0xff]
  %v395 = vld [vmem:[%s5 + $0x350] sm:$0xff]
  %v396 = vld [vmem:[%s5 + $0x358] sm:$0xff]
  %v397 = vld [vmem:[%s5 + $0x360] sm:$0xff]
  %v398 = vld [vmem:[%s5 + $0x368] sm:$0xff]
  %v399 = vld [vmem:[%s5 + $0x370] sm:$0xff]
  %v400 = vld [vmem:[%s5 + $0x378] sm:$0xff]
  %v401 = vld [vmem:[%s5 + $0x380] sm:$0xff]
  %v402 = vld [vmem:[%s5 + $0x388] sm:$0xff]
  %v403 = vld [vmem:[%s5 + $0x390] sm:$0xff]
  %v404 = vld [vmem:[%s5 + $0x398] sm:$0xff]
  %v405 = vld [vmem:[%s5 + $0x3a0] sm:$0xff]
  %v406 = vld [vmem:[%s5 + $0x3a8] sm:$0xff]
  %v407 = vld [vmem:[%s5 + $0x3b0] sm:$0xff]
  %v408 = vld [vmem:[%s5 + $0x3b8] sm:$0xff]
  %v409 = vld [vmem:[%s5 + $0x3c0] sm:$0xff]
  %v410 = vld [vmem:[%s5 + $0x3c8] sm:$0xff]
  %v411 = vld [vmem:[%s5 + $0x3d0] sm:$0xff]
  %v412 = vld [vmem:[%s5 + $0x3d8] sm:$0xff]
  %v413 = vld [vmem:[%s5 + $0x3e0] sm:$0xff]
  %v414 = vld [vmem:[%s5 + $0x3e8] sm:$0xff]
  %v415 = vld [vmem:[%s5 + $0x3f0] sm:$0xff]
  %v416 = vld [vmem:[%s5 + $0x3f8] sm:$0xff]
  %v417 = vld [vmem:[%s6] sm:$0xff]
  %v418 = vld [vmem:[%s0] sm:$0xf]
  %v419 = vld [vmem:[%s0 + $0x4] sm:$0xf]
  %v420 = vld [vmem:[%s0 + $0x8] sm:$0xf]
  %v421 = vld [vmem:[%s0 + $0xc] sm:$0xf]
  %v422 = vld [vmem:[%s0 + $0x10] sm:$0xf]
  %v423 = vld [vmem:[%s0 + $0x14] sm:$0xf]
  %v424 = vld [vmem:[%s0 + $0x18] sm:$0xf]
  %v425 = vld [vmem:[%s0 + $0x1c] sm:$0xf]
  %v426 = vld [vmem:[%s1] sm:$0xff]
  %v427 = vld [vmem:[%s1 + $0x8] sm:$0xff]
  %v428 = vld [vmem:[%s1 + $0x10] sm:$0xff]
  %v429 = vld [vmem:[%s1 + $0x18] sm:$0xff]
  %v430 = vld [vmem:[%s3] sm:$0xff]
  %v432 = vlaneseq
  %v433 = vshrl.u32 %v432, 7
  %v434 = vsub.s32 0, %v433
  %v435 = vrot.slane %v430, %v434
  %v436 = vlaneseq
  %v437 = vshrl.u32 %v436, 7
  %v438 = vsub.s32 1, %v437
  %v439 = vrot.slane %v430, %v438
  %v440 = vlaneseq
  %v441 = vshrl.u32 %v440, 7
  %v442 = vsub.s32 2, %v441
  %v443 = vrot.slane %v430, %v442
  %v444 = vlaneseq
  %v445 = vshrl.u32 %v444, 7
  %v446 = vsub.s32 3, %v445
  %v447 = vrot.slane %v430, %v446
  %v448 = vlaneseq
  %v449 = vshrl.u32 %v448, 7
  %v450 = vsub.s32 4, %v449
  %v451 = vrot.slane %v430, %v450
  %v452 = vlaneseq
  %v453 = vshrl.u32 %v452, 7
  %v454 = vsub.s32 5, %v453
  %v455 = vrot.slane %v430, %v454
  %v456 = vlaneseq
  %v457 = vshrl.u32 %v456, 7
  %v458 = vsub.s32 6, %v457
  %v459 = vrot.slane %v430, %v458
  %v460 = vlaneseq
  %v461 = vshrl.u32 %v460, 7
  %v462 = vsub.s32 7, %v461
  %v463 = vrot.slane %v430, %v462
  %v480 = vunpack.c.l.b16 %v418
  %v481 = vunpack.c.l.b16 %v419
  %v482 = vunpack.c.l.b16 %v420
  %v483 = vunpack.c.l.b16 %v421
  %v484 = vunpack.c.l.b16 %v422
  %v485 = vunpack.c.l.b16 %v423
  %v486 = vunpack.c.l.b16 %v424
  %v487 = vunpack.c.l.b16 %v425
  %v488 = vpack.c.b16 %v481, %v480
  %v489 = vpack.c.b16 %v483, %v482
  %v490 = vpack.c.b16 %v485, %v484
  %v491 = vpack.c.b16 %v487, %v486
  %v496 = vunpack.c.l.b16 %v426
  %v497 = vunpack.c.h.b16 %v426
  %v498 = vunpack.c.l.b16 %v427
  %v499 = vunpack.c.h.b16 %v427
  %v500 = vunpack.c.l.b16 %v428
  %v501 = vunpack.c.h.b16 %v428
  %v502 = vunpack.c.l.b16 %v429
  %v503 = vunpack.c.h.b16 %v429
  %v504 = vpack.c.b16 %v496, %v496
  %v505 = vpack.c.b16 %v497, %v497
  %v506 = vpack.c.b16 %v498, %v498
  %v507 = vpack.c.b16 %v499, %v499
  %v508 = vpack.c.b16 %v500, %v500
  %v509 = vpack.c.b16 %v501, %v501
  %v510 = vpack.c.b16 %v502, %v502
  %v511 = vpack.c.b16 %v503, %v503
  %vm512 = vcmask 64512
  %v514 = vsel %vm512, %v488, 0
  %v517 = vsel %vm512, %v489, 0
  %v520 = vsel %vm512, %v490, 0
  %v523 = vsel %vm512, %v491, 0
  %vm525 = vcmask 1043456
  %v527 = vsel %vm525, %v504, 0
  %v530 = vsel %vm525, %v505, 0
  %v533 = vsel %vm525, %v506, 0
  %v536 = vsel %vm525, %v507, 0
  %v539 = vsel %vm525, %v508, 0
  %v542 = vsel %vm525, %v509, 0
  %v545 = vsel %vm525, %v510, 0
  %v548 = vsel %vm525, %v511, 0
  %550 = vmatprep.subr.bf16.mxu0 %v530
  %551 = vmatpush1.bf16.msra.mxu0 %v527
  %552 = vmatprep.subr.bf16.mxu0 0
  %553 = vmatpush1.bf16.msra.mxu0 0
  %554 = vmatprep.subr.bf16.mxu0 0
  %555 = vmatpush1.bf16.msra.mxu0 0
  %556 = vmatprep.subr.bf16.mxu0 0
  %557 = vmatpush1.bf16.msra.mxu0 0
  %558 = vmatprep.subr.bf16.mxu0 0
  %559 = vmatpush1.bf16.msra.mxu0 0
  %560 = vmatprep.subr.bf16.mxu0 0
  %561 = vmatpush1.bf16.msra.mxu0 0
  %562 = vmatprep.subr.bf16.mxu0 0
  %563 = vmatpush1.bf16.msra.mxu0 0
  %564 = vmatprep.subr.bf16.mxu0 0
  %565 = vmatpush1.bf16.msra.mxu0 0
  %566 = vmatprep.subr.bf16.mxu0 0
  %567 = vmatpush1.bf16.msra.mxu0 0
  %568 = vmatprep.subr.bf16.mxu0 0
  %569 = vmatpush1.bf16.msra.mxu0 0
  %570 = vmatprep.subr.bf16.mxu0 0
  %571 = vmatpush1.bf16.msra.mxu0 0
  %572 = vmatprep.subr.bf16.mxu0 0
  %573 = vmatpush1.bf16.msra.mxu0 0
  %574 = vmatprep.subr.bf16.mxu0 0
  %575 = vmatpush1.bf16.msra.mxu0 0
  %576 = vmatprep.subr.bf16.mxu0 0
  %577 = vmatpush1.bf16.msra.mxu0 0
  %578 = vmatprep.subr.bf16.mxu0 0
  %579 = vmatpush1.bf16.msra.mxu0 0
  %580 = vmatprep.subr.bf16.mxu0 0
  %581 = vmatpush1.bf16.msra.mxu0 0
  %582 = vmatprep.mubr.bf16.mxu0 0
  %583 = vmatmul.mubr.bf16.gmra.mrb[0].mxu0 %v514
  %v584 = vpop.f32.mrb[0].mxu0
  %v585 = vadd.f32 %v435, %v584
  %v586 = vpop.f32.mrb[0].mxu0
  %v587 = vadd.f32 %v439, %v586
  %v588 = vpop.f32.mrb[0].mxu0
  %v589 = vadd.f32 %v435, %v588
  %v590 = vpop.f32.mrb[0].mxu0
  %v591 = vadd.f32 %v439, %v590
  %592 = vmatprep.mubr.bf16.mxu0 0
  %593 = vmatmul.mubr.bf16.gmra.mrb[0].mxu0 %v517
  %v594 = vpop.f32.mrb[0].mxu0
  %v595 = vadd.f32 %v435, %v594
  %v596 = vpop.f32.mrb[0].mxu0
  %v597 = vadd.f32 %v439, %v596
  %v598 = vpop.f32.mrb[0].mxu0
  %v599 = vadd.f32 %v435, %v598
  %v600 = vpop.f32.mrb[0].mxu0
  %v601 = vadd.f32 %v439, %v600
  %602 = vmatprep.mubr.bf16.mxu0 0
  %603 = vmatmul.mubr.bf16.gmra.mrb[0].mxu0 %v520
  %v604 = vpop.f32.mrb[0].mxu0
  %v605 = vadd.f32 %v435, %v604
  %v606 = vpop.f32.mrb[0].mxu0
  %v607 = vadd.f32 %v439, %v606
  %v608 = vpop.f32.mrb[0].mxu0
  %v609 = vadd.f32 %v435, %v608
  %v610 = vpop.f32.mrb[0].mxu0
  %v611 = vadd.f32 %v439, %v610
  %612 = vmatprep.mubr.bf16.mxu0 0
  %613 = vmatmul.mubr.bf16.gmra.mrb[0].mxu0 %v523
  %v614 = vpop.f32.mrb[0].mxu0
  %v615 = vadd.f32 %v435, %v614
  %v616 = vpop.f32.mrb[0].mxu0
  %v617 = vadd.f32 %v439, %v616
  %v618 = vpop.f32.mrb[0].mxu0
  %v619 = vadd.f32 %v435, %v618
  %v620 = vpop.f32.mrb[0].mxu0
  %v621 = vadd.f32 %v439, %v620
  %622 = vdwg.mxu0
  %623 = vmatprep.subr.bf16.mxu0 %v536
  %624 = vmatpush1.bf16.msra.mxu0 %v533
  %625 = vmatprep.subr.bf16.mxu0 0
  %626 = vmatpush1.bf16.msra.mxu0 0
  %627 = vmatprep.subr.bf16.mxu0 0
  %628 = vmatpush1.bf16.msra.mxu0 0
  %629 = vmatprep.subr.bf16.mxu0 0
  %630 = vmatpush1.bf16.msra.mxu0 0
  %631 = vmatprep.subr.bf16.mxu0 0
  %632 = vmatpush1.bf16.msra.mxu0 0
  %633 = vmatprep.subr.bf16.mxu0 0
  %634 = vmatpush1.bf16.msra.mxu0 0
  %635 = vmatprep.subr.bf16.mxu0 0
  %636 = vmatpush1.bf16.msra.mxu0 0
  %637 = vmatprep.subr.bf16.mxu0 0
  %638 = vmatpush1.bf16.msra.mxu0 0
  %639 = vmatprep.subr.bf16.mxu0 0
  %640 = vmatpush1.bf16.msra.mxu0 0
  %641 = vmatprep.subr.bf16.mxu0 0
  %642 = vmatpush1.bf16.msra.mxu0 0
  %643 = vmatprep.subr.bf16.mxu0 0
  %644 = vmatpush1.bf16.msra.mxu0 0
  %645 = vmatprep.subr.bf16.mxu0 0
  %646 = vmatpush1.bf16.msra.mxu0 0
  %647 = vmatprep.subr.bf16.mxu0 0
  %648 = vmatpush1.bf16.msra.mxu0 0
  %649 = vmatprep.subr.bf16.mxu0 0
  %650 = vmatpush1.bf16.msra.mxu0 0
  %651 = vmatprep.subr.bf16.mxu0 0
  %652 = vmatpush1.bf16.msra.mxu0 0
  %653 = vmatprep.subr.bf16.mxu0 0
  %654 = vmatpush1.bf16.msra.mxu0 0
  %655 = vmatprep.mubr.bf16.mxu0 0
  %656 = vmatmul.mubr.bf16.gmra.mrb[0].mxu0 %v514
  %v657 = vpop.f32.mrb[0].mxu0
  %v658 = vadd.f32 %v443, %v657
  %v659 = vpop.f32.mrb[0].mxu0
  %v660 = vadd.f32 %v447, %v659
  %v661 = vpop.f32.mrb[0].mxu0
  %v662 = vadd.f32 %v443, %v661
  %v663 = vpop.f32.mrb[0].mxu0
  %v664 = vadd.f32 %v447, %v663
  %665 = vmatprep.mubr.bf16.mxu0 0
  %666 = vmatmul.mubr.bf16.gmra.mrb[0].mxu0 %v517
  %v667 = vpop.f32.mrb[0].mxu0
  %v668 = vadd.f32 %v443, %v667
  %v669 = vpop.f32.mrb[0].mxu0
  %v670 = vadd.f32 %v447, %v669
  %v671 = vpop.f32.mrb[0].mxu0
  %v672 = vadd.f32 %v443, %v671
  %v673 = vpop.f32.mrb[0].mxu0
  %v674 = vadd.f32 %v447, %v673
  %675 = vmatprep.mubr.bf16.mxu0 0
  %676 = vmatmul.mubr.bf16.gmra.mrb[0].mxu0 %v520
  %v677 = vpop.f32.mrb[0].mxu0
  %v678 = vadd.f32 %v443, %v677
  %v679 = vpop.f32.mrb[0].mxu0
  %v680 = vadd.f32 %v447, %v679
  %v681 = vpop.f32.mrb[0].mxu0
  %v682 = vadd.f32 %v443, %v681
  %v683 = vpop.f32.mrb[0].mxu0
  %v684 = vadd.f32 %v447, %v683
  %685 = vmatprep.mubr.bf16.mxu0 0
  %686 = vmatmul.mubr.bf16.gmra.mrb[0].mxu0 %v523
  %v687 = vpop.f32.mrb[0].mxu0
  %v688 = vadd.f32 %v443, %v687
  %v689 = vpop.f32.mrb[0].mxu0
  %v690 = vadd.f32 %v447, %v689
  %v691 = vpop.f32.mrb[0].mxu0
  %v692 = vadd.f32 %v443, %v691
  %v693 = vpop.f32.mrb[0].mxu0
  %v694 = vadd.f32 %v447, %v693
  %695 = vdwg.mxu0
  %696 = vmatprep.subr.bf16.mxu0 %v542
  %697 = vmatpush1.bf16.msra.mxu0 %v539
  %698 = vmatprep.subr.bf16.mxu0 0
  %699 = vmatpush1.bf16.msra.mxu0 0
  %700 = vmatprep.subr.bf16.mxu0 0
  %701 = vmatpush1.bf16.msra.mxu0 0
  %702 = vmatprep.subr.bf16.mxu0 0
  %703 = vmatpush1.bf16.msra.mxu0 0
  %704 = vmatprep.subr.bf16.mxu0 0
  %705 = vmatpush1.bf16.msra.mxu0 0
  %706 = vmatprep.subr.bf16.mxu0 0
  %707 = vmatpush1.bf16.msra.mxu0 0
  %708 = vmatprep.subr.bf16.mxu0 0
  %709 = vmatpush1.bf16.msra.mxu0 0
  %710 = vmatprep.subr.bf16.mxu0 0
  %711 = vmatpush1.bf16.msra.mxu0 0
  %712 = vmatprep.subr.bf16.mxu0 0
  %713 = vmatpush1.bf16.msra.mxu0 0
  %714 = vmatprep.subr.bf16.mxu0 0
  %715 = vmatpush1.bf16.msra.mxu0 0
  %716 = vmatprep.subr.bf16.mxu0 0
  %717 = vmatpush1.bf16.msra.mxu0 0
  %718 = vmatprep.subr.bf16.mxu0 0
  %719 = vmatpush1.bf16.msra.mxu0 0
  %720 = vmatprep.subr.bf16.mxu0 0
  %721 = vmatpush1.bf16.msra.mxu0 0
  %722 = vmatprep.subr.bf16.mxu0 0
  %723 = vmatpush1.bf16.msra.mxu0 0
  %724 = vmatprep.subr.bf16.mxu0 0
  %725 = vmatpush1.bf16.msra.mxu0 0
  %726 = vmatprep.subr.bf16.mxu0 0
  %727 = vmatpush1.bf16.msra.mxu0 0
  %728 = vmatprep.mubr.bf16.mxu0 0
  %729 = vmatmul.mubr.bf16.gmra.mrb[0].mxu0 %v514
  %v730 = vpop.f32.mrb[0].mxu0
  %v731 = vadd.f32 %v451, %v730
  %v732 = vpop.f32.mrb[0].mxu0
  %v733 = vadd.f32 %v455, %v732
  %v734 = vpop.f32.mrb[0].mxu0
  %v735 = vadd.f32 %v451, %v734
  %v736 = vpop.f32.mrb[0].mxu0
  %v737 = vadd.f32 %v455, %v736
  %738 = vmatprep.mubr.bf16.mxu0 0
  %739 = vmatmul.mubr.bf16.gmra.mrb[0].mxu0 %v517
  %v740 = vpop.f32.mrb[0].mxu0
  %v741 = vadd.f32 %v451, %v740
  %v742 = vpop.f32.mrb[0].mxu0
  %v743 = vadd.f32 %v455, %v742
  %v744 = vpop.f32.mrb[0].mxu0
  %v745 = vadd.f32 %v451, %v744
  %v746 = vpop.f32.mrb[0].mxu0
  %v747 = vadd.f32 %v455, %v746
  %748 = vmatprep.mubr.bf16.mxu0 0
  %749 = vmatmul.mubr.bf16.gmra.mrb[0].mxu0 %v520
  %v750 = vpop.f32.mrb[0].mxu0
  %v751 = vadd.f32 %v451, %v750
  %v752 = vpop.f32.mrb[0].mxu0
  %v753 = vadd.f32 %v455, %v752
  %v754 = vpop.f32.mrb[0].mxu0
  %v755 = vadd.f32 %v451, %v754
  %v756 = vpop.f32.mrb[0].mxu0
  %v757 = vadd.f32 %v455, %v756
  %758 = vmatprep.mubr.bf16.mxu0 0
  %759 = vmatmul.mubr.bf16.gmra.mrb[0].mxu0 %v523
  %v760 = vpop.f32.mrb[0].mxu0
  %v761 = vadd.f32 %v451, %v760
  %v762 = vpop.f32.mrb[0].mxu0
  %v763 = vadd.f32 %v455, %v762
  %v764 = vpop.f32.mrb[0].mxu0
  %v765 = vadd.f32 %v451, %v764
  %v766 = vpop.f32.mrb[0].mxu0
  %v767 = vadd.f32 %v455, %v766
  %768 = vdwg.mxu0
  %769 = vmatprep.subr.bf16.mxu0 %v548
  %770 = vmatpush1.bf16.msra.mxu0 %v545
  %771 = vmatprep.subr.bf16.mxu0 0
  %772 = vmatpush1.bf16.msra.mxu0 0
  %773 = vmatprep.subr.bf16.mxu0 0
  %774 = vmatpush1.bf16.msra.mxu0 0
  %775 = vmatprep.subr.bf16.mxu0 0
  %776 = vmatpush1.bf16.msra.mxu0 0
  %777 = vmatprep.subr.bf16.mxu0 0
  %778 = vmatpush1.bf16.msra.mxu0 0
  %779 = vmatprep.subr.bf16.mxu0 0
  %780 = vmatpush1.bf16.msra.mxu0 0
  %781 = vmatprep.subr.bf16.mxu0 0
  %782 = vmatpush1.bf16.msra.mxu0 0
  %783 = vmatprep.subr.bf16.mxu0 0
  %784 = vmatpush1.bf16.msra.mxu0 0
  %785 = vmatprep.subr.bf16.mxu0 0
  %786 = vmatpush1.bf16.msra.mxu0 0
  %787 = vmatprep.subr.bf16.mxu0 0
  %788 = vmatpush1.bf16.msra.mxu0 0
  %789 = vmatprep.subr.bf16.mxu0 0
  %790 = vmatpush1.bf16.msra.mxu0 0
  %791 = vmatprep.subr.bf16.mxu0 0
  %792 = vmatpush1.bf16.msra.mxu0 0
  %793 = vmatprep.subr.bf16.mxu0 0
  %794 = vmatpush1.bf16.msra.mxu0 0
  %795 = vmatprep.subr.bf16.mxu0 0
  %796 = vmatpush1.bf16.msra.mxu0 0
  %797 = vmatprep.subr.bf16.mxu0 0
  %798 = vmatpush1.bf16.msra.mxu0 0
  %799 = vmatprep.subr.bf16.mxu0 0
  %800 = vmatpush1.bf16.msra.mxu0 0
  %801 = vmatprep.mubr.bf16.mxu0 0
  %802 = vmatmul.mubr.bf16.gmra.mrb[0].mxu0 %v514
  %v803 = vpop.f32.mrb[0].mxu0
  %v804 = vadd.f32 %v459, %v803
  %v805 = vpop.f32.mrb[0].mxu0
  %v806 = vadd.f32 %v463, %v805
  %v807 = vpop.f32.mrb[0].mxu0
  %v808 = vadd.f32 %v459, %v807
  %v809 = vpop.f32.mrb[0].mxu0
  %v810 = vadd.f32 %v463, %v809
  %811 = vmatprep.mubr.bf16.mxu0 0
  %812 = vmatmul.mubr.bf16.gmra.mrb[0].mxu0 %v517
  %v813 = vpop.f32.mrb[0].mxu0
  %v814 = vadd.f32 %v459, %v813
  %v815 = vpop.f32.mrb[0].mxu0
  %v816 = vadd.f32 %v463, %v815
  %v817 = vpop.f32.mrb[0].mxu0
  %v818 = vadd.f32 %v459, %v817
  %v819 = vpop.f32.mrb[0].mxu0
  %v820 = vadd.f32 %v463, %v819
  %821 = vmatprep.mubr.bf16.mxu0 0
  %822 = vmatmul.mubr.bf16.gmra.mrb[0].mxu0 %v520
  %v823 = vpop.f32.mrb[0].mxu0
  %v824 = vadd.f32 %v459, %v823
  %v825 = vpop.f32.mrb[0].mxu0
  %v826 = vadd.f32 %v463, %v825
  %v827 = vpop.f32.mrb[0].mxu0
  %v828 = vadd.f32 %v459, %v827
  %v829 = vpop.f32.mrb[0].mxu0
  %v830 = vadd.f32 %v463, %v829
  %831 = vmatprep.mubr.bf16.mxu0 0
  %832 = vmatmul.mubr.bf16.gmra.mrb[0].mxu0 %v523
  %v833 = vpop.f32.mrb[0].mxu0
  %v834 = vadd.f32 %v459, %v833
  %v835 = vpop.f32.mrb[0].mxu0
  %v836 = vadd.f32 %v463, %v835
  %v837 = vpop.f32.mrb[0].mxu0
  %v838 = vadd.f32 %v459, %v837
  %v839 = vpop.f32.mrb[0].mxu0
  %v840 = vadd.f32 %v463, %v839
  %841 = vdwg.mxu0
  %v843 = vlaneseq
  %v844 = vshrl.u32 %v843, 7
  %v845 = vsub.s32 0, %v844
  %v846 = vrot.slane %v417, %v845
  %v847 = vlaneseq
  %v848 = vshrl.u32 %v847, 7
  %v849 = vsub.s32 1, %v848
  %v850 = vrot.slane %v417, %v849
  %v851 = vlaneseq
  %v852 = vshrl.u32 %v851, 7
  %v853 = vsub.s32 2, %v852
  %v854 = vrot.slane %v417, %v853
  %v855 = vlaneseq
  %v856 = vshrl.u32 %v855, 7
  %v857 = vsub.s32 3, %v856
  %v858 = vrot.slane %v417, %v857
  %v859 = vlaneseq
  %v860 = vshrl.u32 %v859, 7
  %v861 = vsub.s32 4, %v860
  %v862 = vrot.slane %v417, %v861
  %v863 = vlaneseq
  %v864 = vshrl.u32 %v863, 7
  %v865 = vsub.s32 5, %v864
  %v866 = vrot.slane %v417, %v865
  %v867 = vlaneseq
  %v868 = vshrl.u32 %v867, 7
  %v869 = vsub.s32 6, %v868
  %v870 = vrot.slane %v417, %v869
  %v871 = vlaneseq
  %v872 = vshrl.u32 %v871, 7
  %v873 = vsub.s32 7, %v872
  %v874 = vrot.slane %v417, %v873
  %v1011 = vunpack.c.l.b16 %v289
  %v1012 = vunpack.c.h.b16 %v289
  %v1013 = vunpack.c.l.b16 %v290
  %v1014 = vunpack.c.h.b16 %v290
  %v1015 = vunpack.c.l.b16 %v291
  %v1016 = vunpack.c.h.b16 %v291
  %v1017 = vunpack.c.l.b16 %v292
  %v1018 = vunpack.c.h.b16 %v292
  %v1019 = vunpack.c.l.b16 %v293
  %v1020 = vunpack.c.h.b16 %v293
  %v1021 = vunpack.c.l.b16 %v294
  %v1022 = vunpack.c.h.b16 %v294
  %v1023 = vunpack.c.l.b16 %v295
  %v1024 = vunpack.c.h.b16 %v295
  %v1025 = vunpack.c.l.b16 %v296
  %v1026 = vunpack.c.h.b16 %v296
  %v1027 = vunpack.c.l.b16 %v297
  %v1028 = vunpack.c.h.b16 %v297
  %v1029 = vunpack.c.l.b16 %v298
  %v1030 = vunpack.c.h.b16 %v298
  %v1031 = vunpack.c.l.b16 %v299
  %v1032 = vunpack.c.h.b16 %v299
  %v1033 = vunpack.c.l.b16 %v300
  %v1034 = vunpack.c.h.b16 %v300
  %v1035 = vunpack.c.l.b16 %v301
  %v1036 = vunpack.c.h.b16 %v301
  %v1037 = vunpack.c.l.b16 %v302
  %v1038 = vunpack.c.h.b16 %v302
  %v1039 = vunpack.c.l.b16 %v303
  %v1040 = vunpack.c.h.b16 %v303
  %v1041 = vunpack.c.l.b16 %v304
  %v1042 = vunpack.c.h.b16 %v304
  %v1043 = vunpack.c.l.b16 %v305
  %v1044 = vunpack.c.h.b16 %v305
  %v1045 = vunpack.c.l.b16 %v306
  %v1046 = vunpack.c.h.b16 %v306
  %v1047 = vunpack.c.l.b16 %v307
  %v1048 = vunpack.c.h.b16 %v307
  %v1049 = vunpack.c.l.b16 %v308
  %v1050 = vunpack.c.h.b16 %v308
  %v1051 = vunpack.c.l.b16 %v309
  %v1052 = vunpack.c.h.b16 %v309
  %v1053 = vunpack.c.l.b16 %v310
  %v1054 = vunpack.c.h.b16 %v310
  %v1055 = vunpack.c.l.b16 %v311
  %v1056 = vunpack.c.h.b16 %v311
  %v1057 = vunpack.c.l.b16 %v312
  %v1058 = vunpack.c.h.b16 %v312
  %v1059 = vunpack.c.l.b16 %v313
  %v1060 = vunpack.c.h.b16 %v313
  %v1061 = vunpack.c.l.b16 %v314
  %v1062 = vunpack.c.h.b16 %v314
  %v1063 = vunpack.c.l.b16 %v315
  %v1064 = vunpack.c.h.b16 %v315
  %v1065 = vunpack.c.l.b16 %v316
  %v1066 = vunpack.c.h.b16 %v316
  %v1067 = vunpack.c.l.b16 %v317
  %v1068 = vunpack.c.h.b16 %v317
  %v1069 = vunpack.c.l.b16 %v318
  %v1070 = vunpack.c.h.b16 %v318
  %v1071 = vunpack.c.l.b16 %v319
  %v1072 = vunpack.c.h.b16 %v319
  %v1073 = vunpack.c.l.b16 %v320
  %v1074 = vunpack.c.h.b16 %v320
  %v1075 = vunpack.c.l.b16 %v321
  %v1076 = vunpack.c.h.b16 %v321
  %v1077 = vunpack.c.l.b16 %v322
  %v1078 = vunpack.c.h.b16 %v322
  %v1079 = vunpack.c.l.b16 %v323
  %v1080 = vunpack.c.h.b16 %v323
  %v1081 = vunpack.c.l.b16 %v324
  %v1082 = vunpack.c.h.b16 %v324
  %v1083 = vunpack.c.l.b16 %v325
  %v1084 = vunpack.c.h.b16 %v325
  %v1085 = vunpack.c.l.b16 %v326
  %v1086 = vunpack.c.h.b16 %v326
  %v1087 = vunpack.c.l.b16 %v327
  %v1088 = vunpack.c.h.b16 %v327
  %v1089 = vunpack.c.l.b16 %v328
  %v1090 = vunpack.c.h.b16 %v328
  %v1091 = vunpack.c.l.b16 %v329
  %v1092 = vunpack.c.h.b16 %v329
  %v1093 = vunpack.c.l.b16 %v330
  %v1094 = vunpack.c.h.b16 %v330
  %v1095 = vunpack.c.l.b16 %v331
  %v1096 = vunpack.c.h.b16 %v331
  %v1097 = vunpack.c.l.b16 %v332
  %v1098 = vunpack.c.h.b16 %v332
  %v1099 = vunpack.c.l.b16 %v333
  %v1100 = vunpack.c.h.b16 %v333
  %v1101 = vunpack.c.l.b16 %v334
  %v1102 = vunpack.c.h.b16 %v334
  %v1103 = vunpack.c.l.b16 %v335
  %v1104 = vunpack.c.h.b16 %v335
  %v1105 = vunpack.c.l.b16 %v336
  %v1106 = vunpack.c.h.b16 %v336
  %v1107 = vunpack.c.l.b16 %v337
  %v1108 = vunpack.c.h.b16 %v337
  %v1109 = vunpack.c.l.b16 %v338
  %v1110 = vunpack.c.h.b16 %v338
  %v1111 = vunpack.c.l.b16 %v339
  %v1112 = vunpack.c.h.b16 %v339
  %v1113 = vunpack.c.l.b16 %v340
  %v1114 = vunpack.c.h.b16 %v340
  %v1115 = vunpack.c.l.b16 %v341
  %v1116 = vunpack.c.h.b16 %v341
  %v1117 = vunpack.c.l.b16 %v342
  %v1118 = vunpack.c.h.b16 %v342
  %v1119 = vunpack.c.l.b16 %v343
  %v1120 = vunpack.c.h.b16 %v343
  %v1121 = vunpack.c.l.b16 %v344
  %v1122 = vunpack.c.h.b16 %v344
  %v1123 = vunpack.c.l.b16 %v345
  %v1124 = vunpack.c.h.b16 %v345
  %v1125 = vunpack.c.l.b16 %v346
  %v1126 = vunpack.c.h.b16 %v346
  %v1127 = vunpack.c.l.b16 %v347
  %v1128 = vunpack.c.h.b16 %v347
  %v1129 = vunpack.c.l.b16 %v348
  %v1130 = vunpack.c.h.b16 %v348
  %v1131 = vunpack.c.l.b16 %v349
  %v1132 = vunpack.c.h.b16 %v349
  %v1133 = vunpack.c.l.b16 %v350
  %v1134 = vunpack.c.h.b16 %v350
  %v1135 = vunpack.c.l.b16 %v351
  %v1136 = vunpack.c.h.b16 %v351
  %v1137 = vunpack.c.l.b16 %v352
  %v1138 = vunpack.c.h.b16 %v352
  %v1139 = vunpack.c.l.b16 %v353
  %v1140 = vunpack.c.h.b16 %v353
  %v1141 = vunpack.c.l.b16 %v354
  %v1142 = vunpack.c.h.b16 %v354
  %v1143 = vunpack.c.l.b16 %v355
  %v1144 = vunpack.c.h.b16 %v355
  %v1145 = vunpack.c.l.b16 %v356
  %v1146 = vunpack.c.h.b16 %v356
  %v1147 = vunpack.c.l.b16 %v357
  %v1148 = vunpack.c.h.b16 %v357
  %v1149 = vunpack.c.l.b16 %v358
  %v1150 = vunpack.c.h.b16 %v358
  %v1151 = vunpack.c.l.b16 %v359
  %v1152 = vunpack.c.h.b16 %v359
  %v1153 = vunpack.c.l.b16 %v360
  %v1154 = vunpack.c.h.b16 %v360
  %v1155 = vunpack.c.l.b16 %v361
  %v1156 = vunpack.c.h.b16 %v361
  %v1157 = vunpack.c.l.b16 %v362
  %v1158 = vunpack.c.h.b16 %v362
  %v1159 = vunpack.c.l.b16 %v363
  %v1160 = vunpack.c.h.b16 %v363
  %v1161 = vunpack.c.l.b16 %v364
  %v1162 = vunpack.c.h.b16 %v364
  %v1163 = vunpack.c.l.b16 %v365
  %v1164 = vunpack.c.h.b16 %v365
  %v1165 = vunpack.c.l.b16 %v366
  %v1166 = vunpack.c.h.b16 %v366
  %v1167 = vunpack.c.l.b16 %v367
  %v1168 = vunpack.c.h.b16 %v367
  %v1169 = vunpack.c.l.b16 %v368
  %v1170 = vunpack.c.h.b16 %v368
  %v1171 = vunpack.c.l.b16 %v369
  %v1172 = vunpack.c.h.b16 %v369
  %v1173 = vunpack.c.l.b16 %v370
  %v1174 = vunpack.c.h.b16 %v370
  %v1175 = vunpack.c.l.b16 %v371
  %v1176 = vunpack.c.h.b16 %v371
  %v1177 = vunpack.c.l.b16 %v372
  %v1178 = vunpack.c.h.b16 %v372
  %v1179 = vunpack.c.l.b16 %v373
  %v1180 = vunpack.c.h.b16 %v373
  %v1181 = vunpack.c.l.b16 %v374
  %v1182 = vunpack.c.h.b16 %v374
  %v1183 = vunpack.c.l.b16 %v375
  %v1184 = vunpack.c.h.b16 %v375
  %v1185 = vunpack.c.l.b16 %v376
  %v1186 = vunpack.c.h.b16 %v376
  %v1187 = vunpack.c.l.b16 %v377
  %v1188 = vunpack.c.h.b16 %v377
  %v1189 = vunpack.c.l.b16 %v378
  %v1190 = vunpack.c.h.b16 %v378
  %v1191 = vunpack.c.l.b16 %v379
  %v1192 = vunpack.c.h.b16 %v379
  %v1193 = vunpack.c.l.b16 %v380
  %v1194 = vunpack.c.h.b16 %v380
  %v1195 = vunpack.c.l.b16 %v381
  %v1196 = vunpack.c.h.b16 %v381
  %v1197 = vunpack.c.l.b16 %v382
  %v1198 = vunpack.c.h.b16 %v382
  %v1199 = vunpack.c.l.b16 %v383
  %v1200 = vunpack.c.h.b16 %v383
  %v1201 = vunpack.c.l.b16 %v384
  %v1202 = vunpack.c.h.b16 %v384
  %v1203 = vunpack.c.l.b16 %v385
  %v1204 = vunpack.c.h.b16 %v385
  %v1205 = vunpack.c.l.b16 %v386
  %v1206 = vunpack.c.h.b16 %v386
  %v1207 = vunpack.c.l.b16 %v387
  %v1208 = vunpack.c.h.b16 %v387
  %v1209 = vunpack.c.l.b16 %v388
  %v1210 = vunpack.c.h.b16 %v388
  %v1211 = vunpack.c.l.b16 %v389
  %v1212 = vunpack.c.h.b16 %v389
  %v1213 = vunpack.c.l.b16 %v390
  %v1214 = vunpack.c.h.b16 %v390
  %v1215 = vunpack.c.l.b16 %v391
  %v1216 = vunpack.c.h.b16 %v391
  %v1217 = vunpack.c.l.b16 %v392
  %v1218 = vunpack.c.h.b16 %v392
  %v1219 = vunpack.c.l.b16 %v393
  %v1220 = vunpack.c.h.b16 %v393
  %v1221 = vunpack.c.l.b16 %v394
  %v1222 = vunpack.c.h.b16 %v394
  %v1223 = vunpack.c.l.b16 %v395
  %v1224 = vunpack.c.h.b16 %v395
  %v1225 = vunpack.c.l.b16 %v396
  %v1226 = vunpack.c.h.b16 %v396
  %v1227 = vunpack.c.l.b16 %v397
  %v1228 = vunpack.c.h.b16 %v397
  %v1229 = vunpack.c.l.b16 %v398
  %v1230 = vunpack.c.h.b16 %v398
  %v1231 = vunpack.c.l.b16 %v399
  %v1232 = vunpack.c.h.b16 %v399
  %v1233 = vunpack.c.l.b16 %v400
  %v1234 = vunpack.c.h.b16 %v400
  %v1235 = vunpack.c.l.b16 %v401
  %v1236 = vunpack.c.h.b16 %v401
  %v1237 = vunpack.c.l.b16 %v402
  %v1238 = vunpack.c.h.b16 %v402
  %v1239 = vunpack.c.l.b16 %v403
  %v1240 = vunpack.c.h.b16 %v403
  %v1241 = vunpack.c.l.b16 %v404
  %v1242 = vunpack.c.h.b16 %v404
  %v1243 = vunpack.c.l.b16 %v405
  %v1244 = vunpack.c.h.b16 %v405
  %v1245 = vunpack.c.l.b16 %v406
  %v1246 = vunpack.c.h.b16 %v406
  %v1247 = vunpack.c.l.b16 %v407
  %v1248 = vunpack.c.h.b16 %v407
  %v1249 = vunpack.c.l.b16 %v408
  %v1250 = vunpack.c.h.b16 %v408
  %v1251 = vunpack.c.l.b16 %v409
  %v1252 = vunpack.c.h.b16 %v409
  %v1253 = vunpack.c.l.b16 %v410
  %v1254 = vunpack.c.h.b16 %v410
  %v1255 = vunpack.c.l.b16 %v411
  %v1256 = vunpack.c.h.b16 %v411
  %v1257 = vunpack.c.l.b16 %v412
  %v1258 = vunpack.c.h.b16 %v412
  %v1259 = vunpack.c.l.b16 %v413
  %v1260 = vunpack.c.h.b16 %v413
  %v1261 = vunpack.c.l.b16 %v414
  %v1262 = vunpack.c.h.b16 %v414
  %v1263 = vunpack.c.l.b16 %v415
  %v1264 = vunpack.c.h.b16 %v415
  %v1265 = vunpack.c.l.b16 %v416
  %v1266 = vunpack.c.h.b16 %v416
  %v1267 = vpack.c.b16 %v1019, %v1011
  %v1268 = vpack.c.b16 %v1020, %v1012
  %v1269 = vpack.c.b16 %v1021, %v1013
  %v1270 = vpack.c.b16 %v1022, %v1014
  %v1271 = vpack.c.b16 %v1023, %v1015
  %v1272 = vpack.c.b16 %v1024, %v1016
  %v1273 = vpack.c.b16 %v1025, %v1017
  %v1274 = vpack.c.b16 %v1026, %v1018
  %v1275 = vpack.c.b16 %v1035, %v1027
  %v1276 = vpack.c.b16 %v1036, %v1028
  %v1277 = vpack.c.b16 %v1037, %v1029
  %v1278 = vpack.c.b16 %v1038, %v1030
  %v1279 = vpack.c.b16 %v1039, %v1031
  %v1280 = vpack.c.b16 %v1040, %v1032
  %v1281 = vpack.c.b16 %v1041, %v1033
  %v1282 = vpack.c.b16 %v1042, %v1034
  %v1283 = vpack.c.b16 %v1051, %v1043
  %v1284 = vpack.c.b16 %v1052, %v1044
  %v1285 = vpack.c.b16 %v1053, %v1045
  %v1286 = vpack.c.b16 %v1054, %v1046
  %v1287 = vpack.c.b16 %v1055, %v1047
  %v1288 = vpack.c.b16 %v1056, %v1048
  %v1289 = vpack.c.b16 %v1057, %v1049
  %v1290 = vpack.c.b16 %v1058, %v1050
  %v1291 = vpack.c.b16 %v1067, %v1059
  %v1292 = vpack.c.b16 %v1068, %v1060
  %v1293 = vpack.c.b16 %v1069, %v1061
  %v1294 = vpack.c.b16 %v1070, %v1062
  %v1295 = vpack.c.b16 %v1071, %v1063
  %v1296 = vpack.c.b16 %v1072, %v1064
  %v1297 = vpack.c.b16 %v1073, %v1065
  %v1298 = vpack.c.b16 %v1074, %v1066
  %v1299 = vpack.c.b16 %v1083, %v1075
  %v1300 = vpack.c.b16 %v1084, %v1076
  %v1301 = vpack.c.b16 %v1085, %v1077
  %v1302 = vpack.c.b16 %v1086, %v1078
  %v1303 = vpack.c.b16 %v1087, %v1079
  %v1304 = vpack.c.b16 %v1088, %v1080
  %v1305 = vpack.c.b16 %v1089, %v1081
  %v1306 = vpack.c.b16 %v1090, %v1082
  %v1307 = vpack.c.b16 %v1099, %v1091
  %v1308 = vpack.c.b16 %v1100, %v1092
  %v1309 = vpack.c.b16 %v1101, %v1093
  %v1310 = vpack.c.b16 %v1102, %v1094
  %v1311 = vpack.c.b16 %v1103, %v1095
  %v1312 = vpack.c.b16 %v1104, %v1096
  %v1313 = vpack.c.b16 %v1105, %v1097
  %v1314 = vpack.c.b16 %v1106, %v1098
  %v1315 = vpack.c.b16 %v1115, %v1107
  %v1316 = vpack.c.b16 %v1116, %v1108
  %v1317 = vpack.c.b16 %v1117, %v1109
  %v1318 = vpack.c.b16 %v1118, %v1110
  %v1319 = vpack.c.b16 %v1119, %v1111
  %v1320 = vpack.c.b16 %v1120, %v1112
  %v1321 = vpack.c.b16 %v1121, %v1113
  %v1322 = vpack.c.b16 %v1122, %v1114
  %v1323 = vpack.c.b16 %v1131, %v1123
  %v1324 = vpack.c.b16 %v1132, %v1124
  %v1325 = vpack.c.b16 %v1133, %v1125
  %v1326 = vpack.c.b16 %v1134, %v1126
  %v1327 = vpack.c.b16 %v1135, %v1127
  %v1328 = vpack.c.b16 %v1136, %v1128
  %v1329 = vpack.c.b16 %v1137, %v1129
  %v1330 = vpack.c.b16 %v1138, %v1130
  %v1331 = vpack.c.b16 %v1147, %v1139
  %v1332 = vpack.c.b16 %v1148, %v1140
  %v1333 = vpack.c.b16 %v1149, %v1141
  %v1334 = vpack.c.b16 %v1150, %v1142
  %v1335 = vpack.c.b16 %v1151, %v1143
  %v1336 = vpack.c.b16 %v1152, %v1144
  %v1337 = vpack.c.b16 %v1153, %v1145
  %v1338 = vpack.c.b16 %v1154, %v1146
  %v1339 = vpack.c.b16 %v1163, %v1155
  %v1340 = vpack.c.b16 %v1164, %v1156
  %v1341 = vpack.c.b16 %v1165, %v1157
  %v1342 = vpack.c.b16 %v1166, %v1158
  %v1343 = vpack.c.b16 %v1167, %v1159
  %v1344 = vpack.c.b16 %v1168, %v1160
  %v1345 = vpack.c.b16 %v1169, %v1161
  %v1346 = vpack.c.b16 %v1170, %v1162
  %v1347 = vpack.c.b16 %v1179, %v1171
  %v1348 = vpack.c.b16 %v1180, %v1172
  %v1349 = vpack.c.b16 %v1181, %v1173
  %v1350 = vpack.c.b16 %v1182, %v1174
  %v1351 = vpack.c.b16 %v1183, %v1175
  %v1352 = vpack.c.b16 %v1184, %v1176
  %v1353 = vpack.c.b16 %v1185, %v1177
  %v1354 = vpack.c.b16 %v1186, %v1178
  %v1355 = vpack.c.b16 %v1195, %v1187
  %v1356 = vpack.c.b16 %v1196, %v1188
  %v1357 = vpack.c.b16 %v1197, %v1189
  %v1358 = vpack.c.b16 %v1198, %v1190
  %v1359 = vpack.c.b16 %v1199, %v1191
  %v1360 = vpack.c.b16 %v1200, %v1192
  %v1361 = vpack.c.b16 %v1201, %v1193
  %v1362 = vpack.c.b16 %v1202, %v1194
  %v1363 = vpack.c.b16 %v1211, %v1203
  %v1364 = vpack.c.b16 %v1212, %v1204
  %v1365 = vpack.c.b16 %v1213, %v1205
  %v1366 = vpack.c.b16 %v1214, %v1206
  %v1367 = vpack.c.b16 %v1215, %v1207
  %v1368 = vpack.c.b16 %v1216, %v1208
  %v1369 = vpack.c.b16 %v1217, %v1209
  %v1370 = vpack.c.b16 %v1218, %v1210
  %v1371 = vpack.c.b16 %v1227, %v1219
  %v1372 = vpack.c.b16 %v1228, %v1220
  %v1373 = vpack.c.b16 %v1229, %v1221
  %v1374 = vpack.c.b16 %v1230, %v1222
  %v1375 = vpack.c.b16 %v1231, %v1223
  %v1376 = vpack.c.b16 %v1232, %v1224
  %v1377 = vpack.c.b16 %v1233, %v1225
  %v1378 = vpack.c.b16 %v1234, %v1226
  %v1379 = vpack.c.b16 %v1243, %v1235
  %v1380 = vpack.c.b16 %v1244, %v1236
  %v1381 = vpack.c.b16 %v1245, %v1237
  %v1382 = vpack.c.b16 %v1246, %v1238
  %v1383 = vpack.c.b16 %v1247, %v1239
  %v1384 = vpack.c.b16 %v1248, %v1240
  %v1385 = vpack.c.b16 %v1249, %v1241
  %v1386 = vpack.c.b16 %v1250, %v1242
  %v1387 = vpack.c.b16 %v1259, %v1251
  %v1388 = vpack.c.b16 %v1260, %v1252
  %v1389 = vpack.c.b16 %v1261, %v1253
  %v1390 = vpack.c.b16 %v1262, %v1254
  %v1391 = vpack.c.b16 %v1263, %v1255
  %v1392 = vpack.c.b16 %v1264, %v1256
  %v1393 = vpack.c.b16 %v1265, %v1257
  %v1394 = vpack.c.b16 %v1266, %v1258
  %1523 = vmatprep.subr.bf16.mxu0 %v1268
  %1524 = vmatpush1.bf16.msra.mxu0 %v1267
  %1525 = vmatprep.subr.bf16.mxu0 %v1276
  %1526 = vmatpush1.bf16.msra.mxu0 %v1275
  %1527 = vmatprep.subr.bf16.mxu0 %v1284
  %1528 = vmatpush1.bf16.msra.mxu0 %v1283
  %1529 = vmatprep.subr.bf16.mxu0 %v1292
  %1530 = vmatpush1.bf16.msra.mxu0 %v1291
  %1531 = vmatprep.subr.bf16.mxu0 %v1300
  %1532 = vmatpush1.bf16.msra.mxu0 %v1299
  %1533 = vmatprep.subr.bf16.mxu0 %v1308
  %1534 = vmatpush1.bf16.msra.mxu0 %v1307
  %1535 = vmatprep.subr.bf16.mxu0 %v1316
  %1536 = vmatpush1.bf16.msra.mxu0 %v1315
  %1537 = vmatprep.subr.bf16.mxu0 %v1324
  %1538 = vmatpush1.bf16.msra.mxu0 %v1323
  %1539 = vmatprep.subr.bf16.mxu0 %v1332
  %1540 = vmatpush1.bf16.msra.mxu0 %v1331
  %1541 = vmatprep.subr.bf16.mxu0 %v1340
  %1542 = vmatpush1.bf16.msra.mxu0 %v1339
  %1543 = vmatprep.subr.bf16.mxu0 %v1348
  %1544 = vmatpush1.bf16.msra.mxu0 %v1347
  %1545 = vmatprep.subr.bf16.mxu0 %v1356
  %1546 = vmatpush1.bf16.msra.mxu0 %v1355
  %1547 = vmatprep.subr.bf16.mxu0 %v1364
  %1548 = vmatpush1.bf16.msra.mxu0 %v1363
  %1549 = vmatprep.subr.bf16.mxu0 %v1372
  %1550 = vmatpush1.bf16.msra.mxu0 %v1371
  %1551 = vmatprep.subr.bf16.mxu0 %v1380
  %1552 = vmatpush1.bf16.msra.mxu0 %v1379
  %1553 = vmatprep.subr.bf16.mxu0 %v1388
  %1554 = vmatpush1.bf16.msra.mxu0 %v1387
  %1555 = vmatprep.mubr.bf16.mxu0 0
  %1556 = vmatmul.mubr.bf16.gmra.mrb[0].mxu0 0
  %v1557 = vpop.f32.mrb[0].mxu0
  %v1558 = vadd.f32 %v846, %v1557
  %v1559 = vpop.f32.mrb[0].mxu0
  %v1560 = vadd.f32 %v850, %v1559
  %v1561 = vpop.f32.mrb[0].mxu0
  %v1562 = vpop.f32.mrb[0].mxu0
  %1563 = vdwg.mxu0
  %1564 = vmatprep.subr.bf16.mxu0 %v1270
  %1565 = vmatpush1.bf16.msra.mxu0 %v1269
  %1566 = vmatprep.subr.bf16.mxu0 %v1278
  %1567 = vmatpush1.bf16.msra.mxu0 %v1277
  %1568 = vmatprep.subr.bf16.mxu0 %v1286
  %1569 = vmatpush1.bf16.msra.mxu0 %v1285
  %1570 = vmatprep.subr.bf16.mxu0 %v1294
  %1571 = vmatpush1.bf16.msra.mxu0 %v1293
  %1572 = vmatprep.subr.bf16.mxu0 %v1302
  %1573 = vmatpush1.bf16.msra.mxu0 %v1301
  %1574 = vmatprep.subr.bf16.mxu0 %v1310
  %1575 = vmatpush1.bf16.msra.mxu0 %v1309
  %1576 = vmatprep.subr.bf16.mxu0 %v1318
  %1577 = vmatpush1.bf16.msra.mxu0 %v1317
  %1578 = vmatprep.subr.bf16.mxu0 %v1326
  %1579 = vmatpush1.bf16.msra.mxu0 %v1325
  %1580 = vmatprep.subr.bf16.mxu0 %v1334
  %1581 = vmatpush1.bf16.msra.mxu0 %v1333
  %1582 = vmatprep.subr.bf16.mxu0 %v1342
  %1583 = vmatpush1.bf16.msra.mxu0 %v1341
  %1584 = vmatprep.subr.bf16.mxu0 %v1350
  %1585 = vmatpush1.bf16.msra.mxu0 %v1349
  %1586 = vmatprep.subr.bf16.mxu0 %v1358
  %1587 = vmatpush1.bf16.msra.mxu0 %v1357
  %1588 = vmatprep.subr.bf16.mxu0 %v1366
  %1589 = vmatpush1.bf16.msra.mxu0 %v1365
  %1590 = vmatprep.subr.bf16.mxu0 %v1374
  %1591 = vmatpush1.bf16.msra.mxu0 %v1373
  %1592 = vmatprep.subr.bf16.mxu0 %v1382
  %1593 = vmatpush1.bf16.msra.mxu0 %v1381
  %1594 = vmatprep.subr.bf16.mxu0 %v1390
  %1595 = vmatpush1.bf16.msra.mxu0 %v1389
  %1596 = vmatprep.mubr.bf16.mxu0 0
  %1597 = vmatmul.mubr.bf16.gmra.mrb[0].mxu0 0
  %v1598 = vpop.f32.mrb[0].mxu0
  %v1599 = vadd.f32 %v854, %v1598
  %v1600 = vpop.f32.mrb[0].mxu0
  %v1601 = vadd.f32 %v858, %v1600
  %v1602 = vpop.f32.mrb[0].mxu0
  %v1603 = vpop.f32.mrb[0].mxu0
  %1604 = vdwg.mxu0
  %1605 = vmatprep.subr.bf16.mxu0 %v1272
  %1606 = vmatpush1.bf16.msra.mxu0 %v1271
  %1607 = vmatprep.subr.bf16.mxu0 %v1280
  %1608 = vmatpush1.bf16.msra.mxu0 %v1279
  %1609 = vmatprep.subr.bf16.mxu0 %v1288
  %1610 = vmatpush1.bf16.msra.mxu0 %v1287
  %1611 = vmatprep.subr.bf16.mxu0 %v1296
  %1612 = vmatpush1.bf16.msra.mxu0 %v1295
  %1613 = vmatprep.subr.bf16.mxu0 %v1304
  %1614 = vmatpush1.bf16.msra.mxu0 %v1303
  %1615 = vmatprep.subr.bf16.mxu0 %v1312
  %1616 = vmatpush1.bf16.msra.mxu0 %v1311
  %1617 = vmatprep.subr.bf16.mxu0 %v1320
  %1618 = vmatpush1.bf16.msra.mxu0 %v1319
  %1619 = vmatprep.subr.bf16.mxu0 %v1328
  %1620 = vmatpush1.bf16.msra.mxu0 %v1327
  %1621 = vmatprep.subr.bf16.mxu0 %v1336
  %1622 = vmatpush1.bf16.msra.mxu0 %v1335
  %1623 = vmatprep.subr.bf16.mxu0 %v1344
  %1624 = vmatpush1.bf16.msra.mxu0 %v1343
  %1625 = vmatprep.subr.bf16.mxu0 %v1352
  %1626 = vmatpush1.bf16.msra.mxu0 %v1351
  %1627 = vmatprep.subr.bf16.mxu0 %v1360
  %1628 = vmatpush1.bf16.msra.mxu0 %v1359
  %1629 = vmatprep.subr.bf16.mxu0 %v1368
  %1630 = vmatpush1.bf16.msra.mxu0 %v1367
  %1631 = vmatprep.subr.bf16.mxu0 %v1376
  %1632 = vmatpush1.bf16.msra.mxu0 %v1375
  %1633 = vmatprep.subr.bf16.mxu0 %v1384
  %1634 = vmatpush1.bf16.msra.mxu0 %v1383
  %1635 = vmatprep.subr.bf16.mxu0 %v1392
  %1636 = vmatpush1.bf16.msra.mxu0 %v1391
  %1637 = vmatprep.mubr.bf16.mxu0 0
  %1638 = vmatmul.mubr.bf16.gmra.mrb[0].mxu0 0
  %v1639 = vpop.f32.mrb[0].mxu0
  %v1640 = vadd.f32 %v862, %v1639
  %v1641 = vpop.f32.mrb[0].mxu0
  %v1642 = vadd.f32 %v866, %v1641
  %v1643 = vpop.f32.mrb[0].mxu0
  %v1644 = vpop.f32.mrb[0].mxu0
  %1645 = vdwg.mxu0
  %1646 = vmatprep.subr.bf16.mxu0 %v1274
  %1647 = vmatpush1.bf16.msra.mxu0 %v1273
  %1648 = vmatprep.subr.bf16.mxu0 %v1282
  %1649 = vmatpush1.bf16.msra.mxu0 %v1281
  %1650 = vmatprep.subr.bf16.mxu0 %v1290
  %1651 = vmatpush1.bf16.msra.mxu0 %v1289
  %1652 = vmatprep.subr.bf16.mxu0 %v1298
  %1653 = vmatpush1.bf16.msra.mxu0 %v1297
  %1654 = vmatprep.subr.bf16.mxu0 %v1306
  %1655 = vmatpush1.bf16.msra.mxu0 %v1305
  %1656 = vmatprep.subr.bf16.mxu0 %v1314
  %1657 = vmatpush1.bf16.msra.mxu0 %v1313
  %1658 = vmatprep.subr.bf16.mxu0 %v1322
  %1659 = vmatpush1.bf16.msra.mxu0 %v1321
  %1660 = vmatprep.subr.bf16.mxu0 %v1330
  %1661 = vmatpush1.bf16.msra.mxu0 %v1329
  %1662 = vmatprep.subr.bf16.mxu0 %v1338
  %1663 = vmatpush1.bf16.msra.mxu0 %v1337
  %1664 = vmatprep.subr.bf16.mxu0 %v1346
  %1665 = vmatpush1.bf16.msra.mxu0 %v1345
  %1666 = vmatprep.subr.bf16.mxu0 %v1354
  %1667 = vmatpush1.bf16.msra.mxu0 %v1353
  %1668 = vmatprep.subr.bf16.mxu0 %v1362
  %1669 = vmatpush1.bf16.msra.mxu0 %v1361
  %1670 = vmatprep.subr.bf16.mxu0 %v1370
  %1671 = vmatpush1.bf16.msra.mxu0 %v1369
  %1672 = vmatprep.subr.bf16.mxu0 %v1378
  %1673 = vmatpush1.bf16.msra.mxu0 %v1377
  %1674 = vmatprep.subr.bf16.mxu0 %v1386
  %1675 = vmatpush1.bf16.msra.mxu0 %v1385
  %1676 = vmatprep.subr.bf16.mxu0 %v1394
  %1677 = vmatpush1.bf16.msra.mxu0 %v1393
  %1678 = vmatprep.mubr.bf16.mxu0 0
  %1679 = vmatmul.mubr.bf16.gmra.mrb[0].mxu0 0
  %v1680 = vpop.f32.mrb[0].mxu0
  %v1681 = vadd.f32 %v870, %v1680
  %v1682 = vpop.f32.mrb[0].mxu0
  %v1683 = vadd.f32 %v874, %v1682
  %v1684 = vpop.f32.mrb[0].mxu0
  %v1685 = vpop.f32.mrb[0].mxu0
  %1686 = vdwg.mxu0
  %v1815 = vunpack.c.l.b16 %v33
  %v1816 = vunpack.c.h.b16 %v33
  %v1817 = vunpack.c.l.b16 %v34
  %v1818 = vunpack.c.h.b16 %v34
  %v1819 = vunpack.c.l.b16 %v35
  %v1820 = vunpack.c.h.b16 %v35
  %v1821 = vunpack.c.l.b16 %v36
  %v1822 = vunpack.c.h.b16 %v36
  %v1823 = vunpack.c.l.b16 %v37
  %v1824 = vunpack.c.h.b16 %v37
  %v1825 = vunpack.c.l.b16 %v38
  %v1826 = vunpack.c.h.b16 %v38
  %v1827 = vunpack.c.l.b16 %v39
  %v1828 = vunpack.c.h.b16 %v39
  %v1829 = vunpack.c.l.b16 %v40
  %v1830 = vunpack.c.h.b16 %v40
  %v1831 = vunpack.c.l.b16 %v41
  %v1832 = vunpack.c.h.b16 %v41
  %v1833 = vunpack.c.l.b16 %v42
  %v1834 = vunpack.c.h.b16 %v42
  %v1835 = vunpack.c.l.b16 %v43
  %v1836 = vunpack.c.h.b16 %v43
  %v1837 = vunpack.c.l.b16 %v44
  %v1838 = vunpack.c.h.b16 %v44
  %v1839 = vunpack.c.l.b16 %v45
  %v1840 = vunpack.c.h.b16 %v45
  %v1841 = vunpack.c.l.b16 %v46
  %v1842 = vunpack.c.h.b16 %v46
  %v1843 = vunpack.c.l.b16 %v47
  %v1844 = vunpack.c.h.b16 %v47
  %v1845 = vunpack.c.l.b16 %v48
  %v1846 = vunpack.c.h.b16 %v48
  %v1847 = vunpack.c.l.b16 %v49
  %v1848 = vunpack.c.h.b16 %v49
  %v1849 = vunpack.c.l.b16 %v50
  %v1850 = vunpack.c.h.b16 %v50
  %v1851 = vunpack.c.l.b16 %v51
  %v1852 = vunpack.c.h.b16 %v51
  %v1853 = vunpack.c.l.b16 %v52
  %v1854 = vunpack.c.h.b16 %v52
  %v1855 = vunpack.c.l.b16 %v53
  %v1856 = vunpack.c.h.b16 %v53
  %v1857 = vunpack.c.l.b16 %v54
  %v1858 = vunpack.c.h.b16 %v54
  %v1859 = vunpack.c.l.b16 %v55
  %v1860 = vunpack.c.h.b16 %v55
  %v1861 = vunpack.c.l.b16 %v56
  %v1862 = vunpack.c.h.b16 %v56
  %v1863 = vunpack.c.l.b16 %v57
  %v1864 = vunpack.c.h.b16 %v57
  %v1865 = vunpack.c.l.b16 %v58
  %v1866 = vunpack.c.h.b16 %v58
  %v1867 = vunpack.c.l.b16 %v59
  %v1868 = vunpack.c.h.b16 %v59
  %v1869 = vunpack.c.l.b16 %v60
  %v1870 = vunpack.c.h.b16 %v60
  %v1871 = vunpack.c.l.b16 %v61
  %v1872 = vunpack.c.h.b16 %v61
  %v1873 = vunpack.c.l.b16 %v62
  %v1874 = vunpack.c.h.b16 %v62
  %v1875 = vunpack.c.l.b16 %v63
  %v1876 = vunpack.c.h.b16 %v63
  %v1877 = vunpack.c.l.b16 %v64
  %v1878 = vunpack.c.h.b16 %v64
  %v1879 = vunpack.c.l.b16 %v65
  %v1880 = vunpack.c.h.b16 %v65
  %v1881 = vunpack.c.l.b16 %v66
  %v1882 = vunpack.c.h.b16 %v66
  %v1883 = vunpack.c.l.b16 %v67
  %v1884 = vunpack.c.h.b16 %v67
  %v1885 = vunpack.c.l.b16 %v68
  %v1886 = vunpack.c.h.b16 %v68
  %v1887 = vunpack.c.l.b16 %v69
  %v1888 = vunpack.c.h.b16 %v69
  %v1889 = vunpack.c.l.b16 %v70
  %v1890 = vunpack.c.h.b16 %v70
  %v1891 = vunpack.c.l.b16 %v71
  %v1892 = vunpack.c.h.b16 %v71
  %v1893 = vunpack.c.l.b16 %v72
  %v1894 = vunpack.c.h.b16 %v72
  %v1895 = vunpack.c.l.b16 %v73
  %v1896 = vunpack.c.h.b16 %v73
  %v1897 = vunpack.c.l.b16 %v74
  %v1898 = vunpack.c.h.b16 %v74
  %v1899 = vunpack.c.l.b16 %v75
  %v1900 = vunpack.c.h.b16 %v75
  %v1901 = vunpack.c.l.b16 %v76
  %v1902 = vunpack.c.h.b16 %v76
  %v1903 = vunpack.c.l.b16 %v77
  %v1904 = vunpack.c.h.b16 %v77
  %v1905 = vunpack.c.l.b16 %v78
  %v1906 = vunpack.c.h.b16 %v78
  %v1907 = vunpack.c.l.b16 %v79
  %v1908 = vunpack.c.h.b16 %v79
  %v1909 = vunpack.c.l.b16 %v80
  %v1910 = vunpack.c.h.b16 %v80
  %v1911 = vunpack.c.l.b16 %v81
  %v1912 = vunpack.c.h.b16 %v81
  %v1913 = vunpack.c.l.b16 %v82
  %v1914 = vunpack.c.h.b16 %v82
  %v1915 = vunpack.c.l.b16 %v83
  %v1916 = vunpack.c.h.b16 %v83
  %v1917 = vunpack.c.l.b16 %v84
  %v1918 = vunpack.c.h.b16 %v84
  %v1919 = vunpack.c.l.b16 %v85
  %v1920 = vunpack.c.h.b16 %v85
  %v1921 = vunpack.c.l.b16 %v86
  %v1922 = vunpack.c.h.b16 %v86
  %v1923 = vunpack.c.l.b16 %v87
  %v1924 = vunpack.c.h.b16 %v87
  %v1925 = vunpack.c.l.b16 %v88
  %v1926 = vunpack.c.h.b16 %v88
  %v1927 = vunpack.c.l.b16 %v89
  %v1928 = vunpack.c.h.b16 %v89
  %v1929 = vunpack.c.l.b16 %v90
  %v1930 = vunpack.c.h.b16 %v90
  %v1931 = vunpack.c.l.b16 %v91
  %v1932 = vunpack.c.h.b16 %v91
  %v1933 = vunpack.c.l.b16 %v92
  %v1934 = vunpack.c.h.b16 %v92
  %v1935 = vunpack.c.l.b16 %v93
  %v1936 = vunpack.c.h.b16 %v93
  %v1937 = vunpack.c.l.b16 %v94
  %v1938 = vunpack.c.h.b16 %v94
  %v1939 = vunpack.c.l.b16 %v95
  %v1940 = vunpack.c.h.b16 %v95
  %v1941 = vunpack.c.l.b16 %v96
  %v1942 = vunpack.c.h.b16 %v96
  %v1943 = vunpack.c.l.b16 %v97
  %v1944 = vunpack.c.h.b16 %v97
  %v1945 = vunpack.c.l.b16 %v98
  %v1946 = vunpack.c.h.b16 %v98
  %v1947 = vunpack.c.l.b16 %v99
  %v1948 = vunpack.c.h.b16 %v99
  %v1949 = vunpack.c.l.b16 %v100
  %v1950 = vunpack.c.h.b16 %v100
  %v1951 = vunpack.c.l.b16 %v101
  %v1952 = vunpack.c.h.b16 %v101
  %v1953 = vunpack.c.l.b16 %v102
  %v1954 = vunpack.c.h.b16 %v102
  %v1955 = vunpack.c.l.b16 %v103
  %v1956 = vunpack.c.h.b16 %v103
  %v1957 = vunpack.c.l.b16 %v104
  %v1958 = vunpack.c.h.b16 %v104
  %v1959 = vunpack.c.l.b16 %v105
  %v1960 = vunpack.c.h.b16 %v105
  %v1961 = vunpack.c.l.b16 %v106
  %v1962 = vunpack.c.h.b16 %v106
  %v1963 = vunpack.c.l.b16 %v107
  %v1964 = vunpack.c.h.b16 %v107
  %v1965 = vunpack.c.l.b16 %v108
  %v1966 = vunpack.c.h.b16 %v108
  %v1967 = vunpack.c.l.b16 %v109
  %v1968 = vunpack.c.h.b16 %v109
  %v1969 = vunpack.c.l.b16 %v110
  %v1970 = vunpack.c.h.b16 %v110
  %v1971 = vunpack.c.l.b16 %v111
  %v1972 = vunpack.c.h.b16 %v111
  %v1973 = vunpack.c.l.b16 %v112
  %v1974 = vunpack.c.h.b16 %v112
  %v1975 = vunpack.c.l.b16 %v113
  %v1976 = vunpack.c.h.b16 %v113
  %v1977 = vunpack.c.l.b16 %v114
  %v1978 = vunpack.c.h.b16 %v114
  %v1979 = vunpack.c.l.b16 %v115
  %v1980 = vunpack.c.h.b16 %v115
  %v1981 = vunpack.c.l.b16 %v116
  %v1982 = vunpack.c.h.b16 %v116
  %v1983 = vunpack.c.l.b16 %v117
  %v1984 = vunpack.c.h.b16 %v117
  %v1985 = vunpack.c.l.b16 %v118
  %v1986 = vunpack.c.h.b16 %v118
  %v1987 = vunpack.c.l.b16 %v119
  %v1988 = vunpack.c.h.b16 %v119
  %v1989 = vunpack.c.l.b16 %v120
  %v1990 = vunpack.c.h.b16 %v120
  %v1991 = vunpack.c.l.b16 %v121
  %v1992 = vunpack.c.h.b16 %v121
  %v1993 = vunpack.c.l.b16 %v122
  %v1994 = vunpack.c.h.b16 %v122
  %v1995 = vunpack.c.l.b16 %v123
  %v1996 = vunpack.c.h.b16 %v123
  %v1997 = vunpack.c.l.b16 %v124
  %v1998 = vunpack.c.h.b16 %v124
  %v1999 = vunpack.c.l.b16 %v125
  %v2000 = vunpack.c.h.b16 %v125
  %v2001 = vunpack.c.l.b16 %v126
  %v2002 = vunpack.c.h.b16 %v126
  %v2003 = vunpack.c.l.b16 %v127
  %v2004 = vunpack.c.h.b16 %v127
  %v2005 = vunpack.c.l.b16 %v128
  %v2006 = vunpack.c.h.b16 %v128
  %v2007 = vunpack.c.l.b16 %v129
  %v2008 = vunpack.c.h.b16 %v129
  %v2009 = vunpack.c.l.b16 %v130
  %v2010 = vunpack.c.h.b16 %v130
  %v2011 = vunpack.c.l.b16 %v131
  %v2012 = vunpack.c.h.b16 %v131
  %v2013 = vunpack.c.l.b16 %v132
  %v2014 = vunpack.c.h.b16 %v132
  %v2015 = vunpack.c.l.b16 %v133
  %v2016 = vunpack.c.h.b16 %v133
  %v2017 = vunpack.c.l.b16 %v134
  %v2018 = vunpack.c.h.b16 %v134
  %v2019 = vunpack.c.l.b16 %v135
  %v2020 = vunpack.c.h.b16 %v135
  %v2021 = vunpack.c.l.b16 %v136
  %v2022 = vunpack.c.h.b16 %v136
  %v2023 = vunpack.c.l.b16 %v137
  %v2024 = vunpack.c.h.b16 %v137
  %v2025 = vunpack.c.l.b16 %v138
  %v2026 = vunpack.c.h.b16 %v138
  %v2027 = vunpack.c.l.b16 %v139
  %v2028 = vunpack.c.h.b16 %v139
  %v2029 = vunpack.c.l.b16 %v140
  %v2030 = vunpack.c.h.b16 %v140
  %v2031 = vunpack.c.l.b16 %v141
  %v2032 = vunpack.c.h.b16 %v141
  %v2033 = vunpack.c.l.b16 %v142
  %v2034 = vunpack.c.h.b16 %v142
  %v2035 = vunpack.c.l.b16 %v143
  %v2036 = vunpack.c.h.b16 %v143
  %v2037 = vunpack.c.l.b16 %v144
  %v2038 = vunpack.c.h.b16 %v144
  %v2039 = vunpack.c.l.b16 %v145
  %v2040 = vunpack.c.h.b16 %v145
  %v2041 = vunpack.c.l.b16 %v146
  %v2042 = vunpack.c.h.b16 %v146
  %v2043 = vunpack.c.l.b16 %v147
  %v2044 = vunpack.c.h.b16 %v147
  %v2045 = vunpack.c.l.b16 %v148
  %v2046 = vunpack.c.h.b16 %v148
  %v2047 = vunpack.c.l.b16 %v149
  %v2048 = vunpack.c.h.b16 %v149
  %v2049 = vunpack.c.l.b16 %v150
  %v2050 = vunpack.c.h.b16 %v150
  %v2051 = vunpack.c.l.b16 %v151
  %v2052 = vunpack.c.h.b16 %v151
  %v2053 = vunpack.c.l.b16 %v152
  %v2054 = vunpack.c.h.b16 %v152
  %v2055 = vunpack.c.l.b16 %v153
  %v2056 = vunpack.c.h.b16 %v153
  %v2057 = vunpack.c.l.b16 %v154
  %v2058 = vunpack.c.h.b16 %v154
  %v2059 = vunpack.c.l.b16 %v155
  %v2060 = vunpack.c.h.b16 %v155
  %v2061 = vunpack.c.l.b16 %v156
  %v2062 = vunpack.c.h.b16 %v156
  %v2063 = vunpack.c.l.b16 %v157
  %v2064 = vunpack.c.h.b16 %v157
  %v2065 = vunpack.c.l.b16 %v158
  %v2066 = vunpack.c.h.b16 %v158
  %v2067 = vunpack.c.l.b16 %v159
  %v2068 = vunpack.c.h.b16 %v159
  %v2069 = vunpack.c.l.b16 %v160
  %v2070 = vunpack.c.h.b16 %v160
  %v2071 = vpack.c.b16 %v1823, %v1815
  %v2072 = vpack.c.b16 %v1824, %v1816
  %v2073 = vpack.c.b16 %v1825, %v1817
  %v2074 = vpack.c.b16 %v1826, %v1818
  %v2075 = vpack.c.b16 %v1827, %v1819
  %v2076 = vpack.c.b16 %v1828, %v1820
  %v2077 = vpack.c.b16 %v1829, %v1821
  %v2078 = vpack.c.b16 %v1830, %v1822
  %v2079 = vpack.c.b16 %v1839, %v1831
  %v2080 = vpack.c.b16 %v1840, %v1832
  %v2081 = vpack.c.b16 %v1841, %v1833
  %v2082 = vpack.c.b16 %v1842, %v1834
  %v2083 = vpack.c.b16 %v1843, %v1835
  %v2084 = vpack.c.b16 %v1844, %v1836
  %v2085 = vpack.c.b16 %v1845, %v1837
  %v2086 = vpack.c.b16 %v1846, %v1838
  %v2087 = vpack.c.b16 %v1855, %v1847
  %v2088 = vpack.c.b16 %v1856, %v1848
  %v2089 = vpack.c.b16 %v1857, %v1849
  %v2090 = vpack.c.b16 %v1858, %v1850
  %v2091 = vpack.c.b16 %v1859, %v1851
  %v2092 = vpack.c.b16 %v1860, %v1852
  %v2093 = vpack.c.b16 %v1861, %v1853
  %v2094 = vpack.c.b16 %v1862, %v1854
  %v2095 = vpack.c.b16 %v1871, %v1863
  %v2096 = vpack.c.b16 %v1872, %v1864
  %v2097 = vpack.c.b16 %v1873, %v1865
  %v2098 = vpack.c.b16 %v1874, %v1866
  %v2099 = vpack.c.b16 %v1875, %v1867
  %v2100 = vpack.c.b16 %v1876, %v1868
  %v2101 = vpack.c.b16 %v1877, %v1869
  %v2102 = vpack.c.b16 %v1878, %v1870
  %v2103 = vpack.c.b16 %v1887, %v1879
  %v2104 = vpack.c.b16 %v1888, %v1880
  %v2105 = vpack.c.b16 %v1889, %v1881
  %v2106 = vpack.c.b16 %v1890, %v1882
  %v2107 = vpack.c.b16 %v1891, %v1883
  %v2108 = vpack.c.b16 %v1892, %v1884
  %v2109 = vpack.c.b16 %v1893, %v1885
  %v2110 = vpack.c.b16 %v1894, %v1886
  %v2111 = vpack.c.b16 %v1903, %v1895
  %v2112 = vpack.c.b16 %v1904, %v1896
  %v2113 = vpack.c.b16 %v1905, %v1897
  %v2114 = vpack.c.b16 %v1906, %v1898
  %v2115 = vpack.c.b16 %v1907, %v1899
  %v2116 = vpack.c.b16 %v1908, %v1900
  %v2117 = vpack.c.b16 %v1909, %v1901
  %v2118 = vpack.c.b16 %v1910, %v1902
  %v2119 = vpack.c.b16 %v1919, %v1911
  %v2120 = vpack.c.b16 %v1920, %v1912
  %v2121 = vpack.c.b16 %v1921, %v1913
  %v2122 = vpack.c.b16 %v1922, %v1914
  %v2123 = vpack.c.b16 %v1923, %v1915
  %v2124 = vpack.c.b16 %v1924, %v1916
  %v2125 = vpack.c.b16 %v1925, %v1917
  %v2126 = vpack.c.b16 %v1926, %v1918
  %v2127 = vpack.c.b16 %v1935, %v1927
  %v2128 = vpack.c.b16 %v1936, %v1928
  %v2129 = vpack.c.b16 %v1937, %v1929
  %v2130 = vpack.c.b16 %v1938, %v1930
  %v2131 = vpack.c.b16 %v1939, %v1931
  %v2132 = vpack.c.b16 %v1940, %v1932
  %v2133 = vpack.c.b16 %v1941, %v1933
  %v2134 = vpack.c.b16 %v1942, %v1934
  %v2135 = vpack.c.b16 %v1951, %v1943
  %v2136 = vpack.c.b16 %v1952, %v1944
  %v2137 = vpack.c.b16 %v1953, %v1945
  %v2138 = vpack.c.b16 %v1954, %v1946
  %v2139 = vpack.c.b16 %v1955, %v1947
  %v2140 = vpack.c.b16 %v1956, %v1948
  %v2141 = vpack.c.b16 %v1957, %v1949
  %v2142 = vpack.c.b16 %v1958, %v1950
  %v2143 = vpack.c.b16 %v1967, %v1959
  %v2144 = vpack.c.b16 %v1968, %v1960
  %v2145 = vpack.c.b16 %v1969, %v1961
  %v2146 = vpack.c.b16 %v1970, %v1962
  %v2147 = vpack.c.b16 %v1971, %v1963
  %v2148 = vpack.c.b16 %v1972, %v1964
  %v2149 = vpack.c.b16 %v1973, %v1965
  %v2150 = vpack.c.b16 %v1974, %v1966
  %v2151 = vpack.c.b16 %v1983, %v1975
  %v2152 = vpack.c.b16 %v1984, %v1976
  %v2153 = vpack.c.b16 %v1985, %v1977
  %v2154 = vpack.c.b16 %v1986, %v1978
  %v2155 = vpack.c.b16 %v1987, %v1979
  %v2156 = vpack.c.b16 %v1988, %v1980
  %v2157 = vpack.c.b16 %v1989, %v1981
  %v2158 = vpack.c.b16 %v1990, %v1982
  %v2159 = vpack.c.b16 %v1999, %v1991
  %v2160 = vpack.c.b16 %v2000, %v1992
  %v2161 = vpack.c.b16 %v2001, %v1993
  %v2162 = vpack.c.b16 %v2002, %v1994
  %v2163 = vpack.c.b16 %v2003, %v1995
  %v2164 = vpack.c.b16 %v2004, %v1996
  %v2165 = vpack.c.b16 %v2005, %v1997
  %v2166 = vpack.c.b16 %v2006, %v1998
  %v2167 = vpack.c.b16 %v2015, %v2007
  %v2168 = vpack.c.b16 %v2016, %v2008
  %v2169 = vpack.c.b16 %v2017, %v2009
  %v2170 = vpack.c.b16 %v2018, %v2010
  %v2171 = vpack.c.b16 %v2019, %v2011
  %v2172 = vpack.c.b16 %v2020, %v2012
  %v2173 = vpack.c.b16 %v2021, %v2013
  %v2174 = vpack.c.b16 %v2022, %v2014
  %v2175 = vpack.c.b16 %v2031, %v2023
  %v2176 = vpack.c.b16 %v2032, %v2024
  %v2177 = vpack.c.b16 %v2033, %v2025
  %v2178 = vpack.c.b16 %v2034, %v2026
  %v2179 = vpack.c.b16 %v2035, %v2027
  %v2180 = vpack.c.b16 %v2036, %v2028
  %v2181 = vpack.c.b16 %v2037, %v2029
  %v2182 = vpack.c.b16 %v2038, %v2030
  %v2183 = vpack.c.b16 %v2047, %v2039
  %v2184 = vpack.c.b16 %v2048, %v2040
  %v2185 = vpack.c.b16 %v2049, %v2041
  %v2186 = vpack.c.b16 %v2050, %v2042
  %v2187 = vpack.c.b16 %v2051, %v2043
  %v2188 = vpack.c.b16 %v2052, %v2044
  %v2189 = vpack.c.b16 %v2053, %v2045
  %v2190 = vpack.c.b16 %v2054, %v2046
  %v2191 = vpack.c.b16 %v2063, %v2055
  %v2192 = vpack.c.b16 %v2064, %v2056
  %v2193 = vpack.c.b16 %v2065, %v2057
  %v2194 = vpack.c.b16 %v2066, %v2058
  %v2195 = vpack.c.b16 %v2067, %v2059
  %v2196 = vpack.c.b16 %v2068, %v2060
  %v2197 = vpack.c.b16 %v2069, %v2061
  %v2198 = vpack.c.b16 %v2070, %v2062
  %2327 = vmatprep.subr.bf16.mxu0 %v2072
  %2328 = vmatpush1.bf16.msra.mxu0 %v2071
  %2329 = vmatprep.subr.bf16.mxu0 %v2080
  %2330 = vmatpush1.bf16.msra.mxu0 %v2079
  %2331 = vmatprep.subr.bf16.mxu0 %v2088
  %2332 = vmatpush1.bf16.msra.mxu0 %v2087
  %2333 = vmatprep.subr.bf16.mxu0 %v2096
  %2334 = vmatpush1.bf16.msra.mxu0 %v2095
  %2335 = vmatprep.subr.bf16.mxu0 %v2104
  %2336 = vmatpush1.bf16.msra.mxu0 %v2103
  %2337 = vmatprep.subr.bf16.mxu0 %v2112
  %2338 = vmatpush1.bf16.msra.mxu0 %v2111
  %2339 = vmatprep.subr.bf16.mxu0 %v2120
  %2340 = vmatpush1.bf16.msra.mxu0 %v2119
  %2341 = vmatprep.subr.bf16.mxu0 %v2128
  %2342 = vmatpush1.bf16.msra.mxu0 %v2127
  %2343 = vmatprep.subr.bf16.mxu0 %v2136
  %2344 = vmatpush1.bf16.msra.mxu0 %v2135
  %2345 = vmatprep.subr.bf16.mxu0 %v2144
  %2346 = vmatpush1.bf16.msra.mxu0 %v2143
  %2347 = vmatprep.subr.bf16.mxu0 %v2152
  %2348 = vmatpush1.bf16.msra.mxu0 %v2151
  %2349 = vmatprep.subr.bf16.mxu0 %v2160
  %2350 = vmatpush1.bf16.msra.mxu0 %v2159
  %2351 = vmatprep.subr.bf16.mxu0 %v2168
  %2352 = vmatpush1.bf16.msra.mxu0 %v2167
  %2353 = vmatprep.subr.bf16.mxu0 %v2176
  %2354 = vmatpush1.bf16.msra.mxu0 %v2175
  %2355 = vmatprep.subr.bf16.mxu0 %v2184
  %2356 = vmatpush1.bf16.msra.mxu0 %v2183
  %2357 = vmatprep.subr.bf16.mxu0 %v2192
  %2358 = vmatpush1.bf16.msra.mxu0 %v2191
  %2359 = vmatprep.mubr.bf16.mxu0 0
  %2360 = vmatmul.mubr.bf16.gmra.mrb[0].mxu0 0
  %v2361 = vpop.f32.mrb[0].mxu0
  %v2362 = vadd.f32 0.0, %v2361
  %v2363 = vpop.f32.mrb[0].mxu0
  %v2364 = vadd.f32 0.0, %v2363
  %v2365 = vpop.f32.mrb[0].mxu0
  %v2366 = vpop.f32.mrb[0].mxu0
  %2367 = vdwg.mxu0
  %2368 = vmatprep.subr.bf16.mxu0 %v2074
  %2369 = vmatpush1.bf16.msra.mxu0 %v2073
  %2370 = vmatprep.subr.bf16.mxu0 %v2082
  %2371 = vmatpush1.bf16.msra.mxu0 %v2081
  %2372 = vmatprep.subr.bf16.mxu0 %v2090
  %2373 = vmatpush1.bf16.msra.mxu0 %v2089
  %2374 = vmatprep.subr.bf16.mxu0 %v2098
  %2375 = vmatpush1.bf16.msra.mxu0 %v2097
  %2376 = vmatprep.subr.bf16.mxu0 %v2106
  %2377 = vmatpush1.bf16.msra.mxu0 %v2105
  %2378 = vmatprep.subr.bf16.mxu0 %v2114
  %2379 = vmatpush1.bf16.msra.mxu0 %v2113
  %2380 = vmatprep.subr.bf16.mxu0 %v2122
  %2381 = vmatpush1.bf16.msra.mxu0 %v2121
  %2382 = vmatprep.subr.bf16.mxu0 %v2130
  %2383 = vmatpush1.bf16.msra.mxu0 %v2129
  %2384 = vmatprep.subr.bf16.mxu0 %v2138
  %2385 = vmatpush1.bf16.msra.mxu0 %v2137
  %2386 = vmatprep.subr.bf16.mxu0 %v2146
  %2387 = vmatpush1.bf16.msra.mxu0 %v2145
  %2388 = vmatprep.subr.bf16.mxu0 %v2154
  %2389 = vmatpush1.bf16.msra.mxu0 %v2153
  %2390 = vmatprep.subr.bf16.mxu0 %v2162
  %2391 = vmatpush1.bf16.msra.mxu0 %v2161
  %2392 = vmatprep.subr.bf16.mxu0 %v2170
  %2393 = vmatpush1.bf16.msra.mxu0 %v2169
  %2394 = vmatprep.subr.bf16.mxu0 %v2178
  %2395 = vmatpush1.bf16.msra.mxu0 %v2177
  %2396 = vmatprep.subr.bf16.mxu0 %v2186
  %2397 = vmatpush1.bf16.msra.mxu0 %v2185
  %2398 = vmatprep.subr.bf16.mxu0 %v2194
  %2399 = vmatpush1.bf16.msra.mxu0 %v2193
  %2400 = vmatprep.mubr.bf16.mxu0 0
  %2401 = vmatmul.mubr.bf16.gmra.mrb[0].mxu0 0
  %v2402 = vpop.f32.mrb[0].mxu0
  %v2403 = vadd.f32 0.0, %v2402
  %v2404 = vpop.f32.mrb[0].mxu0
  %v2405 = vadd.f32 0.0, %v2404
  %v2406 = vpop.f32.mrb[0].mxu0
  %v2407 = vpop.f32.mrb[0].mxu0
  %2408 = vdwg.mxu0
  %2409 = vmatprep.subr.bf16.mxu0 %v2076
  %2410 = vmatpush1.bf16.msra.mxu0 %v2075
  %2411 = vmatprep.subr.bf16.mxu0 %v2084
  %2412 = vmatpush1.bf16.msra.mxu0 %v2083
  %2413 = vmatprep.subr.bf16.mxu0 %v2092
  %2414 = vmatpush1.bf16.msra.mxu0 %v2091
  %2415 = vmatprep.subr.bf16.mxu0 %v2100
  %2416 = vmatpush1.bf16.msra.mxu0 %v2099
  %2417 = vmatprep.subr.bf16.mxu0 %v2108
  %2418 = vmatpush1.bf16.msra.mxu0 %v2107
  %2419 = vmatprep.subr.bf16.mxu0 %v2116
  %2420 = vmatpush1.bf16.msra.mxu0 %v2115
  %2421 = vmatprep.subr.bf16.mxu0 %v2124
  %2422 = vmatpush1.bf16.msra.mxu0 %v2123
  %2423 = vmatprep.subr.bf16.mxu0 %v2132
  %2424 = vmatpush1.bf16.msra.mxu0 %v2131
  %2425 = vmatprep.subr.bf16.mxu0 %v2140
  %2426 = vmatpush1.bf16.msra.mxu0 %v2139
  %2427 = vmatprep.subr.bf16.mxu0 %v2148
  %2428 = vmatpush1.bf16.msra.mxu0 %v2147
  %2429 = vmatprep.subr.bf16.mxu0 %v2156
  %2430 = vmatpush1.bf16.msra.mxu0 %v2155
  %2431 = vmatprep.subr.bf16.mxu0 %v2164
  %2432 = vmatpush1.bf16.msra.mxu0 %v2163
  %2433 = vmatprep.subr.bf16.mxu0 %v2172
  %2434 = vmatpush1.bf16.msra.mxu0 %v2171
  %2435 = vmatprep.subr.bf16.mxu0 %v2180
  %2436 = vmatpush1.bf16.msra.mxu0 %v2179
  %2437 = vmatprep.subr.bf16.mxu0 %v2188
  %2438 = vmatpush1.bf16.msra.mxu0 %v2187
  %2439 = vmatprep.subr.bf16.mxu0 %v2196
  %2440 = vmatpush1.bf16.msra.mxu0 %v2195
  %2441 = vmatprep.mubr.bf16.mxu0 0
  %2442 = vmatmul.mubr.bf16.gmra.mrb[0].mxu0 0
  %v2443 = vpop.f32.mrb[0].mxu0
  %v2444 = vadd.f32 0.0, %v2443
  %v2445 = vpop.f32.mrb[0].mxu0
  %v2446 = vadd.f32 0.0, %v2445
  %v2447 = vpop.f32.mrb[0].mxu0
  %v2448 = vpop.f32.mrb[0].mxu0
  %2449 = vdwg.mxu0
  %2450 = vmatprep.subr.bf16.mxu0 %v2078
  %2451 = vmatpush1.bf16.msra.mxu0 %v2077
  %2452 = vmatprep.subr.bf16.mxu0 %v2086
  %2453 = vmatpush1.bf16.msra.mxu0 %v2085
  %2454 = vmatprep.subr.bf16.mxu0 %v2094
  %2455 = vmatpush1.bf16.msra.mxu0 %v2093
  %2456 = vmatprep.subr.bf16.mxu0 %v2102
  %2457 = vmatpush1.bf16.msra.mxu0 %v2101
  %2458 = vmatprep.subr.bf16.mxu0 %v2110
  %2459 = vmatpush1.bf16.msra.mxu0 %v2109
  %2460 = vmatprep.subr.bf16.mxu0 %v2118
  %2461 = vmatpush1.bf16.msra.mxu0 %v2117
  %2462 = vmatprep.subr.bf16.mxu0 %v2126
  %2463 = vmatpush1.bf16.msra.mxu0 %v2125
  %2464 = vmatprep.subr.bf16.mxu0 %v2134
  %2465 = vmatpush1.bf16.msra.mxu0 %v2133
  %2466 = vmatprep.subr.bf16.mxu0 %v2142
  %2467 = vmatpush1.bf16.msra.mxu0 %v2141
  %2468 = vmatprep.subr.bf16.mxu0 %v2150
  %2469 = vmatpush1.bf16.msra.mxu0 %v2149
  %2470 = vmatprep.subr.bf16.mxu0 %v2158
  %2471 = vmatpush1.bf16.msra.mxu0 %v2157
  %2472 = vmatprep.subr.bf16.mxu0 %v2166
  %2473 = vmatpush1.bf16.msra.mxu0 %v2165
  %2474 = vmatprep.subr.bf16.mxu0 %v2174
  %2475 = vmatpush1.bf16.msra.mxu0 %v2173
  %2476 = vmatprep.subr.bf16.mxu0 %v2182
  %2477 = vmatpush1.bf16.msra.mxu0 %v2181
  %2478 = vmatprep.subr.bf16.mxu0 %v2190
  %2479 = vmatpush1.bf16.msra.mxu0 %v2189
  %2480 = vmatprep.subr.bf16.mxu0 %v2198
  %2481 = vmatpush1.bf16.msra.mxu0 %v2197
  %2482 = vmatprep.mubr.bf16.mxu0 0
  %2483 = vmatmul.mubr.bf16.gmra.mrb[0].mxu0 0
  %v2484 = vpop.f32.mrb[0].mxu0
  %v2485 = vadd.f32 0.0, %v2484
  %v2486 = vpop.f32.mrb[0].mxu0
  %v2487 = vadd.f32 0.0, %v2486
  %v2488 = vpop.f32.mrb[0].mxu0
  %v2489 = vpop.f32.mrb[0].mxu0
  %2490 = vdwg.mxu0
  %v2491 = vadd.f32 %v585, %v2362
  %v2492 = vadd.f32 %v587, %v2364
  %v2493 = vadd.f32 %v658, %v2403
  %v2494 = vadd.f32 %v660, %v2405
  %v2495 = vadd.f32 %v731, %v2444
  %v2496 = vadd.f32 %v733, %v2446
  %v2497 = vadd.f32 %v804, %v2485
  %v2498 = vadd.f32 %v806, %v2487
  %v2499 = vxor.u32 %v2491, 2147483648
  %v2500 = vxor.u32 %v2492, 2147483648
  %v2501 = vmul.f32 %v2499, 1.442695
  %v2502 = vpow.pop %v2501
  %v2503 = vmul.f32 %v2500, 1.442695
  %v2504 = vpow.pop %v2503
  %v2505 = vadd.f32 %v2502, 1.0
  %v2506 = vadd.f32 %v2504, 1.0
  %v2507 = vrcp.pop %v2505
  %v2508 = vmul.f32 1.0, %v2507
  %v2509 = vrcp.pop %v2506
  %v2510 = vmul.f32 1.0, %v2509
  %v2511 = vxor.u32 %v2493, 2147483648
  %v2512 = vxor.u32 %v2494, 2147483648
  %v2513 = vmul.f32 %v2511, 1.442695
  %v2514 = vpow.pop %v2513
  %v2515 = vmul.f32 %v2512, 1.442695
  %v2516 = vpow.pop %v2515
  %v2517 = vadd.f32 %v2514, 1.0
  %v2518 = vadd.f32 %v2516, 1.0
  %v2519 = vrcp.pop %v2517
  %v2520 = vmul.f32 1.0, %v2519
  %v2521 = vrcp.pop %v2518
  %v2522 = vmul.f32 1.0, %v2521
  %v2523 = vtanh.pop %v2495
  %v2524 = vtanh.pop %v2496
  %v2525 = vxor.u32 %v2497, 2147483648
  %v2526 = vxor.u32 %v2498, 2147483648
  %v2527 = vmul.f32 %v2525, 1.442695
  %v2528 = vpow.pop %v2527
  %v2529 = vmul.f32 %v2526, 1.442695
  %v2530 = vpow.pop %v2529
  %v2531 = vadd.f32 %v2528, 1.0
  %v2532 = vadd.f32 %v2530, 1.0
  %v2533 = vrcp.pop %v2531
  %v2534 = vmul.f32 1.0, %v2533
  %v2535 = vrcp.pop %v2532
  %v2536 = vmul.f32 1.0, %v2535
  %v2537 = vmul.f32 %v2520, 0.0
  %v2538 = vmul.f32 %v2522, 0.0
  %v2539 = vmul.f32 %v2508, %v2523
  %v2540 = vmul.f32 %v2510, %v2524
  %v2541 = vadd.f32 %v2537, %v2539
  %v2542 = vadd.f32 %v2538, %v2540
  %v2543 = vtanh.pop %v2541
  %v2544 = vtanh.pop %v2542
  %v2545 = vmul.f32 %v2534, %v2543
  %v2546 = vmul.f32 %v2536, %v2544
  %v2547 = vpack.c.bf16 %v2545, %v2545
  %v2548 = vpack.c.bf16 %v2546, %v2546
  %v2677 = vunpack.c.l.b16 %v161
  %v2678 = vunpack.c.h.b16 %v161
  %v2679 = vunpack.c.l.b16 %v162
  %v2680 = vunpack.c.h.b16 %v162
  %v2681 = vunpack.c.l.b16 %v163
  %v2682 = vunpack.c.h.b16 %v163
  %v2683 = vunpack.c.l.b16 %v164
  %v2684 = vunpack.c.h.b16 %v164
  %v2685 = vunpack.c.l.b16 %v165
  %v2686 = vunpack.c.h.b16 %v165
  %v2687 = vunpack.c.l.b16 %v166
  %v2688 = vunpack.c.h.b16 %v166
  %v2689 = vunpack.c.l.b16 %v167
  %v2690 = vunpack.c.h.b16 %v167
  %v2691 = vunpack.c.l.b16 %v168
  %v2692 = vunpack.c.h.b16 %v168
  %v2693 = vunpack.c.l.b16 %v169
  %v2694 = vunpack.c.h.b16 %v169
  %v2695 = vunpack.c.l.b16 %v170
  %v2696 = vunpack.c.h.b16 %v170
  %v2697 = vunpack.c.l.b16 %v171
  %v2698 = vunpack.c.h.b16 %v171
  %v2699 = vunpack.c.l.b16 %v172
  %v2700 = vunpack.c.h.b16 %v172
  %v2701 = vunpack.c.l.b16 %v173
  %v2702 = vunpack.c.h.b16 %v173
  %v2703 = vunpack.c.l.b16 %v174
  %v2704 = vunpack.c.h.b16 %v174
  %v2705 = vunpack.c.l.b16 %v175
  %v2706 = vunpack.c.h.b16 %v175
  %v2707 = vunpack.c.l.b16 %v176
  %v2708 = vunpack.c.h.b16 %v176
  %v2709 = vunpack.c.l.b16 %v177
  %v2710 = vunpack.c.h.b16 %v177
  %v2711 = vunpack.c.l.b16 %v178
  %v2712 = vunpack.c.h.b16 %v178
  %v2713 = vunpack.c.l.b16 %v179
  %v2714 = vunpack.c.h.b16 %v179
  %v2715 = vunpack.c.l.b16 %v180
  %v2716 = vunpack.c.h.b16 %v180
  %v2717 = vunpack.c.l.b16 %v181
  %v2718 = vunpack.c.h.b16 %v181
  %v2719 = vunpack.c.l.b16 %v182
  %v2720 = vunpack.c.h.b16 %v182
  %v2721 = vunpack.c.l.b16 %v183
  %v2722 = vunpack.c.h.b16 %v183
  %v2723 = vunpack.c.l.b16 %v184
  %v2724 = vunpack.c.h.b16 %v184
  %v2725 = vunpack.c.l.b16 %v185
  %v2726 = vunpack.c.h.b16 %v185
  %v2727 = vunpack.c.l.b16 %v186
  %v2728 = vunpack.c.h.b16 %v186
  %v2729 = vunpack.c.l.b16 %v187
  %v2730 = vunpack.c.h.b16 %v187
  %v2731 = vunpack.c.l.b16 %v188
  %v2732 = vunpack.c.h.b16 %v188
  %v2733 = vunpack.c.l.b16 %v189
  %v2734 = vunpack.c.h.b16 %v189
  %v2735 = vunpack.c.l.b16 %v190
  %v2736 = vunpack.c.h.b16 %v190
  %v2737 = vunpack.c.l.b16 %v191
  %v2738 = vunpack.c.h.b16 %v191
  %v2739 = vunpack.c.l.b16 %v192
  %v2740 = vunpack.c.h.b16 %v192
  %v2741 = vunpack.c.l.b16 %v193
  %v2742 = vunpack.c.h.b16 %v193
  %v2743 = vunpack.c.l.b16 %v194
  %v2744 = vunpack.c.h.b16 %v194
  %v2745 = vunpack.c.l.b16 %v195
  %v2746 = vunpack.c.h.b16 %v195
  %v2747 = vunpack.c.l.b16 %v196
  %v2748 = vunpack.c.h.b16 %v196
  %v2749 = vunpack.c.l.b16 %v197
  %v2750 = vunpack.c.h.b16 %v197
  %v2751 = vunpack.c.l.b16 %v198
  %v2752 = vunpack.c.h.b16 %v198
  %v2753 = vunpack.c.l.b16 %v199
  %v2754 = vunpack.c.h.b16 %v199
  %v2755 = vunpack.c.l.b16 %v200
  %v2756 = vunpack.c.h.b16 %v200
  %v2757 = vunpack.c.l.b16 %v201
  %v2758 = vunpack.c.h.b16 %v201
  %v2759 = vunpack.c.l.b16 %v202
  %v2760 = vunpack.c.h.b16 %v202
  %v2761 = vunpack.c.l.b16 %v203
  %v2762 = vunpack.c.h.b16 %v203
  %v2763 = vunpack.c.l.b16 %v204
  %v2764 = vunpack.c.h.b16 %v204
  %v2765 = vunpack.c.l.b16 %v205
  %v2766 = vunpack.c.h.b16 %v205
  %v2767 = vunpack.c.l.b16 %v206
  %v2768 = vunpack.c.h.b16 %v206
  %v2769 = vunpack.c.l.b16 %v207
  %v2770 = vunpack.c.h.b16 %v207
  %v2771 = vunpack.c.l.b16 %v208
  %v2772 = vunpack.c.h.b16 %v208
  %v2773 = vunpack.c.l.b16 %v209
  %v2774 = vunpack.c.h.b16 %v209
  %v2775 = vunpack.c.l.b16 %v210
  %v2776 = vunpack.c.h.b16 %v210
  %v2777 = vunpack.c.l.b16 %v211
  %v2778 = vunpack.c.h.b16 %v211
  %v2779 = vunpack.c.l.b16 %v212
  %v2780 = vunpack.c.h.b16 %v212
  %v2781 = vunpack.c.l.b16 %v213
  %v2782 = vunpack.c.h.b16 %v213
  %v2783 = vunpack.c.l.b16 %v214
  %v2784 = vunpack.c.h.b16 %v214
  %v2785 = vunpack.c.l.b16 %v215
  %v2786 = vunpack.c.h.b16 %v215
  %v2787 = vunpack.c.l.b16 %v216
  %v2788 = vunpack.c.h.b16 %v216
  %v2789 = vunpack.c.l.b16 %v217
  %v2790 = vunpack.c.h.b16 %v217
  %v2791 = vunpack.c.l.b16 %v218
  %v2792 = vunpack.c.h.b16 %v218
  %v2793 = vunpack.c.l.b16 %v219
  %v2794 = vunpack.c.h.b16 %v219
  %v2795 = vunpack.c.l.b16 %v220
  %v2796 = vunpack.c.h.b16 %v220
  %v2797 = vunpack.c.l.b16 %v221
  %v2798 = vunpack.c.h.b16 %v221
  %v2799 = vunpack.c.l.b16 %v222
  %v2800 = vunpack.c.h.b16 %v222
  %v2801 = vunpack.c.l.b16 %v223
  %v2802 = vunpack.c.h.b16 %v223
  %v2803 = vunpack.c.l.b16 %v224
  %v2804 = vunpack.c.h.b16 %v224
  %v2805 = vunpack.c.l.b16 %v225
  %v2806 = vunpack.c.h.b16 %v225
  %v2807 = vunpack.c.l.b16 %v226
  %v2808 = vunpack.c.h.b16 %v226
  %v2809 = vunpack.c.l.b16 %v227
  %v2810 = vunpack.c.h.b16 %v227
  %v2811 = vunpack.c.l.b16 %v228
  %v2812 = vunpack.c.h.b16 %v228
  %v2813 = vunpack.c.l.b16 %v229
  %v2814 = vunpack.c.h.b16 %v229
  %v2815 = vunpack.c.l.b16 %v230
  %v2816 = vunpack.c.h.b16 %v230
  %v2817 = vunpack.c.l.b16 %v231
  %v2818 = vunpack.c.h.b16 %v231
  %v2819 = vunpack.c.l.b16 %v232
  %v2820 = vunpack.c.h.b16 %v232
  %v2821 = vunpack.c.l.b16 %v233
  %v2822 = vunpack.c.h.b16 %v233
  %v2823 = vunpack.c.l.b16 %v234
  %v2824 = vunpack.c.h.b16 %v234
  %v2825 = vunpack.c.l.b16 %v235
  %v2826 = vunpack.c.h.b16 %v235
  %v2827 = vunpack.c.l.b16 %v236
  %v2828 = vunpack.c.h.b16 %v236
  %v2829 = vunpack.c.l.b16 %v237
  %v2830 = vunpack.c.h.b16 %v237
  %v2831 = vunpack.c.l.b16 %v238
  %v2832 = vunpack.c.h.b16 %v238
  %v2833 = vunpack.c.l.b16 %v239
  %v2834 = vunpack.c.h.b16 %v239
  %v2835 = vunpack.c.l.b16 %v240
  %v2836 = vunpack.c.h.b16 %v240
  %v2837 = vunpack.c.l.b16 %v241
  %v2838 = vunpack.c.h.b16 %v241
  %v2839 = vunpack.c.l.b16 %v242
  %v2840 = vunpack.c.h.b16 %v242
  %v2841 = vunpack.c.l.b16 %v243
  %v2842 = vunpack.c.h.b16 %v243
  %v2843 = vunpack.c.l.b16 %v244
  %v2844 = vunpack.c.h.b16 %v244
  %v2845 = vunpack.c.l.b16 %v245
  %v2846 = vunpack.c.h.b16 %v245
  %v2847 = vunpack.c.l.b16 %v246
  %v2848 = vunpack.c.h.b16 %v246
  %v2849 = vunpack.c.l.b16 %v247
  %v2850 = vunpack.c.h.b16 %v247
  %v2851 = vunpack.c.l.b16 %v248
  %v2852 = vunpack.c.h.b16 %v248
  %v2853 = vunpack.c.l.b16 %v249
  %v2854 = vunpack.c.h.b16 %v249
  %v2855 = vunpack.c.l.b16 %v250
  %v2856 = vunpack.c.h.b16 %v250
  %v2857 = vunpack.c.l.b16 %v251
  %v2858 = vunpack.c.h.b16 %v251
  %v2859 = vunpack.c.l.b16 %v252
  %v2860 = vunpack.c.h.b16 %v252
  %v2861 = vunpack.c.l.b16 %v253
  %v2862 = vunpack.c.h.b16 %v253
  %v2863 = vunpack.c.l.b16 %v254
  %v2864 = vunpack.c.h.b16 %v254
  %v2865 = vunpack.c.l.b16 %v255
  %v2866 = vunpack.c.h.b16 %v255
  %v2867 = vunpack.c.l.b16 %v256
  %v2868 = vunpack.c.h.b16 %v256
  %v2869 = vunpack.c.l.b16 %v257
  %v2870 = vunpack.c.h.b16 %v257
  %v2871 = vunpack.c.l.b16 %v258
  %v2872 = vunpack.c.h.b16 %v258
  %v2873 = vunpack.c.l.b16 %v259
  %v2874 = vunpack.c.h.b16 %v259
  %v2875 = vunpack.c.l.b16 %v260
  %v2876 = vunpack.c.h.b16 %v260
  %v2877 = vunpack.c.l.b16 %v261
  %v2878 = vunpack.c.h.b16 %v261
  %v2879 = vunpack.c.l.b16 %v262
  %v2880 = vunpack.c.h.b16 %v262
  %v2881 = vunpack.c.l.b16 %v263
  %v2882 = vunpack.c.h.b16 %v263
  %v2883 = vunpack.c.l.b16 %v264
  %v2884 = vunpack.c.h.b16 %v264
  %v2885 = vunpack.c.l.b16 %v265
  %v2886 = vunpack.c.h.b16 %v265
  %v2887 = vunpack.c.l.b16 %v266
  %v2888 = vunpack.c.h.b16 %v266
  %v2889 = vunpack.c.l.b16 %v267
  %v2890 = vunpack.c.h.b16 %v267
  %v2891 = vunpack.c.l.b16 %v268
  %v2892 = vunpack.c.h.b16 %v268
  %v2893 = vunpack.c.l.b16 %v269
  %v2894 = vunpack.c.h.b16 %v269
  %v2895 = vunpack.c.l.b16 %v270
  %v2896 = vunpack.c.h.b16 %v270
  %v2897 = vunpack.c.l.b16 %v271
  %v2898 = vunpack.c.h.b16 %v271
  %v2899 = vunpack.c.l.b16 %v272
  %v2900 = vunpack.c.h.b16 %v272
  %v2901 = vunpack.c.l.b16 %v273
  %v2902 = vunpack.c.h.b16 %v273
  %v2903 = vunpack.c.l.b16 %v274
  %v2904 = vunpack.c.h.b16 %v274
  %v2905 = vunpack.c.l.b16 %v275
  %v2906 = vunpack.c.h.b16 %v275
  %v2907 = vunpack.c.l.b16 %v276
  %v2908 = vunpack.c.h.b16 %v276
  %v2909 = vunpack.c.l.b16 %v277
  %v2910 = vunpack.c.h.b16 %v277
  %v2911 = vunpack.c.l.b16 %v278
  %v2912 = vunpack.c.h.b16 %v278
  %v2913 = vunpack.c.l.b16 %v279
  %v2914 = vunpack.c.h.b16 %v279
  %v2915 = vunpack.c.l.b16 %v280
  %v2916 = vunpack.c.h.b16 %v280
  %v2917 = vunpack.c.l.b16 %v281
  %v2918 = vunpack.c.h.b16 %v281
  %v2919 = vunpack.c.l.b16 %v282
  %v2920 = vunpack.c.h.b16 %v282
  %v2921 = vunpack.c.l.b16 %v283
  %v2922 = vunpack.c.h.b16 %v283
  %v2923 = vunpack.c.l.b16 %v284
  %v2924 = vunpack.c.h.b16 %v284
  %v2925 = vunpack.c.l.b16 %v285
  %v2926 = vunpack.c.h.b16 %v285
  %v2927 = vunpack.c.l.b16 %v286
  %v2928 = vunpack.c.h.b16 %v286
  %v2929 = vunpack.c.l.b16 %v287
  %v2930 = vunpack.c.h.b16 %v287
  %v2931 = vunpack.c.l.b16 %v288
  %v2932 = vunpack.c.h.b16 %v288
  %v2933 = vpack.c.b16 %v2685, %v2677
  %v2934 = vpack.c.b16 %v2686, %v2678
  %v2935 = vpack.c.b16 %v2687, %v2679
  %v2936 = vpack.c.b16 %v2688, %v2680
  %v2937 = vpack.c.b16 %v2689, %v2681
  %v2938 = vpack.c.b16 %v2690, %v2682
  %v2939 = vpack.c.b16 %v2691, %v2683
  %v2940 = vpack.c.b16 %v2692, %v2684
  %v2941 = vpack.c.b16 %v2701, %v2693
  %v2942 = vpack.c.b16 %v2702, %v2694
  %v2943 = vpack.c.b16 %v2703, %v2695
  %v2944 = vpack.c.b16 %v2704, %v2696
  %v2945 = vpack.c.b16 %v2705, %v2697
  %v2946 = vpack.c.b16 %v2706, %v2698
  %v2947 = vpack.c.b16 %v2707, %v2699
  %v2948 = vpack.c.b16 %v2708, %v2700
  %v2949 = vpack.c.b16 %v2717, %v2709
  %v2950 = vpack.c.b16 %v2718, %v2710
  %v2951 = vpack.c.b16 %v2719, %v2711
  %v2952 = vpack.c.b16 %v2720, %v2712
  %v2953 = vpack.c.b16 %v2721, %v2713
  %v2954 = vpack.c.b16 %v2722, %v2714
  %v2955 = vpack.c.b16 %v2723, %v2715
  %v2956 = vpack.c.b16 %v2724, %v2716
  %v2957 = vpack.c.b16 %v2733, %v2725
  %v2958 = vpack.c.b16 %v2734, %v2726
  %v2959 = vpack.c.b16 %v2735, %v2727
  %v2960 = vpack.c.b16 %v2736, %v2728
  %v2961 = vpack.c.b16 %v2737, %v2729
  %v2962 = vpack.c.b16 %v2738, %v2730
  %v2963 = vpack.c.b16 %v2739, %v2731
  %v2964 = vpack.c.b16 %v2740, %v2732
  %v2965 = vpack.c.b16 %v2749, %v2741
  %v2966 = vpack.c.b16 %v2750, %v2742
  %v2967 = vpack.c.b16 %v2751, %v2743
  %v2968 = vpack.c.b16 %v2752, %v2744
  %v2969 = vpack.c.b16 %v2753, %v2745
  %v2970 = vpack.c.b16 %v2754, %v2746
  %v2971 = vpack.c.b16 %v2755, %v2747
  %v2972 = vpack.c.b16 %v2756, %v2748
  %v2973 = vpack.c.b16 %v2765, %v2757
  %v2974 = vpack.c.b16 %v2766, %v2758
  %v2975 = vpack.c.b16 %v2767, %v2759
  %v2976 = vpack.c.b16 %v2768, %v2760
  %v2977 = vpack.c.b16 %v2769, %v2761
  %v2978 = vpack.c.b16 %v2770, %v2762
  %v2979 = vpack.c.b16 %v2771, %v2763
  %v2980 = vpack.c.b16 %v2772, %v2764
  %v2981 = vpack.c.b16 %v2781, %v2773
  %v2982 = vpack.c.b16 %v2782, %v2774
  %v2983 = vpack.c.b16 %v2783, %v2775
  %v2984 = vpack.c.b16 %v2784, %v2776
  %v2985 = vpack.c.b16 %v2785, %v2777
  %v2986 = vpack.c.b16 %v2786, %v2778
  %v2987 = vpack.c.b16 %v2787, %v2779
  %v2988 = vpack.c.b16 %v2788, %v2780
  %v2989 = vpack.c.b16 %v2797, %v2789
  %v2990 = vpack.c.b16 %v2798, %v2790
  %v2991 = vpack.c.b16 %v2799, %v2791
  %v2992 = vpack.c.b16 %v2800, %v2792
  %v2993 = vpack.c.b16 %v2801, %v2793
  %v2994 = vpack.c.b16 %v2802, %v2794
  %v2995 = vpack.c.b16 %v2803, %v2795
  %v2996 = vpack.c.b16 %v2804, %v2796
  %v2997 = vpack.c.b16 %v2813, %v2805
  %v2998 = vpack.c.b16 %v2814, %v2806
  %v2999 = vpack.c.b16 %v2815, %v2807
  %v3000 = vpack.c.b16 %v2816, %v2808
  %v3001 = vpack.c.b16 %v2817, %v2809
  %v3002 = vpack.c.b16 %v2818, %v2810
  %v3003 = vpack.c.b16 %v2819, %v2811
  %v3004 = vpack.c.b16 %v2820, %v2812
  %v3005 = vpack.c.b16 %v2829, %v2821
  %v3006 = vpack.c.b16 %v2830, %v2822
  %v3007 = vpack.c.b16 %v2831, %v2823
  %v3008 = vpack.c.b16 %v2832, %v2824
  %v3009 = vpack.c.b16 %v2833, %v2825
  %v3010 = vpack.c.b16 %v2834, %v2826
  %v3011 = vpack.c.b16 %v2835, %v2827
  %v3012 = vpack.c.b16 %v2836, %v2828
  %v3013 = vpack.c.b16 %v2845, %v2837
  %v3014 = vpack.c.b16 %v2846, %v2838
  %v3015 = vpack.c.b16 %v2847, %v2839
  %v3016 = vpack.c.b16 %v2848, %v2840
  %v3017 = vpack.c.b16 %v2849, %v2841
  %v3018 = vpack.c.b16 %v2850, %v2842
  %v3019 = vpack.c.b16 %v2851, %v2843
  %v3020 = vpack.c.b16 %v2852, %v2844
  %v3021 = vpack.c.b16 %v2861, %v2853
  %v3022 = vpack.c.b16 %v2862, %v2854
  %v3023 = vpack.c.b16 %v2863, %v2855
  %v3024 = vpack.c.b16 %v2864, %v2856
  %v3025 = vpack.c.b16 %v2865, %v2857
  %v3026 = vpack.c.b16 %v2866, %v2858
  %v3027 = vpack.c.b16 %v2867, %v2859
  %v3028 = vpack.c.b16 %v2868, %v2860
  %v3029 = vpack.c.b16 %v2877, %v2869
  %v3030 = vpack.c.b16 %v2878, %v2870
  %v3031 = vpack.c.b16 %v2879, %v2871
  %v3032 = vpack.c.b16 %v2880, %v2872
  %v3033 = vpack.c.b16 %v2881, %v2873
  %v3034 = vpack.c.b16 %v2882, %v2874
  %v3035 = vpack.c.b16 %v2883, %v2875
  %v3036 = vpack.c.b16 %v2884, %v2876
  %v3037 = vpack.c.b16 %v2893, %v2885
  %v3038 = vpack.c.b16 %v2894, %v2886
  %v3039 = vpack.c.b16 %v2895, %v2887
  %v3040 = vpack.c.b16 %v2896, %v2888
  %v3041 = vpack.c.b16 %v2897, %v2889
  %v3042 = vpack.c.b16 %v2898, %v2890
  %v3043 = vpack.c.b16 %v2899, %v2891
  %v3044 = vpack.c.b16 %v2900, %v2892
  %v3045 = vpack.c.b16 %v2909, %v2901
  %v3046 = vpack.c.b16 %v2910, %v2902
  %v3047 = vpack.c.b16 %v2911, %v2903
  %v3048 = vpack.c.b16 %v2912, %v2904
  %v3049 = vpack.c.b16 %v2913, %v2905
  %v3050 = vpack.c.b16 %v2914, %v2906
  %v3051 = vpack.c.b16 %v2915, %v2907
  %v3052 = vpack.c.b16 %v2916, %v2908
  %v3053 = vpack.c.b16 %v2925, %v2917
  %v3054 = vpack.c.b16 %v2926, %v2918
  %v3055 = vpack.c.b16 %v2927, %v2919
  %v3056 = vpack.c.b16 %v2928, %v2920
  %v3057 = vpack.c.b16 %v2929, %v2921
  %v3058 = vpack.c.b16 %v2930, %v2922
  %v3059 = vpack.c.b16 %v2931, %v2923
  %v3060 = vpack.c.b16 %v2932, %v2924
  %3189 = vmatprep.subr.bf16.mxu0 %v2934
  %3190 = vmatpush1.bf16.msra.mxu0 %v2933
  %3191 = vmatprep.subr.bf16.mxu0 %v2942
  %3192 = vmatpush1.bf16.msra.mxu0 %v2941
  %3193 = vmatprep.subr.bf16.mxu0 %v2950
  %3194 = vmatpush1.bf16.msra.mxu0 %v2949
  %3195 = vmatprep.subr.bf16.mxu0 %v2958
  %3196 = vmatpush1.bf16.msra.mxu0 %v2957
  %3197 = vmatprep.subr.bf16.mxu0 %v2966
  %3198 = vmatpush1.bf16.msra.mxu0 %v2965
  %3199 = vmatprep.subr.bf16.mxu0 %v2974
  %3200 = vmatpush1.bf16.msra.mxu0 %v2973
  %3201 = vmatprep.subr.bf16.mxu0 %v2982
  %3202 = vmatpush1.bf16.msra.mxu0 %v2981
  %3203 = vmatprep.subr.bf16.mxu0 %v2990
  %3204 = vmatpush1.bf16.msra.mxu0 %v2989
  %3205 = vmatprep.subr.bf16.mxu0 %v2998
  %3206 = vmatpush1.bf16.msra.mxu0 %v2997
  %3207 = vmatprep.subr.bf16.mxu0 %v3006
  %3208 = vmatpush1.bf16.msra.mxu0 %v3005
  %3209 = vmatprep.subr.bf16.mxu0 %v3014
  %3210 = vmatpush1.bf16.msra.mxu0 %v3013
  %3211 = vmatprep.subr.bf16.mxu0 %v3022
  %3212 = vmatpush1.bf16.msra.mxu0 %v3021
  %3213 = vmatprep.subr.bf16.mxu0 %v3030
  %3214 = vmatpush1.bf16.msra.mxu0 %v3029
  %3215 = vmatprep.subr.bf16.mxu0 %v3038
  %3216 = vmatpush1.bf16.msra.mxu0 %v3037
  %3217 = vmatprep.subr.bf16.mxu0 %v3046
  %3218 = vmatpush1.bf16.msra.mxu0 %v3045
  %3219 = vmatprep.subr.bf16.mxu0 %v3054
  %3220 = vmatpush1.bf16.msra.mxu0 %v3053
  %3221 = vmatprep.mubr.bf16.mxu0 %v2548
  %3222 = vmatmul.mubr.bf16.gmra.mrb[0].mxu0 %v2547
  %v3223 = vpop.f32.mrb[0].mxu0
  %v3224 = vadd.f32 0.0, %v3223
  %v3225 = vpop.f32.mrb[0].mxu0
  %v3226 = vadd.f32 0.0, %v3225
  %v3227 = vpop.f32.mrb[0].mxu0
  %v3228 = vpop.f32.mrb[0].mxu0
  %3229 = vdwg.mxu0
  %3230 = vmatprep.subr.bf16.mxu0 %v2936
  %3231 = vmatpush1.bf16.msra.mxu0 %v2935
  %3232 = vmatprep.subr.bf16.mxu0 %v2944
  %3233 = vmatpush1.bf16.msra.mxu0 %v2943
  %3234 = vmatprep.subr.bf16.mxu0 %v2952
  %3235 = vmatpush1.bf16.msra.mxu0 %v2951
  %3236 = vmatprep.subr.bf16.mxu0 %v2960
  %3237 = vmatpush1.bf16.msra.mxu0 %v2959
  %3238 = vmatprep.subr.bf16.mxu0 %v2968
  %3239 = vmatpush1.bf16.msra.mxu0 %v2967
  %3240 = vmatprep.subr.bf16.mxu0 %v2976
  %3241 = vmatpush1.bf16.msra.mxu0 %v2975
  %3242 = vmatprep.subr.bf16.mxu0 %v2984
  %3243 = vmatpush1.bf16.msra.mxu0 %v2983
  %3244 = vmatprep.subr.bf16.mxu0 %v2992
  %3245 = vmatpush1.bf16.msra.mxu0 %v2991
  %3246 = vmatprep.subr.bf16.mxu0 %v3000
  %3247 = vmatpush1.bf16.msra.mxu0 %v2999
  %3248 = vmatprep.subr.bf16.mxu0 %v3008
  %3249 = vmatpush1.bf16.msra.mxu0 %v3007
  %3250 = vmatprep.subr.bf16.mxu0 %v3016
  %3251 = vmatpush1.bf16.msra.mxu0 %v3015
  %3252 = vmatprep.subr.bf16.mxu0 %v3024
  %3253 = vmatpush1.bf16.msra.mxu0 %v3023
  %3254 = vmatprep.subr.bf16.mxu0 %v3032
  %3255 = vmatpush1.bf16.msra.mxu0 %v3031
  %3256 = vmatprep.subr.bf16.mxu0 %v3040
  %3257 = vmatpush1.bf16.msra.mxu0 %v3039
  %3258 = vmatprep.subr.bf16.mxu0 %v3048
  %3259 = vmatpush1.bf16.msra.mxu0 %v3047
  %3260 = vmatprep.subr.bf16.mxu0 %v3056
  %3261 = vmatpush1.bf16.msra.mxu0 %v3055
  %3262 = vmatprep.mubr.bf16.mxu0 %v2548
  %3263 = vmatmul.mubr.bf16.gmra.mrb[0].mxu0 %v2547
  %v3264 = vpop.f32.mrb[0].mxu0
  %v3265 = vadd.f32 0.0, %v3264
  %v3266 = vpop.f32.mrb[0].mxu0
  %v3267 = vadd.f32 0.0, %v3266
  %v3268 = vpop.f32.mrb[0].mxu0
  %v3269 = vpop.f32.mrb[0].mxu0
  %3270 = vdwg.mxu0
  %3271 = vmatprep.subr.bf16.mxu0 %v2938
  %3272 = vmatpush1.bf16.msra.mxu0 %v2937
  %3273 = vmatprep.subr.bf16.mxu0 %v2946
  %3274 = vmatpush1.bf16.msra.mxu0 %v2945
  %3275 = vmatprep.subr.bf16.mxu0 %v2954
  %3276 = vmatpush1.bf16.msra.mxu0 %v2953
  %3277 = vmatprep.subr.bf16.mxu0 %v2962
  %3278 = vmatpush1.bf16.msra.mxu0 %v2961
  %3279 = vmatprep.subr.bf16.mxu0 %v2970
  %3280 = vmatpush1.bf16.msra.mxu0 %v2969
  %3281 = vmatprep.subr.bf16.mxu0 %v2978
  %3282 = vmatpush1.bf16.msra.mxu0 %v2977
  %3283 = vmatprep.subr.bf16.mxu0 %v2986
  %3284 = vmatpush1.bf16.msra.mxu0 %v2985
  %3285 = vmatprep.subr.bf16.mxu0 %v2994
  %3286 = vmatpush1.bf16.msra.mxu0 %v2993
  %3287 = vmatprep.subr.bf16.mxu0 %v3002
  %3288 = vmatpush1.bf16.msra.mxu0 %v3001
  %3289 = vmatprep.subr.bf16.mxu0 %v3010
  %3290 = vmatpush1.bf16.msra.mxu0 %v3009
  %3291 = vmatprep.subr.bf16.mxu0 %v3018
  %3292 = vmatpush1.bf16.msra.mxu0 %v3017
  %3293 = vmatprep.subr.bf16.mxu0 %v3026
  %3294 = vmatpush1.bf16.msra.mxu0 %v3025
  %3295 = vmatprep.subr.bf16.mxu0 %v3034
  %3296 = vmatpush1.bf16.msra.mxu0 %v3033
  %3297 = vmatprep.subr.bf16.mxu0 %v3042
  %3298 = vmatpush1.bf16.msra.mxu0 %v3041
  %3299 = vmatprep.subr.bf16.mxu0 %v3050
  %3300 = vmatpush1.bf16.msra.mxu0 %v3049
  %3301 = vmatprep.subr.bf16.mxu0 %v3058
  %3302 = vmatpush1.bf16.msra.mxu0 %v3057
  %3303 = vmatprep.mubr.bf16.mxu0 %v2548
  %3304 = vmatmul.mubr.bf16.gmra.mrb[0].mxu0 %v2547
  %v3305 = vpop.f32.mrb[0].mxu0
  %v3306 = vadd.f32 0.0, %v3305
  %v3307 = vpop.f32.mrb[0].mxu0
  %v3308 = vadd.f32 0.0, %v3307
  %v3309 = vpop.f32.mrb[0].mxu0
  %v3310 = vpop.f32.mrb[0].mxu0
  %3311 = vdwg.mxu0
  %3312 = vmatprep.subr.bf16.mxu0 %v2940
  %3313 = vmatpush1.bf16.msra.mxu0 %v2939
  %3314 = vmatprep.subr.bf16.mxu0 %v2948
  %3315 = vmatpush1.bf16.msra.mxu0 %v2947
  %3316 = vmatprep.subr.bf16.mxu0 %v2956
  %3317 = vmatpush1.bf16.msra.mxu0 %v2955
  %3318 = vmatprep.subr.bf16.mxu0 %v2964
  %3319 = vmatpush1.bf16.msra.mxu0 %v2963
  %3320 = vmatprep.subr.bf16.mxu0 %v2972
  %3321 = vmatpush1.bf16.msra.mxu0 %v2971
  %3322 = vmatprep.subr.bf16.mxu0 %v2980
  %3323 = vmatpush1.bf16.msra.mxu0 %v2979
  %3324 = vmatprep.subr.bf16.mxu0 %v2988
  %3325 = vmatpush1.bf16.msra.mxu0 %v2987
  %3326 = vmatprep.subr.bf16.mxu0 %v2996
  %3327 = vmatpush1.bf16.msra.mxu0 %v2995
  %3328 = vmatprep.subr.bf16.mxu0 %v3004
  %3329 = vmatpush1.bf16.msra.mxu0 %v3003
  %3330 = vmatprep.subr.bf16.mxu0 %v3012
  %3331 = vmatpush1.bf16.msra.mxu0 %v3011
  %3332 = vmatprep.subr.bf16.mxu0 %v3020
  %3333 = vmatpush1.bf16.msra.mxu0 %v3019
  %3334 = vmatprep.subr.bf16.mxu0 %v3028
  %3335 = vmatpush1.bf16.msra.mxu0 %v3027
  %3336 = vmatprep.subr.bf16.mxu0 %v3036
  %3337 = vmatpush1.bf16.msra.mxu0 %v3035
  %3338 = vmatprep.subr.bf16.mxu0 %v3044
  %3339 = vmatpush1.bf16.msra.mxu0 %v3043
  %3340 = vmatprep.subr.bf16.mxu0 %v3052
  %3341 = vmatpush1.bf16.msra.mxu0 %v3051
  %3342 = vmatprep.subr.bf16.mxu0 %v3060
  %3343 = vmatpush1.bf16.msra.mxu0 %v3059
  %3344 = vmatprep.mubr.bf16.mxu0 %v2548
  %3345 = vmatmul.mubr.bf16.gmra.mrb[0].mxu0 %v2547
  %v3346 = vpop.f32.mrb[0].mxu0
  %v3347 = vadd.f32 0.0, %v3346
  %v3348 = vpop.f32.mrb[0].mxu0
  %v3349 = vadd.f32 0.0, %v3348
  %v3350 = vpop.f32.mrb[0].mxu0
  %v3351 = vpop.f32.mrb[0].mxu0
  %3352 = vdwg.mxu0
  %v3353 = vadd.f32 %v1558, %v3224
  %v3354 = vadd.f32 %v1560, %v3226
  %v3355 = vadd.f32 %v1599, %v3265
  %v3356 = vadd.f32 %v1601, %v3267
  %v3357 = vadd.f32 %v1640, %v3306
  %v3358 = vadd.f32 %v1642, %v3308
  %v3359 = vadd.f32 %v1681, %v3347
  %v3360 = vadd.f32 %v1683, %v3349
  %v3361 = vxor.u32 %v3353, 2147483648
  %v3362 = vxor.u32 %v3354, 2147483648
  %v3363 = vmul.f32 %v3361, 1.442695
  %v3364 = vpow.pop %v3363
  %v3365 = vmul.f32 %v3362, 1.442695
  %v3366 = vpow.pop %v3365
  %v3367 = vadd.f32 %v3364, 1.0
  %v3368 = vadd.f32 %v3366, 1.0
  %v3369 = vrcp.pop %v3367
  %v3370 = vmul.f32 1.0, %v3369
  %v3371 = vrcp.pop %v3368
  %v3372 = vmul.f32 1.0, %v3371
  %v3373 = vxor.u32 %v3355, 2147483648
  %v3374 = vxor.u32 %v3356, 2147483648
  %v3375 = vmul.f32 %v3373, 1.442695
  %v3376 = vpow.pop %v3375
  %v3377 = vmul.f32 %v3374, 1.442695
  %v3378 = vpow.pop %v3377
  %v3379 = vadd.f32 %v3376, 1.0
  %v3380 = vadd.f32 %v3378, 1.0
  %v3381 = vrcp.pop %v3379
  %v3382 = vmul.f32 1.0, %v3381
  %v3383 = vrcp.pop %v3380
  %v3384 = vmul.f32 1.0, %v3383
  %v3385 = vtanh.pop %v3357
  %v3386 = vtanh.pop %v3358
  %v3387 = vxor.u32 %v3359, 2147483648
  %v3388 = vxor.u32 %v3360, 2147483648
  %v3389 = vmul.f32 %v3387, 1.442695
  %v3390 = vpow.pop %v3389
  %v3391 = vmul.f32 %v3388, 1.442695
  %v3392 = vpow.pop %v3391
  %v3393 = vadd.f32 %v3390, 1.0
  %v3394 = vadd.f32 %v3392, 1.0
  %v3395 = vrcp.pop %v3393
  %v3396 = vmul.f32 1.0, %v3395
  %v3397 = vrcp.pop %v3394
  %v3398 = vmul.f32 1.0, %v3397
  %v3399 = vmul.f32 %v3382, 0.0
  %v3400 = vmul.f32 %v3384, 0.0
  %v3401 = vmul.f32 %v3370, %v3385
  %v3402 = vmul.f32 %v3372, %v3386
  %v3403 = vadd.f32 %v3399, %v3401
  %v3404 = vadd.f32 %v3400, %v3402
  %v3405 = vtanh.pop %v3403
  %v3406 = vtanh.pop %v3404
  %v3407 = vmul.f32 %v3396, %v3405
  %v3408 = vmul.f32 %v3398, %v3406
  %v3409 = vpack.c.bf16 %v3407, %v3407
  %v3410 = vpack.c.bf16 %v3408, %v3408
  %3411 = vmatprep.subr.bf16.mxu0 %v1268
  %3412 = vmatpush1.bf16.msra.mxu0 %v1267
  %3413 = vmatprep.subr.bf16.mxu0 %v1276
  %3414 = vmatpush1.bf16.msra.mxu0 %v1275
  %3415 = vmatprep.subr.bf16.mxu0 %v1284
  %3416 = vmatpush1.bf16.msra.mxu0 %v1283
  %3417 = vmatprep.subr.bf16.mxu0 %v1292
  %3418 = vmatpush1.bf16.msra.mxu0 %v1291
  %3419 = vmatprep.subr.bf16.mxu0 %v1300
  %3420 = vmatpush1.bf16.msra.mxu0 %v1299
  %3421 = vmatprep.subr.bf16.mxu0 %v1308
  %3422 = vmatpush1.bf16.msra.mxu0 %v1307
  %3423 = vmatprep.subr.bf16.mxu0 %v1316
  %3424 = vmatpush1.bf16.msra.mxu0 %v1315
  %3425 = vmatprep.subr.bf16.mxu0 %v1324
  %3426 = vmatpush1.bf16.msra.mxu0 %v1323
  %3427 = vmatprep.subr.bf16.mxu0 %v1332
  %3428 = vmatpush1.bf16.msra.mxu0 %v1331
  %3429 = vmatprep.subr.bf16.mxu0 %v1340
  %3430 = vmatpush1.bf16.msra.mxu0 %v1339
  %3431 = vmatprep.subr.bf16.mxu0 %v1348
  %3432 = vmatpush1.bf16.msra.mxu0 %v1347
  %3433 = vmatprep.subr.bf16.mxu0 %v1356
  %3434 = vmatpush1.bf16.msra.mxu0 %v1355
  %3435 = vmatprep.subr.bf16.mxu0 %v1364
  %3436 = vmatpush1.bf16.msra.mxu0 %v1363
  %3437 = vmatprep.subr.bf16.mxu0 %v1372
  %3438 = vmatpush1.bf16.msra.mxu0 %v1371
  %3439 = vmatprep.subr.bf16.mxu0 %v1380
  %3440 = vmatpush1.bf16.msra.mxu0 %v1379
  %3441 = vmatprep.subr.bf16.mxu0 %v1388
  %3442 = vmatpush1.bf16.msra.mxu0 %v1387
  %3443 = vmatprep.mubr.bf16.mxu0 %v3410
  %3444 = vmatmul.mubr.bf16.gmra.mrb[0].mxu0 %v3409
  %v3445 = vpop.f32.mrb[0].mxu0
  %v3446 = vadd.f32 %v846, %v3445
  %v3447 = vpop.f32.mrb[0].mxu0
  %v3448 = vadd.f32 %v850, %v3447
  %v3449 = vpop.f32.mrb[0].mxu0
  %v3450 = vpop.f32.mrb[0].mxu0
  %3451 = vdwg.mxu0
  %3452 = vmatprep.subr.bf16.mxu0 %v1270
  %3453 = vmatpush1.bf16.msra.mxu0 %v1269
  %3454 = vmatprep.subr.bf16.mxu0 %v1278
  %3455 = vmatpush1.bf16.msra.mxu0 %v1277
  %3456 = vmatprep.subr.bf16.mxu0 %v1286
  %3457 = vmatpush1.bf16.msra.mxu0 %v1285
  %3458 = vmatprep.subr.bf16.mxu0 %v1294
  %3459 = vmatpush1.bf16.msra.mxu0 %v1293
  %3460 = vmatprep.subr.bf16.mxu0 %v1302
  %3461 = vmatpush1.bf16.msra.mxu0 %v1301
  %3462 = vmatprep.subr.bf16.mxu0 %v1310
  %3463 = vmatpush1.bf16.msra.mxu0 %v1309
  %3464 = vmatprep.subr.bf16.mxu0 %v1318
  %3465 = vmatpush1.bf16.msra.mxu0 %v1317
  %3466 = vmatprep.subr.bf16.mxu0 %v1326
  %3467 = vmatpush1.bf16.msra.mxu0 %v1325
  %3468 = vmatprep.subr.bf16.mxu0 %v1334
  %3469 = vmatpush1.bf16.msra.mxu0 %v1333
  %3470 = vmatprep.subr.bf16.mxu0 %v1342
  %3471 = vmatpush1.bf16.msra.mxu0 %v1341
  %3472 = vmatprep.subr.bf16.mxu0 %v1350
  %3473 = vmatpush1.bf16.msra.mxu0 %v1349
  %3474 = vmatprep.subr.bf16.mxu0 %v1358
  %3475 = vmatpush1.bf16.msra.mxu0 %v1357
  %3476 = vmatprep.subr.bf16.mxu0 %v1366
  %3477 = vmatpush1.bf16.msra.mxu0 %v1365
  %3478 = vmatprep.subr.bf16.mxu0 %v1374
  %3479 = vmatpush1.bf16.msra.mxu0 %v1373
  %3480 = vmatprep.subr.bf16.mxu0 %v1382
  %3481 = vmatpush1.bf16.msra.mxu0 %v1381
  %3482 = vmatprep.subr.bf16.mxu0 %v1390
  %3483 = vmatpush1.bf16.msra.mxu0 %v1389
  %3484 = vmatprep.mubr.bf16.mxu0 %v3410
  %3485 = vmatmul.mubr.bf16.gmra.mrb[0].mxu0 %v3409
  %v3486 = vpop.f32.mrb[0].mxu0
  %v3487 = vadd.f32 %v854, %v3486
  %v3488 = vpop.f32.mrb[0].mxu0
  %v3489 = vadd.f32 %v858, %v3488
  %v3490 = vpop.f32.mrb[0].mxu0
  %v3491 = vpop.f32.mrb[0].mxu0
  %3492 = vdwg.mxu0
  %3493 = vmatprep.subr.bf16.mxu0 %v1272
  %3494 = vmatpush1.bf16.msra.mxu0 %v1271
  %3495 = vmatprep.subr.bf16.mxu0 %v1280
  %3496 = vmatpush1.bf16.msra.mxu0 %v1279
  %3497 = vmatprep.subr.bf16.mxu0 %v1288
  %3498 = vmatpush1.bf16.msra.mxu0 %v1287
  %3499 = vmatprep.subr.bf16.mxu0 %v1296
  %3500 = vmatpush1.bf16.msra.mxu0 %v1295
  %3501 = vmatprep.subr.bf16.mxu0 %v1304
  %3502 = vmatpush1.bf16.msra.mxu0 %v1303
  %3503 = vmatprep.subr.bf16.mxu0 %v1312
  %3504 = vmatpush1.bf16.msra.mxu0 %v1311
  %3505 = vmatprep.subr.bf16.mxu0 %v1320
  %3506 = vmatpush1.bf16.msra.mxu0 %v1319
  %3507 = vmatprep.subr.bf16.mxu0 %v1328
  %3508 = vmatpush1.bf16.msra.mxu0 %v1327
  %3509 = vmatprep.subr.bf16.mxu0 %v1336
  %3510 = vmatpush1.bf16.msra.mxu0 %v1335
  %3511 = vmatprep.subr.bf16.mxu0 %v1344
  %3512 = vmatpush1.bf16.msra.mxu0 %v1343
  %3513 = vmatprep.subr.bf16.mxu0 %v1352
  %3514 = vmatpush1.bf16.msra.mxu0 %v1351
  %3515 = vmatprep.subr.bf16.mxu0 %v1360
  %3516 = vmatpush1.bf16.msra.mxu0 %v1359
  %3517 = vmatprep.subr.bf16.mxu0 %v1368
  %3518 = vmatpush1.bf16.msra.mxu0 %v1367
  %3519 = vmatprep.subr.bf16.mxu0 %v1376
  %3520 = vmatpush1.bf16.msra.mxu0 %v1375
  %3521 = vmatprep.subr.bf16.mxu0 %v1384
  %3522 = vmatpush1.bf16.msra.mxu0 %v1383
  %3523 = vmatprep.subr.bf16.mxu0 %v1392
  %3524 = vmatpush1.bf16.msra.mxu0 %v1391
  %3525 = vmatprep.mubr.bf16.mxu0 %v3410
  %3526 = vmatmul.mubr.bf16.gmra.mrb[0].mxu0 %v3409
  %v3527 = vpop.f32.mrb[0].mxu0
  %v3528 = vadd.f32 %v862, %v3527
  %v3529 = vpop.f32.mrb[0].mxu0
  %v3530 = vadd.f32 %v866, %v3529
  %v3531 = vpop.f32.mrb[0].mxu0
  %v3532 = vpop.f32.mrb[0].mxu0
  %3533 = vdwg.mxu0
  %3534 = vmatprep.subr.bf16.mxu0 %v1274
  %3535 = vmatpush1.bf16.msra.mxu0 %v1273
  %3536 = vmatprep.subr.bf16.mxu0 %v1282
  %3537 = vmatpush1.bf16.msra.mxu0 %v1281
  %3538 = vmatprep.subr.bf16.mxu0 %v1290
  %3539 = vmatpush1.bf16.msra.mxu0 %v1289
  %3540 = vmatprep.subr.bf16.mxu0 %v1298
  %3541 = vmatpush1.bf16.msra.mxu0 %v1297
  %3542 = vmatprep.subr.bf16.mxu0 %v1306
  %3543 = vmatpush1.bf16.msra.mxu0 %v1305
  %3544 = vmatprep.subr.bf16.mxu0 %v1314
  %3545 = vmatpush1.bf16.msra.mxu0 %v1313
  %3546 = vmatprep.subr.bf16.mxu0 %v1322
  %3547 = vmatpush1.bf16.msra.mxu0 %v1321
  %3548 = vmatprep.subr.bf16.mxu0 %v1330
  %3549 = vmatpush1.bf16.msra.mxu0 %v1329
  %3550 = vmatprep.subr.bf16.mxu0 %v1338
  %3551 = vmatpush1.bf16.msra.mxu0 %v1337
  %3552 = vmatprep.subr.bf16.mxu0 %v1346
  %3553 = vmatpush1.bf16.msra.mxu0 %v1345
  %3554 = vmatprep.subr.bf16.mxu0 %v1354
  %3555 = vmatpush1.bf16.msra.mxu0 %v1353
  %3556 = vmatprep.subr.bf16.mxu0 %v1362
  %3557 = vmatpush1.bf16.msra.mxu0 %v1361
  %3558 = vmatprep.subr.bf16.mxu0 %v1370
  %3559 = vmatpush1.bf16.msra.mxu0 %v1369
  %3560 = vmatprep.subr.bf16.mxu0 %v1378
  %3561 = vmatpush1.bf16.msra.mxu0 %v1377
  %3562 = vmatprep.subr.bf16.mxu0 %v1386
  %3563 = vmatpush1.bf16.msra.mxu0 %v1385
  %3564 = vmatprep.subr.bf16.mxu0 %v1394
  %3565 = vmatpush1.bf16.msra.mxu0 %v1393
  %3566 = vmatprep.mubr.bf16.mxu0 %v3410
  %3567 = vmatmul.mubr.bf16.gmra.mrb[0].mxu0 %v3409
  %v3568 = vpop.f32.mrb[0].mxu0
  %v3569 = vadd.f32 %v870, %v3568
  %v3570 = vpop.f32.mrb[0].mxu0
  %v3571 = vadd.f32 %v874, %v3570
  %v3572 = vpop.f32.mrb[0].mxu0
  %v3573 = vpop.f32.mrb[0].mxu0
  %3574 = vdwg.mxu0
  %3575 = vmatprep.subr.bf16.mxu0 %v2072
  %3576 = vmatpush1.bf16.msra.mxu0 %v2071
  %3577 = vmatprep.subr.bf16.mxu0 %v2080
  %3578 = vmatpush1.bf16.msra.mxu0 %v2079
  %3579 = vmatprep.subr.bf16.mxu0 %v2088
  %3580 = vmatpush1.bf16.msra.mxu0 %v2087
  %3581 = vmatprep.subr.bf16.mxu0 %v2096
  %3582 = vmatpush1.bf16.msra.mxu0 %v2095
  %3583 = vmatprep.subr.bf16.mxu0 %v2104
  %3584 = vmatpush1.bf16.msra.mxu0 %v2103
  %3585 = vmatprep.subr.bf16.mxu0 %v2112
  %3586 = vmatpush1.bf16.msra.mxu0 %v2111
  %3587 = vmatprep.subr.bf16.mxu0 %v2120
  %3588 = vmatpush1.bf16.msra.mxu0 %v2119
  %3589 = vmatprep.subr.bf16.mxu0 %v2128
  %3590 = vmatpush1.bf16.msra.mxu0 %v2127
  %3591 = vmatprep.subr.bf16.mxu0 %v2136
  %3592 = vmatpush1.bf16.msra.mxu0 %v2135
  %3593 = vmatprep.subr.bf16.mxu0 %v2144
  %3594 = vmatpush1.bf16.msra.mxu0 %v2143
  %3595 = vmatprep.subr.bf16.mxu0 %v2152
  %3596 = vmatpush1.bf16.msra.mxu0 %v2151
  %3597 = vmatprep.subr.bf16.mxu0 %v2160
  %3598 = vmatpush1.bf16.msra.mxu0 %v2159
  %3599 = vmatprep.subr.bf16.mxu0 %v2168
  %3600 = vmatpush1.bf16.msra.mxu0 %v2167
  %3601 = vmatprep.subr.bf16.mxu0 %v2176
  %3602 = vmatpush1.bf16.msra.mxu0 %v2175
  %3603 = vmatprep.subr.bf16.mxu0 %v2184
  %3604 = vmatpush1.bf16.msra.mxu0 %v2183
  %3605 = vmatprep.subr.bf16.mxu0 %v2192
  %3606 = vmatpush1.bf16.msra.mxu0 %v2191
  %3607 = vmatprep.mubr.bf16.mxu0 %v2548
  %3608 = vmatmul.mubr.bf16.gmra.mrb[0].mxu0 %v2547
  %v3609 = vpop.f32.mrb[0].mxu0
  %v3610 = vadd.f32 0.0, %v3609
  %v3611 = vpop.f32.mrb[0].mxu0
  %v3612 = vadd.f32 0.0, %v3611
  %v3613 = vpop.f32.mrb[0].mxu0
  %v3614 = vpop.f32.mrb[0].mxu0
  %3615 = vdwg.mxu0
  %3616 = vmatprep.subr.bf16.mxu0 %v2074
  %3617 = vmatpush1.bf16.msra.mxu0 %v2073
  %3618 = vmatprep.subr.bf16.mxu0 %v2082
  %3619 = vmatpush1.bf16.msra.mxu0 %v2081
  %3620 = vmatprep.subr.bf16.mxu0 %v2090
  %3621 = vmatpush1.bf16.msra.mxu0 %v2089
  %3622 = vmatprep.subr.bf16.mxu0 %v2098
  %3623 = vmatpush1.bf16.msra.mxu0 %v2097
  %3624 = vmatprep.subr.bf16.mxu0 %v2106
  %3625 = vmatpush1.bf16.msra.mxu0 %v2105
  %3626 = vmatprep.subr.bf16.mxu0 %v2114
  %3627 = vmatpush1.bf16.msra.mxu0 %v2113
  %3628 = vmatprep.subr.bf16.mxu0 %v2122
  %3629 = vmatpush1.bf16.msra.mxu0 %v2121
  %3630 = vmatprep.subr.bf16.mxu0 %v2130
  %3631 = vmatpush1.bf16.msra.mxu0 %v2129
  %3632 = vmatprep.subr.bf16.mxu0 %v2138
  %3633 = vmatpush1.bf16.msra.mxu0 %v2137
  %3634 = vmatprep.subr.bf16.mxu0 %v2146
  %3635 = vmatpush1.bf16.msra.mxu0 %v2145
  %3636 = vmatprep.subr.bf16.mxu0 %v2154
  %3637 = vmatpush1.bf16.msra.mxu0 %v2153
  %3638 = vmatprep.subr.bf16.mxu0 %v2162
  %3639 = vmatpush1.bf16.msra.mxu0 %v2161
  %3640 = vmatprep.subr.bf16.mxu0 %v2170
  %3641 = vmatpush1.bf16.msra.mxu0 %v2169
  %3642 = vmatprep.subr.bf16.mxu0 %v2178
  %3643 = vmatpush1.bf16.msra.mxu0 %v2177
  %3644 = vmatprep.subr.bf16.mxu0 %v2186
  %3645 = vmatpush1.bf16.msra.mxu0 %v2185
  %3646 = vmatprep.subr.bf16.mxu0 %v2194
  %3647 = vmatpush1.bf16.msra.mxu0 %v2193
  %3648 = vmatprep.mubr.bf16.mxu0 %v2548
  %3649 = vmatmul.mubr.bf16.gmra.mrb[0].mxu0 %v2547
  %v3650 = vpop.f32.mrb[0].mxu0
  %v3651 = vadd.f32 0.0, %v3650
  %v3652 = vpop.f32.mrb[0].mxu0
  %v3653 = vadd.f32 0.0, %v3652
  %v3654 = vpop.f32.mrb[0].mxu0
  %v3655 = vpop.f32.mrb[0].mxu0
  %3656 = vdwg.mxu0
  %3657 = vmatprep.subr.bf16.mxu0 %v2076
  %3658 = vmatpush1.bf16.msra.mxu0 %v2075
  %3659 = vmatprep.subr.bf16.mxu0 %v2084
  %3660 = vmatpush1.bf16.msra.mxu0 %v2083
  %3661 = vmatprep.subr.bf16.mxu0 %v2092
  %3662 = vmatpush1.bf16.msra.mxu0 %v2091
  %3663 = vmatprep.subr.bf16.mxu0 %v2100
  %3664 = vmatpush1.bf16.msra.mxu0 %v2099
  %3665 = vmatprep.subr.bf16.mxu0 %v2108
  %3666 = vmatpush1.bf16.msra.mxu0 %v2107
  %3667 = vmatprep.subr.bf16.mxu0 %v2116
  %3668 = vmatpush1.bf16.msra.mxu0 %v2115
  %3669 = vmatprep.subr.bf16.mxu0 %v2124
  %3670 = vmatpush1.bf16.msra.mxu0 %v2123
  %3671 = vmatprep.subr.bf16.mxu0 %v2132
  %3672 = vmatpush1.bf16.msra.mxu0 %v2131
  %3673 = vmatprep.subr.bf16.mxu0 %v2140
  %3674 = vmatpush1.bf16.msra.mxu0 %v2139
  %3675 = vmatprep.subr.bf16.mxu0 %v2148
  %3676 = vmatpush1.bf16.msra.mxu0 %v2147
  %3677 = vmatprep.subr.bf16.mxu0 %v2156
  %3678 = vmatpush1.bf16.msra.mxu0 %v2155
  %3679 = vmatprep.subr.bf16.mxu0 %v2164
  %3680 = vmatpush1.bf16.msra.mxu0 %v2163
  %3681 = vmatprep.subr.bf16.mxu0 %v2172
  %3682 = vmatpush1.bf16.msra.mxu0 %v2171
  %3683 = vmatprep.subr.bf16.mxu0 %v2180
  %3684 = vmatpush1.bf16.msra.mxu0 %v2179
  %3685 = vmatprep.subr.bf16.mxu0 %v2188
  %3686 = vmatpush1.bf16.msra.mxu0 %v2187
  %3687 = vmatprep.subr.bf16.mxu0 %v2196
  %3688 = vmatpush1.bf16.msra.mxu0 %v2195
  %3689 = vmatprep.mubr.bf16.mxu0 %v2548
  %3690 = vmatmul.mubr.bf16.gmra.mrb[0].mxu0 %v2547
  %v3691 = vpop.f32.mrb[0].mxu0
  %v3692 = vadd.f32 0.0, %v3691
  %v3693 = vpop.f32.mrb[0].mxu0
  %v3694 = vadd.f32 0.0, %v3693
  %v3695 = vpop.f32.mrb[0].mxu0
  %v3696 = vpop.f32.mrb[0].mxu0
  %3697 = vdwg.mxu0
  %3698 = vmatprep.subr.bf16.mxu0 %v2078
  %3699 = vmatpush1.bf16.msra.mxu0 %v2077
  %3700 = vmatprep.subr.bf16.mxu0 %v2086
  %3701 = vmatpush1.bf16.msra.mxu0 %v2085
  %3702 = vmatprep.subr.bf16.mxu0 %v2094
  %3703 = vmatpush1.bf16.msra.mxu0 %v2093
  %3704 = vmatprep.subr.bf16.mxu0 %v2102
  %3705 = vmatpush1.bf16.msra.mxu0 %v2101
  %3706 = vmatprep.subr.bf16.mxu0 %v2110
  %3707 = vmatpush1.bf16.msra.mxu0 %v2109
  %3708 = vmatprep.subr.bf16.mxu0 %v2118
  %3709 = vmatpush1.bf16.msra.mxu0 %v2117
  %3710 = vmatprep.subr.bf16.mxu0 %v2126
  %3711 = vmatpush1.bf16.msra.mxu0 %v2125
  %3712 = vmatprep.subr.bf16.mxu0 %v2134
  %3713 = vmatpush1.bf16.msra.mxu0 %v2133
  %3714 = vmatprep.subr.bf16.mxu0 %v2142
  %3715 = vmatpush1.bf16.msra.mxu0 %v2141
  %3716 = vmatprep.subr.bf16.mxu0 %v2150
  %3717 = vmatpush1.bf16.msra.mxu0 %v2149
  %3718 = vmatprep.subr.bf16.mxu0 %v2158
  %3719 = vmatpush1.bf16.msra.mxu0 %v2157
  %3720 = vmatprep.subr.bf16.mxu0 %v2166
  %3721 = vmatpush1.bf16.msra.mxu0 %v2165
  %3722 = vmatprep.subr.bf16.mxu0 %v2174
  %3723 = vmatpush1.bf16.msra.mxu0 %v2173
  %3724 = vmatprep.subr.bf16.mxu0 %v2182
  %3725 = vmatpush1.bf16.msra.mxu0 %v2181
  %3726 = vmatprep.subr.bf16.mxu0 %v2190
  %3727 = vmatpush1.bf16.msra.mxu0 %v2189
  %3728 = vmatprep.subr.bf16.mxu0 %v2198
  %3729 = vmatpush1.bf16.msra.mxu0 %v2197
  %3730 = vmatprep.mubr.bf16.mxu0 %v2548
  %3731 = vmatmul.mubr.bf16.gmra.mrb[0].mxu0 %v2547
  %v3732 = vpop.f32.mrb[0].mxu0
  %v3733 = vadd.f32 0.0, %v3732
  %v3734 = vpop.f32.mrb[0].mxu0
  %v3735 = vadd.f32 0.0, %v3734
  %v3736 = vpop.f32.mrb[0].mxu0
  %v3737 = vpop.f32.mrb[0].mxu0
  %3738 = vdwg.mxu0
  %v3739 = vadd.f32 %v589, %v3610
  %v3740 = vadd.f32 %v591, %v3612
  %v3741 = vadd.f32 %v662, %v3651
  %v3742 = vadd.f32 %v664, %v3653
  %v3743 = vadd.f32 %v735, %v3692
  %v3744 = vadd.f32 %v737, %v3694
  %v3745 = vadd.f32 %v808, %v3733
  %v3746 = vadd.f32 %v810, %v3735
  %v3747 = vxor.u32 %v3739, 2147483648
  %v3748 = vxor.u32 %v3740, 2147483648
  %v3749 = vmul.f32 %v3747, 1.442695
  %v3750 = vpow.pop %v3749
  %v3751 = vmul.f32 %v3748, 1.442695
  %v3752 = vpow.pop %v3751
  %v3753 = vadd.f32 %v3750, 1.0
  %v3754 = vadd.f32 %v3752, 1.0
  %v3755 = vrcp.pop %v3753
  %v3756 = vmul.f32 1.0, %v3755
  %v3757 = vrcp.pop %v3754
  %v3758 = vmul.f32 1.0, %v3757
  %v3759 = vxor.u32 %v3741, 2147483648
  %v3760 = vxor.u32 %v3742, 2147483648
  %v3761 = vmul.f32 %v3759, 1.442695
  %v3762 = vpow.pop %v3761
  %v3763 = vmul.f32 %v3760, 1.442695
  %v3764 = vpow.pop %v3763
  %v3765 = vadd.f32 %v3762, 1.0
  %v3766 = vadd.f32 %v3764, 1.0
  %v3767 = vrcp.pop %v3765
  %v3768 = vmul.f32 1.0, %v3767
  %v3769 = vrcp.pop %v3766
  %v3770 = vmul.f32 1.0, %v3769
  %v3771 = vtanh.pop %v3743
  %v3772 = vtanh.pop %v3744
  %v3773 = vxor.u32 %v3745, 2147483648
  %v3774 = vxor.u32 %v3746, 2147483648
  %v3775 = vmul.f32 %v3773, 1.442695
  %v3776 = vpow.pop %v3775
  %v3777 = vmul.f32 %v3774, 1.442695
  %v3778 = vpow.pop %v3777
  %v3779 = vadd.f32 %v3776, 1.0
  %v3780 = vadd.f32 %v3778, 1.0
  %v3781 = vrcp.pop %v3779
  %v3782 = vmul.f32 1.0, %v3781
  %v3783 = vrcp.pop %v3780
  %v3784 = vmul.f32 1.0, %v3783
  %v3785 = vmul.f32 %v3768, %v2541
  %v3786 = vmul.f32 %v3770, %v2542
  %v3787 = vmul.f32 %v3756, %v3771
  %v3788 = vmul.f32 %v3758, %v3772
  %v3789 = vadd.f32 %v3785, %v3787
  %v3790 = vadd.f32 %v3786, %v3788
  %v3791 = vtanh.pop %v3789
  %v3792 = vtanh.pop %v3790
  %v3793 = vmul.f32 %v3782, %v3791
  %v3794 = vmul.f32 %v3784, %v3792
  %v3795 = vpack.c.bf16 %v3793, %v3793
  %v3796 = vpack.c.bf16 %v3794, %v3794
  %3797 = vmatprep.subr.bf16.mxu0 %v2934
  %3798 = vmatpush1.bf16.msra.mxu0 %v2933
  %3799 = vmatprep.subr.bf16.mxu0 %v2942
  %3800 = vmatpush1.bf16.msra.mxu0 %v2941
  %3801 = vmatprep.subr.bf16.mxu0 %v2950
  %3802 = vmatpush1.bf16.msra.mxu0 %v2949
  %3803 = vmatprep.subr.bf16.mxu0 %v2958
  %3804 = vmatpush1.bf16.msra.mxu0 %v2957
  %3805 = vmatprep.subr.bf16.mxu0 %v2966
  %3806 = vmatpush1.bf16.msra.mxu0 %v2965
  %3807 = vmatprep.subr.bf16.mxu0 %v2974
  %3808 = vmatpush1.bf16.msra.mxu0 %v2973
  %3809 = vmatprep.subr.bf16.mxu0 %v2982
  %3810 = vmatpush1.bf16.msra.mxu0 %v2981
  %3811 = vmatprep.subr.bf16.mxu0 %v2990
  %3812 = vmatpush1.bf16.msra.mxu0 %v2989
  %3813 = vmatprep.subr.bf16.mxu0 %v2998
  %3814 = vmatpush1.bf16.msra.mxu0 %v2997
  %3815 = vmatprep.subr.bf16.mxu0 %v3006
  %3816 = vmatpush1.bf16.msra.mxu0 %v3005
  %3817 = vmatprep.subr.bf16.mxu0 %v3014
  %3818 = vmatpush1.bf16.msra.mxu0 %v3013
  %3819 = vmatprep.subr.bf16.mxu0 %v3022
  %3820 = vmatpush1.bf16.msra.mxu0 %v3021
  %3821 = vmatprep.subr.bf16.mxu0 %v3030
  %3822 = vmatpush1.bf16.msra.mxu0 %v3029
  %3823 = vmatprep.subr.bf16.mxu0 %v3038
  %3824 = vmatpush1.bf16.msra.mxu0 %v3037
  %3825 = vmatprep.subr.bf16.mxu0 %v3046
  %3826 = vmatpush1.bf16.msra.mxu0 %v3045
  %3827 = vmatprep.subr.bf16.mxu0 %v3054
  %3828 = vmatpush1.bf16.msra.mxu0 %v3053
  %3829 = vmatprep.mubr.bf16.mxu0 %v3796
  %3830 = vmatmul.mubr.bf16.gmra.mrb[0].mxu0 %v3795
  %v3831 = vpop.f32.mrb[0].mxu0
  %v3832 = vadd.f32 0.0, %v3831
  %v3833 = vpop.f32.mrb[0].mxu0
  %v3834 = vadd.f32 0.0, %v3833
  %v3835 = vpop.f32.mrb[0].mxu0
  %v3836 = vpop.f32.mrb[0].mxu0
  %3837 = vdwg.mxu0
  %3838 = vmatprep.subr.bf16.mxu0 %v2936
  %3839 = vmatpush1.bf16.msra.mxu0 %v2935
  %3840 = vmatprep.subr.bf16.mxu0 %v2944
  %3841 = vmatpush1.bf16.msra.mxu0 %v2943
  %3842 = vmatprep.subr.bf16.mxu0 %v2952
  %3843 = vmatpush1.bf16.msra.mxu0 %v2951
  %3844 = vmatprep.subr.bf16.mxu0 %v2960
  %3845 = vmatpush1.bf16.msra.mxu0 %v2959
  %3846 = vmatprep.subr.bf16.mxu0 %v2968
  %3847 = vmatpush1.bf16.msra.mxu0 %v2967
  %3848 = vmatprep.subr.bf16.mxu0 %v2976
  %3849 = vmatpush1.bf16.msra.mxu0 %v2975
  %3850 = vmatprep.subr.bf16.mxu0 %v2984
  %3851 = vmatpush1.bf16.msra.mxu0 %v2983
  %3852 = vmatprep.subr.bf16.mxu0 %v2992
  %3853 = vmatpush1.bf16.msra.mxu0 %v2991
  %3854 = vmatprep.subr.bf16.mxu0 %v3000
  %3855 = vmatpush1.bf16.msra.mxu0 %v2999
  %3856 = vmatprep.subr.bf16.mxu0 %v3008
  %3857 = vmatpush1.bf16.msra.mxu0 %v3007
  %3858 = vmatprep.subr.bf16.mxu0 %v3016
  %3859 = vmatpush1.bf16.msra.mxu0 %v3015
  %3860 = vmatprep.subr.bf16.mxu0 %v3024
  %3861 = vmatpush1.bf16.msra.mxu0 %v3023
  %3862 = vmatprep.subr.bf16.mxu0 %v3032
  %3863 = vmatpush1.bf16.msra.mxu0 %v3031
  %3864 = vmatprep.subr.bf16.mxu0 %v3040
  %3865 = vmatpush1.bf16.msra.mxu0 %v3039
  %3866 = vmatprep.subr.bf16.mxu0 %v3048
  %3867 = vmatpush1.bf16.msra.mxu0 %v3047
  %3868 = vmatprep.subr.bf16.mxu0 %v3056
  %3869 = vmatpush1.bf16.msra.mxu0 %v3055
  %3870 = vmatprep.mubr.bf16.mxu0 %v3796
  %3871 = vmatmul.mubr.bf16.gmra.mrb[0].mxu0 %v3795
  %v3872 = vpop.f32.mrb[0].mxu0
  %v3873 = vadd.f32 0.0, %v3872
  %v3874 = vpop.f32.mrb[0].mxu0
  %v3875 = vadd.f32 0.0, %v3874
  %v3876 = vpop.f32.mrb[0].mxu0
  %v3877 = vpop.f32.mrb[0].mxu0
  %3878 = vdwg.mxu0
  %3879 = vmatprep.subr.bf16.mxu0 %v2938
  %3880 = vmatpush1.bf16.msra.mxu0 %v2937
  %3881 = vmatprep.subr.bf16.mxu0 %v2946
  %3882 = vmatpush1.bf16.msra.mxu0 %v2945
  %3883 = vmatprep.subr.bf16.mxu0 %v2954
  %3884 = vmatpush1.bf16.msra.mxu0 %v2953
  %3885 = vmatprep.subr.bf16.mxu0 %v2962
  %3886 = vmatpush1.bf16.msra.mxu0 %v2961
  %3887 = vmatprep.subr.bf16.mxu0 %v2970
  %3888 = vmatpush1.bf16.msra.mxu0 %v2969
  %3889 = vmatprep.subr.bf16.mxu0 %v2978
  %3890 = vmatpush1.bf16.msra.mxu0 %v2977
  %3891 = vmatprep.subr.bf16.mxu0 %v2986
  %3892 = vmatpush1.bf16.msra.mxu0 %v2985
  %3893 = vmatprep.subr.bf16.mxu0 %v2994
  %3894 = vmatpush1.bf16.msra.mxu0 %v2993
  %3895 = vmatprep.subr.bf16.mxu0 %v3002
  %3896 = vmatpush1.bf16.msra.mxu0 %v3001
  %3897 = vmatprep.subr.bf16.mxu0 %v3010
  %3898 = vmatpush1.bf16.msra.mxu0 %v3009
  %3899 = vmatprep.subr.bf16.mxu0 %v3018
  %3900 = vmatpush1.bf16.msra.mxu0 %v3017
  %3901 = vmatprep.subr.bf16.mxu0 %v3026
  %3902 = vmatpush1.bf16.msra.mxu0 %v3025
  %3903 = vmatprep.subr.bf16.mxu0 %v3034
  %3904 = vmatpush1.bf16.msra.mxu0 %v3033
  %3905 = vmatprep.subr.bf16.mxu0 %v3042
  %3906 = vmatpush1.bf16.msra.mxu0 %v3041
  %3907 = vmatprep.subr.bf16.mxu0 %v3050
  %3908 = vmatpush1.bf16.msra.mxu0 %v3049
  %3909 = vmatprep.subr.bf16.mxu0 %v3058
  %3910 = vmatpush1.bf16.msra.mxu0 %v3057
  %3911 = vmatprep.mubr.bf16.mxu0 %v3796
  %3912 = vmatmul.mubr.bf16.gmra.mrb[0].mxu0 %v3795
  %v3913 = vpop.f32.mrb[0].mxu0
  %v3914 = vadd.f32 0.0, %v3913
  %v3915 = vpop.f32.mrb[0].mxu0
  %v3916 = vadd.f32 0.0, %v3915
  %v3917 = vpop.f32.mrb[0].mxu0
  %v3918 = vpop.f32.mrb[0].mxu0
  %3919 = vdwg.mxu0
  %3920 = vmatprep.subr.bf16.mxu0 %v2940
  %3921 = vmatpush1.bf16.msra.mxu0 %v2939
  %3922 = vmatprep.subr.bf16.mxu0 %v2948
  %3923 = vmatpush1.bf16.msra.mxu0 %v2947
  %3924 = vmatprep.subr.bf16.mxu0 %v2956
  %3925 = vmatpush1.bf16.msra.mxu0 %v2955
  %3926 = vmatprep.subr.bf16.mxu0 %v2964
  %3927 = vmatpush1.bf16.msra.mxu0 %v2963
  %3928 = vmatprep.subr.bf16.mxu0 %v2972
  %3929 = vmatpush1.bf16.msra.mxu0 %v2971
  %3930 = vmatprep.subr.bf16.mxu0 %v2980
  %3931 = vmatpush1.bf16.msra.mxu0 %v2979
  %3932 = vmatprep.subr.bf16.mxu0 %v2988
  %3933 = vmatpush1.bf16.msra.mxu0 %v2987
  %3934 = vmatprep.subr.bf16.mxu0 %v2996
  %3935 = vmatpush1.bf16.msra.mxu0 %v2995
  %3936 = vmatprep.subr.bf16.mxu0 %v3004
  %3937 = vmatpush1.bf16.msra.mxu0 %v3003
  %3938 = vmatprep.subr.bf16.mxu0 %v3012
  %3939 = vmatpush1.bf16.msra.mxu0 %v3011
  %3940 = vmatprep.subr.bf16.mxu0 %v3020
  %3941 = vmatpush1.bf16.msra.mxu0 %v3019
  %3942 = vmatprep.subr.bf16.mxu0 %v3028
  %3943 = vmatpush1.bf16.msra.mxu0 %v3027
  %3944 = vmatprep.subr.bf16.mxu0 %v3036
  %3945 = vmatpush1.bf16.msra.mxu0 %v3035
  %3946 = vmatprep.subr.bf16.mxu0 %v3044
  %3947 = vmatpush1.bf16.msra.mxu0 %v3043
  %3948 = vmatprep.subr.bf16.mxu0 %v3052
  %3949 = vmatpush1.bf16.msra.mxu0 %v3051
  %3950 = vmatprep.subr.bf16.mxu0 %v3060
  %3951 = vmatpush1.bf16.msra.mxu0 %v3059
  %3952 = vmatprep.mubr.bf16.mxu0 %v3796
  %3953 = vmatmul.mubr.bf16.gmra.mrb[0].mxu0 %v3795
  %v3954 = vpop.f32.mrb[0].mxu0
  %v3955 = vadd.f32 0.0, %v3954
  %v3956 = vpop.f32.mrb[0].mxu0
  %v3957 = vadd.f32 0.0, %v3956
  %v3958 = vpop.f32.mrb[0].mxu0
  %v3959 = vpop.f32.mrb[0].mxu0
  %3960 = vdwg.mxu0
  %v3961 = vadd.f32 %v3446, %v3832
  %v3962 = vadd.f32 %v3448, %v3834
  %v3963 = vadd.f32 %v3487, %v3873
  %v3964 = vadd.f32 %v3489, %v3875
  %v3965 = vadd.f32 %v3528, %v3914
  %v3966 = vadd.f32 %v3530, %v3916
  %v3967 = vadd.f32 %v3569, %v3955
  %v3968 = vadd.f32 %v3571, %v3957
  %v3969 = vxor.u32 %v3961, 2147483648
  %v3970 = vxor.u32 %v3962, 2147483648
  %v3971 = vmul.f32 %v3969, 1.442695
  %v3972 = vpow.pop %v3971
  %v3973 = vmul.f32 %v3970, 1.442695
  %v3974 = vpow.pop %v3973
  %v3975 = vadd.f32 %v3972, 1.0
  %v3976 = vadd.f32 %v3974, 1.0
  %v3977 = vrcp.pop %v3975
  %v3978 = vmul.f32 1.0, %v3977
  %v3979 = vrcp.pop %v3976
  %v3980 = vmul.f32 1.0, %v3979
  %v3981 = vxor.u32 %v3963, 2147483648
  %v3982 = vxor.u32 %v3964, 2147483648
  %v3983 = vmul.f32 %v3981, 1.442695
  %v3984 = vpow.pop %v3983
  %v3985 = vmul.f32 %v3982, 1.442695
  %v3986 = vpow.pop %v3985
  %v3987 = vadd.f32 %v3984, 1.0
  %v3988 = vadd.f32 %v3986, 1.0
  %v3989 = vrcp.pop %v3987
  %v3990 = vmul.f32 1.0, %v3989
  %v3991 = vrcp.pop %v3988
  %v3992 = vmul.f32 1.0, %v3991
  %v3993 = vtanh.pop %v3965
  %v3994 = vtanh.pop %v3966
  %v3995 = vxor.u32 %v3967, 2147483648
  %v3996 = vxor.u32 %v3968, 2147483648
  %v3997 = vmul.f32 %v3995, 1.442695
  %v3998 = vpow.pop %v3997
  %v3999 = vmul.f32 %v3996, 1.442695
  %v4000 = vpow.pop %v3999
  %v4001 = vadd.f32 %v3998, 1.0
  %v4002 = vadd.f32 %v4000, 1.0
  %v4003 = vrcp.pop %v4001
  %v4004 = vmul.f32 1.0, %v4003
  %v4005 = vrcp.pop %v4002
  %v4006 = vmul.f32 1.0, %v4005
  %v4007 = vmul.f32 %v3990, %v3403
  %v4008 = vmul.f32 %v3992, %v3404
  %v4009 = vmul.f32 %v3978, %v3993
  %v4010 = vmul.f32 %v3980, %v3994
  %v4011 = vadd.f32 %v4007, %v4009
  %v4012 = vadd.f32 %v4008, %v4010
  %v4013 = vtanh.pop %v4011
  %v4014 = vtanh.pop %v4012
  %v4015 = vmul.f32 %v4004, %v4013
  %v4016 = vmul.f32 %v4006, %v4014
  %v4017 = vpack.c.bf16 %v4015, %v4015
  %v4018 = vpack.c.bf16 %v4016, %v4016
  %4019 = vmatprep.subr.bf16.mxu0 %v1268
  %4020 = vmatpush1.bf16.msra.mxu0 %v1267
  %4021 = vmatprep.subr.bf16.mxu0 %v1276
  %4022 = vmatpush1.bf16.msra.mxu0 %v1275
  %4023 = vmatprep.subr.bf16.mxu0 %v1284
  %4024 = vmatpush1.bf16.msra.mxu0 %v1283
  %4025 = vmatprep.subr.bf16.mxu0 %v1292
  %4026 = vmatpush1.bf16.msra.mxu0 %v1291
  %4027 = vmatprep.subr.bf16.mxu0 %v1300
  %4028 = vmatpush1.bf16.msra.mxu0 %v1299
  %4029 = vmatprep.subr.bf16.mxu0 %v1308
  %4030 = vmatpush1.bf16.msra.mxu0 %v1307
  %4031 = vmatprep.subr.bf16.mxu0 %v1316
  %4032 = vmatpush1.bf16.msra.mxu0 %v1315
  %4033 = vmatprep.subr.bf16.mxu0 %v1324
  %4034 = vmatpush1.bf16.msra.mxu0 %v1323
  %4035 = vmatprep.subr.bf16.mxu0 %v1332
  %4036 = vmatpush1.bf16.msra.mxu0 %v1331
  %4037 = vmatprep.subr.bf16.mxu0 %v1340
  %4038 = vmatpush1.bf16.msra.mxu0 %v1339
  %4039 = vmatprep.subr.bf16.mxu0 %v1348
  %4040 = vmatpush1.bf16.msra.mxu0 %v1347
  %4041 = vmatprep.subr.bf16.mxu0 %v1356
  %4042 = vmatpush1.bf16.msra.mxu0 %v1355
  %4043 = vmatprep.subr.bf16.mxu0 %v1364
  %4044 = vmatpush1.bf16.msra.mxu0 %v1363
  %4045 = vmatprep.subr.bf16.mxu0 %v1372
  %4046 = vmatpush1.bf16.msra.mxu0 %v1371
  %4047 = vmatprep.subr.bf16.mxu0 %v1380
  %4048 = vmatpush1.bf16.msra.mxu0 %v1379
  %4049 = vmatprep.subr.bf16.mxu0 %v1388
  %4050 = vmatpush1.bf16.msra.mxu0 %v1387
  %4051 = vmatprep.mubr.bf16.mxu0 %v4018
  %4052 = vmatmul.mubr.bf16.gmra.mrb[0].mxu0 %v4017
  %v4053 = vpop.f32.mrb[0].mxu0
  %v4054 = vadd.f32 %v846, %v4053
  %v4055 = vpop.f32.mrb[0].mxu0
  %v4056 = vadd.f32 %v850, %v4055
  %v4057 = vpop.f32.mrb[0].mxu0
  %v4058 = vpop.f32.mrb[0].mxu0
  %4059 = vdwg.mxu0
  %4060 = vmatprep.subr.bf16.mxu0 %v1270
  %4061 = vmatpush1.bf16.msra.mxu0 %v1269
  %4062 = vmatprep.subr.bf16.mxu0 %v1278
  %4063 = vmatpush1.bf16.msra.mxu0 %v1277
  %4064 = vmatprep.subr.bf16.mxu0 %v1286
  %4065 = vmatpush1.bf16.msra.mxu0 %v1285
  %4066 = vmatprep.subr.bf16.mxu0 %v1294
  %4067 = vmatpush1.bf16.msra.mxu0 %v1293
  %4068 = vmatprep.subr.bf16.mxu0 %v1302
  %4069 = vmatpush1.bf16.msra.mxu0 %v1301
  %4070 = vmatprep.subr.bf16.mxu0 %v1310
  %4071 = vmatpush1.bf16.msra.mxu0 %v1309
  %4072 = vmatprep.subr.bf16.mxu0 %v1318
  %4073 = vmatpush1.bf16.msra.mxu0 %v1317
  %4074 = vmatprep.subr.bf16.mxu0 %v1326
  %4075 = vmatpush1.bf16.msra.mxu0 %v1325
  %4076 = vmatprep.subr.bf16.mxu0 %v1334
  %4077 = vmatpush1.bf16.msra.mxu0 %v1333
  %4078 = vmatprep.subr.bf16.mxu0 %v1342
  %4079 = vmatpush1.bf16.msra.mxu0 %v1341
  %4080 = vmatprep.subr.bf16.mxu0 %v1350
  %4081 = vmatpush1.bf16.msra.mxu0 %v1349
  %4082 = vmatprep.subr.bf16.mxu0 %v1358
  %4083 = vmatpush1.bf16.msra.mxu0 %v1357
  %4084 = vmatprep.subr.bf16.mxu0 %v1366
  %4085 = vmatpush1.bf16.msra.mxu0 %v1365
  %4086 = vmatprep.subr.bf16.mxu0 %v1374
  %4087 = vmatpush1.bf16.msra.mxu0 %v1373
  %4088 = vmatprep.subr.bf16.mxu0 %v1382
  %4089 = vmatpush1.bf16.msra.mxu0 %v1381
  %4090 = vmatprep.subr.bf16.mxu0 %v1390
  %4091 = vmatpush1.bf16.msra.mxu0 %v1389
  %4092 = vmatprep.mubr.bf16.mxu0 %v4018
  %4093 = vmatmul.mubr.bf16.gmra.mrb[0].mxu0 %v4017
  %v4094 = vpop.f32.mrb[0].mxu0
  %v4095 = vadd.f32 %v854, %v4094
  %v4096 = vpop.f32.mrb[0].mxu0
  %v4097 = vadd.f32 %v858, %v4096
  %v4098 = vpop.f32.mrb[0].mxu0
  %v4099 = vpop.f32.mrb[0].mxu0
  %4100 = vdwg.mxu0
  %4101 = vmatprep.subr.bf16.mxu0 %v1272
  %4102 = vmatpush1.bf16.msra.mxu0 %v1271
  %4103 = vmatprep.subr.bf16.mxu0 %v1280
  %4104 = vmatpush1.bf16.msra.mxu0 %v1279
  %4105 = vmatprep.subr.bf16.mxu0 %v1288
  %4106 = vmatpush1.bf16.msra.mxu0 %v1287
  %4107 = vmatprep.subr.bf16.mxu0 %v1296
  %4108 = vmatpush1.bf16.msra.mxu0 %v1295
  %4109 = vmatprep.subr.bf16.mxu0 %v1304
  %4110 = vmatpush1.bf16.msra.mxu0 %v1303
  %4111 = vmatprep.subr.bf16.mxu0 %v1312
  %4112 = vmatpush1.bf16.msra.mxu0 %v1311
  %4113 = vmatprep.subr.bf16.mxu0 %v1320
  %4114 = vmatpush1.bf16.msra.mxu0 %v1319
  %4115 = vmatprep.subr.bf16.mxu0 %v1328
  %4116 = vmatpush1.bf16.msra.mxu0 %v1327
  %4117 = vmatprep.subr.bf16.mxu0 %v1336
  %4118 = vmatpush1.bf16.msra.mxu0 %v1335
  %4119 = vmatprep.subr.bf16.mxu0 %v1344
  %4120 = vmatpush1.bf16.msra.mxu0 %v1343
  %4121 = vmatprep.subr.bf16.mxu0 %v1352
  %4122 = vmatpush1.bf16.msra.mxu0 %v1351
  %4123 = vmatprep.subr.bf16.mxu0 %v1360
  %4124 = vmatpush1.bf16.msra.mxu0 %v1359
  %4125 = vmatprep.subr.bf16.mxu0 %v1368
  %4126 = vmatpush1.bf16.msra.mxu0 %v1367
  %4127 = vmatprep.subr.bf16.mxu0 %v1376
  %4128 = vmatpush1.bf16.msra.mxu0 %v1375
  %4129 = vmatprep.subr.bf16.mxu0 %v1384
  %4130 = vmatpush1.bf16.msra.mxu0 %v1383
  %4131 = vmatprep.subr.bf16.mxu0 %v1392
  %4132 = vmatpush1.bf16.msra.mxu0 %v1391
  %4133 = vmatprep.mubr.bf16.mxu0 %v4018
  %4134 = vmatmul.mubr.bf16.gmra.mrb[0].mxu0 %v4017
  %v4135 = vpop.f32.mrb[0].mxu0
  %v4136 = vadd.f32 %v862, %v4135
  %v4137 = vpop.f32.mrb[0].mxu0
  %v4138 = vadd.f32 %v866, %v4137
  %v4139 = vpop.f32.mrb[0].mxu0
  %v4140 = vpop.f32.mrb[0].mxu0
  %4141 = vdwg.mxu0
  %4142 = vmatprep.subr.bf16.mxu0 %v1274
  %4143 = vmatpush1.bf16.msra.mxu0 %v1273
  %4144 = vmatprep.subr.bf16.mxu0 %v1282
  %4145 = vmatpush1.bf16.msra.mxu0 %v1281
  %4146 = vmatprep.subr.bf16.mxu0 %v1290
  %4147 = vmatpush1.bf16.msra.mxu0 %v1289
  %4148 = vmatprep.subr.bf16.mxu0 %v1298
  %4149 = vmatpush1.bf16.msra.mxu0 %v1297
  %4150 = vmatprep.subr.bf16.mxu0 %v1306
  %4151 = vmatpush1.bf16.msra.mxu0 %v1305
  %4152 = vmatprep.subr.bf16.mxu0 %v1314
  %4153 = vmatpush1.bf16.msra.mxu0 %v1313
  %4154 = vmatprep.subr.bf16.mxu0 %v1322
  %4155 = vmatpush1.bf16.msra.mxu0 %v1321
  %4156 = vmatprep.subr.bf16.mxu0 %v1330
  %4157 = vmatpush1.bf16.msra.mxu0 %v1329
  %4158 = vmatprep.subr.bf16.mxu0 %v1338
  %4159 = vmatpush1.bf16.msra.mxu0 %v1337
  %4160 = vmatprep.subr.bf16.mxu0 %v1346
  %4161 = vmatpush1.bf16.msra.mxu0 %v1345
  %4162 = vmatprep.subr.bf16.mxu0 %v1354
  %4163 = vmatpush1.bf16.msra.mxu0 %v1353
  %4164 = vmatprep.subr.bf16.mxu0 %v1362
  %4165 = vmatpush1.bf16.msra.mxu0 %v1361
  %4166 = vmatprep.subr.bf16.mxu0 %v1370
  %4167 = vmatpush1.bf16.msra.mxu0 %v1369
  %4168 = vmatprep.subr.bf16.mxu0 %v1378
  %4169 = vmatpush1.bf16.msra.mxu0 %v1377
  %4170 = vmatprep.subr.bf16.mxu0 %v1386
  %4171 = vmatpush1.bf16.msra.mxu0 %v1385
  %4172 = vmatprep.subr.bf16.mxu0 %v1394
  %4173 = vmatpush1.bf16.msra.mxu0 %v1393
  %4174 = vmatprep.mubr.bf16.mxu0 %v4018
  %4175 = vmatmul.mubr.bf16.gmra.mrb[0].mxu0 %v4017
  %v4176 = vpop.f32.mrb[0].mxu0
  %v4177 = vadd.f32 %v870, %v4176
  %v4178 = vpop.f32.mrb[0].mxu0
  %v4179 = vadd.f32 %v874, %v4178
  %v4180 = vpop.f32.mrb[0].mxu0
  %v4181 = vpop.f32.mrb[0].mxu0
  %4182 = vdwg.mxu0
  %4183 = vmatprep.subr.bf16.mxu0 %v2072
  %4184 = vmatpush1.bf16.msra.mxu0 %v2071
  %4185 = vmatprep.subr.bf16.mxu0 %v2080
  %4186 = vmatpush1.bf16.msra.mxu0 %v2079
  %4187 = vmatprep.subr.bf16.mxu0 %v2088
  %4188 = vmatpush1.bf16.msra.mxu0 %v2087
  %4189 = vmatprep.subr.bf16.mxu0 %v2096
  %4190 = vmatpush1.bf16.msra.mxu0 %v2095
  %4191 = vmatprep.subr.bf16.mxu0 %v2104
  %4192 = vmatpush1.bf16.msra.mxu0 %v2103
  %4193 = vmatprep.subr.bf16.mxu0 %v2112
  %4194 = vmatpush1.bf16.msra.mxu0 %v2111
  %4195 = vmatprep.subr.bf16.mxu0 %v2120
  %4196 = vmatpush1.bf16.msra.mxu0 %v2119
  %4197 = vmatprep.subr.bf16.mxu0 %v2128
  %4198 = vmatpush1.bf16.msra.mxu0 %v2127
  %4199 = vmatprep.subr.bf16.mxu0 %v2136
  %4200 = vmatpush1.bf16.msra.mxu0 %v2135
  %4201 = vmatprep.subr.bf16.mxu0 %v2144
  %4202 = vmatpush1.bf16.msra.mxu0 %v2143
  %4203 = vmatprep.subr.bf16.mxu0 %v2152
  %4204 = vmatpush1.bf16.msra.mxu0 %v2151
  %4205 = vmatprep.subr.bf16.mxu0 %v2160
  %4206 = vmatpush1.bf16.msra.mxu0 %v2159
  %4207 = vmatprep.subr.bf16.mxu0 %v2168
  %4208 = vmatpush1.bf16.msra.mxu0 %v2167
  %4209 = vmatprep.subr.bf16.mxu0 %v2176
  %4210 = vmatpush1.bf16.msra.mxu0 %v2175
  %4211 = vmatprep.subr.bf16.mxu0 %v2184
  %4212 = vmatpush1.bf16.msra.mxu0 %v2183
  %4213 = vmatprep.subr.bf16.mxu0 %v2192
  %4214 = vmatpush1.bf16.msra.mxu0 %v2191
  %4215 = vmatprep.mubr.bf16.mxu0 %v3796
  %4216 = vmatmul.mubr.bf16.gmra.mrb[0].mxu0 %v3795
  %v4217 = vpop.f32.mrb[0].mxu0
  %v4218 = vadd.f32 0.0, %v4217
  %v4219 = vpop.f32.mrb[0].mxu0
  %v4220 = vadd.f32 0.0, %v4219
  %v4221 = vpop.f32.mrb[0].mxu0
  %v4222 = vpop.f32.mrb[0].mxu0
  %4223 = vdwg.mxu0
  %4224 = vmatprep.subr.bf16.mxu0 %v2074
  %4225 = vmatpush1.bf16.msra.mxu0 %v2073
  %4226 = vmatprep.subr.bf16.mxu0 %v2082
  %4227 = vmatpush1.bf16.msra.mxu0 %v2081
  %4228 = vmatprep.subr.bf16.mxu0 %v2090
  %4229 = vmatpush1.bf16.msra.mxu0 %v2089
  %4230 = vmatprep.subr.bf16.mxu0 %v2098
  %4231 = vmatpush1.bf16.msra.mxu0 %v2097
  %4232 = vmatprep.subr.bf16.mxu0 %v2106
  %4233 = vmatpush1.bf16.msra.mxu0 %v2105
  %4234 = vmatprep.subr.bf16.mxu0 %v2114
  %4235 = vmatpush1.bf16.msra.mxu0 %v2113
  %4236 = vmatprep.subr.bf16.mxu0 %v2122
  %4237 = vmatpush1.bf16.msra.mxu0 %v2121
  %4238 = vmatprep.subr.bf16.mxu0 %v2130
  %4239 = vmatpush1.bf16.msra.mxu0 %v2129
  %4240 = vmatprep.subr.bf16.mxu0 %v2138
  %4241 = vmatpush1.bf16.msra.mxu0 %v2137
  %4242 = vmatprep.subr.bf16.mxu0 %v2146
  %4243 = vmatpush1.bf16.msra.mxu0 %v2145
  %4244 = vmatprep.subr.bf16.mxu0 %v2154
  %4245 = vmatpush1.bf16.msra.mxu0 %v2153
  %4246 = vmatprep.subr.bf16.mxu0 %v2162
  %4247 = vmatpush1.bf16.msra.mxu0 %v2161
  %4248 = vmatprep.subr.bf16.mxu0 %v2170
  %4249 = vmatpush1.bf16.msra.mxu0 %v2169
  %4250 = vmatprep.subr.bf16.mxu0 %v2178
  %4251 = vmatpush1.bf16.msra.mxu0 %v2177
  %4252 = vmatprep.subr.bf16.mxu0 %v2186
  %4253 = vmatpush1.bf16.msra.mxu0 %v2185
  %4254 = vmatprep.subr.bf16.mxu0 %v2194
  %4255 = vmatpush1.bf16.msra.mxu0 %v2193
  %4256 = vmatprep.mubr.bf16.mxu0 %v3796
  %4257 = vmatmul.mubr.bf16.gmra.mrb[0].mxu0 %v3795
  %v4258 = vpop.f32.mrb[0].mxu0
  %v4259 = vadd.f32 0.0, %v4258
  %v4260 = vpop.f32.mrb[0].mxu0
  %v4261 = vadd.f32 0.0, %v4260
  %v4262 = vpop.f32.mrb[0].mxu0
  %v4263 = vpop.f32.mrb[0].mxu0
  %4264 = vdwg.mxu0
  %4265 = vmatprep.subr.bf16.mxu0 %v2076
  %4266 = vmatpush1.bf16.msra.mxu0 %v2075
  %4267 = vmatprep.subr.bf16.mxu0 %v2084
  %4268 = vmatpush1.bf16.msra.mxu0 %v2083
  %4269 = vmatprep.subr.bf16.mxu0 %v2092
  %4270 = vmatpush1.bf16.msra.mxu0 %v2091
  %4271 = vmatprep.subr.bf16.mxu0 %v2100
  %4272 = vmatpush1.bf16.msra.mxu0 %v2099
  %4273 = vmatprep.subr.bf16.mxu0 %v2108
  %4274 = vmatpush1.bf16.msra.mxu0 %v2107
  %4275 = vmatprep.subr.bf16.mxu0 %v2116
  %4276 = vmatpush1.bf16.msra.mxu0 %v2115
  %4277 = vmatprep.subr.bf16.mxu0 %v2124
  %4278 = vmatpush1.bf16.msra.mxu0 %v2123
  %4279 = vmatprep.subr.bf16.mxu0 %v2132
  %4280 = vmatpush1.bf16.msra.mxu0 %v2131
  %4281 = vmatprep.subr.bf16.mxu0 %v2140
  %4282 = vmatpush1.bf16.msra.mxu0 %v2139
  %4283 = vmatprep.subr.bf16.mxu0 %v2148
  %4284 = vmatpush1.bf16.msra.mxu0 %v2147
  %4285 = vmatprep.subr.bf16.mxu0 %v2156
  %4286 = vmatpush1.bf16.msra.mxu0 %v2155
  %4287 = vmatprep.subr.bf16.mxu0 %v2164
  %4288 = vmatpush1.bf16.msra.mxu0 %v2163
  %4289 = vmatprep.subr.bf16.mxu0 %v2172
  %4290 = vmatpush1.bf16.msra.mxu0 %v2171
  %4291 = vmatprep.subr.bf16.mxu0 %v2180
  %4292 = vmatpush1.bf16.msra.mxu0 %v2179
  %4293 = vmatprep.subr.bf16.mxu0 %v2188
  %4294 = vmatpush1.bf16.msra.mxu0 %v2187
  %4295 = vmatprep.subr.bf16.mxu0 %v2196
  %4296 = vmatpush1.bf16.msra.mxu0 %v2195
  %4297 = vmatprep.mubr.bf16.mxu0 %v3796
  %4298 = vmatmul.mubr.bf16.gmra.mrb[0].mxu0 %v3795
  %v4299 = vpop.f32.mrb[0].mxu0
  %v4300 = vadd.f32 0.0, %v4299
  %v4301 = vpop.f32.mrb[0].mxu0
  %v4302 = vadd.f32 0.0, %v4301
  %v4303 = vpop.f32.mrb[0].mxu0
  %v4304 = vpop.f32.mrb[0].mxu0
  %4305 = vdwg.mxu0
  %4306 = vmatprep.subr.bf16.mxu0 %v2078
  %4307 = vmatpush1.bf16.msra.mxu0 %v2077
  %4308 = vmatprep.subr.bf16.mxu0 %v2086
  %4309 = vmatpush1.bf16.msra.mxu0 %v2085
  %4310 = vmatprep.subr.bf16.mxu0 %v2094
  %4311 = vmatpush1.bf16.msra.mxu0 %v2093
  %4312 = vmatprep.subr.bf16.mxu0 %v2102
  %4313 = vmatpush1.bf16.msra.mxu0 %v2101
  %4314 = vmatprep.subr.bf16.mxu0 %v2110
  %4315 = vmatpush1.bf16.msra.mxu0 %v2109
  %4316 = vmatprep.subr.bf16.mxu0 %v2118
  %4317 = vmatpush1.bf16.msra.mxu0 %v2117
  %4318 = vmatprep.subr.bf16.mxu0 %v2126
  %4319 = vmatpush1.bf16.msra.mxu0 %v2125
  %4320 = vmatprep.subr.bf16.mxu0 %v2134
  %4321 = vmatpush1.bf16.msra.mxu0 %v2133
  %4322 = vmatprep.subr.bf16.mxu0 %v2142
  %4323 = vmatpush1.bf16.msra.mxu0 %v2141
  %4324 = vmatprep.subr.bf16.mxu0 %v2150
  %4325 = vmatpush1.bf16.msra.mxu0 %v2149
  %4326 = vmatprep.subr.bf16.mxu0 %v2158
  %4327 = vmatpush1.bf16.msra.mxu0 %v2157
  %4328 = vmatprep.subr.bf16.mxu0 %v2166
  %4329 = vmatpush1.bf16.msra.mxu0 %v2165
  %4330 = vmatprep.subr.bf16.mxu0 %v2174
  %4331 = vmatpush1.bf16.msra.mxu0 %v2173
  %4332 = vmatprep.subr.bf16.mxu0 %v2182
  %4333 = vmatpush1.bf16.msra.mxu0 %v2181
  %4334 = vmatprep.subr.bf16.mxu0 %v2190
  %4335 = vmatpush1.bf16.msra.mxu0 %v2189
  %4336 = vmatprep.subr.bf16.mxu0 %v2198
  %4337 = vmatpush1.bf16.msra.mxu0 %v2197
  %4338 = vmatprep.mubr.bf16.mxu0 %v3796
  %4339 = vmatmul.mubr.bf16.gmra.mrb[0].mxu0 %v3795
  %v4340 = vpop.f32.mrb[0].mxu0
  %v4341 = vadd.f32 0.0, %v4340
  %v4342 = vpop.f32.mrb[0].mxu0
  %v4343 = vadd.f32 0.0, %v4342
  %v4344 = vpop.f32.mrb[0].mxu0
  %v4345 = vpop.f32.mrb[0].mxu0
  %4346 = vdwg.mxu0
  %v4347 = vadd.f32 %v595, %v4218
  %v4348 = vadd.f32 %v597, %v4220
  %v4349 = vadd.f32 %v668, %v4259
  %v4350 = vadd.f32 %v670, %v4261
  %v4351 = vadd.f32 %v741, %v4300
  %v4352 = vadd.f32 %v743, %v4302
  %v4353 = vadd.f32 %v814, %v4341
  %v4354 = vadd.f32 %v816, %v4343
  %v4355 = vxor.u32 %v4347, 2147483648
  %v4356 = vxor.u32 %v4348, 2147483648
  %v4357 = vmul.f32 %v4355, 1.442695
  %v4358 = vpow.pop %v4357
  %v4359 = vmul.f32 %v4356, 1.442695
  %v4360 = vpow.pop %v4359
  %v4361 = vadd.f32 %v4358, 1.0
  %v4362 = vadd.f32 %v4360, 1.0
  %v4363 = vrcp.pop %v4361
  %v4364 = vmul.f32 1.0, %v4363
  %v4365 = vrcp.pop %v4362
  %v4366 = vmul.f32 1.0, %v4365
  %v4367 = vxor.u32 %v4349, 2147483648
  %v4368 = vxor.u32 %v4350, 2147483648
  %v4369 = vmul.f32 %v4367, 1.442695
  %v4370 = vpow.pop %v4369
  %v4371 = vmul.f32 %v4368, 1.442695
  %v4372 = vpow.pop %v4371
  %v4373 = vadd.f32 %v4370, 1.0
  %v4374 = vadd.f32 %v4372, 1.0
  %v4375 = vrcp.pop %v4373
  %v4376 = vmul.f32 1.0, %v4375
  %v4377 = vrcp.pop %v4374
  %v4378 = vmul.f32 1.0, %v4377
  %v4379 = vtanh.pop %v4351
  %v4380 = vtanh.pop %v4352
  %v4381 = vxor.u32 %v4353, 2147483648
  %v4382 = vxor.u32 %v4354, 2147483648
  %v4383 = vmul.f32 %v4381, 1.442695
  %v4384 = vpow.pop %v4383
  %v4385 = vmul.f32 %v4382, 1.442695
  %v4386 = vpow.pop %v4385
  %v4387 = vadd.f32 %v4384, 1.0
  %v4388 = vadd.f32 %v4386, 1.0
  %v4389 = vrcp.pop %v4387
  %v4390 = vmul.f32 1.0, %v4389
  %v4391 = vrcp.pop %v4388
  %v4392 = vmul.f32 1.0, %v4391
  %v4393 = vmul.f32 %v4376, %v3789
  %v4394 = vmul.f32 %v4378, %v3790
  %v4395 = vmul.f32 %v4364, %v4379
  %v4396 = vmul.f32 %v4366, %v4380
  %v4397 = vadd.f32 %v4393, %v4395
  %v4398 = vadd.f32 %v4394, %v4396
  %v4399 = vtanh.pop %v4397
  %v4400 = vtanh.pop %v4398
  %v4401 = vmul.f32 %v4390, %v4399
  %v4402 = vmul.f32 %v4392, %v4400
  %v4403 = vpack.c.bf16 %v4401, %v4401
  %v4404 = vpack.c.bf16 %v4402, %v4402
  %4405 = vmatprep.subr.bf16.mxu0 %v2934
  %4406 = vmatpush1.bf16.msra.mxu0 %v2933
  %4407 = vmatprep.subr.bf16.mxu0 %v2942
  %4408 = vmatpush1.bf16.msra.mxu0 %v2941
  %4409 = vmatprep.subr.bf16.mxu0 %v2950
  %4410 = vmatpush1.bf16.msra.mxu0 %v2949
  %4411 = vmatprep.subr.bf16.mxu0 %v2958
  %4412 = vmatpush1.bf16.msra.mxu0 %v2957
  %4413 = vmatprep.subr.bf16.mxu0 %v2966
  %4414 = vmatpush1.bf16.msra.mxu0 %v2965
  %4415 = vmatprep.subr.bf16.mxu0 %v2974
  %4416 = vmatpush1.bf16.msra.mxu0 %v2973
  %4417 = vmatprep.subr.bf16.mxu0 %v2982
  %4418 = vmatpush1.bf16.msra.mxu0 %v2981
  %4419 = vmatprep.subr.bf16.mxu0 %v2990
  %4420 = vmatpush1.bf16.msra.mxu0 %v2989
  %4421 = vmatprep.subr.bf16.mxu0 %v2998
  %4422 = vmatpush1.bf16.msra.mxu0 %v2997
  %4423 = vmatprep.subr.bf16.mxu0 %v3006
  %4424 = vmatpush1.bf16.msra.mxu0 %v3005
  %4425 = vmatprep.subr.bf16.mxu0 %v3014
  %4426 = vmatpush1.bf16.msra.mxu0 %v3013
  %4427 = vmatprep.subr.bf16.mxu0 %v3022
  %4428 = vmatpush1.bf16.msra.mxu0 %v3021
  %4429 = vmatprep.subr.bf16.mxu0 %v3030
  %4430 = vmatpush1.bf16.msra.mxu0 %v3029
  %4431 = vmatprep.subr.bf16.mxu0 %v3038
  %4432 = vmatpush1.bf16.msra.mxu0 %v3037
  %4433 = vmatprep.subr.bf16.mxu0 %v3046
  %4434 = vmatpush1.bf16.msra.mxu0 %v3045
  %4435 = vmatprep.subr.bf16.mxu0 %v3054
  %4436 = vmatpush1.bf16.msra.mxu0 %v3053
  %4437 = vmatprep.mubr.bf16.mxu0 %v4404
  %4438 = vmatmul.mubr.bf16.gmra.mrb[0].mxu0 %v4403
  %v4439 = vpop.f32.mrb[0].mxu0
  %v4440 = vadd.f32 0.0, %v4439
  %v4441 = vpop.f32.mrb[0].mxu0
  %v4442 = vadd.f32 0.0, %v4441
  %v4443 = vpop.f32.mrb[0].mxu0
  %v4444 = vpop.f32.mrb[0].mxu0
  %4445 = vdwg.mxu0
  %4446 = vmatprep.subr.bf16.mxu0 %v2936
  %4447 = vmatpush1.bf16.msra.mxu0 %v2935
  %4448 = vmatprep.subr.bf16.mxu0 %v2944
  %4449 = vmatpush1.bf16.msra.mxu0 %v2943
  %4450 = vmatprep.subr.bf16.mxu0 %v2952
  %4451 = vmatpush1.bf16.msra.mxu0 %v2951
  %4452 = vmatprep.subr.bf16.mxu0 %v2960
  %4453 = vmatpush1.bf16.msra.mxu0 %v2959
  %4454 = vmatprep.subr.bf16.mxu0 %v2968
  %4455 = vmatpush1.bf16.msra.mxu0 %v2967
  %4456 = vmatprep.subr.bf16.mxu0 %v2976
  %4457 = vmatpush1.bf16.msra.mxu0 %v2975
  %4458 = vmatprep.subr.bf16.mxu0 %v2984
  %4459 = vmatpush1.bf16.msra.mxu0 %v2983
  %4460 = vmatprep.subr.bf16.mxu0 %v2992
  %4461 = vmatpush1.bf16.msra.mxu0 %v2991
  %4462 = vmatprep.subr.bf16.mxu0 %v3000
  %4463 = vmatpush1.bf16.msra.mxu0 %v2999
  %4464 = vmatprep.subr.bf16.mxu0 %v3008
  %4465 = vmatpush1.bf16.msra.mxu0 %v3007
  %4466 = vmatprep.subr.bf16.mxu0 %v3016
  %4467 = vmatpush1.bf16.msra.mxu0 %v3015
  %4468 = vmatprep.subr.bf16.mxu0 %v3024
  %4469 = vmatpush1.bf16.msra.mxu0 %v3023
  %4470 = vmatprep.subr.bf16.mxu0 %v3032
  %4471 = vmatpush1.bf16.msra.mxu0 %v3031
  %4472 = vmatprep.subr.bf16.mxu0 %v3040
  %4473 = vmatpush1.bf16.msra.mxu0 %v3039
  %4474 = vmatprep.subr.bf16.mxu0 %v3048
  %4475 = vmatpush1.bf16.msra.mxu0 %v3047
  %4476 = vmatprep.subr.bf16.mxu0 %v3056
  %4477 = vmatpush1.bf16.msra.mxu0 %v3055
  %4478 = vmatprep.mubr.bf16.mxu0 %v4404
  %4479 = vmatmul.mubr.bf16.gmra.mrb[0].mxu0 %v4403
  %v4480 = vpop.f32.mrb[0].mxu0
  %v4481 = vadd.f32 0.0, %v4480
  %v4482 = vpop.f32.mrb[0].mxu0
  %v4483 = vadd.f32 0.0, %v4482
  %v4484 = vpop.f32.mrb[0].mxu0
  %v4485 = vpop.f32.mrb[0].mxu0
  %4486 = vdwg.mxu0
  %4487 = vmatprep.subr.bf16.mxu0 %v2938
  %4488 = vmatpush1.bf16.msra.mxu0 %v2937
  %4489 = vmatprep.subr.bf16.mxu0 %v2946
  %4490 = vmatpush1.bf16.msra.mxu0 %v2945
  %4491 = vmatprep.subr.bf16.mxu0 %v2954
  %4492 = vmatpush1.bf16.msra.mxu0 %v2953
  %4493 = vmatprep.subr.bf16.mxu0 %v2962
  %4494 = vmatpush1.bf16.msra.mxu0 %v2961
  %4495 = vmatprep.subr.bf16.mxu0 %v2970
  %4496 = vmatpush1.bf16.msra.mxu0 %v2969
  %4497 = vmatprep.subr.bf16.mxu0 %v2978
  %4498 = vmatpush1.bf16.msra.mxu0 %v2977
  %4499 = vmatprep.subr.bf16.mxu0 %v2986
  %4500 = vmatpush1.bf16.msra.mxu0 %v2985
  %4501 = vmatprep.subr.bf16.mxu0 %v2994
  %4502 = vmatpush1.bf16.msra.mxu0 %v2993
  %4503 = vmatprep.subr.bf16.mxu0 %v3002
  %4504 = vmatpush1.bf16.msra.mxu0 %v3001
  %4505 = vmatprep.subr.bf16.mxu0 %v3010
  %4506 = vmatpush1.bf16.msra.mxu0 %v3009
  %4507 = vmatprep.subr.bf16.mxu0 %v3018
  %4508 = vmatpush1.bf16.msra.mxu0 %v3017
  %4509 = vmatprep.subr.bf16.mxu0 %v3026
  %4510 = vmatpush1.bf16.msra.mxu0 %v3025
  %4511 = vmatprep.subr.bf16.mxu0 %v3034
  %4512 = vmatpush1.bf16.msra.mxu0 %v3033
  %4513 = vmatprep.subr.bf16.mxu0 %v3042
  %4514 = vmatpush1.bf16.msra.mxu0 %v3041
  %4515 = vmatprep.subr.bf16.mxu0 %v3050
  %4516 = vmatpush1.bf16.msra.mxu0 %v3049
  %4517 = vmatprep.subr.bf16.mxu0 %v3058
  %4518 = vmatpush1.bf16.msra.mxu0 %v3057
  %4519 = vmatprep.mubr.bf16.mxu0 %v4404
  %4520 = vmatmul.mubr.bf16.gmra.mrb[0].mxu0 %v4403
  %v4521 = vpop.f32.mrb[0].mxu0
  %v4522 = vadd.f32 0.0, %v4521
  %v4523 = vpop.f32.mrb[0].mxu0
  %v4524 = vadd.f32 0.0, %v4523
  %v4525 = vpop.f32.mrb[0].mxu0
  %v4526 = vpop.f32.mrb[0].mxu0
  %4527 = vdwg.mxu0
  %4528 = vmatprep.subr.bf16.mxu0 %v2940
  %4529 = vmatpush1.bf16.msra.mxu0 %v2939
  %4530 = vmatprep.subr.bf16.mxu0 %v2948
  %4531 = vmatpush1.bf16.msra.mxu0 %v2947
  %4532 = vmatprep.subr.bf16.mxu0 %v2956
  %4533 = vmatpush1.bf16.msra.mxu0 %v2955
  %4534 = vmatprep.subr.bf16.mxu0 %v2964
  %4535 = vmatpush1.bf16.msra.mxu0 %v2963
  %4536 = vmatprep.subr.bf16.mxu0 %v2972
  %4537 = vmatpush1.bf16.msra.mxu0 %v2971
  %4538 = vmatprep.subr.bf16.mxu0 %v2980
  %4539 = vmatpush1.bf16.msra.mxu0 %v2979
  %4540 = vmatprep.subr.bf16.mxu0 %v2988
  %4541 = vmatpush1.bf16.msra.mxu0 %v2987
  %4542 = vmatprep.subr.bf16.mxu0 %v2996
  %4543 = vmatpush1.bf16.msra.mxu0 %v2995
  %4544 = vmatprep.subr.bf16.mxu0 %v3004
  %4545 = vmatpush1.bf16.msra.mxu0 %v3003
  %4546 = vmatprep.subr.bf16.mxu0 %v3012
  %4547 = vmatpush1.bf16.msra.mxu0 %v3011
  %4548 = vmatprep.subr.bf16.mxu0 %v3020
  %4549 = vmatpush1.bf16.msra.mxu0 %v3019
  %4550 = vmatprep.subr.bf16.mxu0 %v3028
  %4551 = vmatpush1.bf16.msra.mxu0 %v3027
  %4552 = vmatprep.subr.bf16.mxu0 %v3036
  %4553 = vmatpush1.bf16.msra.mxu0 %v3035
  %4554 = vmatprep.subr.bf16.mxu0 %v3044
  %4555 = vmatpush1.bf16.msra.mxu0 %v3043
  %4556 = vmatprep.subr.bf16.mxu0 %v3052
  %4557 = vmatpush1.bf16.msra.mxu0 %v3051
  %4558 = vmatprep.subr.bf16.mxu0 %v3060
  %4559 = vmatpush1.bf16.msra.mxu0 %v3059
  %4560 = vmatprep.mubr.bf16.mxu0 %v4404
  %4561 = vmatmul.mubr.bf16.gmra.mrb[0].mxu0 %v4403
  %v4562 = vpop.f32.mrb[0].mxu0
  %v4563 = vadd.f32 0.0, %v4562
  %v4564 = vpop.f32.mrb[0].mxu0
  %v4565 = vadd.f32 0.0, %v4564
  %v4566 = vpop.f32.mrb[0].mxu0
  %v4567 = vpop.f32.mrb[0].mxu0
  %4568 = vdwg.mxu0
  %v4569 = vadd.f32 %v4054, %v4440
  %v4570 = vadd.f32 %v4056, %v4442
  %v4571 = vadd.f32 %v4095, %v4481
  %v4572 = vadd.f32 %v4097, %v4483
  %v4573 = vadd.f32 %v4136, %v4522
  %v4574 = vadd.f32 %v4138, %v4524
  %v4575 = vadd.f32 %v4177, %v4563
  %v4576 = vadd.f32 %v4179, %v4565
  %v4577 = vxor.u32 %v4569, 2147483648
  %v4578 = vxor.u32 %v4570, 2147483648
  %v4579 = vmul.f32 %v4577, 1.442695
  %v4580 = vpow.pop %v4579
  %v4581 = vmul.f32 %v4578, 1.442695
  %v4582 = vpow.pop %v4581
  %v4583 = vadd.f32 %v4580, 1.0
  %v4584 = vadd.f32 %v4582, 1.0
  %v4585 = vrcp.pop %v4583
  %v4586 = vmul.f32 1.0, %v4585
  %v4587 = vrcp.pop %v4584
  %v4588 = vmul.f32 1.0, %v4587
  %v4589 = vxor.u32 %v4571, 2147483648
  %v4590 = vxor.u32 %v4572, 2147483648
  %v4591 = vmul.f32 %v4589, 1.442695
  %v4592 = vpow.pop %v4591
  %v4593 = vmul.f32 %v4590, 1.442695
  %v4594 = vpow.pop %v4593
  %v4595 = vadd.f32 %v4592, 1.0
  %v4596 = vadd.f32 %v4594, 1.0
  %v4597 = vrcp.pop %v4595
  %v4598 = vmul.f32 1.0, %v4597
  %v4599 = vrcp.pop %v4596
  %v4600 = vmul.f32 1.0, %v4599
  %v4601 = vtanh.pop %v4573
  %v4602 = vtanh.pop %v4574
  %v4603 = vxor.u32 %v4575, 2147483648
  %v4604 = vxor.u32 %v4576, 2147483648
  %v4605 = vmul.f32 %v4603, 1.442695
  %v4606 = vpow.pop %v4605
  %v4607 = vmul.f32 %v4604, 1.442695
  %v4608 = vpow.pop %v4607
  %v4609 = vadd.f32 %v4606, 1.0
  %v4610 = vadd.f32 %v4608, 1.0
  %v4611 = vrcp.pop %v4609
  %v4612 = vmul.f32 1.0, %v4611
  %v4613 = vrcp.pop %v4610
  %v4614 = vmul.f32 1.0, %v4613
  %v4615 = vmul.f32 %v4598, %v4011
  %v4616 = vmul.f32 %v4600, %v4012
  %v4617 = vmul.f32 %v4586, %v4601
  %v4618 = vmul.f32 %v4588, %v4602
  %v4619 = vadd.f32 %v4615, %v4617
  %v4620 = vadd.f32 %v4616, %v4618
  %v4621 = vtanh.pop %v4619
  %v4622 = vtanh.pop %v4620
  %v4623 = vmul.f32 %v4612, %v4621
  %v4624 = vmul.f32 %v4614, %v4622
  %v4625 = vpack.c.bf16 %v4623, %v4623
  %v4626 = vpack.c.bf16 %v4624, %v4624
  %4627 = vmatprep.subr.bf16.mxu0 %v1268
  %4628 = vmatpush1.bf16.msra.mxu0 %v1267
  %4629 = vmatprep.subr.bf16.mxu0 %v1276
  %4630 = vmatpush1.bf16.msra.mxu0 %v1275
  %4631 = vmatprep.subr.bf16.mxu0 %v1284
  %4632 = vmatpush1.bf16.msra.mxu0 %v1283
  %4633 = vmatprep.subr.bf16.mxu0 %v1292
  %4634 = vmatpush1.bf16.msra.mxu0 %v1291
  %4635 = vmatprep.subr.bf16.mxu0 %v1300
  %4636 = vmatpush1.bf16.msra.mxu0 %v1299
  %4637 = vmatprep.subr.bf16.mxu0 %v1308
  %4638 = vmatpush1.bf16.msra.mxu0 %v1307
  %4639 = vmatprep.subr.bf16.mxu0 %v1316
  %4640 = vmatpush1.bf16.msra.mxu0 %v1315
  %4641 = vmatprep.subr.bf16.mxu0 %v1324
  %4642 = vmatpush1.bf16.msra.mxu0 %v1323
  %4643 = vmatprep.subr.bf16.mxu0 %v1332
  %4644 = vmatpush1.bf16.msra.mxu0 %v1331
  %4645 = vmatprep.subr.bf16.mxu0 %v1340
  %4646 = vmatpush1.bf16.msra.mxu0 %v1339
  %4647 = vmatprep.subr.bf16.mxu0 %v1348
  %4648 = vmatpush1.bf16.msra.mxu0 %v1347
  %4649 = vmatprep.subr.bf16.mxu0 %v1356
  %4650 = vmatpush1.bf16.msra.mxu0 %v1355
  %4651 = vmatprep.subr.bf16.mxu0 %v1364
  %4652 = vmatpush1.bf16.msra.mxu0 %v1363
  %4653 = vmatprep.subr.bf16.mxu0 %v1372
  %4654 = vmatpush1.bf16.msra.mxu0 %v1371
  %4655 = vmatprep.subr.bf16.mxu0 %v1380
  %4656 = vmatpush1.bf16.msra.mxu0 %v1379
  %4657 = vmatprep.subr.bf16.mxu0 %v1388
  %4658 = vmatpush1.bf16.msra.mxu0 %v1387
  %4659 = vmatprep.mubr.bf16.mxu0 %v4626
  %4660 = vmatmul.mubr.bf16.gmra.mrb[0].mxu0 %v4625
  %v4661 = vpop.f32.mrb[0].mxu0
  %v4662 = vadd.f32 %v846, %v4661
  %v4663 = vpop.f32.mrb[0].mxu0
  %v4664 = vadd.f32 %v850, %v4663
  %v4665 = vpop.f32.mrb[0].mxu0
  %v4666 = vpop.f32.mrb[0].mxu0
  %4667 = vdwg.mxu0
  %4668 = vmatprep.subr.bf16.mxu0 %v1270
  %4669 = vmatpush1.bf16.msra.mxu0 %v1269
  %4670 = vmatprep.subr.bf16.mxu0 %v1278
  %4671 = vmatpush1.bf16.msra.mxu0 %v1277
  %4672 = vmatprep.subr.bf16.mxu0 %v1286
  %4673 = vmatpush1.bf16.msra.mxu0 %v1285
  %4674 = vmatprep.subr.bf16.mxu0 %v1294
  %4675 = vmatpush1.bf16.msra.mxu0 %v1293
  %4676 = vmatprep.subr.bf16.mxu0 %v1302
  %4677 = vmatpush1.bf16.msra.mxu0 %v1301
  %4678 = vmatprep.subr.bf16.mxu0 %v1310
  %4679 = vmatpush1.bf16.msra.mxu0 %v1309
  %4680 = vmatprep.subr.bf16.mxu0 %v1318
  %4681 = vmatpush1.bf16.msra.mxu0 %v1317
  %4682 = vmatprep.subr.bf16.mxu0 %v1326
  %4683 = vmatpush1.bf16.msra.mxu0 %v1325
  %4684 = vmatprep.subr.bf16.mxu0 %v1334
  %4685 = vmatpush1.bf16.msra.mxu0 %v1333
  %4686 = vmatprep.subr.bf16.mxu0 %v1342
  %4687 = vmatpush1.bf16.msra.mxu0 %v1341
  %4688 = vmatprep.subr.bf16.mxu0 %v1350
  %4689 = vmatpush1.bf16.msra.mxu0 %v1349
  %4690 = vmatprep.subr.bf16.mxu0 %v1358
  %4691 = vmatpush1.bf16.msra.mxu0 %v1357
  %4692 = vmatprep.subr.bf16.mxu0 %v1366
  %4693 = vmatpush1.bf16.msra.mxu0 %v1365
  %4694 = vmatprep.subr.bf16.mxu0 %v1374
  %4695 = vmatpush1.bf16.msra.mxu0 %v1373
  %4696 = vmatprep.subr.bf16.mxu0 %v1382
  %4697 = vmatpush1.bf16.msra.mxu0 %v1381
  %4698 = vmatprep.subr.bf16.mxu0 %v1390
  %4699 = vmatpush1.bf16.msra.mxu0 %v1389
  %4700 = vmatprep.mubr.bf16.mxu0 %v4626
  %4701 = vmatmul.mubr.bf16.gmra.mrb[0].mxu0 %v4625
  %v4702 = vpop.f32.mrb[0].mxu0
  %v4703 = vadd.f32 %v854, %v4702
  %v4704 = vpop.f32.mrb[0].mxu0
  %v4705 = vadd.f32 %v858, %v4704
  %v4706 = vpop.f32.mrb[0].mxu0
  %v4707 = vpop.f32.mrb[0].mxu0
  %4708 = vdwg.mxu0
  %4709 = vmatprep.subr.bf16.mxu0 %v1272
  %4710 = vmatpush1.bf16.msra.mxu0 %v1271
  %4711 = vmatprep.subr.bf16.mxu0 %v1280
  %4712 = vmatpush1.bf16.msra.mxu0 %v1279
  %4713 = vmatprep.subr.bf16.mxu0 %v1288
  %4714 = vmatpush1.bf16.msra.mxu0 %v1287
  %4715 = vmatprep.subr.bf16.mxu0 %v1296
  %4716 = vmatpush1.bf16.msra.mxu0 %v1295
  %4717 = vmatprep.subr.bf16.mxu0 %v1304
  %4718 = vmatpush1.bf16.msra.mxu0 %v1303
  %4719 = vmatprep.subr.bf16.mxu0 %v1312
  %4720 = vmatpush1.bf16.msra.mxu0 %v1311
  %4721 = vmatprep.subr.bf16.mxu0 %v1320
  %4722 = vmatpush1.bf16.msra.mxu0 %v1319
  %4723 = vmatprep.subr.bf16.mxu0 %v1328
  %4724 = vmatpush1.bf16.msra.mxu0 %v1327
  %4725 = vmatprep.subr.bf16.mxu0 %v1336
  %4726 = vmatpush1.bf16.msra.mxu0 %v1335
  %4727 = vmatprep.subr.bf16.mxu0 %v1344
  %4728 = vmatpush1.bf16.msra.mxu0 %v1343
  %4729 = vmatprep.subr.bf16.mxu0 %v1352
  %4730 = vmatpush1.bf16.msra.mxu0 %v1351
  %4731 = vmatprep.subr.bf16.mxu0 %v1360
  %4732 = vmatpush1.bf16.msra.mxu0 %v1359
  %4733 = vmatprep.subr.bf16.mxu0 %v1368
  %4734 = vmatpush1.bf16.msra.mxu0 %v1367
  %4735 = vmatprep.subr.bf16.mxu0 %v1376
  %4736 = vmatpush1.bf16.msra.mxu0 %v1375
  %4737 = vmatprep.subr.bf16.mxu0 %v1384
  %4738 = vmatpush1.bf16.msra.mxu0 %v1383
  %4739 = vmatprep.subr.bf16.mxu0 %v1392
  %4740 = vmatpush1.bf16.msra.mxu0 %v1391
  %4741 = vmatprep.mubr.bf16.mxu0 %v4626
  %4742 = vmatmul.mubr.bf16.gmra.mrb[0].mxu0 %v4625
  %v4743 = vpop.f32.mrb[0].mxu0
  %v4744 = vadd.f32 %v862, %v4743
  %v4745 = vpop.f32.mrb[0].mxu0
  %v4746 = vadd.f32 %v866, %v4745
  %v4747 = vpop.f32.mrb[0].mxu0
  %v4748 = vpop.f32.mrb[0].mxu0
  %4749 = vdwg.mxu0
  %4750 = vmatprep.subr.bf16.mxu0 %v1274
  %4751 = vmatpush1.bf16.msra.mxu0 %v1273
  %4752 = vmatprep.subr.bf16.mxu0 %v1282
  %4753 = vmatpush1.bf16.msra.mxu0 %v1281
  %4754 = vmatprep.subr.bf16.mxu0 %v1290
  %4755 = vmatpush1.bf16.msra.mxu0 %v1289
  %4756 = vmatprep.subr.bf16.mxu0 %v1298
  %4757 = vmatpush1.bf16.msra.mxu0 %v1297
  %4758 = vmatprep.subr.bf16.mxu0 %v1306
  %4759 = vmatpush1.bf16.msra.mxu0 %v1305
  %4760 = vmatprep.subr.bf16.mxu0 %v1314
  %4761 = vmatpush1.bf16.msra.mxu0 %v1313
  %4762 = vmatprep.subr.bf16.mxu0 %v1322
  %4763 = vmatpush1.bf16.msra.mxu0 %v1321
  %4764 = vmatprep.subr.bf16.mxu0 %v1330
  %4765 = vmatpush1.bf16.msra.mxu0 %v1329
  %4766 = vmatprep.subr.bf16.mxu0 %v1338
  %4767 = vmatpush1.bf16.msra.mxu0 %v1337
  %4768 = vmatprep.subr.bf16.mxu0 %v1346
  %4769 = vmatpush1.bf16.msra.mxu0 %v1345
  %4770 = vmatprep.subr.bf16.mxu0 %v1354
  %4771 = vmatpush1.bf16.msra.mxu0 %v1353
  %4772 = vmatprep.subr.bf16.mxu0 %v1362
  %4773 = vmatpush1.bf16.msra.mxu0 %v1361
  %4774 = vmatprep.subr.bf16.mxu0 %v1370
  %4775 = vmatpush1.bf16.msra.mxu0 %v1369
  %4776 = vmatprep.subr.bf16.mxu0 %v1378
  %4777 = vmatpush1.bf16.msra.mxu0 %v1377
  %4778 = vmatprep.subr.bf16.mxu0 %v1386
  %4779 = vmatpush1.bf16.msra.mxu0 %v1385
  %4780 = vmatprep.subr.bf16.mxu0 %v1394
  %4781 = vmatpush1.bf16.msra.mxu0 %v1393
  %4782 = vmatprep.mubr.bf16.mxu0 %v4626
  %4783 = vmatmul.mubr.bf16.gmra.mrb[0].mxu0 %v4625
  %v4784 = vpop.f32.mrb[0].mxu0
  %v4785 = vadd.f32 %v870, %v4784
  %v4786 = vpop.f32.mrb[0].mxu0
  %v4787 = vadd.f32 %v874, %v4786
  %v4788 = vpop.f32.mrb[0].mxu0
  %v4789 = vpop.f32.mrb[0].mxu0
  %4790 = vdwg.mxu0
  %4791 = vmatprep.subr.bf16.mxu0 %v2072
  %4792 = vmatpush1.bf16.msra.mxu0 %v2071
  %4793 = vmatprep.subr.bf16.mxu0 %v2080
  %4794 = vmatpush1.bf16.msra.mxu0 %v2079
  %4795 = vmatprep.subr.bf16.mxu0 %v2088
  %4796 = vmatpush1.bf16.msra.mxu0 %v2087
  %4797 = vmatprep.subr.bf16.mxu0 %v2096
  %4798 = vmatpush1.bf16.msra.mxu0 %v2095
  %4799 = vmatprep.subr.bf16.mxu0 %v2104
  %4800 = vmatpush1.bf16.msra.mxu0 %v2103
  %4801 = vmatprep.subr.bf16.mxu0 %v2112
  %4802 = vmatpush1.bf16.msra.mxu0 %v2111
  %4803 = vmatprep.subr.bf16.mxu0 %v2120
  %4804 = vmatpush1.bf16.msra.mxu0 %v2119
  %4805 = vmatprep.subr.bf16.mxu0 %v2128
  %4806 = vmatpush1.bf16.msra.mxu0 %v2127
  %4807 = vmatprep.subr.bf16.mxu0 %v2136
  %4808 = vmatpush1.bf16.msra.mxu0 %v2135
  %4809 = vmatprep.subr.bf16.mxu0 %v2144
  %4810 = vmatpush1.bf16.msra.mxu0 %v2143
  %4811 = vmatprep.subr.bf16.mxu0 %v2152
  %4812 = vmatpush1.bf16.msra.mxu0 %v2151
  %4813 = vmatprep.subr.bf16.mxu0 %v2160
  %4814 = vmatpush1.bf16.msra.mxu0 %v2159
  %4815 = vmatprep.subr.bf16.mxu0 %v2168
  %4816 = vmatpush1.bf16.msra.mxu0 %v2167
  %4817 = vmatprep.subr.bf16.mxu0 %v2176
  %4818 = vmatpush1.bf16.msra.mxu0 %v2175
  %4819 = vmatprep.subr.bf16.mxu0 %v2184
  %4820 = vmatpush1.bf16.msra.mxu0 %v2183
  %4821 = vmatprep.subr.bf16.mxu0 %v2192
  %4822 = vmatpush1.bf16.msra.mxu0 %v2191
  %4823 = vmatprep.mubr.bf16.mxu0 %v4404
  %4824 = vmatmul.mubr.bf16.gmra.mrb[0].mxu0 %v4403
  %v4825 = vpop.f32.mrb[0].mxu0
  %v4826 = vadd.f32 0.0, %v4825
  %v4827 = vpop.f32.mrb[0].mxu0
  %v4828 = vadd.f32 0.0, %v4827
  %v4829 = vpop.f32.mrb[0].mxu0
  %v4830 = vpop.f32.mrb[0].mxu0
  %4831 = vdwg.mxu0
  %4832 = vmatprep.subr.bf16.mxu0 %v2074
  %4833 = vmatpush1.bf16.msra.mxu0 %v2073
  %4834 = vmatprep.subr.bf16.mxu0 %v2082
  %4835 = vmatpush1.bf16.msra.mxu0 %v2081
  %4836 = vmatprep.subr.bf16.mxu0 %v2090
  %4837 = vmatpush1.bf16.msra.mxu0 %v2089
  %4838 = vmatprep.subr.bf16.mxu0 %v2098
  %4839 = vmatpush1.bf16.msra.mxu0 %v2097
  %4840 = vmatprep.subr.bf16.mxu0 %v2106
  %4841 = vmatpush1.bf16.msra.mxu0 %v2105
  %4842 = vmatprep.subr.bf16.mxu0 %v2114
  %4843 = vmatpush1.bf16.msra.mxu0 %v2113
  %4844 = vmatprep.subr.bf16.mxu0 %v2122
  %4845 = vmatpush1.bf16.msra.mxu0 %v2121
  %4846 = vmatprep.subr.bf16.mxu0 %v2130
  %4847 = vmatpush1.bf16.msra.mxu0 %v2129
  %4848 = vmatprep.subr.bf16.mxu0 %v2138
  %4849 = vmatpush1.bf16.msra.mxu0 %v2137
  %4850 = vmatprep.subr.bf16.mxu0 %v2146
  %4851 = vmatpush1.bf16.msra.mxu0 %v2145
  %4852 = vmatprep.subr.bf16.mxu0 %v2154
  %4853 = vmatpush1.bf16.msra.mxu0 %v2153
  %4854 = vmatprep.subr.bf16.mxu0 %v2162
  %4855 = vmatpush1.bf16.msra.mxu0 %v2161
  %4856 = vmatprep.subr.bf16.mxu0 %v2170
  %4857 = vmatpush1.bf16.msra.mxu0 %v2169
  %4858 = vmatprep.subr.bf16.mxu0 %v2178
  %4859 = vmatpush1.bf16.msra.mxu0 %v2177
  %4860 = vmatprep.subr.bf16.mxu0 %v2186
  %4861 = vmatpush1.bf16.msra.mxu0 %v2185
  %4862 = vmatprep.subr.bf16.mxu0 %v2194
  %4863 = vmatpush1.bf16.msra.mxu0 %v2193
  %4864 = vmatprep.mubr.bf16.mxu0 %v4404
  %4865 = vmatmul.mubr.bf16.gmra.mrb[0].mxu0 %v4403
  %v4866 = vpop.f32.mrb[0].mxu0
  %v4867 = vadd.f32 0.0, %v4866
  %v4868 = vpop.f32.mrb[0].mxu0
  %v4869 = vadd.f32 0.0, %v4868
  %v4870 = vpop.f32.mrb[0].mxu0
  %v4871 = vpop.f32.mrb[0].mxu0
  %4872 = vdwg.mxu0
  %4873 = vmatprep.subr.bf16.mxu0 %v2076
  %4874 = vmatpush1.bf16.msra.mxu0 %v2075
  %4875 = vmatprep.subr.bf16.mxu0 %v2084
  %4876 = vmatpush1.bf16.msra.mxu0 %v2083
  %4877 = vmatprep.subr.bf16.mxu0 %v2092
  %4878 = vmatpush1.bf16.msra.mxu0 %v2091
  %4879 = vmatprep.subr.bf16.mxu0 %v2100
  %4880 = vmatpush1.bf16.msra.mxu0 %v2099
  %4881 = vmatprep.subr.bf16.mxu0 %v2108
  %4882 = vmatpush1.bf16.msra.mxu0 %v2107
  %4883 = vmatprep.subr.bf16.mxu0 %v2116
  %4884 = vmatpush1.bf16.msra.mxu0 %v2115
  %4885 = vmatprep.subr.bf16.mxu0 %v2124
  %4886 = vmatpush1.bf16.msra.mxu0 %v2123
  %4887 = vmatprep.subr.bf16.mxu0 %v2132
  %4888 = vmatpush1.bf16.msra.mxu0 %v2131
  %4889 = vmatprep.subr.bf16.mxu0 %v2140
  %4890 = vmatpush1.bf16.msra.mxu0 %v2139
  %4891 = vmatprep.subr.bf16.mxu0 %v2148
  %4892 = vmatpush1.bf16.msra.mxu0 %v2147
  %4893 = vmatprep.subr.bf16.mxu0 %v2156
  %4894 = vmatpush1.bf16.msra.mxu0 %v2155
  %4895 = vmatprep.subr.bf16.mxu0 %v2164
  %4896 = vmatpush1.bf16.msra.mxu0 %v2163
  %4897 = vmatprep.subr.bf16.mxu0 %v2172
  %4898 = vmatpush1.bf16.msra.mxu0 %v2171
  %4899 = vmatprep.subr.bf16.mxu0 %v2180
  %4900 = vmatpush1.bf16.msra.mxu0 %v2179
  %4901 = vmatprep.subr.bf16.mxu0 %v2188
  %4902 = vmatpush1.bf16.msra.mxu0 %v2187
  %4903 = vmatprep.subr.bf16.mxu0 %v2196
  %4904 = vmatpush1.bf16.msra.mxu0 %v2195
  %4905 = vmatprep.mubr.bf16.mxu0 %v4404
  %4906 = vmatmul.mubr.bf16.gmra.mrb[0].mxu0 %v4403
  %v4907 = vpop.f32.mrb[0].mxu0
  %v4908 = vadd.f32 0.0, %v4907
  %v4909 = vpop.f32.mrb[0].mxu0
  %v4910 = vadd.f32 0.0, %v4909
  %v4911 = vpop.f32.mrb[0].mxu0
  %v4912 = vpop.f32.mrb[0].mxu0
  %4913 = vdwg.mxu0
  %4914 = vmatprep.subr.bf16.mxu0 %v2078
  %4915 = vmatpush1.bf16.msra.mxu0 %v2077
  %4916 = vmatprep.subr.bf16.mxu0 %v2086
  %4917 = vmatpush1.bf16.msra.mxu0 %v2085
  %4918 = vmatprep.subr.bf16.mxu0 %v2094
  %4919 = vmatpush1.bf16.msra.mxu0 %v2093
  %4920 = vmatprep.subr.bf16.mxu0 %v2102
  %4921 = vmatpush1.bf16.msra.mxu0 %v2101
  %4922 = vmatprep.subr.bf16.mxu0 %v2110
  %4923 = vmatpush1.bf16.msra.mxu0 %v2109
  %4924 = vmatprep.subr.bf16.mxu0 %v2118
  %4925 = vmatpush1.bf16.msra.mxu0 %v2117
  %4926 = vmatprep.subr.bf16.mxu0 %v2126
  %4927 = vmatpush1.bf16.msra.mxu0 %v2125
  %4928 = vmatprep.subr.bf16.mxu0 %v2134
  %4929 = vmatpush1.bf16.msra.mxu0 %v2133
  %4930 = vmatprep.subr.bf16.mxu0 %v2142
  %4931 = vmatpush1.bf16.msra.mxu0 %v2141
  %4932 = vmatprep.subr.bf16.mxu0 %v2150
  %4933 = vmatpush1.bf16.msra.mxu0 %v2149
  %4934 = vmatprep.subr.bf16.mxu0 %v2158
  %4935 = vmatpush1.bf16.msra.mxu0 %v2157
  %4936 = vmatprep.subr.bf16.mxu0 %v2166
  %4937 = vmatpush1.bf16.msra.mxu0 %v2165
  %4938 = vmatprep.subr.bf16.mxu0 %v2174
  %4939 = vmatpush1.bf16.msra.mxu0 %v2173
  %4940 = vmatprep.subr.bf16.mxu0 %v2182
  %4941 = vmatpush1.bf16.msra.mxu0 %v2181
  %4942 = vmatprep.subr.bf16.mxu0 %v2190
  %4943 = vmatpush1.bf16.msra.mxu0 %v2189
  %4944 = vmatprep.subr.bf16.mxu0 %v2198
  %4945 = vmatpush1.bf16.msra.mxu0 %v2197
  %4946 = vmatprep.mubr.bf16.mxu0 %v4404
  %4947 = vmatmul.mubr.bf16.gmra.mrb[0].mxu0 %v4403
  %v4948 = vpop.f32.mrb[0].mxu0
  %v4949 = vadd.f32 0.0, %v4948
  %v4950 = vpop.f32.mrb[0].mxu0
  %v4951 = vadd.f32 0.0, %v4950
  %v4952 = vpop.f32.mrb[0].mxu0
  %v4953 = vpop.f32.mrb[0].mxu0
  %4954 = vdwg.mxu0
  %v4955 = vadd.f32 %v599, %v4826
  %v4956 = vadd.f32 %v601, %v4828
  %v4957 = vadd.f32 %v672, %v4867
  %v4958 = vadd.f32 %v674, %v4869
  %v4959 = vadd.f32 %v745, %v4908
  %v4960 = vadd.f32 %v747, %v4910
  %v4961 = vadd.f32 %v818, %v4949
  %v4962 = vadd.f32 %v820, %v4951
  %v4963 = vxor.u32 %v4955, 2147483648
  %v4964 = vxor.u32 %v4956, 2147483648
  %v4965 = vmul.f32 %v4963, 1.442695
  %v4966 = vpow.pop %v4965
  %v4967 = vmul.f32 %v4964, 1.442695
  %v4968 = vpow.pop %v4967
  %v4969 = vadd.f32 %v4966, 1.0
  %v4970 = vadd.f32 %v4968, 1.0
  %v4971 = vrcp.pop %v4969
  %v4972 = vmul.f32 1.0, %v4971
  %v4973 = vrcp.pop %v4970
  %v4974 = vmul.f32 1.0, %v4973
  %v4975 = vxor.u32 %v4957, 2147483648
  %v4976 = vxor.u32 %v4958, 2147483648
  %v4977 = vmul.f32 %v4975, 1.442695
  %v4978 = vpow.pop %v4977
  %v4979 = vmul.f32 %v4976, 1.442695
  %v4980 = vpow.pop %v4979
  %v4981 = vadd.f32 %v4978, 1.0
  %v4982 = vadd.f32 %v4980, 1.0
  %v4983 = vrcp.pop %v4981
  %v4984 = vmul.f32 1.0, %v4983
  %v4985 = vrcp.pop %v4982
  %v4986 = vmul.f32 1.0, %v4985
  %v4987 = vtanh.pop %v4959
  %v4988 = vtanh.pop %v4960
  %v4989 = vxor.u32 %v4961, 2147483648
  %v4990 = vxor.u32 %v4962, 2147483648
  %v4991 = vmul.f32 %v4989, 1.442695
  %v4992 = vpow.pop %v4991
  %v4993 = vmul.f32 %v4990, 1.442695
  %v4994 = vpow.pop %v4993
  %v4995 = vadd.f32 %v4992, 1.0
  %v4996 = vadd.f32 %v4994, 1.0
  %v4997 = vrcp.pop %v4995
  %v4998 = vmul.f32 1.0, %v4997
  %v4999 = vrcp.pop %v4996
  %v5000 = vmul.f32 1.0, %v4999
  %v5001 = vmul.f32 %v4984, %v4397
  %v5002 = vmul.f32 %v4986, %v4398
  %v5003 = vmul.f32 %v4972, %v4987
  %v5004 = vmul.f32 %v4974, %v4988
  %v5005 = vadd.f32 %v5001, %v5003
  %v5006 = vadd.f32 %v5002, %v5004
  %v5007 = vtanh.pop %v5005
  %v5008 = vtanh.pop %v5006
  %v5009 = vmul.f32 %v4998, %v5007
  %v5010 = vmul.f32 %v5000, %v5008
  %v5011 = vpack.c.bf16 %v5009, %v5009
  %v5012 = vpack.c.bf16 %v5010, %v5010
  %5013 = vmatprep.subr.bf16.mxu0 %v2934
  %5014 = vmatpush1.bf16.msra.mxu0 %v2933
  %5015 = vmatprep.subr.bf16.mxu0 %v2942
  %5016 = vmatpush1.bf16.msra.mxu0 %v2941
  %5017 = vmatprep.subr.bf16.mxu0 %v2950
  %5018 = vmatpush1.bf16.msra.mxu0 %v2949
  %5019 = vmatprep.subr.bf16.mxu0 %v2958
  %5020 = vmatpush1.bf16.msra.mxu0 %v2957
  %5021 = vmatprep.subr.bf16.mxu0 %v2966
  %5022 = vmatpush1.bf16.msra.mxu0 %v2965
  %5023 = vmatprep.subr.bf16.mxu0 %v2974
  %5024 = vmatpush1.bf16.msra.mxu0 %v2973
  %5025 = vmatprep.subr.bf16.mxu0 %v2982
  %5026 = vmatpush1.bf16.msra.mxu0 %v2981
  %5027 = vmatprep.subr.bf16.mxu0 %v2990
  %5028 = vmatpush1.bf16.msra.mxu0 %v2989
  %5029 = vmatprep.subr.bf16.mxu0 %v2998
  %5030 = vmatpush1.bf16.msra.mxu0 %v2997
  %5031 = vmatprep.subr.bf16.mxu0 %v3006
  %5032 = vmatpush1.bf16.msra.mxu0 %v3005
  %5033 = vmatprep.subr.bf16.mxu0 %v3014
  %5034 = vmatpush1.bf16.msra.mxu0 %v3013
  %5035 = vmatprep.subr.bf16.mxu0 %v3022
  %5036 = vmatpush1.bf16.msra.mxu0 %v3021
  %5037 = vmatprep.subr.bf16.mxu0 %v3030
  %5038 = vmatpush1.bf16.msra.mxu0 %v3029
  %5039 = vmatprep.subr.bf16.mxu0 %v3038
  %5040 = vmatpush1.bf16.msra.mxu0 %v3037
  %5041 = vmatprep.subr.bf16.mxu0 %v3046
  %5042 = vmatpush1.bf16.msra.mxu0 %v3045
  %5043 = vmatprep.subr.bf16.mxu0 %v3054
  %5044 = vmatpush1.bf16.msra.mxu0 %v3053
  %5045 = vmatprep.mubr.bf16.mxu0 %v5012
  %5046 = vmatmul.mubr.bf16.gmra.mrb[0].mxu0 %v5011
  %v5047 = vpop.f32.mrb[0].mxu0
  %v5048 = vadd.f32 0.0, %v5047
  %v5049 = vpop.f32.mrb[0].mxu0
  %v5050 = vadd.f32 0.0, %v5049
  %v5051 = vpop.f32.mrb[0].mxu0
  %v5052 = vpop.f32.mrb[0].mxu0
  %5053 = vdwg.mxu0
  %5054 = vmatprep.subr.bf16.mxu0 %v2936
  %5055 = vmatpush1.bf16.msra.mxu0 %v2935
  %5056 = vmatprep.subr.bf16.mxu0 %v2944
  %5057 = vmatpush1.bf16.msra.mxu0 %v2943
  %5058 = vmatprep.subr.bf16.mxu0 %v2952
  %5059 = vmatpush1.bf16.msra.mxu0 %v2951
  %5060 = vmatprep.subr.bf16.mxu0 %v2960
  %5061 = vmatpush1.bf16.msra.mxu0 %v2959
  %5062 = vmatprep.subr.bf16.mxu0 %v2968
  %5063 = vmatpush1.bf16.msra.mxu0 %v2967
  %5064 = vmatprep.subr.bf16.mxu0 %v2976
  %5065 = vmatpush1.bf16.msra.mxu0 %v2975
  %5066 = vmatprep.subr.bf16.mxu0 %v2984
  %5067 = vmatpush1.bf16.msra.mxu0 %v2983
  %5068 = vmatprep.subr.bf16.mxu0 %v2992
  %5069 = vmatpush1.bf16.msra.mxu0 %v2991
  %5070 = vmatprep.subr.bf16.mxu0 %v3000
  %5071 = vmatpush1.bf16.msra.mxu0 %v2999
  %5072 = vmatprep.subr.bf16.mxu0 %v3008
  %5073 = vmatpush1.bf16.msra.mxu0 %v3007
  %5074 = vmatprep.subr.bf16.mxu0 %v3016
  %5075 = vmatpush1.bf16.msra.mxu0 %v3015
  %5076 = vmatprep.subr.bf16.mxu0 %v3024
  %5077 = vmatpush1.bf16.msra.mxu0 %v3023
  %5078 = vmatprep.subr.bf16.mxu0 %v3032
  %5079 = vmatpush1.bf16.msra.mxu0 %v3031
  %5080 = vmatprep.subr.bf16.mxu0 %v3040
  %5081 = vmatpush1.bf16.msra.mxu0 %v3039
  %5082 = vmatprep.subr.bf16.mxu0 %v3048
  %5083 = vmatpush1.bf16.msra.mxu0 %v3047
  %5084 = vmatprep.subr.bf16.mxu0 %v3056
  %5085 = vmatpush1.bf16.msra.mxu0 %v3055
  %5086 = vmatprep.mubr.bf16.mxu0 %v5012
  %5087 = vmatmul.mubr.bf16.gmra.mrb[0].mxu0 %v5011
  %v5088 = vpop.f32.mrb[0].mxu0
  %v5089 = vadd.f32 0.0, %v5088
  %v5090 = vpop.f32.mrb[0].mxu0
  %v5091 = vadd.f32 0.0, %v5090
  %v5092 = vpop.f32.mrb[0].mxu0
  %v5093 = vpop.f32.mrb[0].mxu0
  %5094 = vdwg.mxu0
  %5095 = vmatprep.subr.bf16.mxu0 %v2938
  %5096 = vmatpush1.bf16.msra.mxu0 %v2937
  %5097 = vmatprep.subr.bf16.mxu0 %v2946
  %5098 = vmatpush1.bf16.msra.mxu0 %v2945
  %5099 = vmatprep.subr.bf16.mxu0 %v2954
  %5100 = vmatpush1.bf16.msra.mxu0 %v2953
  %5101 = vmatprep.subr.bf16.mxu0 %v2962
  %5102 = vmatpush1.bf16.msra.mxu0 %v2961
  %5103 = vmatprep.subr.bf16.mxu0 %v2970
  %5104 = vmatpush1.bf16.msra.mxu0 %v2969
  %5105 = vmatprep.subr.bf16.mxu0 %v2978
  %5106 = vmatpush1.bf16.msra.mxu0 %v2977
  %5107 = vmatprep.subr.bf16.mxu0 %v2986
  %5108 = vmatpush1.bf16.msra.mxu0 %v2985
  %5109 = vmatprep.subr.bf16.mxu0 %v2994
  %5110 = vmatpush1.bf16.msra.mxu0 %v2993
  %5111 = vmatprep.subr.bf16.mxu0 %v3002
  %5112 = vmatpush1.bf16.msra.mxu0 %v3001
  %5113 = vmatprep.subr.bf16.mxu0 %v3010
  %5114 = vmatpush1.bf16.msra.mxu0 %v3009
  %5115 = vmatprep.subr.bf16.mxu0 %v3018
  %5116 = vmatpush1.bf16.msra.mxu0 %v3017
  %5117 = vmatprep.subr.bf16.mxu0 %v3026
  %5118 = vmatpush1.bf16.msra.mxu0 %v3025
  %5119 = vmatprep.subr.bf16.mxu0 %v3034
  %5120 = vmatpush1.bf16.msra.mxu0 %v3033
  %5121 = vmatprep.subr.bf16.mxu0 %v3042
  %5122 = vmatpush1.bf16.msra.mxu0 %v3041
  %5123 = vmatprep.subr.bf16.mxu0 %v3050
  %5124 = vmatpush1.bf16.msra.mxu0 %v3049
  %5125 = vmatprep.subr.bf16.mxu0 %v3058
  %5126 = vmatpush1.bf16.msra.mxu0 %v3057
  %5127 = vmatprep.mubr.bf16.mxu0 %v5012
  %5128 = vmatmul.mubr.bf16.gmra.mrb[0].mxu0 %v5011
  %v5129 = vpop.f32.mrb[0].mxu0
  %v5130 = vadd.f32 0.0, %v5129
  %v5131 = vpop.f32.mrb[0].mxu0
  %v5132 = vadd.f32 0.0, %v5131
  %v5133 = vpop.f32.mrb[0].mxu0
  %v5134 = vpop.f32.mrb[0].mxu0
  %5135 = vdwg.mxu0
  %5136 = vmatprep.subr.bf16.mxu0 %v2940
  %5137 = vmatpush1.bf16.msra.mxu0 %v2939
  %5138 = vmatprep.subr.bf16.mxu0 %v2948
  %5139 = vmatpush1.bf16.msra.mxu0 %v2947
  %5140 = vmatprep.subr.bf16.mxu0 %v2956
  %5141 = vmatpush1.bf16.msra.mxu0 %v2955
  %5142 = vmatprep.subr.bf16.mxu0 %v2964
  %5143 = vmatpush1.bf16.msra.mxu0 %v2963
  %5144 = vmatprep.subr.bf16.mxu0 %v2972
  %5145 = vmatpush1.bf16.msra.mxu0 %v2971
  %5146 = vmatprep.subr.bf16.mxu0 %v2980
  %5147 = vmatpush1.bf16.msra.mxu0 %v2979
  %5148 = vmatprep.subr.bf16.mxu0 %v2988
  %5149 = vmatpush1.bf16.msra.mxu0 %v2987
  %5150 = vmatprep.subr.bf16.mxu0 %v2996
  %5151 = vmatpush1.bf16.msra.mxu0 %v2995
  %5152 = vmatprep.subr.bf16.mxu0 %v3004
  %5153 = vmatpush1.bf16.msra.mxu0 %v3003
  %5154 = vmatprep.subr.bf16.mxu0 %v3012
  %5155 = vmatpush1.bf16.msra.mxu0 %v3011
  %5156 = vmatprep.subr.bf16.mxu0 %v3020
  %5157 = vmatpush1.bf16.msra.mxu0 %v3019
  %5158 = vmatprep.subr.bf16.mxu0 %v3028
  %5159 = vmatpush1.bf16.msra.mxu0 %v3027
  %5160 = vmatprep.subr.bf16.mxu0 %v3036
  %5161 = vmatpush1.bf16.msra.mxu0 %v3035
  %5162 = vmatprep.subr.bf16.mxu0 %v3044
  %5163 = vmatpush1.bf16.msra.mxu0 %v3043
  %5164 = vmatprep.subr.bf16.mxu0 %v3052
  %5165 = vmatpush1.bf16.msra.mxu0 %v3051
  %5166 = vmatprep.subr.bf16.mxu0 %v3060
  %5167 = vmatpush1.bf16.msra.mxu0 %v3059
  %5168 = vmatprep.mubr.bf16.mxu0 %v5012
  %5169 = vmatmul.mubr.bf16.gmra.mrb[0].mxu0 %v5011
  %v5170 = vpop.f32.mrb[0].mxu0
  %v5171 = vadd.f32 0.0, %v5170
  %v5172 = vpop.f32.mrb[0].mxu0
  %v5173 = vadd.f32 0.0, %v5172
  %v5174 = vpop.f32.mrb[0].mxu0
  %v5175 = vpop.f32.mrb[0].mxu0
  %5176 = vdwg.mxu0
  %v5177 = vadd.f32 %v4662, %v5048
  %v5178 = vadd.f32 %v4664, %v5050
  %v5179 = vadd.f32 %v4703, %v5089
  %v5180 = vadd.f32 %v4705, %v5091
  %v5181 = vadd.f32 %v4744, %v5130
  %v5182 = vadd.f32 %v4746, %v5132
  %v5183 = vadd.f32 %v4785, %v5171
  %v5184 = vadd.f32 %v4787, %v5173
  %v5185 = vxor.u32 %v5177, 2147483648
  %v5186 = vxor.u32 %v5178, 2147483648
  %v5187 = vmul.f32 %v5185, 1.442695
  %v5188 = vpow.pop %v5187
  %v5189 = vmul.f32 %v5186, 1.442695
  %v5190 = vpow.pop %v5189
  %v5191 = vadd.f32 %v5188, 1.0
  %v5192 = vadd.f32 %v5190, 1.0
  %v5193 = vrcp.pop %v5191
  %v5194 = vmul.f32 1.0, %v5193
  %v5195 = vrcp.pop %v5192
  %v5196 = vmul.f32 1.0, %v5195
  %v5197 = vxor.u32 %v5179, 2147483648
  %v5198 = vxor.u32 %v5180, 2147483648
  %v5199 = vmul.f32 %v5197, 1.442695
  %v5200 = vpow.pop %v5199
  %v5201 = vmul.f32 %v5198, 1.442695
  %v5202 = vpow.pop %v5201
  %v5203 = vadd.f32 %v5200, 1.0
  %v5204 = vadd.f32 %v5202, 1.0
  %v5205 = vrcp.pop %v5203
  %v5206 = vmul.f32 1.0, %v5205
  %v5207 = vrcp.pop %v5204
  %v5208 = vmul.f32 1.0, %v5207
  %v5209 = vtanh.pop %v5181
  %v5210 = vtanh.pop %v5182
  %v5211 = vxor.u32 %v5183, 2147483648
  %v5212 = vxor.u32 %v5184, 2147483648
  %v5213 = vmul.f32 %v5211, 1.442695
  %v5214 = vpow.pop %v5213
  %v5215 = vmul.f32 %v5212, 1.442695
  %v5216 = vpow.pop %v5215
  %v5217 = vadd.f32 %v5214, 1.0
  %v5218 = vadd.f32 %v5216, 1.0
  %v5219 = vrcp.pop %v5217
  %v5220 = vmul.f32 1.0, %v5219
  %v5221 = vrcp.pop %v5218
  %v5222 = vmul.f32 1.0, %v5221
  %v5223 = vmul.f32 %v5206, %v4619
  %v5224 = vmul.f32 %v5208, %v4620
  %v5225 = vmul.f32 %v5194, %v5209
  %v5226 = vmul.f32 %v5196, %v5210
  %v5227 = vadd.f32 %v5223, %v5225
  %v5228 = vadd.f32 %v5224, %v5226
  %v5229 = vtanh.pop %v5227
  %v5230 = vtanh.pop %v5228
  %v5231 = vmul.f32 %v5220, %v5229
  %v5232 = vmul.f32 %v5222, %v5230
  %v5233 = vpack.c.bf16 %v5231, %v5231
  %v5234 = vpack.c.bf16 %v5232, %v5232
  %5235 = vmatprep.subr.bf16.mxu0 %v1268
  %5236 = vmatpush1.bf16.msra.mxu0 %v1267
  %5237 = vmatprep.subr.bf16.mxu0 %v1276
  %5238 = vmatpush1.bf16.msra.mxu0 %v1275
  %5239 = vmatprep.subr.bf16.mxu0 %v1284
  %5240 = vmatpush1.bf16.msra.mxu0 %v1283
  %5241 = vmatprep.subr.bf16.mxu0 %v1292
  %5242 = vmatpush1.bf16.msra.mxu0 %v1291
  %5243 = vmatprep.subr.bf16.mxu0 %v1300
  %5244 = vmatpush1.bf16.msra.mxu0 %v1299
  %5245 = vmatprep.subr.bf16.mxu0 %v1308
  %5246 = vmatpush1.bf16.msra.mxu0 %v1307
  %5247 = vmatprep.subr.bf16.mxu0 %v1316
  %5248 = vmatpush1.bf16.msra.mxu0 %v1315
  %5249 = vmatprep.subr.bf16.mxu0 %v1324
  %5250 = vmatpush1.bf16.msra.mxu0 %v1323
  %5251 = vmatprep.subr.bf16.mxu0 %v1332
  %5252 = vmatpush1.bf16.msra.mxu0 %v1331
  %5253 = vmatprep.subr.bf16.mxu0 %v1340
  %5254 = vmatpush1.bf16.msra.mxu0 %v1339
  %5255 = vmatprep.subr.bf16.mxu0 %v1348
  %5256 = vmatpush1.bf16.msra.mxu0 %v1347
  %5257 = vmatprep.subr.bf16.mxu0 %v1356
  %5258 = vmatpush1.bf16.msra.mxu0 %v1355
  %5259 = vmatprep.subr.bf16.mxu0 %v1364
  %5260 = vmatpush1.bf16.msra.mxu0 %v1363
  %5261 = vmatprep.subr.bf16.mxu0 %v1372
  %5262 = vmatpush1.bf16.msra.mxu0 %v1371
  %5263 = vmatprep.subr.bf16.mxu0 %v1380
  %5264 = vmatpush1.bf16.msra.mxu0 %v1379
  %5265 = vmatprep.subr.bf16.mxu0 %v1388
  %5266 = vmatpush1.bf16.msra.mxu0 %v1387
  %5267 = vmatprep.mubr.bf16.mxu0 %v5234
  %5268 = vmatmul.mubr.bf16.gmra.mrb[0].mxu0 %v5233
  %v5269 = vpop.f32.mrb[0].mxu0
  %v5270 = vadd.f32 %v846, %v5269
  %v5271 = vpop.f32.mrb[0].mxu0
  %v5272 = vadd.f32 %v850, %v5271
  %v5273 = vpop.f32.mrb[0].mxu0
  %v5274 = vpop.f32.mrb[0].mxu0
  %5275 = vdwg.mxu0
  %5276 = vmatprep.subr.bf16.mxu0 %v1270
  %5277 = vmatpush1.bf16.msra.mxu0 %v1269
  %5278 = vmatprep.subr.bf16.mxu0 %v1278
  %5279 = vmatpush1.bf16.msra.mxu0 %v1277
  %5280 = vmatprep.subr.bf16.mxu0 %v1286
  %5281 = vmatpush1.bf16.msra.mxu0 %v1285
  %5282 = vmatprep.subr.bf16.mxu0 %v1294
  %5283 = vmatpush1.bf16.msra.mxu0 %v1293
  %5284 = vmatprep.subr.bf16.mxu0 %v1302
  %5285 = vmatpush1.bf16.msra.mxu0 %v1301
  %5286 = vmatprep.subr.bf16.mxu0 %v1310
  %5287 = vmatpush1.bf16.msra.mxu0 %v1309
  %5288 = vmatprep.subr.bf16.mxu0 %v1318
  %5289 = vmatpush1.bf16.msra.mxu0 %v1317
  %5290 = vmatprep.subr.bf16.mxu0 %v1326
  %5291 = vmatpush1.bf16.msra.mxu0 %v1325
  %5292 = vmatprep.subr.bf16.mxu0 %v1334
  %5293 = vmatpush1.bf16.msra.mxu0 %v1333
  %5294 = vmatprep.subr.bf16.mxu0 %v1342
  %5295 = vmatpush1.bf16.msra.mxu0 %v1341
  %5296 = vmatprep.subr.bf16.mxu0 %v1350
  %5297 = vmatpush1.bf16.msra.mxu0 %v1349
  %5298 = vmatprep.subr.bf16.mxu0 %v1358
  %5299 = vmatpush1.bf16.msra.mxu0 %v1357
  %5300 = vmatprep.subr.bf16.mxu0 %v1366
  %5301 = vmatpush1.bf16.msra.mxu0 %v1365
  %5302 = vmatprep.subr.bf16.mxu0 %v1374
  %5303 = vmatpush1.bf16.msra.mxu0 %v1373
  %5304 = vmatprep.subr.bf16.mxu0 %v1382
  %5305 = vmatpush1.bf16.msra.mxu0 %v1381
  %5306 = vmatprep.subr.bf16.mxu0 %v1390
  %5307 = vmatpush1.bf16.msra.mxu0 %v1389
  %5308 = vmatprep.mubr.bf16.mxu0 %v5234
  %5309 = vmatmul.mubr.bf16.gmra.mrb[0].mxu0 %v5233
  %v5310 = vpop.f32.mrb[0].mxu0
  %v5311 = vadd.f32 %v854, %v5310
  %v5312 = vpop.f32.mrb[0].mxu0
  %v5313 = vadd.f32 %v858, %v5312
  %v5314 = vpop.f32.mrb[0].mxu0
  %v5315 = vpop.f32.mrb[0].mxu0
  %5316 = vdwg.mxu0
  %5317 = vmatprep.subr.bf16.mxu0 %v1272
  %5318 = vmatpush1.bf16.msra.mxu0 %v1271
  %5319 = vmatprep.subr.bf16.mxu0 %v1280
  %5320 = vmatpush1.bf16.msra.mxu0 %v1279
  %5321 = vmatprep.subr.bf16.mxu0 %v1288
  %5322 = vmatpush1.bf16.msra.mxu0 %v1287
  %5323 = vmatprep.subr.bf16.mxu0 %v1296
  %5324 = vmatpush1.bf16.msra.mxu0 %v1295
  %5325 = vmatprep.subr.bf16.mxu0 %v1304
  %5326 = vmatpush1.bf16.msra.mxu0 %v1303
  %5327 = vmatprep.subr.bf16.mxu0 %v1312
  %5328 = vmatpush1.bf16.msra.mxu0 %v1311
  %5329 = vmatprep.subr.bf16.mxu0 %v1320
  %5330 = vmatpush1.bf16.msra.mxu0 %v1319
  %5331 = vmatprep.subr.bf16.mxu0 %v1328
  %5332 = vmatpush1.bf16.msra.mxu0 %v1327
  %5333 = vmatprep.subr.bf16.mxu0 %v1336
  %5334 = vmatpush1.bf16.msra.mxu0 %v1335
  %5335 = vmatprep.subr.bf16.mxu0 %v1344
  %5336 = vmatpush1.bf16.msra.mxu0 %v1343
  %5337 = vmatprep.subr.bf16.mxu0 %v1352
  %5338 = vmatpush1.bf16.msra.mxu0 %v1351
  %5339 = vmatprep.subr.bf16.mxu0 %v1360
  %5340 = vmatpush1.bf16.msra.mxu0 %v1359
  %5341 = vmatprep.subr.bf16.mxu0 %v1368
  %5342 = vmatpush1.bf16.msra.mxu0 %v1367
  %5343 = vmatprep.subr.bf16.mxu0 %v1376
  %5344 = vmatpush1.bf16.msra.mxu0 %v1375
  %5345 = vmatprep.subr.bf16.mxu0 %v1384
  %5346 = vmatpush1.bf16.msra.mxu0 %v1383
  %5347 = vmatprep.subr.bf16.mxu0 %v1392
  %5348 = vmatpush1.bf16.msra.mxu0 %v1391
  %5349 = vmatprep.mubr.bf16.mxu0 %v5234
  %5350 = vmatmul.mubr.bf16.gmra.mrb[0].mxu0 %v5233
  %v5351 = vpop.f32.mrb[0].mxu0
  %v5352 = vadd.f32 %v862, %v5351
  %v5353 = vpop.f32.mrb[0].mxu0
  %v5354 = vadd.f32 %v866, %v5353
  %v5355 = vpop.f32.mrb[0].mxu0
  %v5356 = vpop.f32.mrb[0].mxu0
  %5357 = vdwg.mxu0
  %5358 = vmatprep.subr.bf16.mxu0 %v1274
  %5359 = vmatpush1.bf16.msra.mxu0 %v1273
  %5360 = vmatprep.subr.bf16.mxu0 %v1282
  %5361 = vmatpush1.bf16.msra.mxu0 %v1281
  %5362 = vmatprep.subr.bf16.mxu0 %v1290
  %5363 = vmatpush1.bf16.msra.mxu0 %v1289
  %5364 = vmatprep.subr.bf16.mxu0 %v1298
  %5365 = vmatpush1.bf16.msra.mxu0 %v1297
  %5366 = vmatprep.subr.bf16.mxu0 %v1306
  %5367 = vmatpush1.bf16.msra.mxu0 %v1305
  %5368 = vmatprep.subr.bf16.mxu0 %v1314
  %5369 = vmatpush1.bf16.msra.mxu0 %v1313
  %5370 = vmatprep.subr.bf16.mxu0 %v1322
  %5371 = vmatpush1.bf16.msra.mxu0 %v1321
  %5372 = vmatprep.subr.bf16.mxu0 %v1330
  %5373 = vmatpush1.bf16.msra.mxu0 %v1329
  %5374 = vmatprep.subr.bf16.mxu0 %v1338
  %5375 = vmatpush1.bf16.msra.mxu0 %v1337
  %5376 = vmatprep.subr.bf16.mxu0 %v1346
  %5377 = vmatpush1.bf16.msra.mxu0 %v1345
  %5378 = vmatprep.subr.bf16.mxu0 %v1354
  %5379 = vmatpush1.bf16.msra.mxu0 %v1353
  %5380 = vmatprep.subr.bf16.mxu0 %v1362
  %5381 = vmatpush1.bf16.msra.mxu0 %v1361
  %5382 = vmatprep.subr.bf16.mxu0 %v1370
  %5383 = vmatpush1.bf16.msra.mxu0 %v1369
  %5384 = vmatprep.subr.bf16.mxu0 %v1378
  %5385 = vmatpush1.bf16.msra.mxu0 %v1377
  %5386 = vmatprep.subr.bf16.mxu0 %v1386
  %5387 = vmatpush1.bf16.msra.mxu0 %v1385
  %5388 = vmatprep.subr.bf16.mxu0 %v1394
  %5389 = vmatpush1.bf16.msra.mxu0 %v1393
  %5390 = vmatprep.mubr.bf16.mxu0 %v5234
  %5391 = vmatmul.mubr.bf16.gmra.mrb[0].mxu0 %v5233
  %v5392 = vpop.f32.mrb[0].mxu0
  %v5393 = vadd.f32 %v870, %v5392
  %v5394 = vpop.f32.mrb[0].mxu0
  %v5395 = vadd.f32 %v874, %v5394
  %v5396 = vpop.f32.mrb[0].mxu0
  %v5397 = vpop.f32.mrb[0].mxu0
  %5398 = vdwg.mxu0
  %5399 = vmatprep.subr.bf16.mxu0 %v2072
  %5400 = vmatpush1.bf16.msra.mxu0 %v2071
  %5401 = vmatprep.subr.bf16.mxu0 %v2080
  %5402 = vmatpush1.bf16.msra.mxu0 %v2079
  %5403 = vmatprep.subr.bf16.mxu0 %v2088
  %5404 = vmatpush1.bf16.msra.mxu0 %v2087
  %5405 = vmatprep.subr.bf16.mxu0 %v2096
  %5406 = vmatpush1.bf16.msra.mxu0 %v2095
  %5407 = vmatprep.subr.bf16.mxu0 %v2104
  %5408 = vmatpush1.bf16.msra.mxu0 %v2103
  %5409 = vmatprep.subr.bf16.mxu0 %v2112
  %5410 = vmatpush1.bf16.msra.mxu0 %v2111
  %5411 = vmatprep.subr.bf16.mxu0 %v2120
  %5412 = vmatpush1.bf16.msra.mxu0 %v2119
  %5413 = vmatprep.subr.bf16.mxu0 %v2128
  %5414 = vmatpush1.bf16.msra.mxu0 %v2127
  %5415 = vmatprep.subr.bf16.mxu0 %v2136
  %5416 = vmatpush1.bf16.msra.mxu0 %v2135
  %5417 = vmatprep.subr.bf16.mxu0 %v2144
  %5418 = vmatpush1.bf16.msra.mxu0 %v2143
  %5419 = vmatprep.subr.bf16.mxu0 %v2152
  %5420 = vmatpush1.bf16.msra.mxu0 %v2151
  %5421 = vmatprep.subr.bf16.mxu0 %v2160
  %5422 = vmatpush1.bf16.msra.mxu0 %v2159
  %5423 = vmatprep.subr.bf16.mxu0 %v2168
  %5424 = vmatpush1.bf16.msra.mxu0 %v2167
  %5425 = vmatprep.subr.bf16.mxu0 %v2176
  %5426 = vmatpush1.bf16.msra.mxu0 %v2175
  %5427 = vmatprep.subr.bf16.mxu0 %v2184
  %5428 = vmatpush1.bf16.msra.mxu0 %v2183
  %5429 = vmatprep.subr.bf16.mxu0 %v2192
  %5430 = vmatpush1.bf16.msra.mxu0 %v2191
  %5431 = vmatprep.mubr.bf16.mxu0 %v5012
  %5432 = vmatmul.mubr.bf16.gmra.mrb[0].mxu0 %v5011
  %v5433 = vpop.f32.mrb[0].mxu0
  %v5434 = vadd.f32 0.0, %v5433
  %v5435 = vpop.f32.mrb[0].mxu0
  %v5436 = vadd.f32 0.0, %v5435
  %v5437 = vpop.f32.mrb[0].mxu0
  %v5438 = vpop.f32.mrb[0].mxu0
  %5439 = vdwg.mxu0
  %5440 = vmatprep.subr.bf16.mxu0 %v2074
  %5441 = vmatpush1.bf16.msra.mxu0 %v2073
  %5442 = vmatprep.subr.bf16.mxu0 %v2082
  %5443 = vmatpush1.bf16.msra.mxu0 %v2081
  %5444 = vmatprep.subr.bf16.mxu0 %v2090
  %5445 = vmatpush1.bf16.msra.mxu0 %v2089
  %5446 = vmatprep.subr.bf16.mxu0 %v2098
  %5447 = vmatpush1.bf16.msra.mxu0 %v2097
  %5448 = vmatprep.subr.bf16.mxu0 %v2106
  %5449 = vmatpush1.bf16.msra.mxu0 %v2105
  %5450 = vmatprep.subr.bf16.mxu0 %v2114
  %5451 = vmatpush1.bf16.msra.mxu0 %v2113
  %5452 = vmatprep.subr.bf16.mxu0 %v2122
  %5453 = vmatpush1.bf16.msra.mxu0 %v2121
  %5454 = vmatprep.subr.bf16.mxu0 %v2130
  %5455 = vmatpush1.bf16.msra.mxu0 %v2129
  %5456 = vmatprep.subr.bf16.mxu0 %v2138
  %5457 = vmatpush1.bf16.msra.mxu0 %v2137
  %5458 = vmatprep.subr.bf16.mxu0 %v2146
  %5459 = vmatpush1.bf16.msra.mxu0 %v2145
  %5460 = vmatprep.subr.bf16.mxu0 %v2154
  %5461 = vmatpush1.bf16.msra.mxu0 %v2153
  %5462 = vmatprep.subr.bf16.mxu0 %v2162
  %5463 = vmatpush1.bf16.msra.mxu0 %v2161
  %5464 = vmatprep.subr.bf16.mxu0 %v2170
  %5465 = vmatpush1.bf16.msra.mxu0 %v2169
  %5466 = vmatprep.subr.bf16.mxu0 %v2178
  %5467 = vmatpush1.bf16.msra.mxu0 %v2177
  %5468 = vmatprep.subr.bf16.mxu0 %v2186
  %5469 = vmatpush1.bf16.msra.mxu0 %v2185
  %5470 = vmatprep.subr.bf16.mxu0 %v2194
  %5471 = vmatpush1.bf16.msra.mxu0 %v2193
  %5472 = vmatprep.mubr.bf16.mxu0 %v5012
  %5473 = vmatmul.mubr.bf16.gmra.mrb[0].mxu0 %v5011
  %v5474 = vpop.f32.mrb[0].mxu0
  %v5475 = vadd.f32 0.0, %v5474
  %v5476 = vpop.f32.mrb[0].mxu0
  %v5477 = vadd.f32 0.0, %v5476
  %v5478 = vpop.f32.mrb[0].mxu0
  %v5479 = vpop.f32.mrb[0].mxu0
  %5480 = vdwg.mxu0
  %5481 = vmatprep.subr.bf16.mxu0 %v2076
  %5482 = vmatpush1.bf16.msra.mxu0 %v2075
  %5483 = vmatprep.subr.bf16.mxu0 %v2084
  %5484 = vmatpush1.bf16.msra.mxu0 %v2083
  %5485 = vmatprep.subr.bf16.mxu0 %v2092
  %5486 = vmatpush1.bf16.msra.mxu0 %v2091
  %5487 = vmatprep.subr.bf16.mxu0 %v2100
  %5488 = vmatpush1.bf16.msra.mxu0 %v2099
  %5489 = vmatprep.subr.bf16.mxu0 %v2108
  %5490 = vmatpush1.bf16.msra.mxu0 %v2107
  %5491 = vmatprep.subr.bf16.mxu0 %v2116
  %5492 = vmatpush1.bf16.msra.mxu0 %v2115
  %5493 = vmatprep.subr.bf16.mxu0 %v2124
  %5494 = vmatpush1.bf16.msra.mxu0 %v2123
  %5495 = vmatprep.subr.bf16.mxu0 %v2132
  %5496 = vmatpush1.bf16.msra.mxu0 %v2131
  %5497 = vmatprep.subr.bf16.mxu0 %v2140
  %5498 = vmatpush1.bf16.msra.mxu0 %v2139
  %5499 = vmatprep.subr.bf16.mxu0 %v2148
  %5500 = vmatpush1.bf16.msra.mxu0 %v2147
  %5501 = vmatprep.subr.bf16.mxu0 %v2156
  %5502 = vmatpush1.bf16.msra.mxu0 %v2155
  %5503 = vmatprep.subr.bf16.mxu0 %v2164
  %5504 = vmatpush1.bf16.msra.mxu0 %v2163
  %5505 = vmatprep.subr.bf16.mxu0 %v2172
  %5506 = vmatpush1.bf16.msra.mxu0 %v2171
  %5507 = vmatprep.subr.bf16.mxu0 %v2180
  %5508 = vmatpush1.bf16.msra.mxu0 %v2179
  %5509 = vmatprep.subr.bf16.mxu0 %v2188
  %5510 = vmatpush1.bf16.msra.mxu0 %v2187
  %5511 = vmatprep.subr.bf16.mxu0 %v2196
  %5512 = vmatpush1.bf16.msra.mxu0 %v2195
  %5513 = vmatprep.mubr.bf16.mxu0 %v5012
  %5514 = vmatmul.mubr.bf16.gmra.mrb[0].mxu0 %v5011
  %v5515 = vpop.f32.mrb[0].mxu0
  %v5516 = vadd.f32 0.0, %v5515
  %v5517 = vpop.f32.mrb[0].mxu0
  %v5518 = vadd.f32 0.0, %v5517
  %v5519 = vpop.f32.mrb[0].mxu0
  %v5520 = vpop.f32.mrb[0].mxu0
  %5521 = vdwg.mxu0
  %5522 = vmatprep.subr.bf16.mxu0 %v2078
  %5523 = vmatpush1.bf16.msra.mxu0 %v2077
  %5524 = vmatprep.subr.bf16.mxu0 %v2086
  %5525 = vmatpush1.bf16.msra.mxu0 %v2085
  %5526 = vmatprep.subr.bf16.mxu0 %v2094
  %5527 = vmatpush1.bf16.msra.mxu0 %v2093
  %5528 = vmatprep.subr.bf16.mxu0 %v2102
  %5529 = vmatpush1.bf16.msra.mxu0 %v2101
  %5530 = vmatprep.subr.bf16.mxu0 %v2110
  %5531 = vmatpush1.bf16.msra.mxu0 %v2109
  %5532 = vmatprep.subr.bf16.mxu0 %v2118
  %5533 = vmatpush1.bf16.msra.mxu0 %v2117
  %5534 = vmatprep.subr.bf16.mxu0 %v2126
  %5535 = vmatpush1.bf16.msra.mxu0 %v2125
  %5536 = vmatprep.subr.bf16.mxu0 %v2134
  %5537 = vmatpush1.bf16.msra.mxu0 %v2133
  %5538 = vmatprep.subr.bf16.mxu0 %v2142
  %5539 = vmatpush1.bf16.msra.mxu0 %v2141
  %5540 = vmatprep.subr.bf16.mxu0 %v2150
  %5541 = vmatpush1.bf16.msra.mxu0 %v2149
  %5542 = vmatprep.subr.bf16.mxu0 %v2158
  %5543 = vmatpush1.bf16.msra.mxu0 %v2157
  %5544 = vmatprep.subr.bf16.mxu0 %v2166
  %5545 = vmatpush1.bf16.msra.mxu0 %v2165
  %5546 = vmatprep.subr.bf16.mxu0 %v2174
  %5547 = vmatpush1.bf16.msra.mxu0 %v2173
  %5548 = vmatprep.subr.bf16.mxu0 %v2182
  %5549 = vmatpush1.bf16.msra.mxu0 %v2181
  %5550 = vmatprep.subr.bf16.mxu0 %v2190
  %5551 = vmatpush1.bf16.msra.mxu0 %v2189
  %5552 = vmatprep.subr.bf16.mxu0 %v2198
  %5553 = vmatpush1.bf16.msra.mxu0 %v2197
  %5554 = vmatprep.mubr.bf16.mxu0 %v5012
  %5555 = vmatmul.mubr.bf16.gmra.mrb[0].mxu0 %v5011
  %v5556 = vpop.f32.mrb[0].mxu0
  %v5557 = vadd.f32 0.0, %v5556
  %v5558 = vpop.f32.mrb[0].mxu0
  %v5559 = vadd.f32 0.0, %v5558
  %v5560 = vpop.f32.mrb[0].mxu0
  %v5561 = vpop.f32.mrb[0].mxu0
  %5562 = vdwg.mxu0
  %v5563 = vadd.f32 %v605, %v5434
  %v5564 = vadd.f32 %v607, %v5436
  %v5565 = vadd.f32 %v678, %v5475
  %v5566 = vadd.f32 %v680, %v5477
  %v5567 = vadd.f32 %v751, %v5516
  %v5568 = vadd.f32 %v753, %v5518
  %v5569 = vadd.f32 %v824, %v5557
  %v5570 = vadd.f32 %v826, %v5559
  %v5571 = vxor.u32 %v5563, 2147483648
  %v5572 = vxor.u32 %v5564, 2147483648
  %v5573 = vmul.f32 %v5571, 1.442695
  %v5574 = vpow.pop %v5573
  %v5575 = vmul.f32 %v5572, 1.442695
  %v5576 = vpow.pop %v5575
  %v5577 = vadd.f32 %v5574, 1.0
  %v5578 = vadd.f32 %v5576, 1.0
  %v5579 = vrcp.pop %v5577
  %v5580 = vmul.f32 1.0, %v5579
  %v5581 = vrcp.pop %v5578
  %v5582 = vmul.f32 1.0, %v5581
  %v5583 = vxor.u32 %v5565, 2147483648
  %v5584 = vxor.u32 %v5566, 2147483648
  %v5585 = vmul.f32 %v5583, 1.442695
  %v5586 = vpow.pop %v5585
  %v5587 = vmul.f32 %v5584, 1.442695
  %v5588 = vpow.pop %v5587
  %v5589 = vadd.f32 %v5586, 1.0
  %v5590 = vadd.f32 %v5588, 1.0
  %v5591 = vrcp.pop %v5589
  %v5592 = vmul.f32 1.0, %v5591
  %v5593 = vrcp.pop %v5590
  %v5594 = vmul.f32 1.0, %v5593
  %v5595 = vtanh.pop %v5567
  %v5596 = vtanh.pop %v5568
  %v5597 = vxor.u32 %v5569, 2147483648
  %v5598 = vxor.u32 %v5570, 2147483648
  %v5599 = vmul.f32 %v5597, 1.442695
  %v5600 = vpow.pop %v5599
  %v5601 = vmul.f32 %v5598, 1.442695
  %v5602 = vpow.pop %v5601
  %v5603 = vadd.f32 %v5600, 1.0
  %v5604 = vadd.f32 %v5602, 1.0
  %v5605 = vrcp.pop %v5603
  %v5606 = vmul.f32 1.0, %v5605
  %v5607 = vrcp.pop %v5604
  %v5608 = vmul.f32 1.0, %v5607
  %v5609 = vmul.f32 %v5592, %v5005
  %v5610 = vmul.f32 %v5594, %v5006
  %v5611 = vmul.f32 %v5580, %v5595
  %v5612 = vmul.f32 %v5582, %v5596
  %v5613 = vadd.f32 %v5609, %v5611
  %v5614 = vadd.f32 %v5610, %v5612
  %v5615 = vtanh.pop %v5613
  %v5616 = vtanh.pop %v5614
  %v5617 = vmul.f32 %v5606, %v5615
  %v5618 = vmul.f32 %v5608, %v5616
  %v5619 = vpack.c.bf16 %v5617, %v5617
  %v5620 = vpack.c.bf16 %v5618, %v5618
  %5621 = vmatprep.subr.bf16.mxu0 %v2934
  %5622 = vmatpush1.bf16.msra.mxu0 %v2933
  %5623 = vmatprep.subr.bf16.mxu0 %v2942
  %5624 = vmatpush1.bf16.msra.mxu0 %v2941
  %5625 = vmatprep.subr.bf16.mxu0 %v2950
  %5626 = vmatpush1.bf16.msra.mxu0 %v2949
  %5627 = vmatprep.subr.bf16.mxu0 %v2958
  %5628 = vmatpush1.bf16.msra.mxu0 %v2957
  %5629 = vmatprep.subr.bf16.mxu0 %v2966
  %5630 = vmatpush1.bf16.msra.mxu0 %v2965
  %5631 = vmatprep.subr.bf16.mxu0 %v2974
  %5632 = vmatpush1.bf16.msra.mxu0 %v2973
  %5633 = vmatprep.subr.bf16.mxu0 %v2982
  %5634 = vmatpush1.bf16.msra.mxu0 %v2981
  %5635 = vmatprep.subr.bf16.mxu0 %v2990
  %5636 = vmatpush1.bf16.msra.mxu0 %v2989
  %5637 = vmatprep.subr.bf16.mxu0 %v2998
  %5638 = vmatpush1.bf16.msra.mxu0 %v2997
  %5639 = vmatprep.subr.bf16.mxu0 %v3006
  %5640 = vmatpush1.bf16.msra.mxu0 %v3005
  %5641 = vmatprep.subr.bf16.mxu0 %v3014
  %5642 = vmatpush1.bf16.msra.mxu0 %v3013
  %5643 = vmatprep.subr.bf16.mxu0 %v3022
  %5644 = vmatpush1.bf16.msra.mxu0 %v3021
  %5645 = vmatprep.subr.bf16.mxu0 %v3030
  %5646 = vmatpush1.bf16.msra.mxu0 %v3029
  %5647 = vmatprep.subr.bf16.mxu0 %v3038
  %5648 = vmatpush1.bf16.msra.mxu0 %v3037
  %5649 = vmatprep.subr.bf16.mxu0 %v3046
  %5650 = vmatpush1.bf16.msra.mxu0 %v3045
  %5651 = vmatprep.subr.bf16.mxu0 %v3054
  %5652 = vmatpush1.bf16.msra.mxu0 %v3053
  %5653 = vmatprep.mubr.bf16.mxu0 %v5620
  %5654 = vmatmul.mubr.bf16.gmra.mrb[0].mxu0 %v5619
  %v5655 = vpop.f32.mrb[0].mxu0
  %v5656 = vadd.f32 0.0, %v5655
  %v5657 = vpop.f32.mrb[0].mxu0
  %v5658 = vadd.f32 0.0, %v5657
  %v5659 = vpop.f32.mrb[0].mxu0
  %v5660 = vpop.f32.mrb[0].mxu0
  %5661 = vdwg.mxu0
  %5662 = vmatprep.subr.bf16.mxu0 %v2936
  %5663 = vmatpush1.bf16.msra.mxu0 %v2935
  %5664 = vmatprep.subr.bf16.mxu0 %v2944
  %5665 = vmatpush1.bf16.msra.mxu0 %v2943
  %5666 = vmatprep.subr.bf16.mxu0 %v2952
  %5667 = vmatpush1.bf16.msra.mxu0 %v2951
  %5668 = vmatprep.subr.bf16.mxu0 %v2960
  %5669 = vmatpush1.bf16.msra.mxu0 %v2959
  %5670 = vmatprep.subr.bf16.mxu0 %v2968
  %5671 = vmatpush1.bf16.msra.mxu0 %v2967
  %5672 = vmatprep.subr.bf16.mxu0 %v2976
  %5673 = vmatpush1.bf16.msra.mxu0 %v2975
  %5674 = vmatprep.subr.bf16.mxu0 %v2984
  %5675 = vmatpush1.bf16.msra.mxu0 %v2983
  %5676 = vmatprep.subr.bf16.mxu0 %v2992
  %5677 = vmatpush1.bf16.msra.mxu0 %v2991
  %5678 = vmatprep.subr.bf16.mxu0 %v3000
  %5679 = vmatpush1.bf16.msra.mxu0 %v2999
  %5680 = vmatprep.subr.bf16.mxu0 %v3008
  %5681 = vmatpush1.bf16.msra.mxu0 %v3007
  %5682 = vmatprep.subr.bf16.mxu0 %v3016
  %5683 = vmatpush1.bf16.msra.mxu0 %v3015
  %5684 = vmatprep.subr.bf16.mxu0 %v3024
  %5685 = vmatpush1.bf16.msra.mxu0 %v3023
  %5686 = vmatprep.subr.bf16.mxu0 %v3032
  %5687 = vmatpush1.bf16.msra.mxu0 %v3031
  %5688 = vmatprep.subr.bf16.mxu0 %v3040
  %5689 = vmatpush1.bf16.msra.mxu0 %v3039
  %5690 = vmatprep.subr.bf16.mxu0 %v3048
  %5691 = vmatpush1.bf16.msra.mxu0 %v3047
  %5692 = vmatprep.subr.bf16.mxu0 %v3056
  %5693 = vmatpush1.bf16.msra.mxu0 %v3055
  %5694 = vmatprep.mubr.bf16.mxu0 %v5620
  %5695 = vmatmul.mubr.bf16.gmra.mrb[0].mxu0 %v5619
  %v5696 = vpop.f32.mrb[0].mxu0
  %v5697 = vadd.f32 0.0, %v5696
  %v5698 = vpop.f32.mrb[0].mxu0
  %v5699 = vadd.f32 0.0, %v5698
  %v5700 = vpop.f32.mrb[0].mxu0
  %v5701 = vpop.f32.mrb[0].mxu0
  %5702 = vdwg.mxu0
  %5703 = vmatprep.subr.bf16.mxu0 %v2938
  %5704 = vmatpush1.bf16.msra.mxu0 %v2937
  %5705 = vmatprep.subr.bf16.mxu0 %v2946
  %5706 = vmatpush1.bf16.msra.mxu0 %v2945
  %5707 = vmatprep.subr.bf16.mxu0 %v2954
  %5708 = vmatpush1.bf16.msra.mxu0 %v2953
  %5709 = vmatprep.subr.bf16.mxu0 %v2962
  %5710 = vmatpush1.bf16.msra.mxu0 %v2961
  %5711 = vmatprep.subr.bf16.mxu0 %v2970
  %5712 = vmatpush1.bf16.msra.mxu0 %v2969
  %5713 = vmatprep.subr.bf16.mxu0 %v2978
  %5714 = vmatpush1.bf16.msra.mxu0 %v2977
  %5715 = vmatprep.subr.bf16.mxu0 %v2986
  %5716 = vmatpush1.bf16.msra.mxu0 %v2985
  %5717 = vmatprep.subr.bf16.mxu0 %v2994
  %5718 = vmatpush1.bf16.msra.mxu0 %v2993
  %5719 = vmatprep.subr.bf16.mxu0 %v3002
  %5720 = vmatpush1.bf16.msra.mxu0 %v3001
  %5721 = vmatprep.subr.bf16.mxu0 %v3010
  %5722 = vmatpush1.bf16.msra.mxu0 %v3009
  %5723 = vmatprep.subr.bf16.mxu0 %v3018
  %5724 = vmatpush1.bf16.msra.mxu0 %v3017
  %5725 = vmatprep.subr.bf16.mxu0 %v3026
  %5726 = vmatpush1.bf16.msra.mxu0 %v3025
  %5727 = vmatprep.subr.bf16.mxu0 %v3034
  %5728 = vmatpush1.bf16.msra.mxu0 %v3033
  %5729 = vmatprep.subr.bf16.mxu0 %v3042
  %5730 = vmatpush1.bf16.msra.mxu0 %v3041
  %5731 = vmatprep.subr.bf16.mxu0 %v3050
  %5732 = vmatpush1.bf16.msra.mxu0 %v3049
  %5733 = vmatprep.subr.bf16.mxu0 %v3058
  %5734 = vmatpush1.bf16.msra.mxu0 %v3057
  %5735 = vmatprep.mubr.bf16.mxu0 %v5620
  %5736 = vmatmul.mubr.bf16.gmra.mrb[0].mxu0 %v5619
  %v5737 = vpop.f32.mrb[0].mxu0
  %v5738 = vadd.f32 0.0, %v5737
  %v5739 = vpop.f32.mrb[0].mxu0
  %v5740 = vadd.f32 0.0, %v5739
  %v5741 = vpop.f32.mrb[0].mxu0
  %v5742 = vpop.f32.mrb[0].mxu0
  %5743 = vdwg.mxu0
  %5744 = vmatprep.subr.bf16.mxu0 %v2940
  %5745 = vmatpush1.bf16.msra.mxu0 %v2939
  %5746 = vmatprep.subr.bf16.mxu0 %v2948
  %5747 = vmatpush1.bf16.msra.mxu0 %v2947
  %5748 = vmatprep.subr.bf16.mxu0 %v2956
  %5749 = vmatpush1.bf16.msra.mxu0 %v2955
  %5750 = vmatprep.subr.bf16.mxu0 %v2964
  %5751 = vmatpush1.bf16.msra.mxu0 %v2963
  %5752 = vmatprep.subr.bf16.mxu0 %v2972
  %5753 = vmatpush1.bf16.msra.mxu0 %v2971
  %5754 = vmatprep.subr.bf16.mxu0 %v2980
  %5755 = vmatpush1.bf16.msra.mxu0 %v2979
  %5756 = vmatprep.subr.bf16.mxu0 %v2988
  %5757 = vmatpush1.bf16.msra.mxu0 %v2987
  %5758 = vmatprep.subr.bf16.mxu0 %v2996
  %5759 = vmatpush1.bf16.msra.mxu0 %v2995
  %5760 = vmatprep.subr.bf16.mxu0 %v3004
  %5761 = vmatpush1.bf16.msra.mxu0 %v3003
  %5762 = vmatprep.subr.bf16.mxu0 %v3012
  %5763 = vmatpush1.bf16.msra.mxu0 %v3011
  %5764 = vmatprep.subr.bf16.mxu0 %v3020
  %5765 = vmatpush1.bf16.msra.mxu0 %v3019
  %5766 = vmatprep.subr.bf16.mxu0 %v3028
  %5767 = vmatpush1.bf16.msra.mxu0 %v3027
  %5768 = vmatprep.subr.bf16.mxu0 %v3036
  %5769 = vmatpush1.bf16.msra.mxu0 %v3035
  %5770 = vmatprep.subr.bf16.mxu0 %v3044
  %5771 = vmatpush1.bf16.msra.mxu0 %v3043
  %5772 = vmatprep.subr.bf16.mxu0 %v3052
  %5773 = vmatpush1.bf16.msra.mxu0 %v3051
  %5774 = vmatprep.subr.bf16.mxu0 %v3060
  %5775 = vmatpush1.bf16.msra.mxu0 %v3059
  %5776 = vmatprep.mubr.bf16.mxu0 %v5620
  %5777 = vmatmul.mubr.bf16.gmra.mrb[0].mxu0 %v5619
  %v5778 = vpop.f32.mrb[0].mxu0
  %v5779 = vadd.f32 0.0, %v5778
  %v5780 = vpop.f32.mrb[0].mxu0
  %v5781 = vadd.f32 0.0, %v5780
  %v5782 = vpop.f32.mrb[0].mxu0
  %v5783 = vpop.f32.mrb[0].mxu0
  %5784 = vdwg.mxu0
  %v5785 = vadd.f32 %v5270, %v5656
  %v5786 = vadd.f32 %v5272, %v5658
  %v5787 = vadd.f32 %v5311, %v5697
  %v5788 = vadd.f32 %v5313, %v5699
  %v5789 = vadd.f32 %v5352, %v5738
  %v5790 = vadd.f32 %v5354, %v5740
  %v5791 = vadd.f32 %v5393, %v5779
  %v5792 = vadd.f32 %v5395, %v5781
  %v5793 = vxor.u32 %v5785, 2147483648
  %v5794 = vxor.u32 %v5786, 2147483648
  %v5795 = vmul.f32 %v5793, 1.442695
  %v5796 = vpow.pop %v5795
  %v5797 = vmul.f32 %v5794, 1.442695
  %v5798 = vpow.pop %v5797
  %v5799 = vadd.f32 %v5796, 1.0
  %v5800 = vadd.f32 %v5798, 1.0
  %v5801 = vrcp.pop %v5799
  %v5802 = vmul.f32 1.0, %v5801
  %v5803 = vrcp.pop %v5800
  %v5804 = vmul.f32 1.0, %v5803
  %v5805 = vxor.u32 %v5787, 2147483648
  %v5806 = vxor.u32 %v5788, 2147483648
  %v5807 = vmul.f32 %v5805, 1.442695
  %v5808 = vpow.pop %v5807
  %v5809 = vmul.f32 %v5806, 1.442695
  %v5810 = vpow.pop %v5809
  %v5811 = vadd.f32 %v5808, 1.0
  %v5812 = vadd.f32 %v5810, 1.0
  %v5813 = vrcp.pop %v5811
  %v5814 = vmul.f32 1.0, %v5813
  %v5815 = vrcp.pop %v5812
  %v5816 = vmul.f32 1.0, %v5815
  %v5817 = vtanh.pop %v5789
  %v5818 = vtanh.pop %v5790
  %v5819 = vxor.u32 %v5791, 2147483648
  %v5820 = vxor.u32 %v5792, 2147483648
  %v5821 = vmul.f32 %v5819, 1.442695
  %v5822 = vpow.pop %v5821
  %v5823 = vmul.f32 %v5820, 1.442695
  %v5824 = vpow.pop %v5823
  %v5825 = vadd.f32 %v5822, 1.0
  %v5826 = vadd.f32 %v5824, 1.0
  %v5827 = vrcp.pop %v5825
  %v5828 = vmul.f32 1.0, %v5827
  %v5829 = vrcp.pop %v5826
  %v5830 = vmul.f32 1.0, %v5829
  %v5831 = vmul.f32 %v5814, %v5227
  %v5832 = vmul.f32 %v5816, %v5228
  %v5833 = vmul.f32 %v5802, %v5817
  %v5834 = vmul.f32 %v5804, %v5818
  %v5835 = vadd.f32 %v5831, %v5833
  %v5836 = vadd.f32 %v5832, %v5834
  %v5837 = vtanh.pop %v5835
  %v5838 = vtanh.pop %v5836
  %v5839 = vmul.f32 %v5828, %v5837
  %v5840 = vmul.f32 %v5830, %v5838
  %v5841 = vpack.c.bf16 %v5839, %v5839
  %v5842 = vpack.c.bf16 %v5840, %v5840
  %5843 = vmatprep.subr.bf16.mxu0 %v1268
  %5844 = vmatpush1.bf16.msra.mxu0 %v1267
  %5845 = vmatprep.subr.bf16.mxu0 %v1276
  %5846 = vmatpush1.bf16.msra.mxu0 %v1275
  %5847 = vmatprep.subr.bf16.mxu0 %v1284
  %5848 = vmatpush1.bf16.msra.mxu0 %v1283
  %5849 = vmatprep.subr.bf16.mxu0 %v1292
  %5850 = vmatpush1.bf16.msra.mxu0 %v1291
  %5851 = vmatprep.subr.bf16.mxu0 %v1300
  %5852 = vmatpush1.bf16.msra.mxu0 %v1299
  %5853 = vmatprep.subr.bf16.mxu0 %v1308
  %5854 = vmatpush1.bf16.msra.mxu0 %v1307
  %5855 = vmatprep.subr.bf16.mxu0 %v1316
  %5856 = vmatpush1.bf16.msra.mxu0 %v1315
  %5857 = vmatprep.subr.bf16.mxu0 %v1324
  %5858 = vmatpush1.bf16.msra.mxu0 %v1323
  %5859 = vmatprep.subr.bf16.mxu0 %v1332
  %5860 = vmatpush1.bf16.msra.mxu0 %v1331
  %5861 = vmatprep.subr.bf16.mxu0 %v1340
  %5862 = vmatpush1.bf16.msra.mxu0 %v1339
  %5863 = vmatprep.subr.bf16.mxu0 %v1348
  %5864 = vmatpush1.bf16.msra.mxu0 %v1347
  %5865 = vmatprep.subr.bf16.mxu0 %v1356
  %5866 = vmatpush1.bf16.msra.mxu0 %v1355
  %5867 = vmatprep.subr.bf16.mxu0 %v1364
  %5868 = vmatpush1.bf16.msra.mxu0 %v1363
  %5869 = vmatprep.subr.bf16.mxu0 %v1372
  %5870 = vmatpush1.bf16.msra.mxu0 %v1371
  %5871 = vmatprep.subr.bf16.mxu0 %v1380
  %5872 = vmatpush1.bf16.msra.mxu0 %v1379
  %5873 = vmatprep.subr.bf16.mxu0 %v1388
  %5874 = vmatpush1.bf16.msra.mxu0 %v1387
  %5875 = vmatprep.mubr.bf16.mxu0 %v5842
  %5876 = vmatmul.mubr.bf16.gmra.mrb[0].mxu0 %v5841
  %v5877 = vpop.f32.mrb[0].mxu0
  %v5878 = vadd.f32 %v846, %v5877
  %v5879 = vpop.f32.mrb[0].mxu0
  %v5880 = vadd.f32 %v850, %v5879
  %v5881 = vpop.f32.mrb[0].mxu0
  %v5882 = vpop.f32.mrb[0].mxu0
  %5883 = vdwg.mxu0
  %5884 = vmatprep.subr.bf16.mxu0 %v1270
  %5885 = vmatpush1.bf16.msra.mxu0 %v1269
  %5886 = vmatprep.subr.bf16.mxu0 %v1278
  %5887 = vmatpush1.bf16.msra.mxu0 %v1277
  %5888 = vmatprep.subr.bf16.mxu0 %v1286
  %5889 = vmatpush1.bf16.msra.mxu0 %v1285
  %5890 = vmatprep.subr.bf16.mxu0 %v1294
  %5891 = vmatpush1.bf16.msra.mxu0 %v1293
  %5892 = vmatprep.subr.bf16.mxu0 %v1302
  %5893 = vmatpush1.bf16.msra.mxu0 %v1301
  %5894 = vmatprep.subr.bf16.mxu0 %v1310
  %5895 = vmatpush1.bf16.msra.mxu0 %v1309
  %5896 = vmatprep.subr.bf16.mxu0 %v1318
  %5897 = vmatpush1.bf16.msra.mxu0 %v1317
  %5898 = vmatprep.subr.bf16.mxu0 %v1326
  %5899 = vmatpush1.bf16.msra.mxu0 %v1325
  %5900 = vmatprep.subr.bf16.mxu0 %v1334
  %5901 = vmatpush1.bf16.msra.mxu0 %v1333
  %5902 = vmatprep.subr.bf16.mxu0 %v1342
  %5903 = vmatpush1.bf16.msra.mxu0 %v1341
  %5904 = vmatprep.subr.bf16.mxu0 %v1350
  %5905 = vmatpush1.bf16.msra.mxu0 %v1349
  %5906 = vmatprep.subr.bf16.mxu0 %v1358
  %5907 = vmatpush1.bf16.msra.mxu0 %v1357
  %5908 = vmatprep.subr.bf16.mxu0 %v1366
  %5909 = vmatpush1.bf16.msra.mxu0 %v1365
  %5910 = vmatprep.subr.bf16.mxu0 %v1374
  %5911 = vmatpush1.bf16.msra.mxu0 %v1373
  %5912 = vmatprep.subr.bf16.mxu0 %v1382
  %5913 = vmatpush1.bf16.msra.mxu0 %v1381
  %5914 = vmatprep.subr.bf16.mxu0 %v1390
  %5915 = vmatpush1.bf16.msra.mxu0 %v1389
  %5916 = vmatprep.mubr.bf16.mxu0 %v5842
  %5917 = vmatmul.mubr.bf16.gmra.mrb[0].mxu0 %v5841
  %v5918 = vpop.f32.mrb[0].mxu0
  %v5919 = vadd.f32 %v854, %v5918
  %v5920 = vpop.f32.mrb[0].mxu0
  %v5921 = vadd.f32 %v858, %v5920
  %v5922 = vpop.f32.mrb[0].mxu0
  %v5923 = vpop.f32.mrb[0].mxu0
  %5924 = vdwg.mxu0
  %5925 = vmatprep.subr.bf16.mxu0 %v1272
  %5926 = vmatpush1.bf16.msra.mxu0 %v1271
  %5927 = vmatprep.subr.bf16.mxu0 %v1280
  %5928 = vmatpush1.bf16.msra.mxu0 %v1279
  %5929 = vmatprep.subr.bf16.mxu0 %v1288
  %5930 = vmatpush1.bf16.msra.mxu0 %v1287
  %5931 = vmatprep.subr.bf16.mxu0 %v1296
  %5932 = vmatpush1.bf16.msra.mxu0 %v1295
  %5933 = vmatprep.subr.bf16.mxu0 %v1304
  %5934 = vmatpush1.bf16.msra.mxu0 %v1303
  %5935 = vmatprep.subr.bf16.mxu0 %v1312
  %5936 = vmatpush1.bf16.msra.mxu0 %v1311
  %5937 = vmatprep.subr.bf16.mxu0 %v1320
  %5938 = vmatpush1.bf16.msra.mxu0 %v1319
  %5939 = vmatprep.subr.bf16.mxu0 %v1328
  %5940 = vmatpush1.bf16.msra.mxu0 %v1327
  %5941 = vmatprep.subr.bf16.mxu0 %v1336
  %5942 = vmatpush1.bf16.msra.mxu0 %v1335
  %5943 = vmatprep.subr.bf16.mxu0 %v1344
  %5944 = vmatpush1.bf16.msra.mxu0 %v1343
  %5945 = vmatprep.subr.bf16.mxu0 %v1352
  %5946 = vmatpush1.bf16.msra.mxu0 %v1351
  %5947 = vmatprep.subr.bf16.mxu0 %v1360
  %5948 = vmatpush1.bf16.msra.mxu0 %v1359
  %5949 = vmatprep.subr.bf16.mxu0 %v1368
  %5950 = vmatpush1.bf16.msra.mxu0 %v1367
  %5951 = vmatprep.subr.bf16.mxu0 %v1376
  %5952 = vmatpush1.bf16.msra.mxu0 %v1375
  %5953 = vmatprep.subr.bf16.mxu0 %v1384
  %5954 = vmatpush1.bf16.msra.mxu0 %v1383
  %5955 = vmatprep.subr.bf16.mxu0 %v1392
  %5956 = vmatpush1.bf16.msra.mxu0 %v1391
  %5957 = vmatprep.mubr.bf16.mxu0 %v5842
  %5958 = vmatmul.mubr.bf16.gmra.mrb[0].mxu0 %v5841
  %v5959 = vpop.f32.mrb[0].mxu0
  %v5960 = vadd.f32 %v862, %v5959
  %v5961 = vpop.f32.mrb[0].mxu0
  %v5962 = vadd.f32 %v866, %v5961
  %v5963 = vpop.f32.mrb[0].mxu0
  %v5964 = vpop.f32.mrb[0].mxu0
  %5965 = vdwg.mxu0
  %5966 = vmatprep.subr.bf16.mxu0 %v1274
  %5967 = vmatpush1.bf16.msra.mxu0 %v1273
  %5968 = vmatprep.subr.bf16.mxu0 %v1282
  %5969 = vmatpush1.bf16.msra.mxu0 %v1281
  %5970 = vmatprep.subr.bf16.mxu0 %v1290
  %5971 = vmatpush1.bf16.msra.mxu0 %v1289
  %5972 = vmatprep.subr.bf16.mxu0 %v1298
  %5973 = vmatpush1.bf16.msra.mxu0 %v1297
  %5974 = vmatprep.subr.bf16.mxu0 %v1306
  %5975 = vmatpush1.bf16.msra.mxu0 %v1305
  %5976 = vmatprep.subr.bf16.mxu0 %v1314
  %5977 = vmatpush1.bf16.msra.mxu0 %v1313
  %5978 = vmatprep.subr.bf16.mxu0 %v1322
  %5979 = vmatpush1.bf16.msra.mxu0 %v1321
  %5980 = vmatprep.subr.bf16.mxu0 %v1330
  %5981 = vmatpush1.bf16.msra.mxu0 %v1329
  %5982 = vmatprep.subr.bf16.mxu0 %v1338
  %5983 = vmatpush1.bf16.msra.mxu0 %v1337
  %5984 = vmatprep.subr.bf16.mxu0 %v1346
  %5985 = vmatpush1.bf16.msra.mxu0 %v1345
  %5986 = vmatprep.subr.bf16.mxu0 %v1354
  %5987 = vmatpush1.bf16.msra.mxu0 %v1353
  %5988 = vmatprep.subr.bf16.mxu0 %v1362
  %5989 = vmatpush1.bf16.msra.mxu0 %v1361
  %5990 = vmatprep.subr.bf16.mxu0 %v1370
  %5991 = vmatpush1.bf16.msra.mxu0 %v1369
  %5992 = vmatprep.subr.bf16.mxu0 %v1378
  %5993 = vmatpush1.bf16.msra.mxu0 %v1377
  %5994 = vmatprep.subr.bf16.mxu0 %v1386
  %5995 = vmatpush1.bf16.msra.mxu0 %v1385
  %5996 = vmatprep.subr.bf16.mxu0 %v1394
  %5997 = vmatpush1.bf16.msra.mxu0 %v1393
  %5998 = vmatprep.mubr.bf16.mxu0 %v5842
  %5999 = vmatmul.mubr.bf16.gmra.mrb[0].mxu0 %v5841
  %v6000 = vpop.f32.mrb[0].mxu0
  %v6001 = vadd.f32 %v870, %v6000
  %v6002 = vpop.f32.mrb[0].mxu0
  %v6003 = vadd.f32 %v874, %v6002
  %v6004 = vpop.f32.mrb[0].mxu0
  %v6005 = vpop.f32.mrb[0].mxu0
  %6006 = vdwg.mxu0
  %6007 = vmatprep.subr.bf16.mxu0 %v2072
  %6008 = vmatpush1.bf16.msra.mxu0 %v2071
  %6009 = vmatprep.subr.bf16.mxu0 %v2080
  %6010 = vmatpush1.bf16.msra.mxu0 %v2079
  %6011 = vmatprep.subr.bf16.mxu0 %v2088
  %6012 = vmatpush1.bf16.msra.mxu0 %v2087
  %6013 = vmatprep.subr.bf16.mxu0 %v2096
  %6014 = vmatpush1.bf16.msra.mxu0 %v2095
  %6015 = vmatprep.subr.bf16.mxu0 %v2104
  %6016 = vmatpush1.bf16.msra.mxu0 %v2103
  %6017 = vmatprep.subr.bf16.mxu0 %v2112
  %6018 = vmatpush1.bf16.msra.mxu0 %v2111
  %6019 = vmatprep.subr.bf16.mxu0 %v2120
  %6020 = vmatpush1.bf16.msra.mxu0 %v2119
  %6021 = vmatprep.subr.bf16.mxu0 %v2128
  %6022 = vmatpush1.bf16.msra.mxu0 %v2127
  %6023 = vmatprep.subr.bf16.mxu0 %v2136
  %6024 = vmatpush1.bf16.msra.mxu0 %v2135
  %6025 = vmatprep.subr.bf16.mxu0 %v2144
  %6026 = vmatpush1.bf16.msra.mxu0 %v2143
  %6027 = vmatprep.subr.bf16.mxu0 %v2152
  %6028 = vmatpush1.bf16.msra.mxu0 %v2151
  %6029 = vmatprep.subr.bf16.mxu0 %v2160
  %6030 = vmatpush1.bf16.msra.mxu0 %v2159
  %6031 = vmatprep.subr.bf16.mxu0 %v2168
  %6032 = vmatpush1.bf16.msra.mxu0 %v2167
  %6033 = vmatprep.subr.bf16.mxu0 %v2176
  %6034 = vmatpush1.bf16.msra.mxu0 %v2175
  %6035 = vmatprep.subr.bf16.mxu0 %v2184
  %6036 = vmatpush1.bf16.msra.mxu0 %v2183
  %6037 = vmatprep.subr.bf16.mxu0 %v2192
  %6038 = vmatpush1.bf16.msra.mxu0 %v2191
  %6039 = vmatprep.mubr.bf16.mxu0 %v5620
  %6040 = vmatmul.mubr.bf16.gmra.mrb[0].mxu0 %v5619
  %v6041 = vpop.f32.mrb[0].mxu0
  %v6042 = vadd.f32 0.0, %v6041
  %v6043 = vpop.f32.mrb[0].mxu0
  %v6044 = vadd.f32 0.0, %v6043
  %v6045 = vpop.f32.mrb[0].mxu0
  %v6046 = vpop.f32.mrb[0].mxu0
  %6047 = vdwg.mxu0
  %6048 = vmatprep.subr.bf16.mxu0 %v2074
  %6049 = vmatpush1.bf16.msra.mxu0 %v2073
  %6050 = vmatprep.subr.bf16.mxu0 %v2082
  %6051 = vmatpush1.bf16.msra.mxu0 %v2081
  %6052 = vmatprep.subr.bf16.mxu0 %v2090
  %6053 = vmatpush1.bf16.msra.mxu0 %v2089
  %6054 = vmatprep.subr.bf16.mxu0 %v2098
  %6055 = vmatpush1.bf16.msra.mxu0 %v2097
  %6056 = vmatprep.subr.bf16.mxu0 %v2106
  %6057 = vmatpush1.bf16.msra.mxu0 %v2105
  %6058 = vmatprep.subr.bf16.mxu0 %v2114
  %6059 = vmatpush1.bf16.msra.mxu0 %v2113
  %6060 = vmatprep.subr.bf16.mxu0 %v2122
  %6061 = vmatpush1.bf16.msra.mxu0 %v2121
  %6062 = vmatprep.subr.bf16.mxu0 %v2130
  %6063 = vmatpush1.bf16.msra.mxu0 %v2129
  %6064 = vmatprep.subr.bf16.mxu0 %v2138
  %6065 = vmatpush1.bf16.msra.mxu0 %v2137
  %6066 = vmatprep.subr.bf16.mxu0 %v2146
  %6067 = vmatpush1.bf16.msra.mxu0 %v2145
  %6068 = vmatprep.subr.bf16.mxu0 %v2154
  %6069 = vmatpush1.bf16.msra.mxu0 %v2153
  %6070 = vmatprep.subr.bf16.mxu0 %v2162
  %6071 = vmatpush1.bf16.msra.mxu0 %v2161
  %6072 = vmatprep.subr.bf16.mxu0 %v2170
  %6073 = vmatpush1.bf16.msra.mxu0 %v2169
  %6074 = vmatprep.subr.bf16.mxu0 %v2178
  %6075 = vmatpush1.bf16.msra.mxu0 %v2177
  %6076 = vmatprep.subr.bf16.mxu0 %v2186
  %6077 = vmatpush1.bf16.msra.mxu0 %v2185
  %6078 = vmatprep.subr.bf16.mxu0 %v2194
  %6079 = vmatpush1.bf16.msra.mxu0 %v2193
  %6080 = vmatprep.mubr.bf16.mxu0 %v5620
  %6081 = vmatmul.mubr.bf16.gmra.mrb[0].mxu0 %v5619
  %v6082 = vpop.f32.mrb[0].mxu0
  %v6083 = vadd.f32 0.0, %v6082
  %v6084 = vpop.f32.mrb[0].mxu0
  %v6085 = vadd.f32 0.0, %v6084
  %v6086 = vpop.f32.mrb[0].mxu0
  %v6087 = vpop.f32.mrb[0].mxu0
  %6088 = vdwg.mxu0
  %6089 = vmatprep.subr.bf16.mxu0 %v2076
  %6090 = vmatpush1.bf16.msra.mxu0 %v2075
  %6091 = vmatprep.subr.bf16.mxu0 %v2084
  %6092 = vmatpush1.bf16.msra.mxu0 %v2083
  %6093 = vmatprep.subr.bf16.mxu0 %v2092
  %6094 = vmatpush1.bf16.msra.mxu0 %v2091
  %6095 = vmatprep.subr.bf16.mxu0 %v2100
  %6096 = vmatpush1.bf16.msra.mxu0 %v2099
  %6097 = vmatprep.subr.bf16.mxu0 %v2108
  %6098 = vmatpush1.bf16.msra.mxu0 %v2107
  %6099 = vmatprep.subr.bf16.mxu0 %v2116
  %6100 = vmatpush1.bf16.msra.mxu0 %v2115
  %6101 = vmatprep.subr.bf16.mxu0 %v2124
  %6102 = vmatpush1.bf16.msra.mxu0 %v2123
  %6103 = vmatprep.subr.bf16.mxu0 %v2132
  %6104 = vmatpush1.bf16.msra.mxu0 %v2131
  %6105 = vmatprep.subr.bf16.mxu0 %v2140
  %6106 = vmatpush1.bf16.msra.mxu0 %v2139
  %6107 = vmatprep.subr.bf16.mxu0 %v2148
  %6108 = vmatpush1.bf16.msra.mxu0 %v2147
  %6109 = vmatprep.subr.bf16.mxu0 %v2156
  %6110 = vmatpush1.bf16.msra.mxu0 %v2155
  %6111 = vmatprep.subr.bf16.mxu0 %v2164
  %6112 = vmatpush1.bf16.msra.mxu0 %v2163
  %6113 = vmatprep.subr.bf16.mxu0 %v2172
  %6114 = vmatpush1.bf16.msra.mxu0 %v2171
  %6115 = vmatprep.subr.bf16.mxu0 %v2180
  %6116 = vmatpush1.bf16.msra.mxu0 %v2179
  %6117 = vmatprep.subr.bf16.mxu0 %v2188
  %6118 = vmatpush1.bf16.msra.mxu0 %v2187
  %6119 = vmatprep.subr.bf16.mxu0 %v2196
  %6120 = vmatpush1.bf16.msra.mxu0 %v2195
  %6121 = vmatprep.mubr.bf16.mxu0 %v5620
  %6122 = vmatmul.mubr.bf16.gmra.mrb[0].mxu0 %v5619
  %v6123 = vpop.f32.mrb[0].mxu0
  %v6124 = vadd.f32 0.0, %v6123
  %v6125 = vpop.f32.mrb[0].mxu0
  %v6126 = vadd.f32 0.0, %v6125
  %v6127 = vpop.f32.mrb[0].mxu0
  %v6128 = vpop.f32.mrb[0].mxu0
  %6129 = vdwg.mxu0
  %6130 = vmatprep.subr.bf16.mxu0 %v2078
  %6131 = vmatpush1.bf16.msra.mxu0 %v2077
  %6132 = vmatprep.subr.bf16.mxu0 %v2086
  %6133 = vmatpush1.bf16.msra.mxu0 %v2085
  %6134 = vmatprep.subr.bf16.mxu0 %v2094
  %6135 = vmatpush1.bf16.msra.mxu0 %v2093
  %6136 = vmatprep.subr.bf16.mxu0 %v2102
  %6137 = vmatpush1.bf16.msra.mxu0 %v2101
  %6138 = vmatprep.subr.bf16.mxu0 %v2110
  %6139 = vmatpush1.bf16.msra.mxu0 %v2109
  %6140 = vmatprep.subr.bf16.mxu0 %v2118
  %6141 = vmatpush1.bf16.msra.mxu0 %v2117
  %6142 = vmatprep.subr.bf16.mxu0 %v2126
  %6143 = vmatpush1.bf16.msra.mxu0 %v2125
  %6144 = vmatprep.subr.bf16.mxu0 %v2134
  %6145 = vmatpush1.bf16.msra.mxu0 %v2133
  %6146 = vmatprep.subr.bf16.mxu0 %v2142
  %6147 = vmatpush1.bf16.msra.mxu0 %v2141
  %6148 = vmatprep.subr.bf16.mxu0 %v2150
  %6149 = vmatpush1.bf16.msra.mxu0 %v2149
  %6150 = vmatprep.subr.bf16.mxu0 %v2158
  %6151 = vmatpush1.bf16.msra.mxu0 %v2157
  %6152 = vmatprep.subr.bf16.mxu0 %v2166
  %6153 = vmatpush1.bf16.msra.mxu0 %v2165
  %6154 = vmatprep.subr.bf16.mxu0 %v2174
  %6155 = vmatpush1.bf16.msra.mxu0 %v2173
  %6156 = vmatprep.subr.bf16.mxu0 %v2182
  %6157 = vmatpush1.bf16.msra.mxu0 %v2181
  %6158 = vmatprep.subr.bf16.mxu0 %v2190
  %6159 = vmatpush1.bf16.msra.mxu0 %v2189
  %6160 = vmatprep.subr.bf16.mxu0 %v2198
  %6161 = vmatpush1.bf16.msra.mxu0 %v2197
  %6162 = vmatprep.mubr.bf16.mxu0 %v5620
  %6163 = vmatmul.mubr.bf16.gmra.mrb[0].mxu0 %v5619
  %v6164 = vpop.f32.mrb[0].mxu0
  %v6165 = vadd.f32 0.0, %v6164
  %v6166 = vpop.f32.mrb[0].mxu0
  %v6167 = vadd.f32 0.0, %v6166
  %v6168 = vpop.f32.mrb[0].mxu0
  %v6169 = vpop.f32.mrb[0].mxu0
  %6170 = vdwg.mxu0
  %v6171 = vadd.f32 %v609, %v6042
  %v6172 = vadd.f32 %v611, %v6044
  %v6173 = vadd.f32 %v682, %v6083
  %v6174 = vadd.f32 %v684, %v6085
  %v6175 = vadd.f32 %v755, %v6124
  %v6176 = vadd.f32 %v757, %v6126
  %v6177 = vadd.f32 %v828, %v6165
  %v6178 = vadd.f32 %v830, %v6167
  %v6179 = vxor.u32 %v6171, 2147483648
  %v6180 = vxor.u32 %v6172, 2147483648
  %v6181 = vmul.f32 %v6179, 1.442695
  %v6182 = vpow.pop %v6181
  %v6183 = vmul.f32 %v6180, 1.442695
  %v6184 = vpow.pop %v6183
  %v6185 = vadd.f32 %v6182, 1.0
  %v6186 = vadd.f32 %v6184, 1.0
  %v6187 = vrcp.pop %v6185
  %v6188 = vmul.f32 1.0, %v6187
  %v6189 = vrcp.pop %v6186
  %v6190 = vmul.f32 1.0, %v6189
  %v6191 = vxor.u32 %v6173, 2147483648
  %v6192 = vxor.u32 %v6174, 2147483648
  %v6193 = vmul.f32 %v6191, 1.442695
  %v6194 = vpow.pop %v6193
  %v6195 = vmul.f32 %v6192, 1.442695
  %v6196 = vpow.pop %v6195
  %v6197 = vadd.f32 %v6194, 1.0
  %v6198 = vadd.f32 %v6196, 1.0
  %v6199 = vrcp.pop %v6197
  %v6200 = vmul.f32 1.0, %v6199
  %v6201 = vrcp.pop %v6198
  %v6202 = vmul.f32 1.0, %v6201
  %v6203 = vtanh.pop %v6175
  %v6204 = vtanh.pop %v6176
  %v6205 = vxor.u32 %v6177, 2147483648
  %v6206 = vxor.u32 %v6178, 2147483648
  %v6207 = vmul.f32 %v6205, 1.442695
  %v6208 = vpow.pop %v6207
  %v6209 = vmul.f32 %v6206, 1.442695
  %v6210 = vpow.pop %v6209
  %v6211 = vadd.f32 %v6208, 1.0
  %v6212 = vadd.f32 %v6210, 1.0
  %v6213 = vrcp.pop %v6211
  %v6214 = vmul.f32 1.0, %v6213
  %v6215 = vrcp.pop %v6212
  %v6216 = vmul.f32 1.0, %v6215
  %v6217 = vmul.f32 %v6200, %v5613
  %v6218 = vmul.f32 %v6202, %v5614
  %v6219 = vmul.f32 %v6188, %v6203
  %v6220 = vmul.f32 %v6190, %v6204
  %v6221 = vadd.f32 %v6217, %v6219
  %v6222 = vadd.f32 %v6218, %v6220
  %v6223 = vtanh.pop %v6221
  %v6224 = vtanh.pop %v6222
  %v6225 = vmul.f32 %v6214, %v6223
  %v6226 = vmul.f32 %v6216, %v6224
  %v6227 = vpack.c.bf16 %v6225, %v6225
  %v6228 = vpack.c.bf16 %v6226, %v6226
  %6229 = vmatprep.subr.bf16.mxu0 %v2934
  %6230 = vmatpush1.bf16.msra.mxu0 %v2933
  %6231 = vmatprep.subr.bf16.mxu0 %v2942
  %6232 = vmatpush1.bf16.msra.mxu0 %v2941
  %6233 = vmatprep.subr.bf16.mxu0 %v2950
  %6234 = vmatpush1.bf16.msra.mxu0 %v2949
  %6235 = vmatprep.subr.bf16.mxu0 %v2958
  %6236 = vmatpush1.bf16.msra.mxu0 %v2957
  %6237 = vmatprep.subr.bf16.mxu0 %v2966
  %6238 = vmatpush1.bf16.msra.mxu0 %v2965
  %6239 = vmatprep.subr.bf16.mxu0 %v2974
  %6240 = vmatpush1.bf16.msra.mxu0 %v2973
  %6241 = vmatprep.subr.bf16.mxu0 %v2982
  %6242 = vmatpush1.bf16.msra.mxu0 %v2981
  %6243 = vmatprep.subr.bf16.mxu0 %v2990
  %6244 = vmatpush1.bf16.msra.mxu0 %v2989
  %6245 = vmatprep.subr.bf16.mxu0 %v2998
  %6246 = vmatpush1.bf16.msra.mxu0 %v2997
  %6247 = vmatprep.subr.bf16.mxu0 %v3006
  %6248 = vmatpush1.bf16.msra.mxu0 %v3005
  %6249 = vmatprep.subr.bf16.mxu0 %v3014
  %6250 = vmatpush1.bf16.msra.mxu0 %v3013
  %6251 = vmatprep.subr.bf16.mxu0 %v3022
  %6252 = vmatpush1.bf16.msra.mxu0 %v3021
  %6253 = vmatprep.subr.bf16.mxu0 %v3030
  %6254 = vmatpush1.bf16.msra.mxu0 %v3029
  %6255 = vmatprep.subr.bf16.mxu0 %v3038
  %6256 = vmatpush1.bf16.msra.mxu0 %v3037
  %6257 = vmatprep.subr.bf16.mxu0 %v3046
  %6258 = vmatpush1.bf16.msra.mxu0 %v3045
  %6259 = vmatprep.subr.bf16.mxu0 %v3054
  %6260 = vmatpush1.bf16.msra.mxu0 %v3053
  %6261 = vmatprep.mubr.bf16.mxu0 %v6228
  %6262 = vmatmul.mubr.bf16.gmra.mrb[0].mxu0 %v6227
  %v6263 = vpop.f32.mrb[0].mxu0
  %v6264 = vadd.f32 0.0, %v6263
  %v6265 = vpop.f32.mrb[0].mxu0
  %v6266 = vadd.f32 0.0, %v6265
  %v6267 = vpop.f32.mrb[0].mxu0
  %v6268 = vpop.f32.mrb[0].mxu0
  %6269 = vdwg.mxu0
  %6270 = vmatprep.subr.bf16.mxu0 %v2936
  %6271 = vmatpush1.bf16.msra.mxu0 %v2935
  %6272 = vmatprep.subr.bf16.mxu0 %v2944
  %6273 = vmatpush1.bf16.msra.mxu0 %v2943
  %6274 = vmatprep.subr.bf16.mxu0 %v2952
  %6275 = vmatpush1.bf16.msra.mxu0 %v2951
  %6276 = vmatprep.subr.bf16.mxu0 %v2960
  %6277 = vmatpush1.bf16.msra.mxu0 %v2959
  %6278 = vmatprep.subr.bf16.mxu0 %v2968
  %6279 = vmatpush1.bf16.msra.mxu0 %v2967
  %6280 = vmatprep.subr.bf16.mxu0 %v2976
  %6281 = vmatpush1.bf16.msra.mxu0 %v2975
  %6282 = vmatprep.subr.bf16.mxu0 %v2984
  %6283 = vmatpush1.bf16.msra.mxu0 %v2983
  %6284 = vmatprep.subr.bf16.mxu0 %v2992
  %6285 = vmatpush1.bf16.msra.mxu0 %v2991
  %6286 = vmatprep.subr.bf16.mxu0 %v3000
  %6287 = vmatpush1.bf16.msra.mxu0 %v2999
  %6288 = vmatprep.subr.bf16.mxu0 %v3008
  %6289 = vmatpush1.bf16.msra.mxu0 %v3007
  %6290 = vmatprep.subr.bf16.mxu0 %v3016
  %6291 = vmatpush1.bf16.msra.mxu0 %v3015
  %6292 = vmatprep.subr.bf16.mxu0 %v3024
  %6293 = vmatpush1.bf16.msra.mxu0 %v3023
  %6294 = vmatprep.subr.bf16.mxu0 %v3032
  %6295 = vmatpush1.bf16.msra.mxu0 %v3031
  %6296 = vmatprep.subr.bf16.mxu0 %v3040
  %6297 = vmatpush1.bf16.msra.mxu0 %v3039
  %6298 = vmatprep.subr.bf16.mxu0 %v3048
  %6299 = vmatpush1.bf16.msra.mxu0 %v3047
  %6300 = vmatprep.subr.bf16.mxu0 %v3056
  %6301 = vmatpush1.bf16.msra.mxu0 %v3055
  %6302 = vmatprep.mubr.bf16.mxu0 %v6228
  %6303 = vmatmul.mubr.bf16.gmra.mrb[0].mxu0 %v6227
  %v6304 = vpop.f32.mrb[0].mxu0
  %v6305 = vadd.f32 0.0, %v6304
  %v6306 = vpop.f32.mrb[0].mxu0
  %v6307 = vadd.f32 0.0, %v6306
  %v6308 = vpop.f32.mrb[0].mxu0
  %v6309 = vpop.f32.mrb[0].mxu0
  %6310 = vdwg.mxu0
  %6311 = vmatprep.subr.bf16.mxu0 %v2938
  %6312 = vmatpush1.bf16.msra.mxu0 %v2937
  %6313 = vmatprep.subr.bf16.mxu0 %v2946
  %6314 = vmatpush1.bf16.msra.mxu0 %v2945
  %6315 = vmatprep.subr.bf16.mxu0 %v2954
  %6316 = vmatpush1.bf16.msra.mxu0 %v2953
  %6317 = vmatprep.subr.bf16.mxu0 %v2962
  %6318 = vmatpush1.bf16.msra.mxu0 %v2961
  %6319 = vmatprep.subr.bf16.mxu0 %v2970
  %6320 = vmatpush1.bf16.msra.mxu0 %v2969
  %6321 = vmatprep.subr.bf16.mxu0 %v2978
  %6322 = vmatpush1.bf16.msra.mxu0 %v2977
  %6323 = vmatprep.subr.bf16.mxu0 %v2986
  %6324 = vmatpush1.bf16.msra.mxu0 %v2985
  %6325 = vmatprep.subr.bf16.mxu0 %v2994
  %6326 = vmatpush1.bf16.msra.mxu0 %v2993
  %6327 = vmatprep.subr.bf16.mxu0 %v3002
  %6328 = vmatpush1.bf16.msra.mxu0 %v3001
  %6329 = vmatprep.subr.bf16.mxu0 %v3010
  %6330 = vmatpush1.bf16.msra.mxu0 %v3009
  %6331 = vmatprep.subr.bf16.mxu0 %v3018
  %6332 = vmatpush1.bf16.msra.mxu0 %v3017
  %6333 = vmatprep.subr.bf16.mxu0 %v3026
  %6334 = vmatpush1.bf16.msra.mxu0 %v3025
  %6335 = vmatprep.subr.bf16.mxu0 %v3034
  %6336 = vmatpush1.bf16.msra.mxu0 %v3033
  %6337 = vmatprep.subr.bf16.mxu0 %v3042
  %6338 = vmatpush1.bf16.msra.mxu0 %v3041
  %6339 = vmatprep.subr.bf16.mxu0 %v3050
  %6340 = vmatpush1.bf16.msra.mxu0 %v3049
  %6341 = vmatprep.subr.bf16.mxu0 %v3058
  %6342 = vmatpush1.bf16.msra.mxu0 %v3057
  %6343 = vmatprep.mubr.bf16.mxu0 %v6228
  %6344 = vmatmul.mubr.bf16.gmra.mrb[0].mxu0 %v6227
  %v6345 = vpop.f32.mrb[0].mxu0
  %v6346 = vadd.f32 0.0, %v6345
  %v6347 = vpop.f32.mrb[0].mxu0
  %v6348 = vadd.f32 0.0, %v6347
  %v6349 = vpop.f32.mrb[0].mxu0
  %v6350 = vpop.f32.mrb[0].mxu0
  %6351 = vdwg.mxu0
  %6352 = vmatprep.subr.bf16.mxu0 %v2940
  %6353 = vmatpush1.bf16.msra.mxu0 %v2939
  %6354 = vmatprep.subr.bf16.mxu0 %v2948
  %6355 = vmatpush1.bf16.msra.mxu0 %v2947
  %6356 = vmatprep.subr.bf16.mxu0 %v2956
  %6357 = vmatpush1.bf16.msra.mxu0 %v2955
  %6358 = vmatprep.subr.bf16.mxu0 %v2964
  %6359 = vmatpush1.bf16.msra.mxu0 %v2963
  %6360 = vmatprep.subr.bf16.mxu0 %v2972
  %6361 = vmatpush1.bf16.msra.mxu0 %v2971
  %6362 = vmatprep.subr.bf16.mxu0 %v2980
  %6363 = vmatpush1.bf16.msra.mxu0 %v2979
  %6364 = vmatprep.subr.bf16.mxu0 %v2988
  %6365 = vmatpush1.bf16.msra.mxu0 %v2987
  %6366 = vmatprep.subr.bf16.mxu0 %v2996
  %6367 = vmatpush1.bf16.msra.mxu0 %v2995
  %6368 = vmatprep.subr.bf16.mxu0 %v3004
  %6369 = vmatpush1.bf16.msra.mxu0 %v3003
  %6370 = vmatprep.subr.bf16.mxu0 %v3012
  %6371 = vmatpush1.bf16.msra.mxu0 %v3011
  %6372 = vmatprep.subr.bf16.mxu0 %v3020
  %6373 = vmatpush1.bf16.msra.mxu0 %v3019
  %6374 = vmatprep.subr.bf16.mxu0 %v3028
  %6375 = vmatpush1.bf16.msra.mxu0 %v3027
  %6376 = vmatprep.subr.bf16.mxu0 %v3036
  %6377 = vmatpush1.bf16.msra.mxu0 %v3035
  %6378 = vmatprep.subr.bf16.mxu0 %v3044
  %6379 = vmatpush1.bf16.msra.mxu0 %v3043
  %6380 = vmatprep.subr.bf16.mxu0 %v3052
  %6381 = vmatpush1.bf16.msra.mxu0 %v3051
  %6382 = vmatprep.subr.bf16.mxu0 %v3060
  %6383 = vmatpush1.bf16.msra.mxu0 %v3059
  %6384 = vmatprep.mubr.bf16.mxu0 %v6228
  %6385 = vmatmul.mubr.bf16.gmra.mrb[0].mxu0 %v6227
  %v6386 = vpop.f32.mrb[0].mxu0
  %v6387 = vadd.f32 0.0, %v6386
  %v6388 = vpop.f32.mrb[0].mxu0
  %v6389 = vadd.f32 0.0, %v6388
  %v6390 = vpop.f32.mrb[0].mxu0
  %v6391 = vpop.f32.mrb[0].mxu0
  %6392 = vdwg.mxu0
  %v6393 = vadd.f32 %v5878, %v6264
  %v6394 = vadd.f32 %v5880, %v6266
  %v6395 = vadd.f32 %v5919, %v6305
  %v6396 = vadd.f32 %v5921, %v6307
  %v6397 = vadd.f32 %v5960, %v6346
  %v6398 = vadd.f32 %v5962, %v6348
  %v6399 = vadd.f32 %v6001, %v6387
  %v6400 = vadd.f32 %v6003, %v6389
  %v6401 = vxor.u32 %v6393, 2147483648
  %v6402 = vxor.u32 %v6394, 2147483648
  %v6403 = vmul.f32 %v6401, 1.442695
  %v6404 = vpow.pop %v6403
  %v6405 = vmul.f32 %v6402, 1.442695
  %v6406 = vpow.pop %v6405
  %v6407 = vadd.f32 %v6404, 1.0
  %v6408 = vadd.f32 %v6406, 1.0
  %v6409 = vrcp.pop %v6407
  %v6410 = vmul.f32 1.0, %v6409
  %v6411 = vrcp.pop %v6408
  %v6412 = vmul.f32 1.0, %v6411
  %v6413 = vxor.u32 %v6395, 2147483648
  %v6414 = vxor.u32 %v6396, 2147483648
  %v6415 = vmul.f32 %v6413, 1.442695
  %v6416 = vpow.pop %v6415
  %v6417 = vmul.f32 %v6414, 1.442695
  %v6418 = vpow.pop %v6417
  %v6419 = vadd.f32 %v6416, 1.0
  %v6420 = vadd.f32 %v6418, 1.0
  %v6421 = vrcp.pop %v6419
  %v6422 = vmul.f32 1.0, %v6421
  %v6423 = vrcp.pop %v6420
  %v6424 = vmul.f32 1.0, %v6423
  %v6425 = vtanh.pop %v6397
  %v6426 = vtanh.pop %v6398
  %v6427 = vxor.u32 %v6399, 2147483648
  %v6428 = vxor.u32 %v6400, 2147483648
  %v6429 = vmul.f32 %v6427, 1.442695
  %v6430 = vpow.pop %v6429
  %v6431 = vmul.f32 %v6428, 1.442695
  %v6432 = vpow.pop %v6431
  %v6433 = vadd.f32 %v6430, 1.0
  %v6434 = vadd.f32 %v6432, 1.0
  %v6435 = vrcp.pop %v6433
  %v6436 = vmul.f32 1.0, %v6435
  %v6437 = vrcp.pop %v6434
  %v6438 = vmul.f32 1.0, %v6437
  %v6439 = vmul.f32 %v6422, %v5835
  %v6440 = vmul.f32 %v6424, %v5836
  %v6441 = vmul.f32 %v6410, %v6425
  %v6442 = vmul.f32 %v6412, %v6426
  %v6443 = vadd.f32 %v6439, %v6441
  %v6444 = vadd.f32 %v6440, %v6442
  %v6445 = vtanh.pop %v6443
  %v6446 = vtanh.pop %v6444
  %v6447 = vmul.f32 %v6436, %v6445
  %v6448 = vmul.f32 %v6438, %v6446
  %v6449 = vpack.c.bf16 %v6447, %v6447
  %v6450 = vpack.c.bf16 %v6448, %v6448
  %6451 = vmatprep.subr.bf16.mxu0 %v1268
  %6452 = vmatpush1.bf16.msra.mxu0 %v1267
  %6453 = vmatprep.subr.bf16.mxu0 %v1276
  %6454 = vmatpush1.bf16.msra.mxu0 %v1275
  %6455 = vmatprep.subr.bf16.mxu0 %v1284
  %6456 = vmatpush1.bf16.msra.mxu0 %v1283
  %6457 = vmatprep.subr.bf16.mxu0 %v1292
  %6458 = vmatpush1.bf16.msra.mxu0 %v1291
  %6459 = vmatprep.subr.bf16.mxu0 %v1300
  %6460 = vmatpush1.bf16.msra.mxu0 %v1299
  %6461 = vmatprep.subr.bf16.mxu0 %v1308
  %6462 = vmatpush1.bf16.msra.mxu0 %v1307
  %6463 = vmatprep.subr.bf16.mxu0 %v1316
  %6464 = vmatpush1.bf16.msra.mxu0 %v1315
  %6465 = vmatprep.subr.bf16.mxu0 %v1324
  %6466 = vmatpush1.bf16.msra.mxu0 %v1323
  %6467 = vmatprep.subr.bf16.mxu0 %v1332
  %6468 = vmatpush1.bf16.msra.mxu0 %v1331
  %6469 = vmatprep.subr.bf16.mxu0 %v1340
  %6470 = vmatpush1.bf16.msra.mxu0 %v1339
  %6471 = vmatprep.subr.bf16.mxu0 %v1348
  %6472 = vmatpush1.bf16.msra.mxu0 %v1347
  %6473 = vmatprep.subr.bf16.mxu0 %v1356
  %6474 = vmatpush1.bf16.msra.mxu0 %v1355
  %6475 = vmatprep.subr.bf16.mxu0 %v1364
  %6476 = vmatpush1.bf16.msra.mxu0 %v1363
  %6477 = vmatprep.subr.bf16.mxu0 %v1372
  %6478 = vmatpush1.bf16.msra.mxu0 %v1371
  %6479 = vmatprep.subr.bf16.mxu0 %v1380
  %6480 = vmatpush1.bf16.msra.mxu0 %v1379
  %6481 = vmatprep.subr.bf16.mxu0 %v1388
  %6482 = vmatpush1.bf16.msra.mxu0 %v1387
  %6483 = vmatprep.mubr.bf16.mxu0 %v6450
  %6484 = vmatmul.mubr.bf16.gmra.mrb[0].mxu0 %v6449
  %v6485 = vpop.f32.mrb[0].mxu0
  %v6486 = vadd.f32 %v846, %v6485
  %v6487 = vpop.f32.mrb[0].mxu0
  %v6488 = vadd.f32 %v850, %v6487
  %v6489 = vpop.f32.mrb[0].mxu0
  %v6490 = vpop.f32.mrb[0].mxu0
  %6491 = vdwg.mxu0
  %6492 = vmatprep.subr.bf16.mxu0 %v1270
  %6493 = vmatpush1.bf16.msra.mxu0 %v1269
  %6494 = vmatprep.subr.bf16.mxu0 %v1278
  %6495 = vmatpush1.bf16.msra.mxu0 %v1277
  %6496 = vmatprep.subr.bf16.mxu0 %v1286
  %6497 = vmatpush1.bf16.msra.mxu0 %v1285
  %6498 = vmatprep.subr.bf16.mxu0 %v1294
  %6499 = vmatpush1.bf16.msra.mxu0 %v1293
  %6500 = vmatprep.subr.bf16.mxu0 %v1302
  %6501 = vmatpush1.bf16.msra.mxu0 %v1301
  %6502 = vmatprep.subr.bf16.mxu0 %v1310
  %6503 = vmatpush1.bf16.msra.mxu0 %v1309
  %6504 = vmatprep.subr.bf16.mxu0 %v1318
  %6505 = vmatpush1.bf16.msra.mxu0 %v1317
  %6506 = vmatprep.subr.bf16.mxu0 %v1326
  %6507 = vmatpush1.bf16.msra.mxu0 %v1325
  %6508 = vmatprep.subr.bf16.mxu0 %v1334
  %6509 = vmatpush1.bf16.msra.mxu0 %v1333
  %6510 = vmatprep.subr.bf16.mxu0 %v1342
  %6511 = vmatpush1.bf16.msra.mxu0 %v1341
  %6512 = vmatprep.subr.bf16.mxu0 %v1350
  %6513 = vmatpush1.bf16.msra.mxu0 %v1349
  %6514 = vmatprep.subr.bf16.mxu0 %v1358
  %6515 = vmatpush1.bf16.msra.mxu0 %v1357
  %6516 = vmatprep.subr.bf16.mxu0 %v1366
  %6517 = vmatpush1.bf16.msra.mxu0 %v1365
  %6518 = vmatprep.subr.bf16.mxu0 %v1374
  %6519 = vmatpush1.bf16.msra.mxu0 %v1373
  %6520 = vmatprep.subr.bf16.mxu0 %v1382
  %6521 = vmatpush1.bf16.msra.mxu0 %v1381
  %6522 = vmatprep.subr.bf16.mxu0 %v1390
  %6523 = vmatpush1.bf16.msra.mxu0 %v1389
  %6524 = vmatprep.mubr.bf16.mxu0 %v6450
  %6525 = vmatmul.mubr.bf16.gmra.mrb[0].mxu0 %v6449
  %v6526 = vpop.f32.mrb[0].mxu0
  %v6527 = vadd.f32 %v854, %v6526
  %v6528 = vpop.f32.mrb[0].mxu0
  %v6529 = vadd.f32 %v858, %v6528
  %v6530 = vpop.f32.mrb[0].mxu0
  %v6531 = vpop.f32.mrb[0].mxu0
  %6532 = vdwg.mxu0
  %6533 = vmatprep.subr.bf16.mxu0 %v1272
  %6534 = vmatpush1.bf16.msra.mxu0 %v1271
  %6535 = vmatprep.subr.bf16.mxu0 %v1280
  %6536 = vmatpush1.bf16.msra.mxu0 %v1279
  %6537 = vmatprep.subr.bf16.mxu0 %v1288
  %6538 = vmatpush1.bf16.msra.mxu0 %v1287
  %6539 = vmatprep.subr.bf16.mxu0 %v1296
  %6540 = vmatpush1.bf16.msra.mxu0 %v1295
  %6541 = vmatprep.subr.bf16.mxu0 %v1304
  %6542 = vmatpush1.bf16.msra.mxu0 %v1303
  %6543 = vmatprep.subr.bf16.mxu0 %v1312
  %6544 = vmatpush1.bf16.msra.mxu0 %v1311
  %6545 = vmatprep.subr.bf16.mxu0 %v1320
  %6546 = vmatpush1.bf16.msra.mxu0 %v1319
  %6547 = vmatprep.subr.bf16.mxu0 %v1328
  %6548 = vmatpush1.bf16.msra.mxu0 %v1327
  %6549 = vmatprep.subr.bf16.mxu0 %v1336
  %6550 = vmatpush1.bf16.msra.mxu0 %v1335
  %6551 = vmatprep.subr.bf16.mxu0 %v1344
  %6552 = vmatpush1.bf16.msra.mxu0 %v1343
  %6553 = vmatprep.subr.bf16.mxu0 %v1352
  %6554 = vmatpush1.bf16.msra.mxu0 %v1351
  %6555 = vmatprep.subr.bf16.mxu0 %v1360
  %6556 = vmatpush1.bf16.msra.mxu0 %v1359
  %6557 = vmatprep.subr.bf16.mxu0 %v1368
  %6558 = vmatpush1.bf16.msra.mxu0 %v1367
  %6559 = vmatprep.subr.bf16.mxu0 %v1376
  %6560 = vmatpush1.bf16.msra.mxu0 %v1375
  %6561 = vmatprep.subr.bf16.mxu0 %v1384
  %6562 = vmatpush1.bf16.msra.mxu0 %v1383
  %6563 = vmatprep.subr.bf16.mxu0 %v1392
  %6564 = vmatpush1.bf16.msra.mxu0 %v1391
  %6565 = vmatprep.mubr.bf16.mxu0 %v6450
  %6566 = vmatmul.mubr.bf16.gmra.mrb[0].mxu0 %v6449
  %v6567 = vpop.f32.mrb[0].mxu0
  %v6568 = vadd.f32 %v862, %v6567
  %v6569 = vpop.f32.mrb[0].mxu0
  %v6570 = vadd.f32 %v866, %v6569
  %v6571 = vpop.f32.mrb[0].mxu0
  %v6572 = vpop.f32.mrb[0].mxu0
  %6573 = vdwg.mxu0
  %6574 = vmatprep.subr.bf16.mxu0 %v1274
  %6575 = vmatpush1.bf16.msra.mxu0 %v1273
  %6576 = vmatprep.subr.bf16.mxu0 %v1282
  %6577 = vmatpush1.bf16.msra.mxu0 %v1281
  %6578 = vmatprep.subr.bf16.mxu0 %v1290
  %6579 = vmatpush1.bf16.msra.mxu0 %v1289
  %6580 = vmatprep.subr.bf16.mxu0 %v1298
  %6581 = vmatpush1.bf16.msra.mxu0 %v1297
  %6582 = vmatprep.subr.bf16.mxu0 %v1306
  %6583 = vmatpush1.bf16.msra.mxu0 %v1305
  %6584 = vmatprep.subr.bf16.mxu0 %v1314
  %6585 = vmatpush1.bf16.msra.mxu0 %v1313
  %6586 = vmatprep.subr.bf16.mxu0 %v1322
  %6587 = vmatpush1.bf16.msra.mxu0 %v1321
  %6588 = vmatprep.subr.bf16.mxu0 %v1330
  %6589 = vmatpush1.bf16.msra.mxu0 %v1329
  %6590 = vmatprep.subr.bf16.mxu0 %v1338
  %6591 = vmatpush1.bf16.msra.mxu0 %v1337
  %6592 = vmatprep.subr.bf16.mxu0 %v1346
  %6593 = vmatpush1.bf16.msra.mxu0 %v1345
  %6594 = vmatprep.subr.bf16.mxu0 %v1354
  %6595 = vmatpush1.bf16.msra.mxu0 %v1353
  %6596 = vmatprep.subr.bf16.mxu0 %v1362
  %6597 = vmatpush1.bf16.msra.mxu0 %v1361
  %6598 = vmatprep.subr.bf16.mxu0 %v1370
  %6599 = vmatpush1.bf16.msra.mxu0 %v1369
  %6600 = vmatprep.subr.bf16.mxu0 %v1378
  %6601 = vmatpush1.bf16.msra.mxu0 %v1377
  %6602 = vmatprep.subr.bf16.mxu0 %v1386
  %6603 = vmatpush1.bf16.msra.mxu0 %v1385
  %6604 = vmatprep.subr.bf16.mxu0 %v1394
  %6605 = vmatpush1.bf16.msra.mxu0 %v1393
  %6606 = vmatprep.mubr.bf16.mxu0 %v6450
  %6607 = vmatmul.mubr.bf16.gmra.mrb[0].mxu0 %v6449
  %v6608 = vpop.f32.mrb[0].mxu0
  %v6609 = vadd.f32 %v870, %v6608
  %v6610 = vpop.f32.mrb[0].mxu0
  %v6611 = vadd.f32 %v874, %v6610
  %v6612 = vpop.f32.mrb[0].mxu0
  %v6613 = vpop.f32.mrb[0].mxu0
  %6614 = vdwg.mxu0
  %6615 = vmatprep.subr.bf16.mxu0 %v2072
  %6616 = vmatpush1.bf16.msra.mxu0 %v2071
  %6617 = vmatprep.subr.bf16.mxu0 %v2080
  %6618 = vmatpush1.bf16.msra.mxu0 %v2079
  %6619 = vmatprep.subr.bf16.mxu0 %v2088
  %6620 = vmatpush1.bf16.msra.mxu0 %v2087
  %6621 = vmatprep.subr.bf16.mxu0 %v2096
  %6622 = vmatpush1.bf16.msra.mxu0 %v2095
  %6623 = vmatprep.subr.bf16.mxu0 %v2104
  %6624 = vmatpush1.bf16.msra.mxu0 %v2103
  %6625 = vmatprep.subr.bf16.mxu0 %v2112
  %6626 = vmatpush1.bf16.msra.mxu0 %v2111
  %6627 = vmatprep.subr.bf16.mxu0 %v2120
  %6628 = vmatpush1.bf16.msra.mxu0 %v2119
  %6629 = vmatprep.subr.bf16.mxu0 %v2128
  %6630 = vmatpush1.bf16.msra.mxu0 %v2127
  %6631 = vmatprep.subr.bf16.mxu0 %v2136
  %6632 = vmatpush1.bf16.msra.mxu0 %v2135
  %6633 = vmatprep.subr.bf16.mxu0 %v2144
  %6634 = vmatpush1.bf16.msra.mxu0 %v2143
  %6635 = vmatprep.subr.bf16.mxu0 %v2152
  %6636 = vmatpush1.bf16.msra.mxu0 %v2151
  %6637 = vmatprep.subr.bf16.mxu0 %v2160
  %6638 = vmatpush1.bf16.msra.mxu0 %v2159
  %6639 = vmatprep.subr.bf16.mxu0 %v2168
  %6640 = vmatpush1.bf16.msra.mxu0 %v2167
  %6641 = vmatprep.subr.bf16.mxu0 %v2176
  %6642 = vmatpush1.bf16.msra.mxu0 %v2175
  %6643 = vmatprep.subr.bf16.mxu0 %v2184
  %6644 = vmatpush1.bf16.msra.mxu0 %v2183
  %6645 = vmatprep.subr.bf16.mxu0 %v2192
  %6646 = vmatpush1.bf16.msra.mxu0 %v2191
  %6647 = vmatprep.mubr.bf16.mxu0 %v6228
  %6648 = vmatmul.mubr.bf16.gmra.mrb[0].mxu0 %v6227
  %v6649 = vpop.f32.mrb[0].mxu0
  %v6650 = vadd.f32 0.0, %v6649
  %v6651 = vpop.f32.mrb[0].mxu0
  %v6652 = vadd.f32 0.0, %v6651
  %v6653 = vpop.f32.mrb[0].mxu0
  %v6654 = vpop.f32.mrb[0].mxu0
  %6655 = vdwg.mxu0
  %6656 = vmatprep.subr.bf16.mxu0 %v2074
  %6657 = vmatpush1.bf16.msra.mxu0 %v2073
  %6658 = vmatprep.subr.bf16.mxu0 %v2082
  %6659 = vmatpush1.bf16.msra.mxu0 %v2081
  %6660 = vmatprep.subr.bf16.mxu0 %v2090
  %6661 = vmatpush1.bf16.msra.mxu0 %v2089
  %6662 = vmatprep.subr.bf16.mxu0 %v2098
  %6663 = vmatpush1.bf16.msra.mxu0 %v2097
  %6664 = vmatprep.subr.bf16.mxu0 %v2106
  %6665 = vmatpush1.bf16.msra.mxu0 %v2105
  %6666 = vmatprep.subr.bf16.mxu0 %v2114
  %6667 = vmatpush1.bf16.msra.mxu0 %v2113
  %6668 = vmatprep.subr.bf16.mxu0 %v2122
  %6669 = vmatpush1.bf16.msra.mxu0 %v2121
  %6670 = vmatprep.subr.bf16.mxu0 %v2130
  %6671 = vmatpush1.bf16.msra.mxu0 %v2129
  %6672 = vmatprep.subr.bf16.mxu0 %v2138
  %6673 = vmatpush1.bf16.msra.mxu0 %v2137
  %6674 = vmatprep.subr.bf16.mxu0 %v2146
  %6675 = vmatpush1.bf16.msra.mxu0 %v2145
  %6676 = vmatprep.subr.bf16.mxu0 %v2154
  %6677 = vmatpush1.bf16.msra.mxu0 %v2153
  %6678 = vmatprep.subr.bf16.mxu0 %v2162
  %6679 = vmatpush1.bf16.msra.mxu0 %v2161
  %6680 = vmatprep.subr.bf16.mxu0 %v2170
  %6681 = vmatpush1.bf16.msra.mxu0 %v2169
  %6682 = vmatprep.subr.bf16.mxu0 %v2178
  %6683 = vmatpush1.bf16.msra.mxu0 %v2177
  %6684 = vmatprep.subr.bf16.mxu0 %v2186
  %6685 = vmatpush1.bf16.msra.mxu0 %v2185
  %6686 = vmatprep.subr.bf16.mxu0 %v2194
  %6687 = vmatpush1.bf16.msra.mxu0 %v2193
  %6688 = vmatprep.mubr.bf16.mxu0 %v6228
  %6689 = vmatmul.mubr.bf16.gmra.mrb[0].mxu0 %v6227
  %v6690 = vpop.f32.mrb[0].mxu0
  %v6691 = vadd.f32 0.0, %v6690
  %v6692 = vpop.f32.mrb[0].mxu0
  %v6693 = vadd.f32 0.0, %v6692
  %v6694 = vpop.f32.mrb[0].mxu0
  %v6695 = vpop.f32.mrb[0].mxu0
  %6696 = vdwg.mxu0
  %6697 = vmatprep.subr.bf16.mxu0 %v2076
  %6698 = vmatpush1.bf16.msra.mxu0 %v2075
  %6699 = vmatprep.subr.bf16.mxu0 %v2084
  %6700 = vmatpush1.bf16.msra.mxu0 %v2083
  %6701 = vmatprep.subr.bf16.mxu0 %v2092
  %6702 = vmatpush1.bf16.msra.mxu0 %v2091
  %6703 = vmatprep.subr.bf16.mxu0 %v2100
  %6704 = vmatpush1.bf16.msra.mxu0 %v2099
  %6705 = vmatprep.subr.bf16.mxu0 %v2108
  %6706 = vmatpush1.bf16.msra.mxu0 %v2107
  %6707 = vmatprep.subr.bf16.mxu0 %v2116
  %6708 = vmatpush1.bf16.msra.mxu0 %v2115
  %6709 = vmatprep.subr.bf16.mxu0 %v2124
  %6710 = vmatpush1.bf16.msra.mxu0 %v2123
  %6711 = vmatprep.subr.bf16.mxu0 %v2132
  %6712 = vmatpush1.bf16.msra.mxu0 %v2131
  %6713 = vmatprep.subr.bf16.mxu0 %v2140
  %6714 = vmatpush1.bf16.msra.mxu0 %v2139
  %6715 = vmatprep.subr.bf16.mxu0 %v2148
  %6716 = vmatpush1.bf16.msra.mxu0 %v2147
  %6717 = vmatprep.subr.bf16.mxu0 %v2156
  %6718 = vmatpush1.bf16.msra.mxu0 %v2155
  %6719 = vmatprep.subr.bf16.mxu0 %v2164
  %6720 = vmatpush1.bf16.msra.mxu0 %v2163
  %6721 = vmatprep.subr.bf16.mxu0 %v2172
  %6722 = vmatpush1.bf16.msra.mxu0 %v2171
  %6723 = vmatprep.subr.bf16.mxu0 %v2180
  %6724 = vmatpush1.bf16.msra.mxu0 %v2179
  %6725 = vmatprep.subr.bf16.mxu0 %v2188
  %6726 = vmatpush1.bf16.msra.mxu0 %v2187
  %6727 = vmatprep.subr.bf16.mxu0 %v2196
  %6728 = vmatpush1.bf16.msra.mxu0 %v2195
  %6729 = vmatprep.mubr.bf16.mxu0 %v6228
  %6730 = vmatmul.mubr.bf16.gmra.mrb[0].mxu0 %v6227
  %v6731 = vpop.f32.mrb[0].mxu0
  %v6732 = vadd.f32 0.0, %v6731
  %v6733 = vpop.f32.mrb[0].mxu0
  %v6734 = vadd.f32 0.0, %v6733
  %v6735 = vpop.f32.mrb[0].mxu0
  %v6736 = vpop.f32.mrb[0].mxu0
  %6737 = vdwg.mxu0
  %6738 = vmatprep.subr.bf16.mxu0 %v2078
  %6739 = vmatpush1.bf16.msra.mxu0 %v2077
  %6740 = vmatprep.subr.bf16.mxu0 %v2086
  %6741 = vmatpush1.bf16.msra.mxu0 %v2085
  %6742 = vmatprep.subr.bf16.mxu0 %v2094
  %6743 = vmatpush1.bf16.msra.mxu0 %v2093
  %6744 = vmatprep.subr.bf16.mxu0 %v2102
  %6745 = vmatpush1.bf16.msra.mxu0 %v2101
  %6746 = vmatprep.subr.bf16.mxu0 %v2110
  %6747 = vmatpush1.bf16.msra.mxu0 %v2109
  %6748 = vmatprep.subr.bf16.mxu0 %v2118
  %6749 = vmatpush1.bf16.msra.mxu0 %v2117
  %6750 = vmatprep.subr.bf16.mxu0 %v2126
  %6751 = vmatpush1.bf16.msra.mxu0 %v2125
  %6752 = vmatprep.subr.bf16.mxu0 %v2134
  %6753 = vmatpush1.bf16.msra.mxu0 %v2133
  %6754 = vmatprep.subr.bf16.mxu0 %v2142
  %6755 = vmatpush1.bf16.msra.mxu0 %v2141
  %6756 = vmatprep.subr.bf16.mxu0 %v2150
  %6757 = vmatpush1.bf16.msra.mxu0 %v2149
  %6758 = vmatprep.subr.bf16.mxu0 %v2158
  %6759 = vmatpush1.bf16.msra.mxu0 %v2157
  %6760 = vmatprep.subr.bf16.mxu0 %v2166
  %6761 = vmatpush1.bf16.msra.mxu0 %v2165
  %6762 = vmatprep.subr.bf16.mxu0 %v2174
  %6763 = vmatpush1.bf16.msra.mxu0 %v2173
  %6764 = vmatprep.subr.bf16.mxu0 %v2182
  %6765 = vmatpush1.bf16.msra.mxu0 %v2181
  %6766 = vmatprep.subr.bf16.mxu0 %v2190
  %6767 = vmatpush1.bf16.msra.mxu0 %v2189
  %6768 = vmatprep.subr.bf16.mxu0 %v2198
  %6769 = vmatpush1.bf16.msra.mxu0 %v2197
  %6770 = vmatprep.mubr.bf16.mxu0 %v6228
  %6771 = vmatmul.mubr.bf16.gmra.mrb[0].mxu0 %v6227
  %v6772 = vpop.f32.mrb[0].mxu0
  %v6773 = vadd.f32 0.0, %v6772
  %v6774 = vpop.f32.mrb[0].mxu0
  %v6775 = vadd.f32 0.0, %v6774
  %v6776 = vpop.f32.mrb[0].mxu0
  %v6777 = vpop.f32.mrb[0].mxu0
  %6778 = vdwg.mxu0
  %v6779 = vadd.f32 %v615, %v6650
  %v6780 = vadd.f32 %v617, %v6652
  %v6781 = vadd.f32 %v688, %v6691
  %v6782 = vadd.f32 %v690, %v6693
  %v6783 = vadd.f32 %v761, %v6732
  %v6784 = vadd.f32 %v763, %v6734
  %v6785 = vadd.f32 %v834, %v6773
  %v6786 = vadd.f32 %v836, %v6775
  %v6787 = vxor.u32 %v6779, 2147483648
  %v6788 = vxor.u32 %v6780, 2147483648
  %v6789 = vmul.f32 %v6787, 1.442695
  %v6790 = vpow.pop %v6789
  %v6791 = vmul.f32 %v6788, 1.442695
  %v6792 = vpow.pop %v6791
  %v6793 = vadd.f32 %v6790, 1.0
  %v6794 = vadd.f32 %v6792, 1.0
  %v6795 = vrcp.pop %v6793
  %v6796 = vmul.f32 1.0, %v6795
  %v6797 = vrcp.pop %v6794
  %v6798 = vmul.f32 1.0, %v6797
  %v6799 = vxor.u32 %v6781, 2147483648
  %v6800 = vxor.u32 %v6782, 2147483648
  %v6801 = vmul.f32 %v6799, 1.442695
  %v6802 = vpow.pop %v6801
  %v6803 = vmul.f32 %v6800, 1.442695
  %v6804 = vpow.pop %v6803
  %v6805 = vadd.f32 %v6802, 1.0
  %v6806 = vadd.f32 %v6804, 1.0
  %v6807 = vrcp.pop %v6805
  %v6808 = vmul.f32 1.0, %v6807
  %v6809 = vrcp.pop %v6806
  %v6810 = vmul.f32 1.0, %v6809
  %v6811 = vtanh.pop %v6783
  %v6812 = vtanh.pop %v6784
  %v6813 = vxor.u32 %v6785, 2147483648
  %v6814 = vxor.u32 %v6786, 2147483648
  %v6815 = vmul.f32 %v6813, 1.442695
  %v6816 = vpow.pop %v6815
  %v6817 = vmul.f32 %v6814, 1.442695
  %v6818 = vpow.pop %v6817
  %v6819 = vadd.f32 %v6816, 1.0
  %v6820 = vadd.f32 %v6818, 1.0
  %v6821 = vrcp.pop %v6819
  %v6822 = vmul.f32 1.0, %v6821
  %v6823 = vrcp.pop %v6820
  %v6824 = vmul.f32 1.0, %v6823
  %v6825 = vmul.f32 %v6808, %v6221
  %v6826 = vmul.f32 %v6810, %v6222
  %v6827 = vmul.f32 %v6796, %v6811
  %v6828 = vmul.f32 %v6798, %v6812
  %v6829 = vadd.f32 %v6825, %v6827
  %v6830 = vadd.f32 %v6826, %v6828
  %v6831 = vtanh.pop %v6829
  %v6832 = vtanh.pop %v6830
  %v6833 = vmul.f32 %v6822, %v6831
  %v6834 = vmul.f32 %v6824, %v6832
  %v6835 = vpack.c.bf16 %v6833, %v6833
  %v6836 = vpack.c.bf16 %v6834, %v6834
  %6837 = vmatprep.subr.bf16.mxu0 %v2934
  %6838 = vmatpush1.bf16.msra.mxu0 %v2933
  %6839 = vmatprep.subr.bf16.mxu0 %v2942
  %6840 = vmatpush1.bf16.msra.mxu0 %v2941
  %6841 = vmatprep.subr.bf16.mxu0 %v2950
  %6842 = vmatpush1.bf16.msra.mxu0 %v2949
  %6843 = vmatprep.subr.bf16.mxu0 %v2958
  %6844 = vmatpush1.bf16.msra.mxu0 %v2957
  %6845 = vmatprep.subr.bf16.mxu0 %v2966
  %6846 = vmatpush1.bf16.msra.mxu0 %v2965
  %6847 = vmatprep.subr.bf16.mxu0 %v2974
  %6848 = vmatpush1.bf16.msra.mxu0 %v2973
  %6849 = vmatprep.subr.bf16.mxu0 %v2982
  %6850 = vmatpush1.bf16.msra.mxu0 %v2981
  %6851 = vmatprep.subr.bf16.mxu0 %v2990
  %6852 = vmatpush1.bf16.msra.mxu0 %v2989
  %6853 = vmatprep.subr.bf16.mxu0 %v2998
  %6854 = vmatpush1.bf16.msra.mxu0 %v2997
  %6855 = vmatprep.subr.bf16.mxu0 %v3006
  %6856 = vmatpush1.bf16.msra.mxu0 %v3005
  %6857 = vmatprep.subr.bf16.mxu0 %v3014
  %6858 = vmatpush1.bf16.msra.mxu0 %v3013
  %6859 = vmatprep.subr.bf16.mxu0 %v3022
  %6860 = vmatpush1.bf16.msra.mxu0 %v3021
  %6861 = vmatprep.subr.bf16.mxu0 %v3030
  %6862 = vmatpush1.bf16.msra.mxu0 %v3029
  %6863 = vmatprep.subr.bf16.mxu0 %v3038
  %6864 = vmatpush1.bf16.msra.mxu0 %v3037
  %6865 = vmatprep.subr.bf16.mxu0 %v3046
  %6866 = vmatpush1.bf16.msra.mxu0 %v3045
  %6867 = vmatprep.subr.bf16.mxu0 %v3054
  %6868 = vmatpush1.bf16.msra.mxu0 %v3053
  %6869 = vmatprep.mubr.bf16.mxu0 %v6836
  %6870 = vmatmul.mubr.bf16.gmra.mrb[0].mxu0 %v6835
  %v6871 = vpop.f32.mrb[0].mxu0
  %v6872 = vadd.f32 0.0, %v6871
  %v6873 = vpop.f32.mrb[0].mxu0
  %v6874 = vadd.f32 0.0, %v6873
  %v6875 = vpop.f32.mrb[0].mxu0
  %v6876 = vpop.f32.mrb[0].mxu0
  %6877 = vdwg.mxu0
  %6878 = vmatprep.subr.bf16.mxu0 %v2936
  %6879 = vmatpush1.bf16.msra.mxu0 %v2935
  %6880 = vmatprep.subr.bf16.mxu0 %v2944
  %6881 = vmatpush1.bf16.msra.mxu0 %v2943
  %6882 = vmatprep.subr.bf16.mxu0 %v2952
  %6883 = vmatpush1.bf16.msra.mxu0 %v2951
  %6884 = vmatprep.subr.bf16.mxu0 %v2960
  %6885 = vmatpush1.bf16.msra.mxu0 %v2959
  %6886 = vmatprep.subr.bf16.mxu0 %v2968
  %6887 = vmatpush1.bf16.msra.mxu0 %v2967
  %6888 = vmatprep.subr.bf16.mxu0 %v2976
  %6889 = vmatpush1.bf16.msra.mxu0 %v2975
  %6890 = vmatprep.subr.bf16.mxu0 %v2984
  %6891 = vmatpush1.bf16.msra.mxu0 %v2983
  %6892 = vmatprep.subr.bf16.mxu0 %v2992
  %6893 = vmatpush1.bf16.msra.mxu0 %v2991
  %6894 = vmatprep.subr.bf16.mxu0 %v3000
  %6895 = vmatpush1.bf16.msra.mxu0 %v2999
  %6896 = vmatprep.subr.bf16.mxu0 %v3008
  %6897 = vmatpush1.bf16.msra.mxu0 %v3007
  %6898 = vmatprep.subr.bf16.mxu0 %v3016
  %6899 = vmatpush1.bf16.msra.mxu0 %v3015
  %6900 = vmatprep.subr.bf16.mxu0 %v3024
  %6901 = vmatpush1.bf16.msra.mxu0 %v3023
  %6902 = vmatprep.subr.bf16.mxu0 %v3032
  %6903 = vmatpush1.bf16.msra.mxu0 %v3031
  %6904 = vmatprep.subr.bf16.mxu0 %v3040
  %6905 = vmatpush1.bf16.msra.mxu0 %v3039
  %6906 = vmatprep.subr.bf16.mxu0 %v3048
  %6907 = vmatpush1.bf16.msra.mxu0 %v3047
  %6908 = vmatprep.subr.bf16.mxu0 %v3056
  %6909 = vmatpush1.bf16.msra.mxu0 %v3055
  %6910 = vmatprep.mubr.bf16.mxu0 %v6836
  %6911 = vmatmul.mubr.bf16.gmra.mrb[0].mxu0 %v6835
  %v6912 = vpop.f32.mrb[0].mxu0
  %v6913 = vadd.f32 0.0, %v6912
  %v6914 = vpop.f32.mrb[0].mxu0
  %v6915 = vadd.f32 0.0, %v6914
  %v6916 = vpop.f32.mrb[0].mxu0
  %v6917 = vpop.f32.mrb[0].mxu0
  %6918 = vdwg.mxu0
  %6919 = vmatprep.subr.bf16.mxu0 %v2938
  %6920 = vmatpush1.bf16.msra.mxu0 %v2937
  %6921 = vmatprep.subr.bf16.mxu0 %v2946
  %6922 = vmatpush1.bf16.msra.mxu0 %v2945
  %6923 = vmatprep.subr.bf16.mxu0 %v2954
  %6924 = vmatpush1.bf16.msra.mxu0 %v2953
  %6925 = vmatprep.subr.bf16.mxu0 %v2962
  %6926 = vmatpush1.bf16.msra.mxu0 %v2961
  %6927 = vmatprep.subr.bf16.mxu0 %v2970
  %6928 = vmatpush1.bf16.msra.mxu0 %v2969
  %6929 = vmatprep.subr.bf16.mxu0 %v2978
  %6930 = vmatpush1.bf16.msra.mxu0 %v2977
  %6931 = vmatprep.subr.bf16.mxu0 %v2986
  %6932 = vmatpush1.bf16.msra.mxu0 %v2985
  %6933 = vmatprep.subr.bf16.mxu0 %v2994
  %6934 = vmatpush1.bf16.msra.mxu0 %v2993
  %6935 = vmatprep.subr.bf16.mxu0 %v3002
  %6936 = vmatpush1.bf16.msra.mxu0 %v3001
  %6937 = vmatprep.subr.bf16.mxu0 %v3010
  %6938 = vmatpush1.bf16.msra.mxu0 %v3009
  %6939 = vmatprep.subr.bf16.mxu0 %v3018
  %6940 = vmatpush1.bf16.msra.mxu0 %v3017
  %6941 = vmatprep.subr.bf16.mxu0 %v3026
  %6942 = vmatpush1.bf16.msra.mxu0 %v3025
  %6943 = vmatprep.subr.bf16.mxu0 %v3034
  %6944 = vmatpush1.bf16.msra.mxu0 %v3033
  %6945 = vmatprep.subr.bf16.mxu0 %v3042
  %6946 = vmatpush1.bf16.msra.mxu0 %v3041
  %6947 = vmatprep.subr.bf16.mxu0 %v3050
  %6948 = vmatpush1.bf16.msra.mxu0 %v3049
  %6949 = vmatprep.subr.bf16.mxu0 %v3058
  %6950 = vmatpush1.bf16.msra.mxu0 %v3057
  %6951 = vmatprep.mubr.bf16.mxu0 %v6836
  %6952 = vmatmul.mubr.bf16.gmra.mrb[0].mxu0 %v6835
  %v6953 = vpop.f32.mrb[0].mxu0
  %v6954 = vadd.f32 0.0, %v6953
  %v6955 = vpop.f32.mrb[0].mxu0
  %v6956 = vadd.f32 0.0, %v6955
  %v6957 = vpop.f32.mrb[0].mxu0
  %v6958 = vpop.f32.mrb[0].mxu0
  %6959 = vdwg.mxu0
  %6960 = vmatprep.subr.bf16.mxu0 %v2940
  %6961 = vmatpush1.bf16.msra.mxu0 %v2939
  %6962 = vmatprep.subr.bf16.mxu0 %v2948
  %6963 = vmatpush1.bf16.msra.mxu0 %v2947
  %6964 = vmatprep.subr.bf16.mxu0 %v2956
  %6965 = vmatpush1.bf16.msra.mxu0 %v2955
  %6966 = vmatprep.subr.bf16.mxu0 %v2964
  %6967 = vmatpush1.bf16.msra.mxu0 %v2963
  %6968 = vmatprep.subr.bf16.mxu0 %v2972
  %6969 = vmatpush1.bf16.msra.mxu0 %v2971
  %6970 = vmatprep.subr.bf16.mxu0 %v2980
  %6971 = vmatpush1.bf16.msra.mxu0 %v2979
  %6972 = vmatprep.subr.bf16.mxu0 %v2988
  %6973 = vmatpush1.bf16.msra.mxu0 %v2987
  %6974 = vmatprep.subr.bf16.mxu0 %v2996
  %6975 = vmatpush1.bf16.msra.mxu0 %v2995
  %6976 = vmatprep.subr.bf16.mxu0 %v3004
  %6977 = vmatpush1.bf16.msra.mxu0 %v3003
  %6978 = vmatprep.subr.bf16.mxu0 %v3012
  %6979 = vmatpush1.bf16.msra.mxu0 %v3011
  %6980 = vmatprep.subr.bf16.mxu0 %v3020
  %6981 = vmatpush1.bf16.msra.mxu0 %v3019
  %6982 = vmatprep.subr.bf16.mxu0 %v3028
  %6983 = vmatpush1.bf16.msra.mxu0 %v3027
  %6984 = vmatprep.subr.bf16.mxu0 %v3036
  %6985 = vmatpush1.bf16.msra.mxu0 %v3035
  %6986 = vmatprep.subr.bf16.mxu0 %v3044
  %6987 = vmatpush1.bf16.msra.mxu0 %v3043
  %6988 = vmatprep.subr.bf16.mxu0 %v3052
  %6989 = vmatpush1.bf16.msra.mxu0 %v3051
  %6990 = vmatprep.subr.bf16.mxu0 %v3060
  %6991 = vmatpush1.bf16.msra.mxu0 %v3059
  %6992 = vmatprep.mubr.bf16.mxu0 %v6836
  %6993 = vmatmul.mubr.bf16.gmra.mrb[0].mxu0 %v6835
  %v6994 = vpop.f32.mrb[0].mxu0
  %v6995 = vadd.f32 0.0, %v6994
  %v6996 = vpop.f32.mrb[0].mxu0
  %v6997 = vadd.f32 0.0, %v6996
  %v6998 = vpop.f32.mrb[0].mxu0
  %v6999 = vpop.f32.mrb[0].mxu0
  %7000 = vdwg.mxu0
  %v7001 = vadd.f32 %v6486, %v6872
  %v7002 = vadd.f32 %v6488, %v6874
  %v7003 = vadd.f32 %v6527, %v6913
  %v7004 = vadd.f32 %v6529, %v6915
  %v7005 = vadd.f32 %v6568, %v6954
  %v7006 = vadd.f32 %v6570, %v6956
  %v7007 = vadd.f32 %v6609, %v6995
  %v7008 = vadd.f32 %v6611, %v6997
  %v7009 = vxor.u32 %v7001, 2147483648
  %v7010 = vxor.u32 %v7002, 2147483648
  %v7011 = vmul.f32 %v7009, 1.442695
  %v7012 = vpow.pop %v7011
  %v7013 = vmul.f32 %v7010, 1.442695
  %v7014 = vpow.pop %v7013
  %v7015 = vadd.f32 %v7012, 1.0
  %v7016 = vadd.f32 %v7014, 1.0
  %v7017 = vrcp.pop %v7015
  %v7018 = vmul.f32 1.0, %v7017
  %v7019 = vrcp.pop %v7016
  %v7020 = vmul.f32 1.0, %v7019
  %v7021 = vxor.u32 %v7003, 2147483648
  %v7022 = vxor.u32 %v7004, 2147483648
  %v7023 = vmul.f32 %v7021, 1.442695
  %v7024 = vpow.pop %v7023
  %v7025 = vmul.f32 %v7022, 1.442695
  %v7026 = vpow.pop %v7025
  %v7027 = vadd.f32 %v7024, 1.0
  %v7028 = vadd.f32 %v7026, 1.0
  %v7029 = vrcp.pop %v7027
  %v7030 = vmul.f32 1.0, %v7029
  %v7031 = vrcp.pop %v7028
  %v7032 = vmul.f32 1.0, %v7031
  %v7033 = vtanh.pop %v7005
  %v7034 = vtanh.pop %v7006
  %v7035 = vxor.u32 %v7007, 2147483648
  %v7036 = vxor.u32 %v7008, 2147483648
  %v7037 = vmul.f32 %v7035, 1.442695
  %v7038 = vpow.pop %v7037
  %v7039 = vmul.f32 %v7036, 1.442695
  %v7040 = vpow.pop %v7039
  %v7041 = vadd.f32 %v7038, 1.0
  %v7042 = vadd.f32 %v7040, 1.0
  %v7043 = vrcp.pop %v7041
  %v7044 = vmul.f32 1.0, %v7043
  %v7045 = vrcp.pop %v7042
  %v7046 = vmul.f32 1.0, %v7045
  %v7047 = vmul.f32 %v7030, %v6443
  %v7048 = vmul.f32 %v7032, %v6444
  %v7049 = vmul.f32 %v7018, %v7033
  %v7050 = vmul.f32 %v7020, %v7034
  %v7051 = vadd.f32 %v7047, %v7049
  %v7052 = vadd.f32 %v7048, %v7050
  %v7053 = vtanh.pop %v7051
  %v7054 = vtanh.pop %v7052
  %v7055 = vmul.f32 %v7044, %v7053
  %v7056 = vmul.f32 %v7046, %v7054
  %v7057 = vpack.c.bf16 %v7055, %v7055
  %v7058 = vpack.c.bf16 %v7056, %v7056
  %7059 = vmatprep.subr.bf16.mxu0 %v1268
  %7060 = vmatpush1.bf16.msra.mxu0 %v1267
  %7061 = vmatprep.subr.bf16.mxu0 %v1276
  %7062 = vmatpush1.bf16.msra.mxu0 %v1275
  %7063 = vmatprep.subr.bf16.mxu0 %v1284
  %7064 = vmatpush1.bf16.msra.mxu0 %v1283
  %7065 = vmatprep.subr.bf16.mxu0 %v1292
  %7066 = vmatpush1.bf16.msra.mxu0 %v1291
  %7067 = vmatprep.subr.bf16.mxu0 %v1300
  %7068 = vmatpush1.bf16.msra.mxu0 %v1299
  %7069 = vmatprep.subr.bf16.mxu0 %v1308
  %7070 = vmatpush1.bf16.msra.mxu0 %v1307
  %7071 = vmatprep.subr.bf16.mxu0 %v1316
  %7072 = vmatpush1.bf16.msra.mxu0 %v1315
  %7073 = vmatprep.subr.bf16.mxu0 %v1324
  %7074 = vmatpush1.bf16.msra.mxu0 %v1323
  %7075 = vmatprep.subr.bf16.mxu0 %v1332
  %7076 = vmatpush1.bf16.msra.mxu0 %v1331
  %7077 = vmatprep.subr.bf16.mxu0 %v1340
  %7078 = vmatpush1.bf16.msra.mxu0 %v1339
  %7079 = vmatprep.subr.bf16.mxu0 %v1348
  %7080 = vmatpush1.bf16.msra.mxu0 %v1347
  %7081 = vmatprep.subr.bf16.mxu0 %v1356
  %7082 = vmatpush1.bf16.msra.mxu0 %v1355
  %7083 = vmatprep.subr.bf16.mxu0 %v1364
  %7084 = vmatpush1.bf16.msra.mxu0 %v1363
  %7085 = vmatprep.subr.bf16.mxu0 %v1372
  %7086 = vmatpush1.bf16.msra.mxu0 %v1371
  %7087 = vmatprep.subr.bf16.mxu0 %v1380
  %7088 = vmatpush1.bf16.msra.mxu0 %v1379
  %7089 = vmatprep.subr.bf16.mxu0 %v1388
  %7090 = vmatpush1.bf16.msra.mxu0 %v1387
  %7091 = vmatprep.mubr.bf16.mxu0 %v7058
  %7092 = vmatmul.mubr.bf16.gmra.mrb[0].mxu0 %v7057
  %v7093 = vpop.f32.mrb[0].mxu0
  %v7094 = vadd.f32 %v846, %v7093
  %v7095 = vpop.f32.mrb[0].mxu0
  %v7096 = vadd.f32 %v850, %v7095
  %v7097 = vpop.f32.mrb[0].mxu0
  %v7098 = vpop.f32.mrb[0].mxu0
  %7099 = vdwg.mxu0
  %7100 = vmatprep.subr.bf16.mxu0 %v1270
  %7101 = vmatpush1.bf16.msra.mxu0 %v1269
  %7102 = vmatprep.subr.bf16.mxu0 %v1278
  %7103 = vmatpush1.bf16.msra.mxu0 %v1277
  %7104 = vmatprep.subr.bf16.mxu0 %v1286
  %7105 = vmatpush1.bf16.msra.mxu0 %v1285
  %7106 = vmatprep.subr.bf16.mxu0 %v1294
  %7107 = vmatpush1.bf16.msra.mxu0 %v1293
  %7108 = vmatprep.subr.bf16.mxu0 %v1302
  %7109 = vmatpush1.bf16.msra.mxu0 %v1301
  %7110 = vmatprep.subr.bf16.mxu0 %v1310
  %7111 = vmatpush1.bf16.msra.mxu0 %v1309
  %7112 = vmatprep.subr.bf16.mxu0 %v1318
  %7113 = vmatpush1.bf16.msra.mxu0 %v1317
  %7114 = vmatprep.subr.bf16.mxu0 %v1326
  %7115 = vmatpush1.bf16.msra.mxu0 %v1325
  %7116 = vmatprep.subr.bf16.mxu0 %v1334
  %7117 = vmatpush1.bf16.msra.mxu0 %v1333
  %7118 = vmatprep.subr.bf16.mxu0 %v1342
  %7119 = vmatpush1.bf16.msra.mxu0 %v1341
  %7120 = vmatprep.subr.bf16.mxu0 %v1350
  %7121 = vmatpush1.bf16.msra.mxu0 %v1349
  %7122 = vmatprep.subr.bf16.mxu0 %v1358
  %7123 = vmatpush1.bf16.msra.mxu0 %v1357
  %7124 = vmatprep.subr.bf16.mxu0 %v1366
  %7125 = vmatpush1.bf16.msra.mxu0 %v1365
  %7126 = vmatprep.subr.bf16.mxu0 %v1374
  %7127 = vmatpush1.bf16.msra.mxu0 %v1373
  %7128 = vmatprep.subr.bf16.mxu0 %v1382
  %7129 = vmatpush1.bf16.msra.mxu0 %v1381
  %7130 = vmatprep.subr.bf16.mxu0 %v1390
  %7131 = vmatpush1.bf16.msra.mxu0 %v1389
  %7132 = vmatprep.mubr.bf16.mxu0 %v7058
  %7133 = vmatmul.mubr.bf16.gmra.mrb[0].mxu0 %v7057
  %v7134 = vpop.f32.mrb[0].mxu0
  %v7135 = vadd.f32 %v854, %v7134
  %v7136 = vpop.f32.mrb[0].mxu0
  %v7137 = vadd.f32 %v858, %v7136
  %v7138 = vpop.f32.mrb[0].mxu0
  %v7139 = vpop.f32.mrb[0].mxu0
  %7140 = vdwg.mxu0
  %7141 = vmatprep.subr.bf16.mxu0 %v1272
  %7142 = vmatpush1.bf16.msra.mxu0 %v1271
  %7143 = vmatprep.subr.bf16.mxu0 %v1280
  %7144 = vmatpush1.bf16.msra.mxu0 %v1279
  %7145 = vmatprep.subr.bf16.mxu0 %v1288
  %7146 = vmatpush1.bf16.msra.mxu0 %v1287
  %7147 = vmatprep.subr.bf16.mxu0 %v1296
  %7148 = vmatpush1.bf16.msra.mxu0 %v1295
  %7149 = vmatprep.subr.bf16.mxu0 %v1304
  %7150 = vmatpush1.bf16.msra.mxu0 %v1303
  %7151 = vmatprep.subr.bf16.mxu0 %v1312
  %7152 = vmatpush1.bf16.msra.mxu0 %v1311
  %7153 = vmatprep.subr.bf16.mxu0 %v1320
  %7154 = vmatpush1.bf16.msra.mxu0 %v1319
  %7155 = vmatprep.subr.bf16.mxu0 %v1328
  %7156 = vmatpush1.bf16.msra.mxu0 %v1327
  %7157 = vmatprep.subr.bf16.mxu0 %v1336
  %7158 = vmatpush1.bf16.msra.mxu0 %v1335
  %7159 = vmatprep.subr.bf16.mxu0 %v1344
  %7160 = vmatpush1.bf16.msra.mxu0 %v1343
  %7161 = vmatprep.subr.bf16.mxu0 %v1352
  %7162 = vmatpush1.bf16.msra.mxu0 %v1351
  %7163 = vmatprep.subr.bf16.mxu0 %v1360
  %7164 = vmatpush1.bf16.msra.mxu0 %v1359
  %7165 = vmatprep.subr.bf16.mxu0 %v1368
  %7166 = vmatpush1.bf16.msra.mxu0 %v1367
  %7167 = vmatprep.subr.bf16.mxu0 %v1376
  %7168 = vmatpush1.bf16.msra.mxu0 %v1375
  %7169 = vmatprep.subr.bf16.mxu0 %v1384
  %7170 = vmatpush1.bf16.msra.mxu0 %v1383
  %7171 = vmatprep.subr.bf16.mxu0 %v1392
  %7172 = vmatpush1.bf16.msra.mxu0 %v1391
  %7173 = vmatprep.mubr.bf16.mxu0 %v7058
  %7174 = vmatmul.mubr.bf16.gmra.mrb[0].mxu0 %v7057
  %v7175 = vpop.f32.mrb[0].mxu0
  %v7176 = vadd.f32 %v862, %v7175
  %v7177 = vpop.f32.mrb[0].mxu0
  %v7178 = vadd.f32 %v866, %v7177
  %v7179 = vpop.f32.mrb[0].mxu0
  %v7180 = vpop.f32.mrb[0].mxu0
  %7181 = vdwg.mxu0
  %7182 = vmatprep.subr.bf16.mxu0 %v1274
  %7183 = vmatpush1.bf16.msra.mxu0 %v1273
  %7184 = vmatprep.subr.bf16.mxu0 %v1282
  %7185 = vmatpush1.bf16.msra.mxu0 %v1281
  %7186 = vmatprep.subr.bf16.mxu0 %v1290
  %7187 = vmatpush1.bf16.msra.mxu0 %v1289
  %7188 = vmatprep.subr.bf16.mxu0 %v1298
  %7189 = vmatpush1.bf16.msra.mxu0 %v1297
  %7190 = vmatprep.subr.bf16.mxu0 %v1306
  %7191 = vmatpush1.bf16.msra.mxu0 %v1305
  %7192 = vmatprep.subr.bf16.mxu0 %v1314
  %7193 = vmatpush1.bf16.msra.mxu0 %v1313
  %7194 = vmatprep.subr.bf16.mxu0 %v1322
  %7195 = vmatpush1.bf16.msra.mxu0 %v1321
  %7196 = vmatprep.subr.bf16.mxu0 %v1330
  %7197 = vmatpush1.bf16.msra.mxu0 %v1329
  %7198 = vmatprep.subr.bf16.mxu0 %v1338
  %7199 = vmatpush1.bf16.msra.mxu0 %v1337
  %7200 = vmatprep.subr.bf16.mxu0 %v1346
  %7201 = vmatpush1.bf16.msra.mxu0 %v1345
  %7202 = vmatprep.subr.bf16.mxu0 %v1354
  %7203 = vmatpush1.bf16.msra.mxu0 %v1353
  %7204 = vmatprep.subr.bf16.mxu0 %v1362
  %7205 = vmatpush1.bf16.msra.mxu0 %v1361
  %7206 = vmatprep.subr.bf16.mxu0 %v1370
  %7207 = vmatpush1.bf16.msra.mxu0 %v1369
  %7208 = vmatprep.subr.bf16.mxu0 %v1378
  %7209 = vmatpush1.bf16.msra.mxu0 %v1377
  %7210 = vmatprep.subr.bf16.mxu0 %v1386
  %7211 = vmatpush1.bf16.msra.mxu0 %v1385
  %7212 = vmatprep.subr.bf16.mxu0 %v1394
  %7213 = vmatpush1.bf16.msra.mxu0 %v1393
  %7214 = vmatprep.mubr.bf16.mxu0 %v7058
  %7215 = vmatmul.mubr.bf16.gmra.mrb[0].mxu0 %v7057
  %v7216 = vpop.f32.mrb[0].mxu0
  %v7217 = vadd.f32 %v870, %v7216
  %v7218 = vpop.f32.mrb[0].mxu0
  %v7219 = vadd.f32 %v874, %v7218
  %v7220 = vpop.f32.mrb[0].mxu0
  %v7221 = vpop.f32.mrb[0].mxu0
  %7222 = vdwg.mxu0
  %7223 = vmatprep.subr.bf16.mxu0 %v2072
  %7224 = vmatpush1.bf16.msra.mxu0 %v2071
  %7225 = vmatprep.subr.bf16.mxu0 %v2080
  %7226 = vmatpush1.bf16.msra.mxu0 %v2079
  %7227 = vmatprep.subr.bf16.mxu0 %v2088
  %7228 = vmatpush1.bf16.msra.mxu0 %v2087
  %7229 = vmatprep.subr.bf16.mxu0 %v2096
  %7230 = vmatpush1.bf16.msra.mxu0 %v2095
  %7231 = vmatprep.subr.bf16.mxu0 %v2104
  %7232 = vmatpush1.bf16.msra.mxu0 %v2103
  %7233 = vmatprep.subr.bf16.mxu0 %v2112
  %7234 = vmatpush1.bf16.msra.mxu0 %v2111
  %7235 = vmatprep.subr.bf16.mxu0 %v2120
  %7236 = vmatpush1.bf16.msra.mxu0 %v2119
  %7237 = vmatprep.subr.bf16.mxu0 %v2128
  %7238 = vmatpush1.bf16.msra.mxu0 %v2127
  %7239 = vmatprep.subr.bf16.mxu0 %v2136
  %7240 = vmatpush1.bf16.msra.mxu0 %v2135
  %7241 = vmatprep.subr.bf16.mxu0 %v2144
  %7242 = vmatpush1.bf16.msra.mxu0 %v2143
  %7243 = vmatprep.subr.bf16.mxu0 %v2152
  %7244 = vmatpush1.bf16.msra.mxu0 %v2151
  %7245 = vmatprep.subr.bf16.mxu0 %v2160
  %7246 = vmatpush1.bf16.msra.mxu0 %v2159
  %7247 = vmatprep.subr.bf16.mxu0 %v2168
  %7248 = vmatpush1.bf16.msra.mxu0 %v2167
  %7249 = vmatprep.subr.bf16.mxu0 %v2176
  %7250 = vmatpush1.bf16.msra.mxu0 %v2175
  %7251 = vmatprep.subr.bf16.mxu0 %v2184
  %7252 = vmatpush1.bf16.msra.mxu0 %v2183
  %7253 = vmatprep.subr.bf16.mxu0 %v2192
  %7254 = vmatpush1.bf16.msra.mxu0 %v2191
  %7255 = vmatprep.mubr.bf16.mxu0 %v6836
  %7256 = vmatmul.mubr.bf16.gmra.mrb[0].mxu0 %v6835
  %v7257 = vpop.f32.mrb[0].mxu0
  %v7258 = vadd.f32 0.0, %v7257
  %v7259 = vpop.f32.mrb[0].mxu0
  %v7260 = vadd.f32 0.0, %v7259
  %v7261 = vpop.f32.mrb[0].mxu0
  %v7262 = vpop.f32.mrb[0].mxu0
  %7263 = vdwg.mxu0
  %7264 = vmatprep.subr.bf16.mxu0 %v2074
  %7265 = vmatpush1.bf16.msra.mxu0 %v2073
  %7266 = vmatprep.subr.bf16.mxu0 %v2082
  %7267 = vmatpush1.bf16.msra.mxu0 %v2081
  %7268 = vmatprep.subr.bf16.mxu0 %v2090
  %7269 = vmatpush1.bf16.msra.mxu0 %v2089
  %7270 = vmatprep.subr.bf16.mxu0 %v2098
  %7271 = vmatpush1.bf16.msra.mxu0 %v2097
  %7272 = vmatprep.subr.bf16.mxu0 %v2106
  %7273 = vmatpush1.bf16.msra.mxu0 %v2105
  %7274 = vmatprep.subr.bf16.mxu0 %v2114
  %7275 = vmatpush1.bf16.msra.mxu0 %v2113
  %7276 = vmatprep.subr.bf16.mxu0 %v2122
  %7277 = vmatpush1.bf16.msra.mxu0 %v2121
  %7278 = vmatprep.subr.bf16.mxu0 %v2130
  %7279 = vmatpush1.bf16.msra.mxu0 %v2129
  %7280 = vmatprep.subr.bf16.mxu0 %v2138
  %7281 = vmatpush1.bf16.msra.mxu0 %v2137
  %7282 = vmatprep.subr.bf16.mxu0 %v2146
  %7283 = vmatpush1.bf16.msra.mxu0 %v2145
  %7284 = vmatprep.subr.bf16.mxu0 %v2154
  %7285 = vmatpush1.bf16.msra.mxu0 %v2153
  %7286 = vmatprep.subr.bf16.mxu0 %v2162
  %7287 = vmatpush1.bf16.msra.mxu0 %v2161
  %7288 = vmatprep.subr.bf16.mxu0 %v2170
  %7289 = vmatpush1.bf16.msra.mxu0 %v2169
  %7290 = vmatprep.subr.bf16.mxu0 %v2178
  %7291 = vmatpush1.bf16.msra.mxu0 %v2177
  %7292 = vmatprep.subr.bf16.mxu0 %v2186
  %7293 = vmatpush1.bf16.msra.mxu0 %v2185
  %7294 = vmatprep.subr.bf16.mxu0 %v2194
  %7295 = vmatpush1.bf16.msra.mxu0 %v2193
  %7296 = vmatprep.mubr.bf16.mxu0 %v6836
  %7297 = vmatmul.mubr.bf16.gmra.mrb[0].mxu0 %v6835
  %v7298 = vpop.f32.mrb[0].mxu0
  %v7299 = vadd.f32 0.0, %v7298
  %v7300 = vpop.f32.mrb[0].mxu0
  %v7301 = vadd.f32 0.0, %v7300
  %v7302 = vpop.f32.mrb[0].mxu0
  %v7303 = vpop.f32.mrb[0].mxu0
  %7304 = vdwg.mxu0
  %7305 = vmatprep.subr.bf16.mxu0 %v2076
  %7306 = vmatpush1.bf16.msra.mxu0 %v2075
  %7307 = vmatprep.subr.bf16.mxu0 %v2084
  %7308 = vmatpush1.bf16.msra.mxu0 %v2083
  %7309 = vmatprep.subr.bf16.mxu0 %v2092
  %7310 = vmatpush1.bf16.msra.mxu0 %v2091
  %7311 = vmatprep.subr.bf16.mxu0 %v2100
  %7312 = vmatpush1.bf16.msra.mxu0 %v2099
  %7313 = vmatprep.subr.bf16.mxu0 %v2108
  %7314 = vmatpush1.bf16.msra.mxu0 %v2107
  %7315 = vmatprep.subr.bf16.mxu0 %v2116
  %7316 = vmatpush1.bf16.msra.mxu0 %v2115
  %7317 = vmatprep.subr.bf16.mxu0 %v2124
  %7318 = vmatpush1.bf16.msra.mxu0 %v2123
  %7319 = vmatprep.subr.bf16.mxu0 %v2132
  %7320 = vmatpush1.bf16.msra.mxu0 %v2131
  %7321 = vmatprep.subr.bf16.mxu0 %v2140
  %7322 = vmatpush1.bf16.msra.mxu0 %v2139
  %7323 = vmatprep.subr.bf16.mxu0 %v2148
  %7324 = vmatpush1.bf16.msra.mxu0 %v2147
  %7325 = vmatprep.subr.bf16.mxu0 %v2156
  %7326 = vmatpush1.bf16.msra.mxu0 %v2155
  %7327 = vmatprep.subr.bf16.mxu0 %v2164
  %7328 = vmatpush1.bf16.msra.mxu0 %v2163
  %7329 = vmatprep.subr.bf16.mxu0 %v2172
  %7330 = vmatpush1.bf16.msra.mxu0 %v2171
  %7331 = vmatprep.subr.bf16.mxu0 %v2180
  %7332 = vmatpush1.bf16.msra.mxu0 %v2179
  %7333 = vmatprep.subr.bf16.mxu0 %v2188
  %7334 = vmatpush1.bf16.msra.mxu0 %v2187
  %7335 = vmatprep.subr.bf16.mxu0 %v2196
  %7336 = vmatpush1.bf16.msra.mxu0 %v2195
  %7337 = vmatprep.mubr.bf16.mxu0 %v6836
  %7338 = vmatmul.mubr.bf16.gmra.mrb[0].mxu0 %v6835
  %v7339 = vpop.f32.mrb[0].mxu0
  %v7340 = vadd.f32 0.0, %v7339
  %v7341 = vpop.f32.mrb[0].mxu0
  %v7342 = vadd.f32 0.0, %v7341
  %v7343 = vpop.f32.mrb[0].mxu0
  %v7344 = vpop.f32.mrb[0].mxu0
  %7345 = vdwg.mxu0
  %7346 = vmatprep.subr.bf16.mxu0 %v2078
  %7347 = vmatpush1.bf16.msra.mxu0 %v2077
  %7348 = vmatprep.subr.bf16.mxu0 %v2086
  %7349 = vmatpush1.bf16.msra.mxu0 %v2085
  %7350 = vmatprep.subr.bf16.mxu0 %v2094
  %7351 = vmatpush1.bf16.msra.mxu0 %v2093
  %7352 = vmatprep.subr.bf16.mxu0 %v2102
  %7353 = vmatpush1.bf16.msra.mxu0 %v2101
  %7354 = vmatprep.subr.bf16.mxu0 %v2110
  %7355 = vmatpush1.bf16.msra.mxu0 %v2109
  %7356 = vmatprep.subr.bf16.mxu0 %v2118
  %7357 = vmatpush1.bf16.msra.mxu0 %v2117
  %7358 = vmatprep.subr.bf16.mxu0 %v2126
  %7359 = vmatpush1.bf16.msra.mxu0 %v2125
  %7360 = vmatprep.subr.bf16.mxu0 %v2134
  %7361 = vmatpush1.bf16.msra.mxu0 %v2133
  %7362 = vmatprep.subr.bf16.mxu0 %v2142
  %7363 = vmatpush1.bf16.msra.mxu0 %v2141
  %7364 = vmatprep.subr.bf16.mxu0 %v2150
  %7365 = vmatpush1.bf16.msra.mxu0 %v2149
  %7366 = vmatprep.subr.bf16.mxu0 %v2158
  %7367 = vmatpush1.bf16.msra.mxu0 %v2157
  %7368 = vmatprep.subr.bf16.mxu0 %v2166
  %7369 = vmatpush1.bf16.msra.mxu0 %v2165
  %7370 = vmatprep.subr.bf16.mxu0 %v2174
  %7371 = vmatpush1.bf16.msra.mxu0 %v2173
  %7372 = vmatprep.subr.bf16.mxu0 %v2182
  %7373 = vmatpush1.bf16.msra.mxu0 %v2181
  %7374 = vmatprep.subr.bf16.mxu0 %v2190
  %7375 = vmatpush1.bf16.msra.mxu0 %v2189
  %7376 = vmatprep.subr.bf16.mxu0 %v2198
  %7377 = vmatpush1.bf16.msra.mxu0 %v2197
  %7378 = vmatprep.mubr.bf16.mxu0 %v6836
  %7379 = vmatmul.mubr.bf16.gmra.mrb[0].mxu0 %v6835
  %v7380 = vpop.f32.mrb[0].mxu0
  %v7381 = vadd.f32 0.0, %v7380
  %v7382 = vpop.f32.mrb[0].mxu0
  %v7383 = vadd.f32 0.0, %v7382
  %v7384 = vpop.f32.mrb[0].mxu0
  %v7385 = vpop.f32.mrb[0].mxu0
  %7386 = vdwg.mxu0
  %v7387 = vadd.f32 %v619, %v7258
  %v7388 = vadd.f32 %v621, %v7260
  %v7389 = vadd.f32 %v692, %v7299
  %v7390 = vadd.f32 %v694, %v7301
  %v7391 = vadd.f32 %v765, %v7340
  %v7392 = vadd.f32 %v767, %v7342
  %v7393 = vadd.f32 %v838, %v7381
  %v7394 = vadd.f32 %v840, %v7383
  %v7395 = vxor.u32 %v7387, 2147483648
  %v7396 = vxor.u32 %v7388, 2147483648
  %v7397 = vmul.f32 %v7395, 1.442695
  %v7398 = vpow.pop %v7397
  %v7399 = vmul.f32 %v7396, 1.442695
  %v7400 = vpow.pop %v7399
  %v7401 = vadd.f32 %v7398, 1.0
  %v7402 = vadd.f32 %v7400, 1.0
  %v7403 = vrcp.pop %v7401
  %v7404 = vmul.f32 1.0, %v7403
  %v7405 = vrcp.pop %v7402
  %v7406 = vmul.f32 1.0, %v7405
  %v7407 = vxor.u32 %v7389, 2147483648
  %v7408 = vxor.u32 %v7390, 2147483648
  %v7409 = vmul.f32 %v7407, 1.442695
  %v7410 = vpow.pop %v7409
  %v7411 = vmul.f32 %v7408, 1.442695
  %v7412 = vpow.pop %v7411
  %v7413 = vadd.f32 %v7410, 1.0
  %v7414 = vadd.f32 %v7412, 1.0
  %v7415 = vrcp.pop %v7413
  %v7416 = vmul.f32 1.0, %v7415
  %v7417 = vrcp.pop %v7414
  %v7418 = vmul.f32 1.0, %v7417
  %v7419 = vtanh.pop %v7391
  %v7420 = vtanh.pop %v7392
  %v7421 = vxor.u32 %v7393, 2147483648
  %v7422 = vxor.u32 %v7394, 2147483648
  %v7423 = vmul.f32 %v7421, 1.442695
  %v7424 = vpow.pop %v7423
  %v7425 = vmul.f32 %v7422, 1.442695
  %v7426 = vpow.pop %v7425
  %v7427 = vadd.f32 %v7424, 1.0
  %v7428 = vadd.f32 %v7426, 1.0
  %v7429 = vrcp.pop %v7427
  %v7430 = vmul.f32 1.0, %v7429
  %v7431 = vrcp.pop %v7428
  %v7432 = vmul.f32 1.0, %v7431
  %v7433 = vmul.f32 %v7416, %v6829
  %v7434 = vmul.f32 %v7418, %v6830
  %v7435 = vmul.f32 %v7404, %v7419
  %v7436 = vmul.f32 %v7406, %v7420
  %v7437 = vadd.f32 %v7433, %v7435
  %v7438 = vadd.f32 %v7434, %v7436
  %v7439 = vtanh.pop %v7437
  %v7440 = vtanh.pop %v7438
  %v7441 = vmul.f32 %v7430, %v7439
  %v7442 = vmul.f32 %v7432, %v7440
  %v7443 = vpack.c.bf16 %v7441, %v7441
  %v7444 = vpack.c.bf16 %v7442, %v7442
  %7445 = vmatprep.subr.bf16.mxu0 %v2934
  %7446 = vmatpush1.bf16.msra.mxu0 %v2933
  %7447 = vmatprep.subr.bf16.mxu0 %v2942
  %7448 = vmatpush1.bf16.msra.mxu0 %v2941
  %7449 = vmatprep.subr.bf16.mxu0 %v2950
  %7450 = vmatpush1.bf16.msra.mxu0 %v2949
  %7451 = vmatprep.subr.bf16.mxu0 %v2958
  %7452 = vmatpush1.bf16.msra.mxu0 %v2957
  %7453 = vmatprep.subr.bf16.mxu0 %v2966
  %7454 = vmatpush1.bf16.msra.mxu0 %v2965
  %7455 = vmatprep.subr.bf16.mxu0 %v2974
  %7456 = vmatpush1.bf16.msra.mxu0 %v2973
  %7457 = vmatprep.subr.bf16.mxu0 %v2982
  %7458 = vmatpush1.bf16.msra.mxu0 %v2981
  %7459 = vmatprep.subr.bf16.mxu0 %v2990
  %7460 = vmatpush1.bf16.msra.mxu0 %v2989
  %7461 = vmatprep.subr.bf16.mxu0 %v2998
  %7462 = vmatpush1.bf16.msra.mxu0 %v2997
  %7463 = vmatprep.subr.bf16.mxu0 %v3006
  %7464 = vmatpush1.bf16.msra.mxu0 %v3005
  %7465 = vmatprep.subr.bf16.mxu0 %v3014
  %7466 = vmatpush1.bf16.msra.mxu0 %v3013
  %7467 = vmatprep.subr.bf16.mxu0 %v3022
  %7468 = vmatpush1.bf16.msra.mxu0 %v3021
  %7469 = vmatprep.subr.bf16.mxu0 %v3030
  %7470 = vmatpush1.bf16.msra.mxu0 %v3029
  %7471 = vmatprep.subr.bf16.mxu0 %v3038
  %7472 = vmatpush1.bf16.msra.mxu0 %v3037
  %7473 = vmatprep.subr.bf16.mxu0 %v3046
  %7474 = vmatpush1.bf16.msra.mxu0 %v3045
  %7475 = vmatprep.subr.bf16.mxu0 %v3054
  %7476 = vmatpush1.bf16.msra.mxu0 %v3053
  %7477 = vmatprep.mubr.bf16.mxu0 %v7444
  %7478 = vmatmul.mubr.bf16.gmra.mrb[0].mxu0 %v7443
  %v7479 = vpop.f32.mrb[0].mxu0
  %v7480 = vadd.f32 0.0, %v7479
  %v7481 = vpop.f32.mrb[0].mxu0
  %v7482 = vadd.f32 0.0, %v7481
  %v7483 = vpop.f32.mrb[0].mxu0
  %v7484 = vpop.f32.mrb[0].mxu0
  %7485 = vdwg.mxu0
  %7486 = vmatprep.subr.bf16.mxu0 %v2936
  %7487 = vmatpush1.bf16.msra.mxu0 %v2935
  %7488 = vmatprep.subr.bf16.mxu0 %v2944
  %7489 = vmatpush1.bf16.msra.mxu0 %v2943
  %7490 = vmatprep.subr.bf16.mxu0 %v2952
  %7491 = vmatpush1.bf16.msra.mxu0 %v2951
  %7492 = vmatprep.subr.bf16.mxu0 %v2960
  %7493 = vmatpush1.bf16.msra.mxu0 %v2959
  %7494 = vmatprep.subr.bf16.mxu0 %v2968
  %7495 = vmatpush1.bf16.msra.mxu0 %v2967
  %7496 = vmatprep.subr.bf16.mxu0 %v2976
  %7497 = vmatpush1.bf16.msra.mxu0 %v2975
  %7498 = vmatprep.subr.bf16.mxu0 %v2984
  %7499 = vmatpush1.bf16.msra.mxu0 %v2983
  %7500 = vmatprep.subr.bf16.mxu0 %v2992
  %7501 = vmatpush1.bf16.msra.mxu0 %v2991
  %7502 = vmatprep.subr.bf16.mxu0 %v3000
  %7503 = vmatpush1.bf16.msra.mxu0 %v2999
  %7504 = vmatprep.subr.bf16.mxu0 %v3008
  %7505 = vmatpush1.bf16.msra.mxu0 %v3007
  %7506 = vmatprep.subr.bf16.mxu0 %v3016
  %7507 = vmatpush1.bf16.msra.mxu0 %v3015
  %7508 = vmatprep.subr.bf16.mxu0 %v3024
  %7509 = vmatpush1.bf16.msra.mxu0 %v3023
  %7510 = vmatprep.subr.bf16.mxu0 %v3032
  %7511 = vmatpush1.bf16.msra.mxu0 %v3031
  %7512 = vmatprep.subr.bf16.mxu0 %v3040
  %7513 = vmatpush1.bf16.msra.mxu0 %v3039
  %7514 = vmatprep.subr.bf16.mxu0 %v3048
  %7515 = vmatpush1.bf16.msra.mxu0 %v3047
  %7516 = vmatprep.subr.bf16.mxu0 %v3056
  %7517 = vmatpush1.bf16.msra.mxu0 %v3055
  %7518 = vmatprep.mubr.bf16.mxu0 %v7444
  %7519 = vmatmul.mubr.bf16.gmra.mrb[0].mxu0 %v7443
  %v7520 = vpop.f32.mrb[0].mxu0
  %v7521 = vadd.f32 0.0, %v7520
  %v7522 = vpop.f32.mrb[0].mxu0
  %v7523 = vadd.f32 0.0, %v7522
  %v7524 = vpop.f32.mrb[0].mxu0
  %v7525 = vpop.f32.mrb[0].mxu0
  %7526 = vdwg.mxu0
  %7527 = vmatprep.subr.bf16.mxu0 %v2938
  %7528 = vmatpush1.bf16.msra.mxu0 %v2937
  %7529 = vmatprep.subr.bf16.mxu0 %v2946
  %7530 = vmatpush1.bf16.msra.mxu0 %v2945
  %7531 = vmatprep.subr.bf16.mxu0 %v2954
  %7532 = vmatpush1.bf16.msra.mxu0 %v2953
  %7533 = vmatprep.subr.bf16.mxu0 %v2962
  %7534 = vmatpush1.bf16.msra.mxu0 %v2961
  %7535 = vmatprep.subr.bf16.mxu0 %v2970
  %7536 = vmatpush1.bf16.msra.mxu0 %v2969
  %7537 = vmatprep.subr.bf16.mxu0 %v2978
  %7538 = vmatpush1.bf16.msra.mxu0 %v2977
  %7539 = vmatprep.subr.bf16.mxu0 %v2986
  %7540 = vmatpush1.bf16.msra.mxu0 %v2985
  %7541 = vmatprep.subr.bf16.mxu0 %v2994
  %7542 = vmatpush1.bf16.msra.mxu0 %v2993
  %7543 = vmatprep.subr.bf16.mxu0 %v3002
  %7544 = vmatpush1.bf16.msra.mxu0 %v3001
  %7545 = vmatprep.subr.bf16.mxu0 %v3010
  %7546 = vmatpush1.bf16.msra.mxu0 %v3009
  %7547 = vmatprep.subr.bf16.mxu0 %v3018
  %7548 = vmatpush1.bf16.msra.mxu0 %v3017
  %7549 = vmatprep.subr.bf16.mxu0 %v3026
  %7550 = vmatpush1.bf16.msra.mxu0 %v3025
  %7551 = vmatprep.subr.bf16.mxu0 %v3034
  %7552 = vmatpush1.bf16.msra.mxu0 %v3033
  %7553 = vmatprep.subr.bf16.mxu0 %v3042
  %7554 = vmatpush1.bf16.msra.mxu0 %v3041
  %7555 = vmatprep.subr.bf16.mxu0 %v3050
  %7556 = vmatpush1.bf16.msra.mxu0 %v3049
  %7557 = vmatprep.subr.bf16.mxu0 %v3058
  %7558 = vmatpush1.bf16.msra.mxu0 %v3057
  %7559 = vmatprep.mubr.bf16.mxu0 %v7444
  %7560 = vmatmul.mubr.bf16.gmra.mrb[0].mxu0 %v7443
  %v7561 = vpop.f32.mrb[0].mxu0
  %v7562 = vadd.f32 0.0, %v7561
  %v7563 = vpop.f32.mrb[0].mxu0
  %v7564 = vadd.f32 0.0, %v7563
  %v7565 = vpop.f32.mrb[0].mxu0
  %v7566 = vpop.f32.mrb[0].mxu0
  %7567 = vdwg.mxu0
  %7568 = vmatprep.subr.bf16.mxu0 %v2940
  %7569 = vmatpush1.bf16.msra.mxu0 %v2939
  %7570 = vmatprep.subr.bf16.mxu0 %v2948
  %7571 = vmatpush1.bf16.msra.mxu0 %v2947
  %7572 = vmatprep.subr.bf16.mxu0 %v2956
  %7573 = vmatpush1.bf16.msra.mxu0 %v2955
  %7574 = vmatprep.subr.bf16.mxu0 %v2964
  %7575 = vmatpush1.bf16.msra.mxu0 %v2963
  %7576 = vmatprep.subr.bf16.mxu0 %v2972
  %7577 = vmatpush1.bf16.msra.mxu0 %v2971
  %7578 = vmatprep.subr.bf16.mxu0 %v2980
  %7579 = vmatpush1.bf16.msra.mxu0 %v2979
  %7580 = vmatprep.subr.bf16.mxu0 %v2988
  %7581 = vmatpush1.bf16.msra.mxu0 %v2987
  %7582 = vmatprep.subr.bf16.mxu0 %v2996
  %7583 = vmatpush1.bf16.msra.mxu0 %v2995
  %7584 = vmatprep.subr.bf16.mxu0 %v3004
  %7585 = vmatpush1.bf16.msra.mxu0 %v3003
  %7586 = vmatprep.subr.bf16.mxu0 %v3012
  %7587 = vmatpush1.bf16.msra.mxu0 %v3011
  %7588 = vmatprep.subr.bf16.mxu0 %v3020
  %7589 = vmatpush1.bf16.msra.mxu0 %v3019
  %7590 = vmatprep.subr.bf16.mxu0 %v3028
  %7591 = vmatpush1.bf16.msra.mxu0 %v3027
  %7592 = vmatprep.subr.bf16.mxu0 %v3036
  %7593 = vmatpush1.bf16.msra.mxu0 %v3035
  %7594 = vmatprep.subr.bf16.mxu0 %v3044
  %7595 = vmatpush1.bf16.msra.mxu0 %v3043
  %7596 = vmatprep.subr.bf16.mxu0 %v3052
  %7597 = vmatpush1.bf16.msra.mxu0 %v3051
  %7598 = vmatprep.subr.bf16.mxu0 %v3060
  %7599 = vmatpush1.bf16.msra.mxu0 %v3059
  %7600 = vmatprep.mubr.bf16.mxu0 %v7444
  %7601 = vmatmul.mubr.bf16.gmra.mrb[0].mxu0 %v7443
  %v7602 = vpop.f32.mrb[0].mxu0
  %v7603 = vadd.f32 0.0, %v7602
  %v7604 = vpop.f32.mrb[0].mxu0
  %v7605 = vadd.f32 0.0, %v7604
  %v7606 = vpop.f32.mrb[0].mxu0
  %v7607 = vpop.f32.mrb[0].mxu0
  %7608 = vdwg.mxu0
  %v7609 = vadd.f32 %v7094, %v7480
  %v7610 = vadd.f32 %v7096, %v7482
  %v7611 = vadd.f32 %v7135, %v7521
  %v7612 = vadd.f32 %v7137, %v7523
  %v7613 = vadd.f32 %v7176, %v7562
  %v7614 = vadd.f32 %v7178, %v7564
  %v7615 = vadd.f32 %v7217, %v7603
  %v7616 = vadd.f32 %v7219, %v7605
  %v7617 = vxor.u32 %v7609, 2147483648
  %v7618 = vxor.u32 %v7610, 2147483648
  %v7619 = vmul.f32 %v7617, 1.442695
  %v7620 = vpow.pop %v7619
  %v7621 = vmul.f32 %v7618, 1.442695
  %v7622 = vpow.pop %v7621
  %v7623 = vadd.f32 %v7620, 1.0
  %v7624 = vadd.f32 %v7622, 1.0
  %v7625 = vrcp.pop %v7623
  %v7626 = vmul.f32 1.0, %v7625
  %v7627 = vrcp.pop %v7624
  %v7628 = vmul.f32 1.0, %v7627
  %v7629 = vxor.u32 %v7611, 2147483648
  %v7630 = vxor.u32 %v7612, 2147483648
  %v7631 = vmul.f32 %v7629, 1.442695
  %v7632 = vpow.pop %v7631
  %v7633 = vmul.f32 %v7630, 1.442695
  %v7634 = vpow.pop %v7633
  %v7635 = vadd.f32 %v7632, 1.0
  %v7636 = vadd.f32 %v7634, 1.0
  %v7637 = vrcp.pop %v7635
  %v7638 = vmul.f32 1.0, %v7637
  %v7639 = vrcp.pop %v7636
  %v7640 = vmul.f32 1.0, %v7639
  %v7641 = vtanh.pop %v7613
  %v7642 = vtanh.pop %v7614
  %v7643 = vxor.u32 %v7615, 2147483648
  %v7644 = vxor.u32 %v7616, 2147483648
  %v7645 = vmul.f32 %v7643, 1.442695
  %v7646 = vpow.pop %v7645
  %v7647 = vmul.f32 %v7644, 1.442695
  %v7648 = vpow.pop %v7647
  %v7649 = vadd.f32 %v7646, 1.0
  %v7650 = vadd.f32 %v7648, 1.0
  %v7651 = vrcp.pop %v7649
  %v7652 = vmul.f32 1.0, %v7651
  %v7653 = vrcp.pop %v7650
  %v7654 = vmul.f32 1.0, %v7653
  %v7655 = vmul.f32 %v7638, %v7051
  %v7656 = vmul.f32 %v7640, %v7052
  %v7657 = vmul.f32 %v7626, %v7641
  %v7658 = vmul.f32 %v7628, %v7642
  %v7659 = vadd.f32 %v7655, %v7657
  %v7660 = vadd.f32 %v7656, %v7658
  %v7661 = vtanh.pop %v7659
  %v7662 = vtanh.pop %v7660
  %v7663 = vmul.f32 %v7652, %v7661
  %v7664 = vmul.f32 %v7654, %v7662
  %v7665 = vpack.c.bf16 %v7663, %v7663
  %v7666 = vpack.c.bf16 %v7664, %v7664
  %v7667 = vld [vmem:[%s7] sm:$0xf]
  %v7668 = vld [vmem:[%s7 + $0x4] sm:$0xf]
  %v7669 = vld [vmem:[%s7 + $0x8] sm:$0xf]
  %v7670 = vld [vmem:[%s7 + $0xc] sm:$0xf]
  %v7671 = vld [vmem:[%s7 + $0x10] sm:$0xf]
  %v7672 = vld [vmem:[%s7 + $0x14] sm:$0xf]
  %v7673 = vld [vmem:[%s7 + $0x18] sm:$0xf]
  %v7674 = vld [vmem:[%s7 + $0x1c] sm:$0xf]
  %v7675 = vld [vmem:[%s7 + $0x20] sm:$0xf]
  %v7676 = vld [vmem:[%s7 + $0x24] sm:$0xf]
  %v7677 = vld [vmem:[%s7 + $0x28] sm:$0xf]
  %v7678 = vld [vmem:[%s7 + $0x2c] sm:$0xf]
  %v7679 = vld [vmem:[%s7 + $0x30] sm:$0xf]
  %v7680 = vld [vmem:[%s7 + $0x34] sm:$0xf]
  %v7681 = vld [vmem:[%s7 + $0x38] sm:$0xf]
  %v7682 = vld [vmem:[%s7 + $0x3c] sm:$0xf]
  %v7683 = vld [vmem:[%s7 + $0x40] sm:$0xf]
  %v7684 = vld [vmem:[%s7 + $0x44] sm:$0xf]
  %v7685 = vld [vmem:[%s7 + $0x48] sm:$0xf]
  %v7686 = vld [vmem:[%s7 + $0x4c] sm:$0xf]
  %v7687 = vld [vmem:[%s7 + $0x50] sm:$0xf]
  %v7688 = vld [vmem:[%s7 + $0x54] sm:$0xf]
  %v7689 = vld [vmem:[%s7 + $0x58] sm:$0xf]
  %v7690 = vld [vmem:[%s7 + $0x5c] sm:$0xf]
  %v7691 = vld [vmem:[%s7 + $0x60] sm:$0xf]
  %v7692 = vld [vmem:[%s7 + $0x64] sm:$0xf]
  %v7693 = vld [vmem:[%s7 + $0x68] sm:$0xf]
  %v7694 = vld [vmem:[%s7 + $0x6c] sm:$0xf]
  %v7695 = vld [vmem:[%s7 + $0x70] sm:$0xf]
  %v7696 = vld [vmem:[%s7 + $0x74] sm:$0xf]
  %v7697 = vld [vmem:[%s7 + $0x78] sm:$0xf]
  %v7698 = vld [vmem:[%s7 + $0x7c] sm:$0xf]
  %v7699 = vld [vmem:[%s8] sm:$0x1]
  %v7701 = vlaneseq
  %v7702 = vshrl.u32 %v7701, 7
  %v7703 = vsub.s32 0, %v7702
  %v7704 = vrot.slane %v7699, %v7703
  %v7738 = vunpack.c.l.b16 %v7667
  %v7739 = vunpack.c.l.b16 %v7668
  %v7740 = vunpack.c.l.b16 %v7669
  %v7741 = vunpack.c.l.b16 %v7670
  %v7742 = vunpack.c.l.b16 %v7671
  %v7743 = vunpack.c.l.b16 %v7672
  %v7744 = vunpack.c.l.b16 %v7673
  %v7745 = vunpack.c.l.b16 %v7674
  %v7746 = vunpack.c.l.b16 %v7675
  %v7747 = vunpack.c.l.b16 %v7676
  %v7748 = vunpack.c.l.b16 %v7677
  %v7749 = vunpack.c.l.b16 %v7678
  %v7750 = vunpack.c.l.b16 %v7679
  %v7751 = vunpack.c.l.b16 %v7680
  %v7752 = vunpack.c.l.b16 %v7681
  %v7753 = vunpack.c.l.b16 %v7682
  %v7754 = vunpack.c.l.b16 %v7683
  %v7755 = vunpack.c.l.b16 %v7684
  %v7756 = vunpack.c.l.b16 %v7685
  %v7757 = vunpack.c.l.b16 %v7686
  %v7758 = vunpack.c.l.b16 %v7687
  %v7759 = vunpack.c.l.b16 %v7688
  %v7760 = vunpack.c.l.b16 %v7689
  %v7761 = vunpack.c.l.b16 %v7690
  %v7762 = vunpack.c.l.b16 %v7691
  %v7763 = vunpack.c.l.b16 %v7692
  %v7764 = vunpack.c.l.b16 %v7693
  %v7765 = vunpack.c.l.b16 %v7694
  %v7766 = vunpack.c.l.b16 %v7695
  %v7767 = vunpack.c.l.b16 %v7696
  %v7768 = vunpack.c.l.b16 %v7697
  %v7769 = vunpack.c.l.b16 %v7698
  %v7770 = vpack.c.b16 %v7739, %v7738
  %v7771 = vpack.c.b16 %v7741, %v7740
  %v7772 = vpack.c.b16 %v7743, %v7742
  %v7773 = vpack.c.b16 %v7745, %v7744
  %v7774 = vpack.c.b16 %v7747, %v7746
  %v7775 = vpack.c.b16 %v7749, %v7748
  %v7776 = vpack.c.b16 %v7751, %v7750
  %v7777 = vpack.c.b16 %v7753, %v7752
  %v7778 = vpack.c.b16 %v7755, %v7754
  %v7779 = vpack.c.b16 %v7757, %v7756
  %v7780 = vpack.c.b16 %v7759, %v7758
  %v7781 = vpack.c.b16 %v7761, %v7760
  %v7782 = vpack.c.b16 %v7763, %v7762
  %v7783 = vpack.c.b16 %v7765, %v7764
  %v7784 = vpack.c.b16 %v7767, %v7766
  %v7785 = vpack.c.b16 %v7769, %v7768
  %7802 = vmatprep.subr.bf16.mxu0 0
  %7803 = vmatpush1.bf16.msra.mxu0 %v7770
  %7804 = vmatprep.subr.bf16.mxu0 0
  %7805 = vmatpush1.bf16.msra.mxu0 %v7771
  %7806 = vmatprep.subr.bf16.mxu0 0
  %7807 = vmatpush1.bf16.msra.mxu0 %v7772
  %7808 = vmatprep.subr.bf16.mxu0 0
  %7809 = vmatpush1.bf16.msra.mxu0 %v7773
  %7810 = vmatprep.subr.bf16.mxu0 0
  %7811 = vmatpush1.bf16.msra.mxu0 %v7774
  %7812 = vmatprep.subr.bf16.mxu0 0
  %7813 = vmatpush1.bf16.msra.mxu0 %v7775
  %7814 = vmatprep.subr.bf16.mxu0 0
  %7815 = vmatpush1.bf16.msra.mxu0 %v7776
  %7816 = vmatprep.subr.bf16.mxu0 0
  %7817 = vmatpush1.bf16.msra.mxu0 %v7777
  %7818 = vmatprep.subr.bf16.mxu0 0
  %7819 = vmatpush1.bf16.msra.mxu0 %v7778
  %7820 = vmatprep.subr.bf16.mxu0 0
  %7821 = vmatpush1.bf16.msra.mxu0 %v7779
  %7822 = vmatprep.subr.bf16.mxu0 0
  %7823 = vmatpush1.bf16.msra.mxu0 %v7780
  %7824 = vmatprep.subr.bf16.mxu0 0
  %7825 = vmatpush1.bf16.msra.mxu0 %v7781
  %7826 = vmatprep.subr.bf16.mxu0 0
  %7827 = vmatpush1.bf16.msra.mxu0 %v7782
  %7828 = vmatprep.subr.bf16.mxu0 0
  %7829 = vmatpush1.bf16.msra.mxu0 %v7783
  %7830 = vmatprep.subr.bf16.mxu0 0
  %7831 = vmatpush1.bf16.msra.mxu0 %v7784
  %7832 = vmatprep.subr.bf16.mxu0 0
  %7833 = vmatpush1.bf16.msra.mxu0 %v7785
  %7834 = vmatprep.mubr.bf16.mxu0 %v7666
  %7835 = vmatmul.mubr.bf16.gmra.mrb[0].mxu0 %v7665
  %v7836 = vpop.f32.mrb[0].mxu0
  %v7837 = vadd.f32 %v7704, %v7836
  %v7838 = vpop.f32.mrb[0].mxu0
  %v7839 = vpop.f32.mrb[0].mxu0
  %v7840 = vpop.f32.mrb[0].mxu0
  %7841 = vdwg.mxu0
  %7842 = vst [vmem:[%s9] sm:$0xff] %v7837
  // Predicated region
  $region38: #{lstm_shakespeare_forward.1} parent=0 // pred_check
    _
  $region39: #{lstm_shakespeare_forward.1} parent=0 // pred_check_branch
    %7844 = sbr.rel (0) target = $region41
  $region40: #{lstm_shakespeare_forward.1} parent=0 // pred_region
    _
  $region41: #{lstm_shakespeare_forward.1} parent=0 // pred_fallthru
    _
  // Predicated region
  $region42: #{lstm_shakespeare_forward.1} parent=0 // pred_check
    _
  $region43: #{lstm_shakespeare_forward.1} parent=0 // pred_check_branch
    %7846 = sbr.rel (0) target = $region45
  $region44: #{lstm_shakespeare_forward.1} parent=0 // pred_region
    _
  $region45: #{lstm_shakespeare_forward.1} parent=0 // pred_fallthru
    _

</llo_original>
